<compile_context>
chip_gen: v6e
topology: v6e:2x2x1
jax: 0.10.0
libtpu: 0.0.40
codegen_flags: <defaults>
</compile_context>

<pallas_src>
import functools
import numpy as np

import jax
import jax.numpy as jnp
from jax.experimental import pallas as pl
from jax.experimental.pallas import tpu as pltpu

_BN_EPS = 1e-5


def _detect_vmem_limit():
    """Generation-dependent scoped-VMEM budget (~96 MiB v5e/v6e, ~48 MiB v7x)."""
    try:
        cap = getattr(pltpu.get_tpu_info(), "vmem_capacity_bytes", None)
        if cap:
            return int(min(cap * 3 // 4, 100 * 1024 * 1024))
    except Exception:
        pass
    return 32 * 1024 * 1024          # conservative fallback, proven safe


_VMEM_LIMIT = _detect_vmem_limit()


def _compiler_params(*sem):
    return pltpu.CompilerParams(dimension_semantics=sem,
                                vmem_limit_bytes=_VMEM_LIMIT)


def _apply_act(x, act):
    if act == "elu":                                       # ELU(alpha=1)
        return jnp.where(x > 0, x, jnp.exp(jnp.minimum(x, 0.0)) - 1.0)
    if act == "sigmoid":
        # EUP reciprocal rides a free VLIW slot; ~1e-3 rel. error (inference ok).
        return pl.reciprocal(1.0 + jnp.exp(-x), approx=True)
    return x


# --------------------------------------------------------------------------- #
# Tile choosers
# --------------------------------------------------------------------------- #
def _choose_row_tile(h, wp, cgs, cout, out_bytes, k_total):
    """Largest row tile R (divisor of H) whose working set fits the VMEM budget."""
    budget = _VMEM_LIMIT // 2          # headroom for compiler temporaries

    def est(r):
        lwin = (r + 2) * wp + 2
        ltile = r * wp
        in_b = 2 * sum(cg * lwin * 2 for cg in cgs)   # bf16 windows, double-buffered
        out_b = 2 * cout * ltile * out_bytes          # double-buffered output tile
        col_b = k_total * ltile * 2                   # stacked-K scratch (bf16)
        return in_b + out_b + col_b

    r_best = 1
    for r in range(h, 0, -1):
        if h % r == 0 and est(r) <= budget:
            r_best = r
            break
    # Expose a second (non-batch) parallel tile for v7x's two TensorCores when
    # the per-tile output span stays lane-dense.
    if r_best == h and h % 2 == 0 and (h // 2) * wp >= 512:
        r_best = h // 2
    return r_best


def _pick_lane_tile(hw, max_tile=4096):
    """Largest 128-aligned divisor of hw <= max_tile (or hw itself if small)."""
    if hw <= max_tile:
        return hw
    start = max_tile - (max_tile % 128)
    for t in range(start, 0, -128):
        if hw % t == 0:
            return t
    return hw      # no 128-aligned divisor: one whole-row tile (correct, rare)


# --------------------------------------------------------------------------- #
# Pallas kernels
# --------------------------------------------------------------------------- #
def _make_conv3x3_kernel(cgs, taps, ltile, act, out_scale):
    """Reflection-padded 3x3 conv, one stacked-K matmul per row tile.

    refs = [win_0 .. win_{G-1}, w, bias, out, col(scratch)]
      win_g : (1, 1, Cg, Lwin)   bf16  padded+windowed row slab for this tile
      w     : (Cout, K)          bf16  BN-folded, tap/group-stacked weights
      bias  : (Cout, 1)          f32
      out   : (1, 1, Cout, Ltile)      lane-dense flat output tile
      col   : (K, Ltile)         bf16  VMEM im2col scratch (never in HBM)
    """
    n_groups = len(cgs)

    def kernel(*refs):
        w_ref = refs[n_groups]
        b_ref = refs[n_groups + 1]
        o_ref = refs[n_groups + 2]
        col_ref = refs[n_groups + 3]

        off = 0
        for g, cg in enumerate(cgs):            # channel-concat + 9 taps fused here
            x_ref = refs[g]
            for s in taps:
                col_ref[off:off + cg, :] = x_ref[0, 0, :, s:s + ltile]
                off += cg

        acc = jnp.dot(w_ref[...], col_ref[...],
                      preferred_element_type=jnp.float32)        # one big-K matmul
        acc = _apply_act(acc + b_ref[...], act)
        if not (isinstance(out_scale, (int, float)) and out_scale == 1.0):
            acc = acc * out_scale                                 # disp_scale fused
        o_ref[0, 0] = acc.astype(o_ref.dtype)

    return kernel


def _make_conv1x1_kernel(n_groups, act):
    """1x1 conv (+folded BN, + activation) over (Cg, tile) slabs, concat fused."""
    def kernel(*refs):
        b_ref = refs[2 * n_groups]
        o_ref = refs[2 * n_groups + 1]
        acc = None
        for g in range(n_groups):
            xg = refs[2 * g][0].astype(jnp.bfloat16)
            part = jnp.dot(refs[2 * g + 1][...], xg,
                           preferred_element_type=jnp.float32)
            acc = part if acc is None else acc + part
        o_ref[0] = _apply_act(acc + b_ref[...], act).astype(o_ref.dtype)
    return kernel


def _make_se_excite_kernel(inv_hw):
    """SE squeeze + excitation: tiled channel-sum, tiny FCs at the last tile."""
    def kernel(y_ref, w1_ref, w2_ref, e_ref, acc_ref):
        t = pl.program_id(1)

        @pl.when(t == 0)
        def _():
            acc_ref[...] = jnp.zeros_like(acc_ref)

        acc_ref[...] += jnp.sum(y_ref[0].astype(jnp.float32), axis=1,
                                keepdims=True)                       # (C, 1)

        @pl.when(t == pl.num_programs(1) - 1)
        def _():
            m = acc_ref[...] * inv_hw                                # mean (C,1)
            hid = jnp.maximum(jnp.dot(w1_ref[...], m,
                                      preferred_element_type=jnp.float32), 0.0)
            z = jnp.dot(w2_ref[...], hid, preferred_element_type=jnp.float32)
            e_ref[0] = pl.reciprocal(1.0 + jnp.exp(-z), approx=True)  # sigmoid
    return kernel


def _make_se_scale_kernel():
    def kernel(y_ref, e_ref, o_ref):
        o_ref[0] = y_ref[0].astype(jnp.float32) * e_ref[0]
    return kernel


def _make_bilinear_kernel(c, h):
    """Separable bilinear (align_corners=True): out_c = Ah @ (X @ Aw^T).

    The W-direction matmul is batched over channels (one lane-dense
    (C*H, W)@(W, Wo) matmul); only the H-direction stays per-channel."""
    def kernel(x_ref, ah_ref, awt_ref, o_ref):
        t = jnp.dot(x_ref[0], awt_ref[...],
                    preferred_element_type=jnp.float32)          # (C*H, Wo)
        for ci in range(c):                                      # small C, unrolled
            r = jnp.dot(ah_ref[...], t[ci * h:(ci + 1) * h, :],
                        preferred_element_type=jnp.float32)      # (Ho, Wo)
            o_ref[0, ci] = r.astype(o_ref.dtype)
    return kernel
    # TODO(synk): tile the output rows for very large upsampled resolutions.


# --------------------------------------------------------------------------- #
# Wrappers
# --------------------------------------------------------------------------- #
def _fold_bn(w, b, bn):
    """Fold inference BatchNorm into conv weight/bias."""
    gamma, beta, mean, var = bn
    scale = gamma * jax.lax.rsqrt(var + _BN_EPS)
    return w * scale[:, None, None, None], (b - mean) * scale + beta


def conv3x3(groups, bias, *, act="elu", out_scale=1.0,
            out_dtype=jnp.float32, row_tile=None):
    """Reflection-padded 3x3 conv; `groups` = [(x, w), ...] fuses the channel
    concat.  x: (N, Cg, H, W), w: (Cout, Cg, 3, 3) (BN already folded),
    bias: (Cout,).  Returns (N, Cout, H, W) with dtype `out_dtype`."""
    n, _, h, w_sp = groups[0][0].shape
    wp = w_sp + 2
    cout = int(bias.shape[0])
    cgs = [int(g[0].shape[1]) for g in groups]
    k_total = 9 * sum(cgs)
    out_bytes = jnp.dtype(out_dtype).itemsize

    r = row_tile if row_tile is not None else _choose_row_tile(
        h, wp, cgs, cout, out_bytes, k_total)
    if h % r != 0:
        raise ValueError(f"row_tile {r} must divide H={h}")
    t = h // r
    lwin = (r + 2) * wp + 2       # per-tile flat window (+2 tail zeros for taps)
    ltile = r * wp                # per-tile flat output span

    args, in_specs, w_parts = [], [], []
    for xg, wt in groups:
        cg = xg.shape[1]
        # reflect pad + overlapping row windows + bf16 cast: one fused XLA producer.
        xp = jnp.pad(xg, ((0, 0), (0, 0), (1, 1), (1, 1)), mode="reflect")
        win = jnp.stack([xp[:, :, j * r:j * r + r + 2, :] for j in range(t)],
                        axis=1)                                  # (N,T,Cg,r+2,Wp)
        win = win.reshape(n, t, cg, (r + 2) * wp)
        win = jnp.pad(win, ((0, 0), (0, 0), (0, 0), (0, 2))).astype(jnp.bfloat16)
        args.append(win)
        in_specs.append(pl.BlockSpec((1, 1, cg, lwin), lambda i, j: (i, j, 0, 0)))
        # (Cout,Cg,3,3) -> (Cout, 9*Cg), tap-major then channel (matches scratch order)
        w_parts.append(wt.transpose(0, 2, 3, 1).reshape(cout, 9 * cg))

    w_stacked = jnp.concatenate(w_parts, axis=1).astype(jnp.bfloat16)  # (Cout, K)
    args.append(w_stacked)
    in_specs.append(pl.BlockSpec((cout, k_total), lambda i, j: (0, 0)))
    args.append(bias.reshape(cout, 1).astype(jnp.float32))
    in_specs.append(pl.BlockSpec((cout, 1), lambda i, j: (0, 0)))

    taps = tuple(dy * wp + dx for dy in range(3) for dx in range(3))
    out_flat = pl.pallas_call(
        _make_conv3x3_kernel(cgs, taps, ltile, act, out_scale),
        out_shape=jax.ShapeDtypeStruct((n, t, cout, ltile), out_dtype),
        grid=(n, t),
        in_specs=in_specs,
        out_specs=pl.BlockSpec((1, 1, cout, ltile), lambda i, j: (i, j, 0, 0)),
        scratch_shapes=[pltpu.VMEM((k_total, ltile), jnp.bfloat16)],
        compiler_params=_compiler_params("parallel", "parallel"),
    )(*args)

    # (N,T,Cout,R*Wp) -> (N,Cout,H,Wp) -> drop the 2 pad cols.  The transpose is a
    # no-op when T==1 and the slice fuses into the consumer's producer pass.
    out = out_flat.transpose(0, 2, 1, 3).reshape(n, cout, h, wp)
    return out[:, :, :, :w_sp]
    # TODO(synk): fuse the PixelShuffle permutation of the up-conv output into
    # these stores (strided sub-pixel interleave) instead of an XLA transpose.


def conv1x1(groups, bias, *, act="elu", out_dtype=jnp.bfloat16):
    """1x1 conv with fused channel-group concat; tiled over (batch, HW)."""
    n, _, h, w_sp = groups[0][0].shape
    hw = h * w_sp
    cout = int(bias.shape[0])
    tile = _pick_lane_tile(hw)

    args, in_specs = [], []
    for xg, wt in groups:
        cg = xg.shape[1]
        args.append(xg.reshape(n, cg, hw))                   # free reshape, no cast
        args.append(wt.reshape(cout, cg).astype(jnp.bfloat16))
        in_specs.append(pl.BlockSpec((1, cg, tile), lambda i, j: (i, 0, j)))
        in_specs.append(pl.BlockSpec((cout, cg), lambda i, j: (0, 0)))
    args.append(bias.reshape(cout, 1).astype(jnp.float32))
    in_specs.append(pl.BlockSpec((cout, 1), lambda i, j: (0, 0)))

    out = pl.pallas_call(
        _make_conv1x1_kernel(len(groups), act),
        out_shape=jax.ShapeDtypeStruct((n, cout, hw), out_dtype),
        grid=(n, hw // tile),
        in_specs=in_specs,
        out_specs=pl.BlockSpec((1, cout, tile), lambda i, j: (i, 0, j)),
        compiler_params=_compiler_params("parallel", "parallel"),
    )(*args)
    return out.reshape(n, cout, h, w_sp)
    # TODO(synk): the skip-path bilinear upsample commutes with this 1x1 conv
    # and could be fused here so skip_up never hits HBM.


def squeeze_excite(y, w1, w2):
    """SELayer(fc=True): y (N,C,H,W); w1 (C//r, C); w2 (C, C//r) (torch layout)."""
    n, c, h, w_sp = y.shape
    hw = h * w_sp
    tile = _pick_lane_tile(hw)
    grid = (n, hw // tile)
    yf = y.reshape(n, c, hw)

    e = pl.pallas_call(                                   # pass 1: squeeze + excite
        _make_se_excite_kernel(1.0 / hw),
        out_shape=jax.ShapeDtypeStruct((n, c, 1), jnp.float32),
        grid=grid,
        in_specs=[pl.BlockSpec((1, c, tile), lambda i, j: (i, 0, j)),
                  pl.BlockSpec(w1.shape, lambda i, j: (0, 0)),
                  pl.BlockSpec(w2.shape, lambda i, j: (0, 0))],
        out_specs=pl.BlockSpec((1, c, 1), lambda i, j: (i, 0, 0)),
        scratch_shapes=[pltpu.VMEM((c, 1), jnp.float32)],
        compiler_params=_compiler_params("parallel", "arbitrary"),
    )(yf, w1.astype(jnp.float32), w2.astype(jnp.float32))

    out = pl.pallas_call(                                 # pass 2: rescale
        _make_se_scale_kernel(),
        out_shape=jax.ShapeDtypeStruct((n, c, hw), jnp.float32),
        grid=grid,
        in_specs=[pl.BlockSpec((1, c, tile), lambda i, j: (i, 0, j)),
                  pl.BlockSpec((1, c, 1), lambda i, j: (i, 0, 0))],
        out_specs=pl.BlockSpec((1, c, tile), lambda i, j: (i, 0, j)),
        compiler_params=_compiler_params("parallel", "parallel"),
    )(yf, e)
    return out.reshape(n, c, h, w_sp)


def _interp_matrix(in_size, out_size):
    """Row-interpolation matrix for bilinear, align_corners=True (exact)."""
    a = np.zeros((out_size, in_size), dtype=np.float32)
    if in_size == 1:
        a[:, 0] = 1.0
        return jnp.asarray(a)
    src = np.arange(out_size, dtype=np.float64) * (in_size - 1) / (out_size - 1)
    lo = np.clip(np.floor(src).astype(np.int64), 0, in_size - 2)
    frac = src - lo
    a[np.arange(out_size), lo] = (1.0 - frac).astype(np.float32)
    a[np.arange(out_size), lo + 1] += frac.astype(np.float32)
    return jnp.asarray(a)


def bilinear_upsample(x, scale, *, out_dtype=jnp.bfloat16):
    """F.interpolate(scale_factor=scale, mode='bilinear', align_corners=True)."""
    n, c, h, w_sp = x.shape
    ho, wo = h * scale, w_sp * scale
    ah = _interp_matrix(h, ho)            # (Ho, H)
    awt = _interp_matrix(w_sp, wo).T      # (W, Wo)
    xf = x.reshape(n, c * h, w_sp)        # free reshape: batch channels into rows
    return pl.pallas_call(
        _make_bilinear_kernel(c, h),
        out_shape=jax.ShapeDtypeStruct((n, c, ho, wo), out_dtype),
        grid=(n,),
        in_specs=[pl.BlockSpec((1, c * h, w_sp), lambda i: (i, 0, 0)),
                  pl.BlockSpec((ho, h), lambda i: (0, 0)),
                  pl.BlockSpec((w_sp, wo), lambda i: (0, 0))],
        out_specs=pl.BlockSpec((1, c, ho, wo), lambda i: (i, 0, 0, 0)),
        compiler_params=_compiler_params("parallel"),
    )(xf, ah, awt)


def pixel_shuffle(x, r):
    """nn.PixelShuffle(r): (N, C*r*r, H, W) -> (N, C, H*r, W*r).  XLA transpose
    on bf16 data (half the bytes of v1)."""
    n, crr, h, w = x.shape
    c = crr // (r * r)
    x = x.reshape(n, c, r, r, h, w).transpose(0, 1, 4, 2, 5, 3)
    return x.reshape(n, c, h * r, w * r)
    # TODO(synk): fuse this permutation into the up-conv output stores.


# --------------------------------------------------------------------------- #
# DecoderStage parameters + forward
# --------------------------------------------------------------------------- #
def init_decoder_params(key, *, in_channels, feature_in_channels, skip_in_channels,
                        upsample_channels, out_channels, skip_out_channels,
                        disp_channels=2, scale=2, reduction=16):
    ks = iter(jax.random.split(key, 32))

    def nrm(shape, s=0.1):
        return s * jax.random.normal(next(ks), shape, dtype=jnp.float32)

    def bn(c):
        return (1.0 + 0.1 * jax.random.normal(next(ks), (c,), jnp.float32),
                0.1 * jax.random.normal(next(ks), (c,), jnp.float32),
                0.1 * jax.random.normal(next(ks), (c,), jnp.float32),
                1.0 + 0.1 * jnp.abs(jax.random.normal(next(ks), (c,), jnp.float32)))

    up_out = upsample_channels * scale * scale
    se_in = feature_in_channels + skip_in_channels
    c_red = skip_out_channels // reduction
    iconv_in = upsample_channels + skip_out_channels + disp_channels

    return dict(
        up_w=nrm((up_out, in_channels, 3, 3)), up_b=nrm((up_out,), 0.05), up_bn=bn(up_out),
        se_w=nrm((skip_out_channels, se_in, 1, 1)), se_b=nrm((skip_out_channels,), 0.05),
        se_bn=bn(skip_out_channels),
        se_fc1=nrm((c_red, skip_out_channels)),
        se_fc2=nrm((skip_out_channels, c_red)),
        ic_w=nrm((out_channels, iconv_in, 3, 3)), ic_b=nrm((out_channels,), 0.05),
        ic_bn=bn(out_channels),
        disp_w=nrm((disp_channels, out_channels, 3, 3)), disp_b=nrm((disp_channels,), 0.05),
    )


def decoder_stage_forward(params, x, feature_map, skip, disparity, *,
                          scale_factor=2, disp_scale=1.0):
    """Mirrors DecoderStage.forward (batch_norm=True, fc=True, concat_disp=True,
    calculate_disp=True).  Returns (out, skip_out, disparity_out) in f32;
    internal activations travel as bf16 (documented inference tolerance)."""
    up_w, up_b = _fold_bn(params["up_w"], params["up_b"], params["up_bn"])
    se_w, se_b = _fold_bn(params["se_w"], params["se_b"], params["se_bn"])
    ic_w, ic_b = _fold_bn(params["ic_w"], params["ic_b"], params["ic_bn"])

    feat_c = feature_map.shape[1]

    # skip path: bilinear upsample -> (concat fused) 1x1 conv+BN+ELU -> SE
    skip_up = bilinear_upsample(skip, scale_factor)                       # bf16
    y = conv1x1([(feature_map, se_w[:, :feat_c]), (skip_up, se_w[:, feat_c:])],
                se_b, act="elu", out_dtype=jnp.bfloat16)
    skip_out = squeeze_excite(y, params["se_fc1"], params["se_fc2"])      # f32

    # main path: refl-pad 3x3 conv+BN+ELU (stacked-K) -> PixelShuffle
    xu = conv3x3([(x, up_w)], up_b, act="elu", out_dtype=jnp.bfloat16)
    xu = pixel_shuffle(xu, scale_factor)                                  # bf16

    disp_up = bilinear_upsample(disparity, scale_factor)                  # bf16

    # iconv: 3-way channel concat fused into one stacked-K matmul
    c0 = xu.shape[1]
    c1 = c0 + skip_out.shape[1]
    out = conv3x3([(xu, ic_w[:, :c0]),
                   (skip_out, ic_w[:, c0:c1]),
                   (disp_up, ic_w[:, c1:])],
                  ic_b, act="elu", out_dtype=jnp.float32)

    # disparity head: refl-pad 3x3 conv -> sigmoid * disp_scale (fused in-kernel)
    disp_out = conv3x3([(out, params["disp_w"])], params["disp_b"],
                       act="sigmoid", out_scale=disp_scale, out_dtype=jnp.float32)
    return out, skip_out, disp_out


# --------------------------------------------------------------------------- #
if __name__ == "__main__":
    key = jax.random.PRNGKey(0)
    kx, kf, ks, kd, kp = jax.random.split(key, 5)

    N, H, W = 2, 8, 8
    in_ch, feat_ch, skip_ch = 8, 6, 6
    up_ch, out_ch, skip_out_ch, disp_ch = 8, 16, 32, 2
    scale = 2

    params = init_decoder_params(
        kp, in_channels=in_ch, feature_in_channels=feat_ch, skip_in_channels=skip_ch,
        upsample_channels=up_ch, out_channels=out_ch, skip_out_channels=skip_out_ch,
        disp_channels=disp_ch, scale=scale)

    x = jax.random.normal(kx, (N, in_ch, H, W), jnp.float32)
    feature_map = jax.random.normal(kf, (N, feat_ch, H * scale, W * scale), jnp.float32)
    skip = jax.random.normal(ks, (N, skip_ch, H, W), jnp.float32)
    disparity = jax.nn.sigmoid(jax.random.normal(kd, (N, disp_ch, H, W), jnp.float32))

    fwd = jax.jit(functools.partial(decoder_stage_forward,
                                    scale_factor=scale, disp_scale=1.0))
    out, skip_out, disp_out = fwd(params, x, feature_map, skip, disparity)
    jax.block_until_ready((out, skip_out, disp_out))

    assert out.shape == (N, out_ch, H * scale, W * scale)
    assert skip_out.shape == (N, skip_out_ch, H * scale, W * scale)
    assert disp_out.shape == (N, disp_ch, H * scale, W * scale)
    assert bool(jnp.all(jnp.isfinite(out)))
    assert bool(jnp.all(jnp.isfinite(skip_out)))
    assert bool(jnp.all(jnp.isfinite(disp_out)))

    # Exercise the row-tiled (T>1) conv3x3 path and check it matches the
    # single-tile result (same math, different grid).
    conv_t1 = jax.jit(lambda a: conv3x3([(a, params["disp_w"])], params["disp_b"],
                                        act="sigmoid", out_dtype=jnp.float32))
    conv_t4 = jax.jit(lambda a: conv3x3([(a, params["disp_w"])], params["disp_b"],
                                        act="sigmoid", out_dtype=jnp.float32,
                                        row_tile=4))
    d1 = conv_t1(out)
    d4 = conv_t4(out)
    jax.block_until_ready((d1, d4))
    assert bool(jnp.allclose(d1, d4, atol=1e-3, rtol=1e-3))

    print("KERNEL_OK")
</pallas_src>

<mosaic_0001>
module attributes {stable_mosaic.version = 11 : i64} {
  func.func @kernel(%arg0: i32, %arg1: i32, %arg2: memref<1x32x256xbf16, #tpu.memory_space<vmem>>, %arg3: memref<1x32x1xf32, #tpu.memory_space<vmem>>, %arg4: memref<1x32x256xf32, #tpu.memory_space<vmem>>) attributes {dimension_semantics = [#tpu.dimension_semantics<parallel>, #tpu.dimension_semantics<parallel>], iteration_bounds = array<i64: 2, 1>, scalar_prefetch = 0 : i64, scratch_operands = 0 : i64, tpu.core_type = #tpu.core_type<tc>, window_params = [{transform_indices = @transform_0, window_bounds = array<i64: 1, 32, 256>}, {transform_indices = @transform_1, window_bounds = array<i64: 1, 32, 1>}, {transform_indices = @transform_2, window_bounds = array<i64: 1, 32, 256>}]} {
    %c0 = arith.constant 0 : index
    %c0_0 = arith.constant 0 : index
    %c0_1 = arith.constant 0 : index
    %0 = vector.load %arg2[%c0, %c0_0, %c0_1] : memref<1x32x256xbf16, #tpu.memory_space<vmem>>, vector<1x32x256xbf16>
    %1 = vector.shape_cast %0 : vector<1x32x256xbf16> to vector<32x256xbf16>
    %2 = arith.extf %1 : vector<32x256xbf16> to vector<32x256xf32>
    %c0_2 = arith.constant 0 : index
    %c0_3 = arith.constant 0 : index
    %c0_4 = arith.constant 0 : index
    %3 = vector.load %arg3[%c0_2, %c0_3, %c0_4] : memref<1x32x1xf32, #tpu.memory_space<vmem>>, vector<1x32x1xf32>
    %4 = vector.shape_cast %3 : vector<1x32x1xf32> to vector<32x1xf32>
    %5 = vector.broadcast %4 : vector<32x1xf32> to vector<32x256xf32>
    %6 = arith.mulf %2, %5 : vector<32x256xf32>
    %c0_5 = arith.constant 0 : index
    %c0_6 = arith.constant 0 : index
    %c0_7 = arith.constant 0 : index
    %7 = vector.load %arg4[%c0_5, %c0_6, %c0_7] : memref<1x32x256xf32, #tpu.memory_space<vmem>>, vector<1x32x256xf32>
    %8 = vector.shape_cast %7 : vector<1x32x256xf32> to vector<32x256xf32>
    %9 = vector.shape_cast %6 : vector<32x256xf32> to vector<1x32x256xf32>
    tpu.vector_store %arg4[%c0_5, %c0_6, %c0_7], %9 {strides = array<i32>} : memref<1x32x256xf32, #tpu.memory_space<vmem>>, vector<1x32x256xf32>,
    return
  }
  func.func @transform_0(%arg0: i32, %arg1: i32) -> (i32, i32, i32) {
    %c0_i32 = arith.constant 0 : i32
    %c0_i32_0 = arith.constant 0 : i32
    return %arg0, %c0_i32, %arg1 : i32, i32, i32
  }
  func.func @transform_1(%arg0: i32, %arg1: i32) -> (i32, i32, i32) {
    %c0_i32 = arith.constant 0 : i32
    %c0_i32_0 = arith.constant 0 : i32
    %c0_i32_1 = arith.constant 0 : i32
    return %arg0, %c0_i32, %c0_i32_0 : i32, i32, i32
  }
  func.func @transform_2(%arg0: i32, %arg1: i32) -> (i32, i32, i32) {
    %c0_i32 = arith.constant 0 : i32
    %c0_i32_0 = arith.constant 0 : i32
    return %arg0, %c0_i32, %arg1 : i32, i32, i32
  }
}

module attributes {stable_mosaic.version = 11 : i64} {
  func.func @kernel(%arg0: i32, %arg1: memref<1x48x8xf32, #tpu.memory_space<vmem>>, %arg2: memref<16x8xf32, #tpu.memory_space<vmem>>, %arg3: memref<8x16xf32, #tpu.memory_space<vmem>>, %arg4: memref<1x6x16x16xbf16, #tpu.memory_space<vmem>>) attributes {dimension_semantics = [#tpu.dimension_semantics<parallel>], iteration_bounds = array<i64: 2>, scalar_prefetch = 0 : i64, scratch_operands = 0 : i64, tpu.core_type = #tpu.core_type<tc>, window_params = [{transform_indices = @transform_0, window_bounds = array<i64: 1, 48, 8>}, {pipeline_mode = #tpu.pipeline_mode<synchronous>, transform_indices = @transform_1, window_bounds = array<i64: 16, 8>}, {pipeline_mode = #tpu.pipeline_mode<synchronous>, transform_indices = @transform_2, window_bounds = array<i64: 8, 16>}, {transform_indices = @transform_3, window_bounds = array<i64: 1, 6, 16, 16>}]} {
    %c0 = arith.constant 0 : index
    %c0_0 = arith.constant 0 : index
    %c0_1 = arith.constant 0 : index
    %0 = vector.load %arg1[%c0, %c0_0, %c0_1] : memref<1x48x8xf32, #tpu.memory_space<vmem>>, vector<1x48x8xf32>
    %1 = vector.shape_cast %0 : vector<1x48x8xf32> to vector<48x8xf32>
    %c0_2 = arith.constant 0 : index
    %c0_3 = arith.constant 0 : index
    %2 = vector.load %arg3[%c0_2, %c0_3] : memref<8x16xf32, #tpu.memory_space<vmem>>, vector<8x16xf32>
    %cst = arith.constant dense<0.000000e+00> : vector<48x16xf32>
    %3 = tpu.matmul %1, %2, %cst {dimension_numbers = #tpu.dot_dimension_numbers<[1], [0], [0], [1], [0, 0, 1, 1], [], []>} : vector<48x8xf32>, vector<8x16xf32>, vector<48x16xf32> -> vector<48x16xf32>
    %c0_4 = arith.constant 0 : index
    %c0_5 = arith.constant 0 : index
    %4 = vector.load %arg2[%c0_4, %c0_5] : memref<16x8xf32, #tpu.memory_space<vmem>>, vector<16x8xf32>
    %5 = vector.extract_strided_slice %3 {offsets = [0, 0], sizes = [8, 16], strides = [1, 1]} : vector<48x16xf32> to vector<8x16xf32>
    %cst_6 = arith.constant dense<0.000000e+00> : vector<16x16xf32>
    %6 = tpu.matmul %4, %5, %cst_6 {dimension_numbers = #tpu.dot_dimension_numbers<[1], [0], [0], [1], [0, 0, 1, 1], [], []>} : vector<16x8xf32>, vector<8x16xf32>, vector<16x16xf32> -> vector<16x16xf32>
    %7 = arith.truncf %6 : vector<16x16xf32> to vector<16x16xbf16>
    %c0_7 = arith.constant 0 : index
    %c0_8 = arith.constant 0 : index
    %c0_9 = arith.constant 0 : index
    %c0_10 = arith.constant 0 : index
    %8 = vector.load %arg4[%c0_7, %c0_8, %c0_9, %c0_10] : memref<1x6x16x16xbf16, #tpu.memory_space<vmem>>, vector<1x1x16x16xbf16>
    %9 = vector.shape_cast %8 : vector<1x1x16x16xbf16> to vector<16x16xbf16>
    %10 = vector.shape_cast %7 : vector<16x16xbf16> to vector<1x1x16x16xbf16>
    tpu.vector_store %arg4[%c0_7, %c0_8, %c0_9, %c0_10], %10 {strides = array<i32>} : memref<1x6x16x16xbf16, #tpu.memory_space<vmem>>, vector<1x1x16x16xbf16>,
    %c0_11 = arith.constant 0 : index
    %c0_12 = arith.constant 0 : index
    %11 = vector.load %arg2[%c0_11, %c0_12] : memref<16x8xf32, #tpu.memory_space<vmem>>, vector<16x8xf32>
    %12 = vector.extract_strided_slice %3 {offsets = [8, 0], sizes = [8, 16], strides = [1, 1]} : vector<48x16xf32> to vector<8x16xf32>
    %cst_13 = arith.constant dense<0.000000e+00> : vector<16x16xf32>
    %13 = tpu.matmul %11, %12, %cst_13 {dimension_numbers = #tpu.dot_dimension_numbers<[1], [0], [0], [1], [0, 0, 1, 1], [], []>} : vector<16x8xf32>, vector<8x16xf32>, vector<16x16xf32> -> vector<16x16xf32>
    %14 = arith.truncf %13 : vector<16x16xf32> to vector<16x16xbf16>
    %c0_14 = arith.constant 0 : index
    %c1 = arith.constant 1 : index
    %c0_15 = arith.constant 0 : index
    %c0_16 = arith.constant 0 : index
    %15 = vector.load %arg4[%c0_14, %c1, %c0_15, %c0_16] : memref<1x6x16x16xbf16, #tpu.memory_space<vmem>>, vector<1x1x16x16xbf16>
    %16 = vector.shape_cast %15 : vector<1x1x16x16xbf16> to vector<16x16xbf16>
    %17 = vector.shape_cast %14 : vector<16x16xbf16> to vector<1x1x16x16xbf16>
    tpu.vector_store %arg4[%c0_14, %c1, %c0_15, %c0_16], %17 {strides = array<i32>} : memref<1x6x16x16xbf16, #tpu.memory_space<vmem>>, vector<1x1x16x16xbf16>,
    %c0_17 = arith.constant 0 : index
    %c0_18 = arith.constant 0 : index
    %18 = vector.load %arg2[%c0_17, %c0_18] : memref<16x8xf32, #tpu.memory_space<vmem>>, vector<16x8xf32>
    %19 = vector.extract_strided_slice %3 {offsets = [16, 0], sizes = [8, 16], strides = [1, 1]} : vector<48x16xf32> to vector<8x16xf32>
    %cst_19 = arith.constant dense<0.000000e+00> : vector<16x16xf32>
    %20 = tpu.matmul %18, %19, %cst_19 {dimension_numbers = #tpu.dot_dimension_numbers<[1], [0], [0], [1], [0, 0, 1, 1], [], []>} : vector<16x8xf32>, vector<8x16xf32>, vector<16x16xf32> -> vector<16x16xf32>
    %21 = arith.truncf %20 : vector<16x16xf32> to vector<16x16xbf16>
    %c0_20 = arith.constant 0 : index
    %c2 = arith.constant 2 : index
    %c0_21 = arith.constant 0 : index
    %c0_22 = arith.constant 0 : index
    %22 = vector.load %arg4[%c0_20, %c2, %c0_21, %c0_22] : memref<1x6x16x16xbf16, #tpu.memory_space<vmem>>, vector<1x1x16x16xbf16>
    %23 = vector.shape_cast %22 : vector<1x1x16x16xbf16> to vector<16x16xbf16>
    %24 = vector.shape_cast %21 : vector<16x16xbf16> to vector<1x1x16x16xbf16>
    tpu.vector_store %arg4[%c0_20, %c2, %c0_21, %c0_22], %24 {strides = array<i32>} : memref<1x6x16x16xbf16, #tpu.memory_space<vmem>>, vector<1x1x16x16xbf16>,
    %c0_23 = arith.constant 0 : index
    %c0_24 = arith.constant 0 : index
    %25 = vector.load %arg2[%c0_23, %c0_24] : memref<16x8xf32, #tpu.memory_space<vmem>>, vector<16x8xf32>
    %26 = vector.extract_strided_slice %3 {offsets = [24, 0], sizes = [8, 16], strides = [1, 1]} : vector<48x16xf32> to vector<8x16xf32>
    %cst_25 = arith.constant dense<0.000000e+00> : vector<16x16xf32>
    %27 = tpu.matmul %25, %26, %cst_25 {dimension_numbers = #tpu.dot_dimension_numbers<[1], [0], [0], [1], [0, 0, 1, 1], [], []>} : vector<16x8xf32>, vector<8x16xf32>, vector<16x16xf32> -> vector<16x16xf32>
    %28 = arith.truncf %27 : vector<16x16xf32> to vector<16x16xbf16>
    %c0_26 = arith.constant 0 : index
    %c3 = arith.constant 3 : index
    %c0_27 = arith.constant 0 : index
    %c0_28 = arith.constant 0 : index
    %29 = vector.load %arg4[%c0_26, %c3, %c0_27, %c0_28] : memref<1x6x16x16xbf16, #tpu.memory_space<vmem>>, vector<1x1x16x16xbf16>
    %30 = vector.shape_cast %29 : vector<1x1x16x16xbf16> to vector<16x16xbf16>
    %31 = vector.shape_cast %28 : vector<16x16xbf16> to vector<1x1x16x16xbf16>
    tpu.vector_store %arg4[%c0_26, %c3, %c0_27, %c0_28], %31 {strides = array<i32>} : memref<1x6x16x16xbf16, #tpu.memory_space<vmem>>, vector<1x1x16x16xbf16>,
    %c0_29 = arith.constant 0 : index
    %c0_30 = arith.constant 0 : index
    %32 = vector.load %arg2[%c0_29, %c0_30] : memref<16x8xf32, #tpu.memory_space<vmem>>, vector<16x8xf32>
    %33 = vector.extract_strided_slice %3 {offsets = [32, 0], sizes = [8, 16], strides = [1, 1]} : vector<48x16xf32> to vector<8x16xf32>
    %cst_31 = arith.constant dense<0.000000e+00> : vector<16x16xf32>
    %34 = tpu.matmul %32, %33, %cst_31 {dimension_numbers = #tpu.dot_dimension_numbers<[1], [0], [0], [1], [0, 0, 1, 1], [], []>} : vector<16x8xf32>, vector<8x16xf32>, vector<16x16xf32> -> vector<16x16xf32>
    %35 = arith.truncf %34 : vector<16x16xf32> to vector<16x16xbf16>
    %c0_32 = arith.constant 0 : index
    %c4 = arith.constant 4 : index
    %c0_33 = arith.constant 0 : index
    %c0_34 = arith.constant 0 : index
    %36 = vector.load %arg4[%c0_32, %c4, %c0_33, %c0_34] : memref<1x6x16x16xbf16, #tpu.memory_space<vmem>>, vector<1x1x16x16xbf16>
    %37 = vector.shape_cast %36 : vector<1x1x16x16xbf16> to vector<16x16xbf16>
    %38 = vector.shape_cast %35 : vector<16x16xbf16> to vector<1x1x16x16xbf16>
    tpu.vector_store %arg4[%c0_32, %c4, %c0_33, %c0_34], %38 {strides = array<i32>} : memref<1x6x16x16xbf16, #tpu.memory_space<vmem>>, vector<1x1x16x16xbf16>,
    %c0_35 = arith.constant 0 : index
    %c0_36 = arith.constant 0 : index
    %39 = vector.load %arg2[%c0_35, %c0_36] : memref<16x8xf32, #tpu.memory_space<vmem>>, vector<16x8xf32>
    %40 = vector.extract_strided_slice %3 {offsets = [40, 0], sizes = [8, 16], strides = [1, 1]} : vector<48x16xf32> to vector<8x16xf32>
    %cst_37 = arith.constant dense<0.000000e+00> : vector<16x16xf32>
    %41 = tpu.matmul %39, %40, %cst_37 {dimension_numbers = #tpu.dot_dimension_numbers<[1], [0], [0], [1], [0, 0, 1, 1], [], []>} : vector<16x8xf32>, vector<8x16xf32>, vector<16x16xf32> -> vector<16x16xf32>
    %42 = arith.truncf %41 : vector<16x16xf32> to vector<16x16xbf16>
    %c0_38 = arith.constant 0 : index
    %c5 = arith.constant 5 : index
    %c0_39 = arith.constant 0 : index
    %c0_40 = arith.constant 0 : index
    %43 = vector.load %arg4[%c0_38, %c5, %c0_39, %c0_40] : memref<1x6x16x16xbf16, #tpu.memory_space<vmem>>, vector<1x1x16x16xbf16>
    %44 = vector.shape_cast %43 : vector<1x1x16x16xbf16> to vector<16x16xbf16>
    %45 = vector.shape_cast %42 : vector<16x16xbf16> to vector<1x1x16x16xbf16>
    tpu.vector_store %arg4[%c0_38, %c5, %c0_39, %c0_40], %45 {strides = array<i32>} : memref<1x6x16x16xbf16, #tpu.memory_space<vmem>>, vector<1x1x16x16xbf16>,
    return
  }
  func.func @transform_0(%arg0: i32) -> (i32, i32, i32) {
    %c0_i32 = arith.constant 0 : i32
    %c0_i32_0 = arith.constant 0 : i32
    %c0_i32_1 = arith.constant 0 : i32
    return %arg0, %c0_i32, %c0_i32_0 : i32, i32, i32
  }
  func.func @transform_1(%arg0: i32) -> (i32, i32) {
    %c0_i32 = arith.constant 0 : i32
    %c0_i32_0 = arith.constant 0 : i32
    %c0_i32_1 = arith.constant 0 : i32
    return %c0_i32, %c0_i32_0 : i32, i32
  }
  func.func @transform_2(%arg0: i32) -> (i32, i32) {
    %c0_i32 = arith.constant 0 : i32
    %c0_i32_0 = arith.constant 0 : i32
    %c0_i32_1 = arith.constant 0 : i32
    return %c0_i32, %c0_i32_0 : i32, i32
  }
  func.func @transform_3(%arg0: i32) -> (i32, i32, i32, i32) {
    %c0_i32 = arith.constant 0 : i32
    %c0_i32_0 = arith.constant 0 : i32
    %c0_i32_1 = arith.constant 0 : i32
    %c0_i32_2 = arith.constant 0 : i32
    return %arg0, %c0_i32, %c0_i32_0, %c0_i32_1 : i32, i32, i32, i32
  }
}

module attributes {stable_mosaic.version = 11 : i64} {
  func.func @kernel(%arg0: i32, %arg1: i32, %arg2: memref<1x6x256xf32, #tpu.memory_space<vmem>>, %arg3: memref<32x6xbf16, #tpu.memory_space<vmem>>, %arg4: memref<1x6x256xbf16, #tpu.memory_space<vmem>>, %arg5: memref<32x6xbf16, #tpu.memory_space<vmem>>, %arg6: memref<32x1xf32, #tpu.memory_space<vmem>>, %arg7: memref<1x32x256xbf16, #tpu.memory_space<vmem>>) attributes {dimension_semantics = [#tpu.dimension_semantics<parallel>, #tpu.dimension_semantics<parallel>], iteration_bounds = array<i64: 2, 1>, scalar_prefetch = 0 : i64, scratch_operands = 0 : i64, tpu.core_type = #tpu.core_type<tc>, window_params = [{transform_indices = @transform_0, window_bounds = array<i64: 1, 6, 256>}, {pipeline_mode = #tpu.pipeline_mode<synchronous>, transform_indices = @transform_1, window_bounds = array<i64: 32, 6>}, {transform_indices = @transform_2, window_bounds = array<i64: 1, 6, 256>}, {pipeline_mode = #tpu.pipeline_mode<synchronous>, transform_indices = @transform_3, window_bounds = array<i64: 32, 6>}, {pipeline_mode = #tpu.pipeline_mode<synchronous>, transform_indices = @transform_4, window_bounds = array<i64: 32, 1>}, {transform_indices = @transform_5, window_bounds = array<i64: 1, 32, 256>}]} {
    %c0 = arith.constant 0 : index
    %c0_0 = arith.constant 0 : index
    %c0_1 = arith.constant 0 : index
    %0 = vector.load %arg2[%c0, %c0_0, %c0_1] : memref<1x6x256xf32, #tpu.memory_space<vmem>>, vector<1x6x256xf32>
    %1 = vector.shape_cast %0 : vector<1x6x256xf32> to vector<6x256xf32>
    %2 = arith.truncf %1 : vector<6x256xf32> to vector<6x256xbf16>
    %c0_2 = arith.constant 0 : index
    %c0_3 = arith.constant 0 : index
    %3 = vector.load %arg3[%c0_2, %c0_3] : memref<32x6xbf16, #tpu.memory_space<vmem>>, vector<32x6xbf16>
    %cst = arith.constant dense<0.000000e+00> : vector<32x256xf32>
    %4 = tpu.matmul %3, %2, %cst {dimension_numbers = #tpu.dot_dimension_numbers<[1], [0], [0], [1], [0, 0, 1, 1], [], []>} : vector<32x6xbf16>, vector<6x256xbf16>, vector<32x256xf32> -> vector<32x256xf32>
    %c0_4 = arith.constant 0 : index
    %c0_5 = arith.constant 0 : index
    %c0_6 = arith.constant 0 : index
    %5 = vector.load %arg4[%c0_4, %c0_5, %c0_6] : memref<1x6x256xbf16, #tpu.memory_space<vmem>>, vector<1x6x256xbf16>
    %6 = vector.shape_cast %5 : vector<1x6x256xbf16> to vector<6x256xbf16>
    %c0_7 = arith.constant 0 : index
    %c0_8 = arith.constant 0 : index
    %7 = vector.load %arg5[%c0_7, %c0_8] : memref<32x6xbf16, #tpu.memory_space<vmem>>, vector<32x6xbf16>
    %cst_9 = arith.constant dense<0.000000e+00> : vector<32x256xf32>
    %8 = tpu.matmul %7, %6, %cst_9 {dimension_numbers = #tpu.dot_dimension_numbers<[1], [0], [0], [1], [0, 0, 1, 1], [], []>} : vector<32x6xbf16>, vector<6x256xbf16>, vector<32x256xf32> -> vector<32x256xf32>
    %9 = arith.addf %4, %8 : vector<32x256xf32>
    %c0_10 = arith.constant 0 : index
    %c0_11 = arith.constant 0 : index
    %10 = vector.load %arg6[%c0_10, %c0_11] : memref<32x1xf32, #tpu.memory_space<vmem>>, vector<32x1xf32>
    %11 = vector.broadcast %10 : vector<32x1xf32> to vector<32x256xf32>
    %12 = arith.addf %9, %11 : vector<32x256xf32>
    %cst_12 = arith.constant 0.000000e+00 : f32
    %13 = vector.broadcast %cst_12 : f32 to vector<32x256xf32>
    %14 = arith.cmpf ogt, %12, %13 : vector<32x256xf32>
    %cst_13 = arith.constant 0.000000e+00 : f32
    %15 = vector.broadcast %cst_13 : f32 to vector<32x256xf32>
    %16 = arith.minimumf %12, %15 : vector<32x256xf32>
    %17 = math.exp %16 : vector<32x256xf32>
    %cst_14 = arith.constant 1.000000e+00 : f32
    %18 = vector.broadcast %cst_14 : f32 to vector<32x256xf32>
    %19 = arith.subf %17, %18 : vector<32x256xf32>
    %20 = arith.select %14, %12, %19 : vector<32x256xi1>, vector<32x256xf32>
    %21 = arith.truncf %20 : vector<32x256xf32> to vector<32x256xbf16>
    %c0_15 = arith.constant 0 : index
    %c0_16 = arith.constant 0 : index
    %c0_17 = arith.constant 0 : index
    %22 = vector.load %arg7[%c0_15, %c0_16, %c0_17] : memref<1x32x256xbf16, #tpu.memory_space<vmem>>, vector<1x32x256xbf16>
    %23 = vector.shape_cast %22 : vector<1x32x256xbf16> to vector<32x256xbf16>
    %24 = vector.shape_cast %21 : vector<32x256xbf16> to vector<1x32x256xbf16>
    tpu.vector_store %arg7[%c0_15, %c0_16, %c0_17], %24 {strides = array<i32>} : memref<1x32x256xbf16, #tpu.memory_space<vmem>>, vector<1x32x256xbf16>,
    return
  }
  func.func @transform_0(%arg0: i32, %arg1: i32) -> (i32, i32, i32) {
    %c0_i32 = arith.constant 0 : i32
    %c0_i32_0 = arith.constant 0 : i32
    return %arg0, %c0_i32, %arg1 : i32, i32, i32
  }
  func.func @transform_1(%arg0: i32, %arg1: i32) -> (i32, i32) {
    %c0_i32 = arith.constant 0 : i32
    %c0_i32_0 = arith.constant 0 : i32
    %c0_i32_1 = arith.constant 0 : i32
    return %c0_i32, %c0_i32_0 : i32, i32
  }
  func.func @transform_2(%arg0: i32, %arg1: i32) -> (i32, i32, i32) {
    %c0_i32 = arith.constant 0 : i32
    %c0_i32_0 = arith.constant 0 : i32
    return %arg0, %c0_i32, %arg1 : i32, i32, i32
  }
  func.func @transform_3(%arg0: i32, %arg1: i32) -> (i32, i32) {
    %c0_i32 = arith.constant 0 : i32
    %c0_i32_0 = arith.constant 0 : i32
    %c0_i32_1 = arith.constant 0 : i32
    return %c0_i32, %c0_i32_0 : i32, i32
  }
  func.func @transform_4(%arg0: i32, %arg1: i32) -> (i32, i32) {
    %c0_i32 = arith.constant 0 : i32
    %c0_i32_0 = arith.constant 0 : i32
    %c0_i32_1 = arith.constant 0 : i32
    return %c0_i32, %c0_i32_0 : i32, i32
  }
  func.func @transform_5(%arg0: i32, %arg1: i32) -> (i32, i32, i32) {
    %c0_i32 = arith.constant 0 : i32
    %c0_i32_0 = arith.constant 0 : i32
    return %arg0, %c0_i32, %arg1 : i32, i32, i32
  }
}

module attributes {stable_mosaic.version = 11 : i64} {
  func.func @kernel(%arg0: i32, %arg1: i32, %arg2: memref<1x32x256xbf16, #tpu.memory_space<vmem>>, %arg3: memref<2x32xf32, #tpu.memory_space<vmem>>, %arg4: memref<32x2xf32, #tpu.memory_space<vmem>>, %arg5: memref<1x32x1xf32, #tpu.memory_space<vmem>>, %arg6: memref<32x1xf32, #tpu.memory_space<vmem>>) attributes {dimension_semantics = [#tpu.dimension_semantics<parallel>, #tpu.dimension_semantics<arbitrary>], iteration_bounds = array<i64: 2, 1>, scalar_prefetch = 0 : i64, scratch_operands = 1 : i64, tpu.core_type = #tpu.core_type<tc>, window_params = [{transform_indices = @transform_0, window_bounds = array<i64: 1, 32, 256>}, {pipeline_mode = #tpu.pipeline_mode<synchronous>, transform_indices = @transform_1, window_bounds = array<i64: 2, 32>}, {pipeline_mode = #tpu.pipeline_mode<synchronous>, transform_indices = @transform_2, window_bounds = array<i64: 32, 2>}, {transform_indices = @transform_3, window_bounds = array<i64: 1, 32, 1>}]} {
    %c0_i32 = arith.constant 0 : i32
    %0 = arith.cmpi eq, %arg1, %c0_i32 : i32
    %1 = arith.extui %0 : i1 to i32
    %c0_i32_0 = arith.constant 0 : i32
    %2 = arith.cmpi ne, %1, %c0_i32_0 : i32
    scf.if %2 {
      %cst_9 = arith.constant 0.000000e+00 : f32
      %14 = vector.broadcast %cst_9 : f32 to vector<32x1xf32>
      %c0_10 = arith.constant 0 : index
      %c0_11 = arith.constant 0 : index
      %15 = vector.load %arg6[%c0_10, %c0_11] : memref<32x1xf32, #tpu.memory_space<vmem>>, vector<32x1xf32>
      tpu.vector_store %arg6[%c0_10, %c0_11], %14 {strides = array<i32>} : memref<32x1xf32, #tpu.memory_space<vmem>>, vector<32x1xf32>,
    } else {
    }
    %c0 = arith.constant 0 : index
    %c0_1 = arith.constant 0 : index
    %3 = vector.load %arg6[%c0, %c0_1] : memref<32x1xf32, #tpu.memory_space<vmem>>, vector<32x1xf32>
    %c0_2 = arith.constant 0 : index
    %c0_3 = arith.constant 0 : index
    %c0_4 = arith.constant 0 : index
    %4 = vector.load %arg2[%c0_2, %c0_3, %c0_4] : memref<1x32x256xbf16, #tpu.memory_space<vmem>>, vector<1x32x256xbf16>
    %5 = vector.shape_cast %4 : vector<1x32x256xbf16> to vector<32x256xbf16>
    %6 = arith.extf %5 : vector<32x256xbf16> to vector<32x256xf32>
    %cst = arith.constant dense<0.000000e+00> : vector<32xf32>
    %7 = vector.multi_reduction <add>, %6, %cst [1] : vector<32x256xf32> to vector<32xf32>
    %8 = vector.shape_cast %7 : vector<32xf32> to vector<32x1xf32>
    %9 = arith.addf %3, %8 : vector<32x1xf32>
    %c0_5 = arith.constant 0 : index
    %c0_6 = arith.constant 0 : index
    %10 = vector.load %arg6[%c0_5, %c0_6] : memref<32x1xf32, #tpu.memory_space<vmem>>, vector<32x1xf32>
    tpu.vector_store %arg6[%c0_5, %c0_6], %9 {strides = array<i32>} : memref<32x1xf32, #tpu.memory_space<vmem>>, vector<32x1xf32>,
    %c0_i32_7 = arith.constant 0 : i32
    %11 = arith.cmpi eq, %arg1, %c0_i32_7 : i32
    %12 = arith.extui %11 : i1 to i32
    %c0_i32_8 = arith.constant 0 : i32
    %13 = arith.cmpi ne, %12, %c0_i32_8 : i32
    scf.if %13 {
      %c0_9 = arith.constant 0 : index
      %c0_10 = arith.constant 0 : index
      %14 = vector.load %arg6[%c0_9, %c0_10] : memref<32x1xf32, #tpu.memory_space<vmem>>, vector<32x1xf32>
      %cst_11 = arith.constant 3.906250e-03 : f32
      %15 = vector.broadcast %cst_11 : f32 to vector<32x1xf32>
      %16 = arith.mulf %14, %15 : vector<32x1xf32>
      %c0_12 = arith.constant 0 : index
      %c0_13 = arith.constant 0 : index
      %17 = vector.load %arg3[%c0_12, %c0_13] : memref<2x32xf32, #tpu.memory_space<vmem>>, vector<2x32xf32>
      %cst_14 = arith.constant dense<0.000000e+00> : vector<2x1xf32>
      %18 = tpu.matmul %17, %16, %cst_14 {dimension_numbers = #tpu.dot_dimension_numbers<[1], [0], [0], [1], [0, 0, 1, 1], [], []>} : vector<2x32xf32>, vector<32x1xf32>, vector<2x1xf32> -> vector<2x1xf32>
      %cst_15 = arith.constant 0.000000e+00 : f32
      %19 = vector.broadcast %cst_15 : f32 to vector<2x1xf32>
      %20 = arith.maximumf %18, %19 : vector<2x1xf32>
      %c0_16 = arith.constant 0 : index
      %c0_17 = arith.constant 0 : index
      %21 = vector.load %arg4[%c0_16, %c0_17] : memref<32x2xf32, #tpu.memory_space<vmem>>, vector<32x2xf32>
      %cst_18 = arith.constant dense<0.000000e+00> : vector<32x1xf32>
      %22 = tpu.matmul %21, %20, %cst_18 {dimension_numbers = #tpu.dot_dimension_numbers<[1], [0], [0], [1], [0, 0, 1, 1], [], []>} : vector<32x2xf32>, vector<2x1xf32>, vector<32x1xf32> -> vector<32x1xf32>
      %cst_19 = arith.constant 0.000000e+00 : f32
      %23 = vector.broadcast %cst_19 : f32 to vector<32x1xf32>
      %24 = arith.subf %23, %22 : vector<32x1xf32>
      %25 = math.exp %24 : vector<32x1xf32>
      %cst_20 = arith.constant 1.000000e+00 : f32
      %26 = vector.broadcast %cst_20 : f32 to vector<32x1xf32>
      %27 = arith.addf %26, %25 : vector<32x1xf32>
      %28 = tpu.reciprocal %27 {approx = true} : vector<32x1xf32> -> vector<32x1xf32>
      %c0_21 = arith.constant 0 : index
      %c0_22 = arith.constant 0 : index
      %c0_23 = arith.constant 0 : index
      %29 = vector.load %arg5[%c0_21, %c0_22, %c0_23] : memref<1x32x1xf32, #tpu.memory_space<vmem>>, vector<1x32x1xf32>
      %30 = vector.shape_cast %29 : vector<1x32x1xf32> to vector<32x1xf32>
      %31 = vector.shape_cast %28 : vector<32x1xf32> to vector<1x32x1xf32>
      tpu.vector_store %arg5[%c0_21, %c0_22, %c0_23], %31 {strides = array<i32>} : memref<1x32x1xf32, #tpu.memory_space<vmem>>, vector<1x32x1xf32>,
    } else {
    }
    return
  }
  func.func @transform_0(%arg0: i32, %arg1: i32) -> (i32, i32, i32) {
    %c0_i32 = arith.constant 0 : i32
    %c0_i32_0 = arith.constant 0 : i32
    return %arg0, %c0_i32, %arg1 : i32, i32, i32
  }
  func.func @transform_1(%arg0: i32, %arg1: i32) -> (i32, i32) {
    %c0_i32 = arith.constant 0 : i32
    %c0_i32_0 = arith.constant 0 : i32
    %c0_i32_1 = arith.constant 0 : i32
    return %c0_i32, %c0_i32_0 : i32, i32
  }
  func.func @transform_2(%arg0: i32, %arg1: i32) -> (i32, i32) {
    %c0_i32 = arith.constant 0 : i32
    %c0_i32_0 = arith.constant 0 : i32
    %c0_i32_1 = arith.constant 0 : i32
    return %c0_i32, %c0_i32_0 : i32, i32
  }
  func.func @transform_3(%arg0: i32, %arg1: i32) -> (i32, i32, i32) {
    %c0_i32 = arith.constant 0 : i32
    %c0_i32_0 = arith.constant 0 : i32
    %c0_i32_1 = arith.constant 0 : i32
    return %arg0, %c0_i32, %c0_i32_0 : i32, i32, i32
  }
}

module attributes {stable_mosaic.version = 11 : i64} {
  func.func @kernel(%arg0: i32, %arg1: i32, %arg2: memref<1x1x8x102xbf16, #tpu.memory_space<vmem>>, %arg3: memref<32x72xbf16, #tpu.memory_space<vmem>>, %arg4: memref<32x1xf32, #tpu.memory_space<vmem>>, %arg5: memref<1x1x32x80xbf16, #tpu.memory_space<vmem>>, %arg6: memref<72x80xbf16, #tpu.memory_space<vmem>>) attributes {dimension_semantics = [#tpu.dimension_semantics<parallel>, #tpu.dimension_semantics<parallel>], iteration_bounds = array<i64: 2, 1>, scalar_prefetch = 0 : i64, scratch_operands = 1 : i64, tpu.core_type = #tpu.core_type<tc>, window_params = [{transform_indices = @transform_0, window_bounds = array<i64: 1, 1, 8, 102>}, {pipeline_mode = #tpu.pipeline_mode<synchronous>, transform_indices = @transform_1, window_bounds = array<i64: 32, 72>}, {pipeline_mode = #tpu.pipeline_mode<synchronous>, transform_indices = @transform_2, window_bounds = array<i64: 32, 1>}, {transform_indices = @transform_3, window_bounds = array<i64: 1, 1, 32, 80>}]} {
    %c0 = arith.constant 0 : index
    %c0_0 = arith.constant 0 : index
    %c0_1 = arith.constant 0 : index
    %c0_2 = arith.constant 0 : index
    %0 = vector.load %arg2[%c0, %c0_0, %c0_1, %c0_2] : memref<1x1x8x102xbf16, #tpu.memory_space<vmem>>, vector<1x1x8x80xbf16>
    %1 = vector.shape_cast %0 : vector<1x1x8x80xbf16> to vector<8x80xbf16>
    %c0_3 = arith.constant 0 : index
    %c0_4 = arith.constant 0 : index
    %2 = vector.load %arg6[%c0_3, %c0_4] : memref<72x80xbf16, #tpu.memory_space<vmem>>, vector<8x80xbf16>
    tpu.vector_store %arg6[%c0_3, %c0_4], %1 {strides = array<i32>} : memref<72x80xbf16, #tpu.memory_space<vmem>>, vector<8x80xbf16>,
    %c0_5 = arith.constant 0 : index
    %c0_6 = arith.constant 0 : index
    %c0_7 = arith.constant 0 : index
    %c1 = arith.constant 1 : index
    %3 = vector.load %arg2[%c0_5, %c0_6, %c0_7, %c1] : memref<1x1x8x102xbf16, #tpu.memory_space<vmem>>, vector<1x1x8x80xbf16>
    %4 = vector.shape_cast %3 : vector<1x1x8x80xbf16> to vector<8x80xbf16>
    %c8 = arith.constant 8 : index
    %c0_8 = arith.constant 0 : index
    %5 = vector.load %arg6[%c8, %c0_8] : memref<72x80xbf16, #tpu.memory_space<vmem>>, vector<8x80xbf16>
    tpu.vector_store %arg6[%c8, %c0_8], %4 {strides = array<i32>} : memref<72x80xbf16, #tpu.memory_space<vmem>>, vector<8x80xbf16>,
    %c0_9 = arith.constant 0 : index
    %c0_10 = arith.constant 0 : index
    %c0_11 = arith.constant 0 : index
    %c2 = arith.constant 2 : index
    %6 = vector.load %arg2[%c0_9, %c0_10, %c0_11, %c2] : memref<1x1x8x102xbf16, #tpu.memory_space<vmem>>, vector<1x1x8x80xbf16>
    %7 = vector.shape_cast %6 : vector<1x1x8x80xbf16> to vector<8x80xbf16>
    %c16 = arith.constant 16 : index
    %c0_12 = arith.constant 0 : index
    %8 = vector.load %arg6[%c16, %c0_12] : memref<72x80xbf16, #tpu.memory_space<vmem>>, vector<8x80xbf16>
    tpu.vector_store %arg6[%c16, %c0_12], %7 {strides = array<i32>} : memref<72x80xbf16, #tpu.memory_space<vmem>>, vector<8x80xbf16>,
    %c0_13 = arith.constant 0 : index
    %c0_14 = arith.constant 0 : index
    %c0_15 = arith.constant 0 : index
    %c10 = arith.constant 10 : index
    %9 = vector.load %arg2[%c0_13, %c0_14, %c0_15, %c10] : memref<1x1x8x102xbf16, #tpu.memory_space<vmem>>, vector<1x1x8x80xbf16>
    %10 = vector.shape_cast %9 : vector<1x1x8x80xbf16> to vector<8x80xbf16>
    %c24 = arith.constant 24 : index
    %c0_16 = arith.constant 0 : index
    %11 = vector.load %arg6[%c24, %c0_16] : memref<72x80xbf16, #tpu.memory_space<vmem>>, vector<8x80xbf16>
    tpu.vector_store %arg6[%c24, %c0_16], %10 {strides = array<i32>} : memref<72x80xbf16, #tpu.memory_space<vmem>>, vector<8x80xbf16>,
    %c0_17 = arith.constant 0 : index
    %c0_18 = arith.constant 0 : index
    %c0_19 = arith.constant 0 : index
    %c11 = arith.constant 11 : index
    %12 = vector.load %arg2[%c0_17, %c0_18, %c0_19, %c11] : memref<1x1x8x102xbf16, #tpu.memory_space<vmem>>, vector<1x1x8x80xbf16>
    %13 = vector.shape_cast %12 : vector<1x1x8x80xbf16> to vector<8x80xbf16>
    %c32 = arith.constant 32 : index
    %c0_20 = arith.constant 0 : index
    %14 = vector.load %arg6[%c32, %c0_20] : memref<72x80xbf16, #tpu.memory_space<vmem>>, vector<8x80xbf16>
    tpu.vector_store %arg6[%c32, %c0_20], %13 {strides = array<i32>} : memref<72x80xbf16, #tpu.memory_space<vmem>>, vector<8x80xbf16>,
    %c0_21 = arith.constant 0 : index
    %c0_22 = arith.constant 0 : index
    %c0_23 = arith.constant 0 : index
    %c12 = arith.constant 12 : index
    %15 = vector.load %arg2[%c0_21, %c0_22, %c0_23, %c12] : memref<1x1x8x102xbf16, #tpu.memory_space<vmem>>, vector<1x1x8x80xbf16>
    %16 = vector.shape_cast %15 : vector<1x1x8x80xbf16> to vector<8x80xbf16>
    %c40 = arith.constant 40 : index
    %c0_24 = arith.constant 0 : index
    %17 = vector.load %arg6[%c40, %c0_24] : memref<72x80xbf16, #tpu.memory_space<vmem>>, vector<8x80xbf16>
    tpu.vector_store %arg6[%c40, %c0_24], %16 {strides = array<i32>} : memref<72x80xbf16, #tpu.memory_space<vmem>>, vector<8x80xbf16>,
    %c0_25 = arith.constant 0 : index
    %c0_26 = arith.constant 0 : index
    %c0_27 = arith.constant 0 : index
    %c20 = arith.constant 20 : index
    %18 = vector.load %arg2[%c0_25, %c0_26, %c0_27, %c20] : memref<1x1x8x102xbf16, #tpu.memory_space<vmem>>, vector<1x1x8x80xbf16>
    %19 = vector.shape_cast %18 : vector<1x1x8x80xbf16> to vector<8x80xbf16>
    %c48 = arith.constant 48 : index
    %c0_28 = arith.constant 0 : index
    %20 = vector.load %arg6[%c48, %c0_28] : memref<72x80xbf16, #tpu.memory_space<vmem>>, vector<8x80xbf16>
    tpu.vector_store %arg6[%c48, %c0_28], %19 {strides = array<i32>} : memref<72x80xbf16, #tpu.memory_space<vmem>>, vector<8x80xbf16>,
    %c0_29 = arith.constant 0 : index
    %c0_30 = arith.constant 0 : index
    %c0_31 = arith.constant 0 : index
    %c21 = arith.constant 21 : index
    %21 = vector.load %arg2[%c0_29, %c0_30, %c0_31, %c21] : memref<1x1x8x102xbf16, #tpu.memory_space<vmem>>, vector<1x1x8x80xbf16>
    %22 = vector.shape_cast %21 : vector<1x1x8x80xbf16> to vector<8x80xbf16>
    %c56 = arith.constant 56 : index
    %c0_32 = arith.constant 0 : index
    %23 = vector.load %arg6[%c56, %c0_32] : memref<72x80xbf16, #tpu.memory_space<vmem>>, vector<8x80xbf16>
    tpu.vector_store %arg6[%c56, %c0_32], %22 {strides = array<i32>} : memref<72x80xbf16, #tpu.memory_space<vmem>>, vector<8x80xbf16>,
    %c0_33 = arith.constant 0 : index
    %c0_34 = arith.constant 0 : index
    %c0_35 = arith.constant 0 : index
    %c22 = arith.constant 22 : index
    %24 = vector.load %arg2[%c0_33, %c0_34, %c0_35, %c22] : memref<1x1x8x102xbf16, #tpu.memory_space<vmem>>, vector<1x1x8x80xbf16>
    %25 = vector.shape_cast %24 : vector<1x1x8x80xbf16> to vector<8x80xbf16>
    %c64 = arith.constant 64 : index
    %c0_36 = arith.constant 0 : index
    %26 = vector.load %arg6[%c64, %c0_36] : memref<72x80xbf16, #tpu.memory_space<vmem>>, vector<8x80xbf16>
    tpu.vector_store %arg6[%c64, %c0_36], %25 {strides = array<i32>} : memref<72x80xbf16, #tpu.memory_space<vmem>>, vector<8x80xbf16>,
    %c0_37 = arith.constant 0 : index
    %c0_38 = arith.constant 0 : index
    %27 = vector.load %arg3[%c0_37, %c0_38] : memref<32x72xbf16, #tpu.memory_space<vmem>>, vector<32x72xbf16>
    %c0_39 = arith.constant 0 : index
    %c0_40 = arith.constant 0 : index
    %28 = vector.load %arg6[%c0_39, %c0_40] : memref<72x80xbf16, #tpu.memory_space<vmem>>, vector<72x80xbf16>
    %cst = arith.constant dense<0.000000e+00> : vector<32x80xf32>
    %29 = tpu.matmul %27, %28, %cst {dimension_numbers = #tpu.dot_dimension_numbers<[1], [0], [0], [1], [0, 0, 1, 1], [], []>} : vector<32x72xbf16>, vector<72x80xbf16>, vector<32x80xf32> -> vector<32x80xf32>
    %c0_41 = arith.constant 0 : index
    %c0_42 = arith.constant 0 : index
    %30 = vector.load %arg4[%c0_41, %c0_42] : memref<32x1xf32, #tpu.memory_space<vmem>>, vector<32x1xf32>
    %31 = vector.broadcast %30 : vector<32x1xf32> to vector<32x80xf32>
    %32 = arith.addf %29, %31 : vector<32x80xf32>
    %cst_43 = arith.constant 0.000000e+00 : f32
    %33 = vector.broadcast %cst_43 : f32 to vector<32x80xf32>
    %34 = arith.cmpf ogt, %32, %33 : vector<32x80xf32>
    %cst_44 = arith.constant 0.000000e+00 : f32
    %35 = vector.broadcast %cst_44 : f32 to vector<32x80xf32>
    %36 = arith.minimumf %32, %35 : vector<32x80xf32>
    %37 = math.exp %36 : vector<32x80xf32>
    %cst_45 = arith.constant 1.000000e+00 : f32
    %38 = vector.broadcast %cst_45 : f32 to vector<32x80xf32>
    %39 = arith.subf %37, %38 : vector<32x80xf32>
    %40 = arith.select %34, %32, %39 : vector<32x80xi1>, vector<32x80xf32>
    %41 = arith.truncf %40 : vector<32x80xf32> to vector<32x80xbf16>
    %c0_46 = arith.constant 0 : index
    %c0_47 = arith.constant 0 : index
    %c0_48 = arith.constant 0 : index
    %c0_49 = arith.constant 0 : index
    %42 = vector.load %arg5[%c0_46, %c0_47, %c0_48, %c0_49] : memref<1x1x32x80xbf16, #tpu.memory_space<vmem>>, vector<1x1x32x80xbf16>
    %43 = vector.shape_cast %42 : vector<1x1x32x80xbf16> to vector<32x80xbf16>
    %44 = vector.shape_cast %41 : vector<32x80xbf16> to vector<1x1x32x80xbf16>
    tpu.vector_store %arg5[%c0_46, %c0_47, %c0_48, %c0_49], %44 {strides = array<i32>} : memref<1x1x32x80xbf16, #tpu.memory_space<vmem>>, vector<1x1x32x80xbf16>,
    return
  }
  func.func @transform_0(%arg0: i32, %arg1: i32) -> (i32, i32, i32, i32) {
    %c0_i32 = arith.constant 0 : i32
    %c0_i32_0 = arith.constant 0 : i32
    %c0_i32_1 = arith.constant 0 : i32
    return %arg0, %arg1, %c0_i32, %c0_i32_0 : i32, i32, i32, i32
  }
  func.func @transform_1(%arg0: i32, %arg1: i32) -> (i32, i32) {
    %c0_i32 = arith.constant 0 : i32
    %c0_i32_0 = arith.constant 0 : i32
    %c0_i32_1 = arith.constant 0 : i32
    return %c0_i32, %c0_i32_0 : i32, i32
  }
  func.func @transform_2(%arg0: i32, %arg1: i32) -> (i32, i32) {
    %c0_i32 = arith.constant 0 : i32
    %c0_i32_0 = arith.constant 0 : i32
    %c0_i32_1 = arith.constant 0 : i32
    return %c0_i32, %c0_i32_0 : i32, i32
  }
  func.func @transform_3(%arg0: i32, %arg1: i32) -> (i32, i32, i32, i32) {
    %c0_i32 = arith.constant 0 : i32
    %c0_i32_0 = arith.constant 0 : i32
    %c0_i32_1 = arith.constant 0 : i32
    return %arg0, %arg1, %c0_i32, %c0_i32_0 : i32, i32, i32, i32
  }
}

module attributes {stable_mosaic.version = 11 : i64} {
  func.func @kernel(%arg0: i32, %arg1: memref<1x16x8xf32, #tpu.memory_space<vmem>>, %arg2: memref<16x8xf32, #tpu.memory_space<vmem>>, %arg3: memref<8x16xf32, #tpu.memory_space<vmem>>, %arg4: memref<1x2x16x16xbf16, #tpu.memory_space<vmem>>) attributes {dimension_semantics = [#tpu.dimension_semantics<parallel>], iteration_bounds = array<i64: 2>, scalar_prefetch = 0 : i64, scratch_operands = 0 : i64, tpu.core_type = #tpu.core_type<tc>, window_params = [{transform_indices = @transform_0, window_bounds = array<i64: 1, 16, 8>}, {pipeline_mode = #tpu.pipeline_mode<synchronous>, transform_indices = @transform_1, window_bounds = array<i64: 16, 8>}, {pipeline_mode = #tpu.pipeline_mode<synchronous>, transform_indices = @transform_2, window_bounds = array<i64: 8, 16>}, {transform_indices = @transform_3, window_bounds = array<i64: 1, 2, 16, 16>}]} {
    %c0 = arith.constant 0 : index
    %c0_0 = arith.constant 0 : index
    %c0_1 = arith.constant 0 : index
    %0 = vector.load %arg1[%c0, %c0_0, %c0_1] : memref<1x16x8xf32, #tpu.memory_space<vmem>>, vector<1x16x8xf32>
    %1 = vector.shape_cast %0 : vector<1x16x8xf32> to vector<16x8xf32>
    %c0_2 = arith.constant 0 : index
    %c0_3 = arith.constant 0 : index
    %2 = vector.load %arg3[%c0_2, %c0_3] : memref<8x16xf32, #tpu.memory_space<vmem>>, vector<8x16xf32>
    %cst = arith.constant dense<0.000000e+00> : vector<16x16xf32>
    %3 = tpu.matmul %1, %2, %cst {dimension_numbers = #tpu.dot_dimension_numbers<[1], [0], [0], [1], [0, 0, 1, 1], [], []>} : vector<16x8xf32>, vector<8x16xf32>, vector<16x16xf32> -> vector<16x16xf32>
    %c0_4 = arith.constant 0 : index
    %c0_5 = arith.constant 0 : index
    %4 = vector.load %arg2[%c0_4, %c0_5] : memref<16x8xf32, #tpu.memory_space<vmem>>, vector<16x8xf32>
    %5 = vector.extract_strided_slice %3 {offsets = [0, 0], sizes = [8, 16], strides = [1, 1]} : vector<16x16xf32> to vector<8x16xf32>
    %cst_6 = arith.constant dense<0.000000e+00> : vector<16x16xf32>
    %6 = tpu.matmul %4, %5, %cst_6 {dimension_numbers = #tpu.dot_dimension_numbers<[1], [0], [0], [1], [0, 0, 1, 1], [], []>} : vector<16x8xf32>, vector<8x16xf32>, vector<16x16xf32> -> vector<16x16xf32>
    %7 = arith.truncf %6 : vector<16x16xf32> to vector<16x16xbf16>
    %c0_7 = arith.constant 0 : index
    %c0_8 = arith.constant 0 : index
    %c0_9 = arith.constant 0 : index
    %c0_10 = arith.constant 0 : index
    %8 = vector.load %arg4[%c0_7, %c0_8, %c0_9, %c0_10] : memref<1x2x16x16xbf16, #tpu.memory_space<vmem>>, vector<1x1x16x16xbf16>
    %9 = vector.shape_cast %8 : vector<1x1x16x16xbf16> to vector<16x16xbf16>
    %10 = vector.shape_cast %7 : vector<16x16xbf16> to vector<1x1x16x16xbf16>
    tpu.vector_store %arg4[%c0_7, %c0_8, %c0_9, %c0_10], %10 {strides = array<i32>} : memref<1x2x16x16xbf16, #tpu.memory_space<vmem>>, vector<1x1x16x16xbf16>,
    %c0_11 = arith.constant 0 : index
    %c0_12 = arith.constant 0 : index
    %11 = vector.load %arg2[%c0_11, %c0_12] : memref<16x8xf32, #tpu.memory_space<vmem>>, vector<16x8xf32>
    %12 = vector.extract_strided_slice %3 {offsets = [8, 0], sizes = [8, 16], strides = [1, 1]} : vector<16x16xf32> to vector<8x16xf32>
    %cst_13 = arith.constant dense<0.000000e+00> : vector<16x16xf32>
    %13 = tpu.matmul %11, %12, %cst_13 {dimension_numbers = #tpu.dot_dimension_numbers<[1], [0], [0], [1], [0, 0, 1, 1], [], []>} : vector<16x8xf32>, vector<8x16xf32>, vector<16x16xf32> -> vector<16x16xf32>
    %14 = arith.truncf %13 : vector<16x16xf32> to vector<16x16xbf16>
    %c0_14 = arith.constant 0 : index
    %c1 = arith.constant 1 : index
    %c0_15 = arith.constant 0 : index
    %c0_16 = arith.constant 0 : index
    %15 = vector.load %arg4[%c0_14, %c1, %c0_15, %c0_16] : memref<1x2x16x16xbf16, #tpu.memory_space<vmem>>, vector<1x1x16x16xbf16>
    %16 = vector.shape_cast %15 : vector<1x1x16x16xbf16> to vector<16x16xbf16>
    %17 = vector.shape_cast %14 : vector<16x16xbf16> to vector<1x1x16x16xbf16>
    tpu.vector_store %arg4[%c0_14, %c1, %c0_15, %c0_16], %17 {strides = array<i32>} : memref<1x2x16x16xbf16, #tpu.memory_space<vmem>>, vector<1x1x16x16xbf16>,
    return
  }
  func.func @transform_0(%arg0: i32) -> (i32, i32, i32) {
    %c0_i32 = arith.constant 0 : i32
    %c0_i32_0 = arith.constant 0 : i32
    %c0_i32_1 = arith.constant 0 : i32
    return %arg0, %c0_i32, %c0_i32_0 : i32, i32, i32
  }
  func.func @transform_1(%arg0: i32) -> (i32, i32) {
    %c0_i32 = arith.constant 0 : i32
    %c0_i32_0 = arith.constant 0 : i32
    %c0_i32_1 = arith.constant 0 : i32
    return %c0_i32, %c0_i32_0 : i32, i32
  }
  func.func @transform_2(%arg0: i32) -> (i32, i32) {
    %c0_i32 = arith.constant 0 : i32
    %c0_i32_0 = arith.constant 0 : i32
    %c0_i32_1 = arith.constant 0 : i32
    return %c0_i32, %c0_i32_0 : i32, i32
  }
  func.func @transform_3(%arg0: i32) -> (i32, i32, i32, i32) {
    %c0_i32 = arith.constant 0 : i32
    %c0_i32_0 = arith.constant 0 : i32
    %c0_i32_1 = arith.constant 0 : i32
    %c0_i32_2 = arith.constant 0 : i32
    return %arg0, %c0_i32, %c0_i32_0, %c0_i32_1 : i32, i32, i32, i32
  }
}

module attributes {stable_mosaic.version = 11 : i64} {
  func.func @kernel(%arg0: i32, %arg1: i32, %arg2: memref<1x1x8x326xbf16, #tpu.memory_space<vmem>>, %arg3: memref<1x1x32x326xbf16, #tpu.memory_space<vmem>>, %arg4: memref<1x1x2x326xbf16, #tpu.memory_space<vmem>>, %arg5: memref<16x378xbf16, #tpu.memory_space<vmem>>, %arg6: memref<16x1xf32, #tpu.memory_space<vmem>>, %arg7: memref<1x1x16x288xf32, #tpu.memory_space<vmem>>, %arg8: memref<378x288xbf16, #tpu.memory_space<vmem>>) attributes {dimension_semantics = [#tpu.dimension_semantics<parallel>, #tpu.dimension_semantics<parallel>], iteration_bounds = array<i64: 2, 1>, scalar_prefetch = 0 : i64, scratch_operands = 1 : i64, tpu.core_type = #tpu.core_type<tc>, window_params = [{transform_indices = @transform_0, window_bounds = array<i64: 1, 1, 8, 326>}, {transform_indices = @transform_1, window_bounds = array<i64: 1, 1, 32, 326>}, {transform_indices = @transform_2, window_bounds = array<i64: 1, 1, 2, 326>}, {pipeline_mode = #tpu.pipeline_mode<synchronous>, transform_indices = @transform_3, window_bounds = array<i64: 16, 378>}, {pipeline_mode = #tpu.pipeline_mode<synchronous>, transform_indices = @transform_4, window_bounds = array<i64: 16, 1>}, {transform_indices = @transform_5, window_bounds = array<i64: 1, 1, 16, 288>}]} {
    %c0 = arith.constant 0 : index
    %c0_0 = arith.constant 0 : index
    %c0_1 = arith.constant 0 : index
    %c0_2 = arith.constant 0 : index
    %0 = vector.load %arg2[%c0, %c0_0, %c0_1, %c0_2] : memref<1x1x8x326xbf16, #tpu.memory_space<vmem>>, vector<1x1x8x288xbf16>
    %1 = vector.shape_cast %0 : vector<1x1x8x288xbf16> to vector<8x288xbf16>
    %c0_3 = arith.constant 0 : index
    %c0_4 = arith.constant 0 : index
    %2 = vector.load %arg8[%c0_3, %c0_4] : memref<378x288xbf16, #tpu.memory_space<vmem>>, vector<8x288xbf16>
    tpu.vector_store %arg8[%c0_3, %c0_4], %1 {strides = array<i32>} : memref<378x288xbf16, #tpu.memory_space<vmem>>, vector<8x288xbf16>,
    %c0_5 = arith.constant 0 : index
    %c0_6 = arith.constant 0 : index
    %c0_7 = arith.constant 0 : index
    %c1 = arith.constant 1 : index
    %3 = vector.load %arg2[%c0_5, %c0_6, %c0_7, %c1] : memref<1x1x8x326xbf16, #tpu.memory_space<vmem>>, vector<1x1x8x288xbf16>
    %4 = vector.shape_cast %3 : vector<1x1x8x288xbf16> to vector<8x288xbf16>
    %c8 = arith.constant 8 : index
    %c0_8 = arith.constant 0 : index
    %5 = vector.load %arg8[%c8, %c0_8] : memref<378x288xbf16, #tpu.memory_space<vmem>>, vector<8x288xbf16>
    tpu.vector_store %arg8[%c8, %c0_8], %4 {strides = array<i32>} : memref<378x288xbf16, #tpu.memory_space<vmem>>, vector<8x288xbf16>,
    %c0_9 = arith.constant 0 : index
    %c0_10 = arith.constant 0 : index
    %c0_11 = arith.constant 0 : index
    %c2 = arith.constant 2 : index
    %6 = vector.load %arg2[%c0_9, %c0_10, %c0_11, %c2] : memref<1x1x8x326xbf16, #tpu.memory_space<vmem>>, vector<1x1x8x288xbf16>
    %7 = vector.shape_cast %6 : vector<1x1x8x288xbf16> to vector<8x288xbf16>
    %c16 = arith.constant 16 : index
    %c0_12 = arith.constant 0 : index
    %8 = vector.load %arg8[%c16, %c0_12] : memref<378x288xbf16, #tpu.memory_space<vmem>>, vector<8x288xbf16>
    tpu.vector_store %arg8[%c16, %c0_12], %7 {strides = array<i32>} : memref<378x288xbf16, #tpu.memory_space<vmem>>, vector<8x288xbf16>,
    %c0_13 = arith.constant 0 : index
    %c0_14 = arith.constant 0 : index
    %c0_15 = arith.constant 0 : index
    %c18 = arith.constant 18 : index
    %9 = vector.load %arg2[%c0_13, %c0_14, %c0_15, %c18] : memref<1x1x8x326xbf16, #tpu.memory_space<vmem>>, vector<1x1x8x288xbf16>
    %10 = vector.shape_cast %9 : vector<1x1x8x288xbf16> to vector<8x288xbf16>
    %c24 = arith.constant 24 : index
    %c0_16 = arith.constant 0 : index
    %11 = vector.load %arg8[%c24, %c0_16] : memref<378x288xbf16, #tpu.memory_space<vmem>>, vector<8x288xbf16>
    tpu.vector_store %arg8[%c24, %c0_16], %10 {strides = array<i32>} : memref<378x288xbf16, #tpu.memory_space<vmem>>, vector<8x288xbf16>,
    %c0_17 = arith.constant 0 : index
    %c0_18 = arith.constant 0 : index
    %c0_19 = arith.constant 0 : index
    %c19 = arith.constant 19 : index
    %12 = vector.load %arg2[%c0_17, %c0_18, %c0_19, %c19] : memref<1x1x8x326xbf16, #tpu.memory_space<vmem>>, vector<1x1x8x288xbf16>
    %13 = vector.shape_cast %12 : vector<1x1x8x288xbf16> to vector<8x288xbf16>
    %c32 = arith.constant 32 : index
    %c0_20 = arith.constant 0 : index
    %14 = vector.load %arg8[%c32, %c0_20] : memref<378x288xbf16, #tpu.memory_space<vmem>>, vector<8x288xbf16>
    tpu.vector_store %arg8[%c32, %c0_20], %13 {strides = array<i32>} : memref<378x288xbf16, #tpu.memory_space<vmem>>, vector<8x288xbf16>,
    %c0_21 = arith.constant 0 : index
    %c0_22 = arith.constant 0 : index
    %c0_23 = arith.constant 0 : index
    %c20 = arith.constant 20 : index
    %15 = vector.load %arg2[%c0_21, %c0_22, %c0_23, %c20] : memref<1x1x8x326xbf16, #tpu.memory_space<vmem>>, vector<1x1x8x288xbf16>
    %16 = vector.shape_cast %15 : vector<1x1x8x288xbf16> to vector<8x288xbf16>
    %c40 = arith.constant 40 : index
    %c0_24 = arith.constant 0 : index
    %17 = vector.load %arg8[%c40, %c0_24] : memref<378x288xbf16, #tpu.memory_space<vmem>>, vector<8x288xbf16>
    tpu.vector_store %arg8[%c40, %c0_24], %16 {strides = array<i32>} : memref<378x288xbf16, #tpu.memory_space<vmem>>, vector<8x288xbf16>,
    %c0_25 = arith.constant 0 : index
    %c0_26 = arith.constant 0 : index
    %c0_27 = arith.constant 0 : index
    %c36 = arith.constant 36 : index
    %18 = vector.load %arg2[%c0_25, %c0_26, %c0_27, %c36] : memref<1x1x8x326xbf16, #tpu.memory_space<vmem>>, vector<1x1x8x288xbf16>
    %19 = vector.shape_cast %18 : vector<1x1x8x288xbf16> to vector<8x288xbf16>
    %c48 = arith.constant 48 : index
    %c0_28 = arith.constant 0 : index
    %20 = vector.load %arg8[%c48, %c0_28] : memref<378x288xbf16, #tpu.memory_space<vmem>>, vector<8x288xbf16>
    tpu.vector_store %arg8[%c48, %c0_28], %19 {strides = array<i32>} : memref<378x288xbf16, #tpu.memory_space<vmem>>, vector<8x288xbf16>,
    %c0_29 = arith.constant 0 : index
    %c0_30 = arith.constant 0 : index
    %c0_31 = arith.constant 0 : index
    %c37 = arith.constant 37 : index
    %21 = vector.load %arg2[%c0_29, %c0_30, %c0_31, %c37] : memref<1x1x8x326xbf16, #tpu.memory_space<vmem>>, vector<1x1x8x288xbf16>
    %22 = vector.shape_cast %21 : vector<1x1x8x288xbf16> to vector<8x288xbf16>
    %c56 = arith.constant 56 : index
    %c0_32 = arith.constant 0 : index
    %23 = vector.load %arg8[%c56, %c0_32] : memref<378x288xbf16, #tpu.memory_space<vmem>>, vector<8x288xbf16>
    tpu.vector_store %arg8[%c56, %c0_32], %22 {strides = array<i32>} : memref<378x288xbf16, #tpu.memory_space<vmem>>, vector<8x288xbf16>,
    %c0_33 = arith.constant 0 : index
    %c0_34 = arith.constant 0 : index
    %c0_35 = arith.constant 0 : index
    %c38 = arith.constant 38 : index
    %24 = vector.load %arg2[%c0_33, %c0_34, %c0_35, %c38] : memref<1x1x8x326xbf16, #tpu.memory_space<vmem>>, vector<1x1x8x288xbf16>
    %25 = vector.shape_cast %24 : vector<1x1x8x288xbf16> to vector<8x288xbf16>
    %c64 = arith.constant 64 : index
    %c0_36 = arith.constant 0 : index
    %26 = vector.load %arg8[%c64, %c0_36] : memref<378x288xbf16, #tpu.memory_space<vmem>>, vector<8x288xbf16>
    tpu.vector_store %arg8[%c64, %c0_36], %25 {strides = array<i32>} : memref<378x288xbf16, #tpu.memory_space<vmem>>, vector<8x288xbf16>,
    %c0_37 = arith.constant 0 : index
    %c0_38 = arith.constant 0 : index
    %c0_39 = arith.constant 0 : index
    %c0_40 = arith.constant 0 : index
    %27 = vector.load %arg3[%c0_37, %c0_38, %c0_39, %c0_40] : memref<1x1x32x326xbf16, #tpu.memory_space<vmem>>, vector<1x1x32x288xbf16>
    %28 = vector.shape_cast %27 : vector<1x1x32x288xbf16> to vector<32x288xbf16>
    %c72 = arith.constant 72 : index
    %c0_41 = arith.constant 0 : index
    %29 = vector.load %arg8[%c72, %c0_41] : memref<378x288xbf16, #tpu.memory_space<vmem>>, vector<32x288xbf16>
    tpu.vector_store %arg8[%c72, %c0_41], %28 {strides = array<i32>} : memref<378x288xbf16, #tpu.memory_space<vmem>>, vector<32x288xbf16>,
    %c0_42 = arith.constant 0 : index
    %c0_43 = arith.constant 0 : index
    %c0_44 = arith.constant 0 : index
    %c1_45 = arith.constant 1 : index
    %30 = vector.load %arg3[%c0_42, %c0_43, %c0_44, %c1_45] : memref<1x1x32x326xbf16, #tpu.memory_space<vmem>>, vector<1x1x32x288xbf16>
    %31 = vector.shape_cast %30 : vector<1x1x32x288xbf16> to vector<32x288xbf16>
    %c104 = arith.constant 104 : index
    %c0_46 = arith.constant 0 : index
    %32 = vector.load %arg8[%c104, %c0_46] : memref<378x288xbf16, #tpu.memory_space<vmem>>, vector<32x288xbf16>
    tpu.vector_store %arg8[%c104, %c0_46], %31 {strides = array<i32>} : memref<378x288xbf16, #tpu.memory_space<vmem>>, vector<32x288xbf16>,
    %c0_47 = arith.constant 0 : index
    %c0_48 = arith.constant 0 : index
    %c0_49 = arith.constant 0 : index
    %c2_50 = arith.constant 2 : index
    %33 = vector.load %arg3[%c0_47, %c0_48, %c0_49, %c2_50] : memref<1x1x32x326xbf16, #tpu.memory_space<vmem>>, vector<1x1x32x288xbf16>
    %34 = vector.shape_cast %33 : vector<1x1x32x288xbf16> to vector<32x288xbf16>
    %c136 = arith.constant 136 : index
    %c0_51 = arith.constant 0 : index
    %35 = vector.load %arg8[%c136, %c0_51] : memref<378x288xbf16, #tpu.memory_space<vmem>>, vector<32x288xbf16>
    tpu.vector_store %arg8[%c136, %c0_51], %34 {strides = array<i32>} : memref<378x288xbf16, #tpu.memory_space<vmem>>, vector<32x288xbf16>,
    %c0_52 = arith.constant 0 : index
    %c0_53 = arith.constant 0 : index
    %c0_54 = arith.constant 0 : index
    %c18_55 = arith.constant 18 : index
    %36 = vector.load %arg3[%c0_52, %c0_53, %c0_54, %c18_55] : memref<1x1x32x326xbf16, #tpu.memory_space<vmem>>, vector<1x1x32x288xbf16>
    %37 = vector.shape_cast %36 : vector<1x1x32x288xbf16> to vector<32x288xbf16>
    %c168 = arith.constant 168 : index
    %c0_56 = arith.constant 0 : index
    %38 = vector.load %arg8[%c168, %c0_56] : memref<378x288xbf16, #tpu.memory_space<vmem>>, vector<32x288xbf16>
    tpu.vector_store %arg8[%c168, %c0_56], %37 {strides = array<i32>} : memref<378x288xbf16, #tpu.memory_space<vmem>>, vector<32x288xbf16>,
    %c0_57 = arith.constant 0 : index
    %c0_58 = arith.constant 0 : index
    %c0_59 = arith.constant 0 : index
    %c19_60 = arith.constant 19 : index
    %39 = vector.load %arg3[%c0_57, %c0_58, %c0_59, %c19_60] : memref<1x1x32x326xbf16, #tpu.memory_space<vmem>>, vector<1x1x32x288xbf16>
    %40 = vector.shape_cast %39 : vector<1x1x32x288xbf16> to vector<32x288xbf16>
    %c200 = arith.constant 200 : index
    %c0_61 = arith.constant 0 : index
    %41 = vector.load %arg8[%c200, %c0_61] : memref<378x288xbf16, #tpu.memory_space<vmem>>, vector<32x288xbf16>
    tpu.vector_store %arg8[%c200, %c0_61], %40 {strides = array<i32>} : memref<378x288xbf16, #tpu.memory_space<vmem>>, vector<32x288xbf16>,
    %c0_62 = arith.constant 0 : index
    %c0_63 = arith.constant 0 : index
    %c0_64 = arith.constant 0 : index
    %c20_65 = arith.constant 20 : index
    %42 = vector.load %arg3[%c0_62, %c0_63, %c0_64, %c20_65] : memref<1x1x32x326xbf16, #tpu.memory_space<vmem>>, vector<1x1x32x288xbf16>
    %43 = vector.shape_cast %42 : vector<1x1x32x288xbf16> to vector<32x288xbf16>
    %c232 = arith.constant 232 : index
    %c0_66 = arith.constant 0 : index
    %44 = vector.load %arg8[%c232, %c0_66] : memref<378x288xbf16, #tpu.memory_space<vmem>>, vector<32x288xbf16>
    tpu.vector_store %arg8[%c232, %c0_66], %43 {strides = array<i32>} : memref<378x288xbf16, #tpu.memory_space<vmem>>, vector<32x288xbf16>,
    %c0_67 = arith.constant 0 : index
    %c0_68 = arith.constant 0 : index
    %c0_69 = arith.constant 0 : index
    %c36_70 = arith.constant 36 : index
    %45 = vector.load %arg3[%c0_67, %c0_68, %c0_69, %c36_70] : memref<1x1x32x326xbf16, #tpu.memory_space<vmem>>, vector<1x1x32x288xbf16>
    %46 = vector.shape_cast %45 : vector<1x1x32x288xbf16> to vector<32x288xbf16>
    %c264 = arith.constant 264 : index
    %c0_71 = arith.constant 0 : index
    %47 = vector.load %arg8[%c264, %c0_71] : memref<378x288xbf16, #tpu.memory_space<vmem>>, vector<32x288xbf16>
    tpu.vector_store %arg8[%c264, %c0_71], %46 {strides = array<i32>} : memref<378x288xbf16, #tpu.memory_space<vmem>>, vector<32x288xbf16>,
    %c0_72 = arith.constant 0 : index
    %c0_73 = arith.constant 0 : index
    %c0_74 = arith.constant 0 : index
    %c37_75 = arith.constant 37 : index
    %48 = vector.load %arg3[%c0_72, %c0_73, %c0_74, %c37_75] : memref<1x1x32x326xbf16, #tpu.memory_space<vmem>>, vector<1x1x32x288xbf16>
    %49 = vector.shape_cast %48 : vector<1x1x32x288xbf16> to vector<32x288xbf16>
    %c296 = arith.constant 296 : index
    %c0_76 = arith.constant 0 : index
    %50 = vector.load %arg8[%c296, %c0_76] : memref<378x288xbf16, #tpu.memory_space<vmem>>, vector<32x288xbf16>
    tpu.vector_store %arg8[%c296, %c0_76], %49 {strides = array<i32>} : memref<378x288xbf16, #tpu.memory_space<vmem>>, vector<32x288xbf16>,
    %c0_77 = arith.constant 0 : index
    %c0_78 = arith.constant 0 : index
    %c0_79 = arith.constant 0 : index
    %c38_80 = arith.constant 38 : index
    %51 = vector.load %arg3[%c0_77, %c0_78, %c0_79, %c38_80] : memref<1x1x32x326xbf16, #tpu.memory_space<vmem>>, vector<1x1x32x288xbf16>
    %52 = vector.shape_cast %51 : vector<1x1x32x288xbf16> to vector<32x288xbf16>
    %c328 = arith.constant 328 : index
    %c0_81 = arith.constant 0 : index
    %53 = vector.load %arg8[%c328, %c0_81] : memref<378x288xbf16, #tpu.memory_space<vmem>>, vector<32x288xbf16>
    tpu.vector_store %arg8[%c328, %c0_81], %52 {strides = array<i32>} : memref<378x288xbf16, #tpu.memory_space<vmem>>, vector<32x288xbf16>,
    %c0_82 = arith.constant 0 : index
    %c0_83 = arith.constant 0 : index
    %c0_84 = arith.constant 0 : index
    %c0_85 = arith.constant 0 : index
    %54 = vector.load %arg4[%c0_82, %c0_83, %c0_84, %c0_85] : memref<1x1x2x326xbf16, #tpu.memory_space<vmem>>, vector<1x1x2x288xbf16>
    %55 = vector.shape_cast %54 : vector<1x1x2x288xbf16> to vector<2x288xbf16>
    %c360 = arith.constant 360 : index
    %c0_86 = arith.constant 0 : index
    %56 = vector.load %arg8[%c360, %c0_86] : memref<378x288xbf16, #tpu.memory_space<vmem>>, vector<2x288xbf16>
    tpu.vector_store %arg8[%c360, %c0_86], %55 {strides = array<i32>} : memref<378x288xbf16, #tpu.memory_space<vmem>>, vector<2x288xbf16>,
    %c0_87 = arith.constant 0 : index
    %c0_88 = arith.constant 0 : index
    %c0_89 = arith.constant 0 : index
    %c1_90 = arith.constant 1 : index
    %57 = vector.load %arg4[%c0_87, %c0_88, %c0_89, %c1_90] : memref<1x1x2x326xbf16, #tpu.memory_space<vmem>>, vector<1x1x2x288xbf16>
    %58 = vector.shape_cast %57 : vector<1x1x2x288xbf16> to vector<2x288xbf16>
    %c362 = arith.constant 362 : index
    %c0_91 = arith.constant 0 : index
    %59 = vector.load %arg8[%c362, %c0_91] : memref<378x288xbf16, #tpu.memory_space<vmem>>, vector<2x288xbf16>
    tpu.vector_store %arg8[%c362, %c0_91], %58 {strides = array<i32>} : memref<378x288xbf16, #tpu.memory_space<vmem>>, vector<2x288xbf16>,
    %c0_92 = arith.constant 0 : index
    %c0_93 = arith.constant 0 : index
    %c0_94 = arith.constant 0 : index
    %c2_95 = arith.constant 2 : index
    %60 = vector.load %arg4[%c0_92, %c0_93, %c0_94, %c2_95] : memref<1x1x2x326xbf16, #tpu.memory_space<vmem>>, vector<1x1x2x288xbf16>
    %61 = vector.shape_cast %60 : vector<1x1x2x288xbf16> to vector<2x288xbf16>
    %c364 = arith.constant 364 : index
    %c0_96 = arith.constant 0 : index
    %62 = vector.load %arg8[%c364, %c0_96] : memref<378x288xbf16, #tpu.memory_space<vmem>>, vector<2x288xbf16>
    tpu.vector_store %arg8[%c364, %c0_96], %61 {strides = array<i32>} : memref<378x288xbf16, #tpu.memory_space<vmem>>, vector<2x288xbf16>,
    %c0_97 = arith.constant 0 : index
    %c0_98 = arith.constant 0 : index
    %c0_99 = arith.constant 0 : index
    %c18_100 = arith.constant 18 : index
    %63 = vector.load %arg4[%c0_97, %c0_98, %c0_99, %c18_100] : memref<1x1x2x326xbf16, #tpu.memory_space<vmem>>, vector<1x1x2x288xbf16>
    %64 = vector.shape_cast %63 : vector<1x1x2x288xbf16> to vector<2x288xbf16>
    %c366 = arith.constant 366 : index
    %c0_101 = arith.constant 0 : index
    %65 = vector.load %arg8[%c366, %c0_101] : memref<378x288xbf16, #tpu.memory_space<vmem>>, vector<2x288xbf16>
    tpu.vector_store %arg8[%c366, %c0_101], %64 {strides = array<i32>} : memref<378x288xbf16, #tpu.memory_space<vmem>>, vector<2x288xbf16>,
    %c0_102 = arith.constant 0 : index
    %c0_103 = arith.constant 0 : index
    %c0_104 = arith.constant 0 : index
    %c19_105 = arith.constant 19 : index
    %66 = vector.load %arg4[%c0_102, %c0_103, %c0_104, %c19_105] : memref<1x1x2x326xbf16, #tpu.memory_space<vmem>>, vector<1x1x2x288xbf16>
    %67 = vector.shape_cast %66 : vector<1x1x2x288xbf16> to vector<2x288xbf16>
    %c368 = arith.constant 368 : index
    %c0_106 = arith.constant 0 : index
    %68 = vector.load %arg8[%c368, %c0_106] : memref<378x288xbf16, #tpu.memory_space<vmem>>, vector<2x288xbf16>
    tpu.vector_store %arg8[%c368, %c0_106], %67 {strides = array<i32>} : memref<378x288xbf16, #tpu.memory_space<vmem>>, vector<2x288xbf16>,
    %c0_107 = arith.constant 0 : index
    %c0_108 = arith.constant 0 : index
    %c0_109 = arith.constant 0 : index
    %c20_110 = arith.constant 20 : index
    %69 = vector.load %arg4[%c0_107, %c0_108, %c0_109, %c20_110] : memref<1x1x2x326xbf16, #tpu.memory_space<vmem>>, vector<1x1x2x288xbf16>
    %70 = vector.shape_cast %69 : vector<1x1x2x288xbf16> to vector<2x288xbf16>
    %c370 = arith.constant 370 : index
    %c0_111 = arith.constant 0 : index
    %71 = vector.load %arg8[%c370, %c0_111] : memref<378x288xbf16, #tpu.memory_space<vmem>>, vector<2x288xbf16>
    tpu.vector_store %arg8[%c370, %c0_111], %70 {strides = array<i32>} : memref<378x288xbf16, #tpu.memory_space<vmem>>, vector<2x288xbf16>,
    %c0_112 = arith.constant 0 : index
    %c0_113 = arith.constant 0 : index
    %c0_114 = arith.constant 0 : index
    %c36_115 = arith.constant 36 : index
    %72 = vector.load %arg4[%c0_112, %c0_113, %c0_114, %c36_115] : memref<1x1x2x326xbf16, #tpu.memory_space<vmem>>, vector<1x1x2x288xbf16>
    %73 = vector.shape_cast %72 : vector<1x1x2x288xbf16> to vector<2x288xbf16>
    %c372 = arith.constant 372 : index
    %c0_116 = arith.constant 0 : index
    %74 = vector.load %arg8[%c372, %c0_116] : memref<378x288xbf16, #tpu.memory_space<vmem>>, vector<2x288xbf16>
    tpu.vector_store %arg8[%c372, %c0_116], %73 {strides = array<i32>} : memref<378x288xbf16, #tpu.memory_space<vmem>>, vector<2x288xbf16>,
    %c0_117 = arith.constant 0 : index
    %c0_118 = arith.constant 0 : index
    %c0_119 = arith.constant 0 : index
    %c37_120 = arith.constant 37 : index
    %75 = vector.load %arg4[%c0_117, %c0_118, %c0_119, %c37_120] : memref<1x1x2x326xbf16, #tpu.memory_space<vmem>>, vector<1x1x2x288xbf16>
    %76 = vector.shape_cast %75 : vector<1x1x2x288xbf16> to vector<2x288xbf16>
    %c374 = arith.constant 374 : index
    %c0_121 = arith.constant 0 : index
    %77 = vector.load %arg8[%c374, %c0_121] : memref<378x288xbf16, #tpu.memory_space<vmem>>, vector<2x288xbf16>
    tpu.vector_store %arg8[%c374, %c0_121], %76 {strides = array<i32>} : memref<378x288xbf16, #tpu.memory_space<vmem>>, vector<2x288xbf16>,
    %c0_122 = arith.constant 0 : index
    %c0_123 = arith.constant 0 : index
    %c0_124 = arith.constant 0 : index
    %c38_125 = arith.constant 38 : index
    %78 = vector.load %arg4[%c0_122, %c0_123, %c0_124, %c38_125] : memref<1x1x2x326xbf16, #tpu.memory_space<vmem>>, vector<1x1x2x288xbf16>
    %79 = vector.shape_cast %78 : vector<1x1x2x288xbf16> to vector<2x288xbf16>
    %c376 = arith.constant 376 : index
    %c0_126 = arith.constant 0 : index
    %80 = vector.load %arg8[%c376, %c0_126] : memref<378x288xbf16, #tpu.memory_space<vmem>>, vector<2x288xbf16>
    tpu.vector_store %arg8[%c376, %c0_126], %79 {strides = array<i32>} : memref<378x288xbf16, #tpu.memory_space<vmem>>, vector<2x288xbf16>,
    %c0_127 = arith.constant 0 : index
    %c0_128 = arith.constant 0 : index
    %81 = vector.load %arg5[%c0_127, %c0_128] : memref<16x378xbf16, #tpu.memory_space<vmem>>, vector<16x378xbf16>
    %c0_129 = arith.constant 0 : index
    %c0_130 = arith.constant 0 : index
    %82 = vector.load %arg8[%c0_129, %c0_130] : memref<378x288xbf16, #tpu.memory_space<vmem>>, vector<378x288xbf16>
    %cst = arith.constant dense<0.000000e+00> : vector<16x288xf32>
    %83 = tpu.matmul %81, %82, %cst {dimension_numbers = #tpu.dot_dimension_numbers<[1], [0], [0], [1], [0, 0, 1, 1], [], []>} : vector<16x378xbf16>, vector<378x288xbf16>, vector<16x288xf32> -> vector<16x288xf32>
    %c0_131 = arith.constant 0 : index
    %c0_132 = arith.constant 0 : index
    %84 = vector.load %arg6[%c0_131, %c0_132] : memref<16x1xf32, #tpu.memory_space<vmem>>, vector<16x1xf32>
    %85 = vector.broadcast %84 : vector<16x1xf32> to vector<16x288xf32>
    %86 = arith.addf %83, %85 : vector<16x288xf32>
    %cst_133 = arith.constant 0.000000e+00 : f32
    %87 = vector.broadcast %cst_133 : f32 to vector<16x288xf32>
    %88 = arith.cmpf ogt, %86, %87 : vector<16x288xf32>
    %cst_134 = arith.constant 0.000000e+00 : f32
    %89 = vector.broadcast %cst_134 : f32 to vector<16x288xf32>
    %90 = arith.minimumf %86, %89 : vector<16x288xf32>
    %91 = math.exp %90 : vector<16x288xf32>
    %cst_135 = arith.constant 1.000000e+00 : f32
    %92 = vector.broadcast %cst_135 : f32 to vector<16x288xf32>
    %93 = arith.subf %91, %92 : vector<16x288xf32>
    %94 = arith.select %88, %86, %93 : vector<16x288xi1>, vector<16x288xf32>
    %c0_136 = arith.constant 0 : index
    %c0_137 = arith.constant 0 : index
    %c0_138 = arith.constant 0 : index
    %c0_139 = arith.constant 0 : index
    %95 = vector.load %arg7[%c0_136, %c0_137, %c0_138, %c0_139] : memref<1x1x16x288xf32, #tpu.memory_space<vmem>>, vector<1x1x16x288xf32>
    %96 = vector.shape_cast %95 : vector<1x1x16x288xf32> to vector<16x288xf32>
    %97 = vector.shape_cast %94 : vector<16x288xf32> to vector<1x1x16x288xf32>
    tpu.vector_store %arg7[%c0_136, %c0_137, %c0_138, %c0_139], %97 {strides = array<i32>} : memref<1x1x16x288xf32, #tpu.memory_space<vmem>>, vector<1x1x16x288xf32>,
    return
  }
  func.func @transform_0(%arg0: i32, %arg1: i32) -> (i32, i32, i32, i32) {
    %c0_i32 = arith.constant 0 : i32
    %c0_i32_0 = arith.constant 0 : i32
    %c0_i32_1 = arith.constant 0 : i32
    return %arg0, %arg1, %c0_i32, %c0_i32_0 : i32, i32, i32, i32
  }
  func.func @transform_1(%arg0: i32, %arg1: i32) -> (i32, i32, i32, i32) {
    %c0_i32 = arith.constant 0 : i32
    %c0_i32_0 = arith.constant 0 : i32
    %c0_i32_1 = arith.constant 0 : i32
    return %arg0, %arg1, %c0_i32, %c0_i32_0 : i32, i32, i32, i32
  }
  func.func @transform_2(%arg0: i32, %arg1: i32) -> (i32, i32, i32, i32) {
    %c0_i32 = arith.constant 0 : i32
    %c0_i32_0 = arith.constant 0 : i32
    %c0_i32_1 = arith.constant 0 : i32
    return %arg0, %arg1, %c0_i32, %c0_i32_0 : i32, i32, i32, i32
  }
  func.func @transform_3(%arg0: i32, %arg1: i32) -> (i32, i32) {
    %c0_i32 = arith.constant 0 : i32
    %c0_i32_0 = arith.constant 0 : i32
    %c0_i32_1 = arith.constant 0 : i32
    return %c0_i32, %c0_i32_0 : i32, i32
  }
  func.func @transform_4(%arg0: i32, %arg1: i32) -> (i32, i32) {
    %c0_i32 = arith.constant 0 : i32
    %c0_i32_0 = arith.constant 0 : i32
    %c0_i32_1 = arith.constant 0 : i32
    return %c0_i32, %c0_i32_0 : i32, i32
  }
  func.func @transform_5(%arg0: i32, %arg1: i32) -> (i32, i32, i32, i32) {
    %c0_i32 = arith.constant 0 : i32
    %c0_i32_0 = arith.constant 0 : i32
    %c0_i32_1 = arith.constant 0 : i32
    return %arg0, %arg1, %c0_i32, %c0_i32_0 : i32, i32, i32, i32
  }
}

module attributes {stable_mosaic.version = 11 : i64} {
  func.func @kernel(%arg0: i32, %arg1: i32, %arg2: memref<1x1x16x326xbf16, #tpu.memory_space<vmem>>, %arg3: memref<2x144xbf16, #tpu.memory_space<vmem>>, %arg4: memref<2x1xf32, #tpu.memory_space<vmem>>, %arg5: memref<1x1x2x288xf32, #tpu.memory_space<vmem>>, %arg6: memref<144x288xbf16, #tpu.memory_space<vmem>>) attributes {dimension_semantics = [#tpu.dimension_semantics<parallel>, #tpu.dimension_semantics<parallel>], iteration_bounds = array<i64: 2, 1>, scalar_prefetch = 0 : i64, scratch_operands = 1 : i64, tpu.core_type = #tpu.core_type<tc>, window_params = [{transform_indices = @transform_0, window_bounds = array<i64: 1, 1, 16, 326>}, {pipeline_mode = #tpu.pipeline_mode<synchronous>, transform_indices = @transform_1, window_bounds = array<i64: 2, 144>}, {pipeline_mode = #tpu.pipeline_mode<synchronous>, transform_indices = @transform_2, window_bounds = array<i64: 2, 1>}, {transform_indices = @transform_3, window_bounds = array<i64: 1, 1, 2, 288>}]} {
    %c0 = arith.constant 0 : index
    %c0_0 = arith.constant 0 : index
    %c0_1 = arith.constant 0 : index
    %c0_2 = arith.constant 0 : index
    %0 = vector.load %arg2[%c0, %c0_0, %c0_1, %c0_2] : memref<1x1x16x326xbf16, #tpu.memory_space<vmem>>, vector<1x1x16x288xbf16>
    %1 = vector.shape_cast %0 : vector<1x1x16x288xbf16> to vector<16x288xbf16>
    %c0_3 = arith.constant 0 : index
    %c0_4 = arith.constant 0 : index
    %2 = vector.load %arg6[%c0_3, %c0_4] : memref<144x288xbf16, #tpu.memory_space<vmem>>, vector<16x288xbf16>
    tpu.vector_store %arg6[%c0_3, %c0_4], %1 {strides = array<i32>} : memref<144x288xbf16, #tpu.memory_space<vmem>>, vector<16x288xbf16>,
    %c0_5 = arith.constant 0 : index
    %c0_6 = arith.constant 0 : index
    %c0_7 = arith.constant 0 : index
    %c1 = arith.constant 1 : index
    %3 = vector.load %arg2[%c0_5, %c0_6, %c0_7, %c1] : memref<1x1x16x326xbf16, #tpu.memory_space<vmem>>, vector<1x1x16x288xbf16>
    %4 = vector.shape_cast %3 : vector<1x1x16x288xbf16> to vector<16x288xbf16>
    %c16 = arith.constant 16 : index
    %c0_8 = arith.constant 0 : index
    %5 = vector.load %arg6[%c16, %c0_8] : memref<144x288xbf16, #tpu.memory_space<vmem>>, vector<16x288xbf16>
    tpu.vector_store %arg6[%c16, %c0_8], %4 {strides = array<i32>} : memref<144x288xbf16, #tpu.memory_space<vmem>>, vector<16x288xbf16>,
    %c0_9 = arith.constant 0 : index
    %c0_10 = arith.constant 0 : index
    %c0_11 = arith.constant 0 : index
    %c2 = arith.constant 2 : index
    %6 = vector.load %arg2[%c0_9, %c0_10, %c0_11, %c2] : memref<1x1x16x326xbf16, #tpu.memory_space<vmem>>, vector<1x1x16x288xbf16>
    %7 = vector.shape_cast %6 : vector<1x1x16x288xbf16> to vector<16x288xbf16>
    %c32 = arith.constant 32 : index
    %c0_12 = arith.constant 0 : index
    %8 = vector.load %arg6[%c32, %c0_12] : memref<144x288xbf16, #tpu.memory_space<vmem>>, vector<16x288xbf16>
    tpu.vector_store %arg6[%c32, %c0_12], %7 {strides = array<i32>} : memref<144x288xbf16, #tpu.memory_space<vmem>>, vector<16x288xbf16>,
    %c0_13 = arith.constant 0 : index
    %c0_14 = arith.constant 0 : index
    %c0_15 = arith.constant 0 : index
    %c18 = arith.constant 18 : index
    %9 = vector.load %arg2[%c0_13, %c0_14, %c0_15, %c18] : memref<1x1x16x326xbf16, #tpu.memory_space<vmem>>, vector<1x1x16x288xbf16>
    %10 = vector.shape_cast %9 : vector<1x1x16x288xbf16> to vector<16x288xbf16>
    %c48 = arith.constant 48 : index
    %c0_16 = arith.constant 0 : index
    %11 = vector.load %arg6[%c48, %c0_16] : memref<144x288xbf16, #tpu.memory_space<vmem>>, vector<16x288xbf16>
    tpu.vector_store %arg6[%c48, %c0_16], %10 {strides = array<i32>} : memref<144x288xbf16, #tpu.memory_space<vmem>>, vector<16x288xbf16>,
    %c0_17 = arith.constant 0 : index
    %c0_18 = arith.constant 0 : index
    %c0_19 = arith.constant 0 : index
    %c19 = arith.constant 19 : index
    %12 = vector.load %arg2[%c0_17, %c0_18, %c0_19, %c19] : memref<1x1x16x326xbf16, #tpu.memory_space<vmem>>, vector<1x1x16x288xbf16>
    %13 = vector.shape_cast %12 : vector<1x1x16x288xbf16> to vector<16x288xbf16>
    %c64 = arith.constant 64 : index
    %c0_20 = arith.constant 0 : index
    %14 = vector.load %arg6[%c64, %c0_20] : memref<144x288xbf16, #tpu.memory_space<vmem>>, vector<16x288xbf16>
    tpu.vector_store %arg6[%c64, %c0_20], %13 {strides = array<i32>} : memref<144x288xbf16, #tpu.memory_space<vmem>>, vector<16x288xbf16>,
    %c0_21 = arith.constant 0 : index
    %c0_22 = arith.constant 0 : index
    %c0_23 = arith.constant 0 : index
    %c20 = arith.constant 20 : index
    %15 = vector.load %arg2[%c0_21, %c0_22, %c0_23, %c20] : memref<1x1x16x326xbf16, #tpu.memory_space<vmem>>, vector<1x1x16x288xbf16>
    %16 = vector.shape_cast %15 : vector<1x1x16x288xbf16> to vector<16x288xbf16>
    %c80 = arith.constant 80 : index
    %c0_24 = arith.constant 0 : index
    %17 = vector.load %arg6[%c80, %c0_24] : memref<144x288xbf16, #tpu.memory_space<vmem>>, vector<16x288xbf16>
    tpu.vector_store %arg6[%c80, %c0_24], %16 {strides = array<i32>} : memref<144x288xbf16, #tpu.memory_space<vmem>>, vector<16x288xbf16>,
    %c0_25 = arith.constant 0 : index
    %c0_26 = arith.constant 0 : index
    %c0_27 = arith.constant 0 : index
    %c36 = arith.constant 36 : index
    %18 = vector.load %arg2[%c0_25, %c0_26, %c0_27, %c36] : memref<1x1x16x326xbf16, #tpu.memory_space<vmem>>, vector<1x1x16x288xbf16>
    %19 = vector.shape_cast %18 : vector<1x1x16x288xbf16> to vector<16x288xbf16>
    %c96 = arith.constant 96 : index
    %c0_28 = arith.constant 0 : index
    %20 = vector.load %arg6[%c96, %c0_28] : memref<144x288xbf16, #tpu.memory_space<vmem>>, vector<16x288xbf16>
    tpu.vector_store %arg6[%c96, %c0_28], %19 {strides = array<i32>} : memref<144x288xbf16, #tpu.memory_space<vmem>>, vector<16x288xbf16>,
    %c0_29 = arith.constant 0 : index
    %c0_30 = arith.constant 0 : index
    %c0_31 = arith.constant 0 : index
    %c37 = arith.constant 37 : index
    %21 = vector.load %arg2[%c0_29, %c0_30, %c0_31, %c37] : memref<1x1x16x326xbf16, #tpu.memory_space<vmem>>, vector<1x1x16x288xbf16>
    %22 = vector.shape_cast %21 : vector<1x1x16x288xbf16> to vector<16x288xbf16>
    %c112 = arith.constant 112 : index
    %c0_32 = arith.constant 0 : index
    %23 = vector.load %arg6[%c112, %c0_32] : memref<144x288xbf16, #tpu.memory_space<vmem>>, vector<16x288xbf16>
    tpu.vector_store %arg6[%c112, %c0_32], %22 {strides = array<i32>} : memref<144x288xbf16, #tpu.memory_space<vmem>>, vector<16x288xbf16>,
    %c0_33 = arith.constant 0 : index
    %c0_34 = arith.constant 0 : index
    %c0_35 = arith.constant 0 : index
    %c38 = arith.constant 38 : index
    %24 = vector.load %arg2[%c0_33, %c0_34, %c0_35, %c38] : memref<1x1x16x326xbf16, #tpu.memory_space<vmem>>, vector<1x1x16x288xbf16>
    %25 = vector.shape_cast %24 : vector<1x1x16x288xbf16> to vector<16x288xbf16>
    %c128 = arith.constant 128 : index
    %c0_36 = arith.constant 0 : index
    %26 = vector.load %arg6[%c128, %c0_36] : memref<144x288xbf16, #tpu.memory_space<vmem>>, vector<16x288xbf16>
    tpu.vector_store %arg6[%c128, %c0_36], %25 {strides = array<i32>} : memref<144x288xbf16, #tpu.memory_space<vmem>>, vector<16x288xbf16>,
    %c0_37 = arith.constant 0 : index
    %c0_38 = arith.constant 0 : index
    %27 = vector.load %arg3[%c0_37, %c0_38] : memref<2x144xbf16, #tpu.memory_space<vmem>>, vector<2x144xbf16>
    %c0_39 = arith.constant 0 : index
    %c0_40 = arith.constant 0 : index
    %28 = vector.load %arg6[%c0_39, %c0_40] : memref<144x288xbf16, #tpu.memory_space<vmem>>, vector<144x288xbf16>
    %cst = arith.constant dense<0.000000e+00> : vector<2x288xf32>
    %29 = tpu.matmul %27, %28, %cst {dimension_numbers = #tpu.dot_dimension_numbers<[1], [0], [0], [1], [0, 0, 1, 1], [], []>} : vector<2x144xbf16>, vector<144x288xbf16>, vector<2x288xf32> -> vector<2x288xf32>
    %c0_41 = arith.constant 0 : index
    %c0_42 = arith.constant 0 : index
    %30 = vector.load %arg4[%c0_41, %c0_42] : memref<2x1xf32, #tpu.memory_space<vmem>>, vector<2x1xf32>
    %31 = vector.broadcast %30 : vector<2x1xf32> to vector<2x288xf32>
    %32 = arith.addf %29, %31 : vector<2x288xf32>
    %cst_43 = arith.constant 0.000000e+00 : f32
    %33 = vector.broadcast %cst_43 : f32 to vector<2x288xf32>
    %34 = arith.subf %33, %32 : vector<2x288xf32>
    %35 = math.exp %34 : vector<2x288xf32>
    %cst_44 = arith.constant 1.000000e+00 : f32
    %36 = vector.broadcast %cst_44 : f32 to vector<2x288xf32>
    %37 = arith.addf %36, %35 : vector<2x288xf32>
    %38 = tpu.reciprocal %37 {approx = true} : vector<2x288xf32> -> vector<2x288xf32>
    %c0_45 = arith.constant 0 : index
    %c0_46 = arith.constant 0 : index
    %c0_47 = arith.constant 0 : index
    %c0_48 = arith.constant 0 : index
    %39 = vector.load %arg5[%c0_45, %c0_46, %c0_47, %c0_48] : memref<1x1x2x288xf32, #tpu.memory_space<vmem>>, vector<1x1x2x288xf32>
    %40 = vector.shape_cast %39 : vector<1x1x2x288xf32> to vector<2x288xf32>
    %41 = vector.shape_cast %38 : vector<2x288xf32> to vector<1x1x2x288xf32>
    tpu.vector_store %arg5[%c0_45, %c0_46, %c0_47, %c0_48], %41 {strides = array<i32>} : memref<1x1x2x288xf32, #tpu.memory_space<vmem>>, vector<1x1x2x288xf32>,
    return
  }
  func.func @transform_0(%arg0: i32, %arg1: i32) -> (i32, i32, i32, i32) {
    %c0_i32 = arith.constant 0 : i32
    %c0_i32_0 = arith.constant 0 : i32
    %c0_i32_1 = arith.constant 0 : i32
    return %arg0, %arg1, %c0_i32, %c0_i32_0 : i32, i32, i32, i32
  }
  func.func @transform_1(%arg0: i32, %arg1: i32) -> (i32, i32) {
    %c0_i32 = arith.constant 0 : i32
    %c0_i32_0 = arith.constant 0 : i32
    %c0_i32_1 = arith.constant 0 : i32
    return %c0_i32, %c0_i32_0 : i32, i32
  }
  func.func @transform_2(%arg0: i32, %arg1: i32) -> (i32, i32) {
    %c0_i32 = arith.constant 0 : i32
    %c0_i32_0 = arith.constant 0 : i32
    %c0_i32_1 = arith.constant 0 : i32
    return %c0_i32, %c0_i32_0 : i32, i32
  }
  func.func @transform_3(%arg0: i32, %arg1: i32) -> (i32, i32, i32, i32) {
    %c0_i32 = arith.constant 0 : i32
    %c0_i32_0 = arith.constant 0 : i32
    %c0_i32_1 = arith.constant 0 : i32
    return %arg0, %arg1, %c0_i32, %c0_i32_0 : i32, i32, i32, i32
  }
}

</mosaic_0001>

<llo_original>
// kernel: decoder_stage_forward.11
$region0: #{decoder_stage_forward.11}
  #allocation0 [shape = 'u32[]', space=smem, size = 0x4, offset = 0x4, fixed_abs, tag = 'smem constant byte address 0x4 - core index']
  #allocation1 [shape = 'u32[144,128]{1,0:T(1,128)}', space=vmem, size = 0x12000, scoped, tag = 'internal scratch']
  %s0 = inlined_call_operand.vmem [shape: bf16[2,32,256], index: 0, kind: input, shape index: {}]
  %s1 = inlined_call_operand.vmem [shape: f32[2,32,1], index: 1, kind: input, shape index: {}]
  %s2 = inlined_call_operand.vmem [shape: f32[2,32,256], index: 2, kind: output, shape index: {}]
  %s3 = sld [smem:[#allocation0]]
  $region41: #{decoder_stage_forward.11} parent=0
    _
  %s5 = ssub.s32 1, %s3
  %s6 = scalar_select 0, %s5, %s3
  loop: start=0, step=1, limit=4
  $region2: #{decoder_stage_forward.11} parent=0 // loop_pre_header
    _
  $region3: #{decoder_stage_forward.11} parent=0 // loop_header
    %s8 = sphi 0, %s12
    %p9 = scmp.ge.s32.totalorder %s8, 4
    %s15 = sphi 0, %s27
    %s16 = sphi 0, %s23
    %s17 = sphi 0, %s15
    %s18 = sphi 0, %s16
    %s19 = sphi 0, %s17
    %s20 = sphi 0, %s18
    %s32 = sphi 0, %s34
    %s35 = sphi 0, %s32
    %s36 = sphi 0, %s35
    %s52 = sphi 0, %s36
    %s58 = sphi 0, %s60
    %s61 = sphi 0, %s58
    %s62 = sphi 0, %s61
    %s78 = sphi 0, %s62
    %s86 = sphi 0, %s88
    %s89 = sphi 0, %s86
    %s90 = sphi 0, %s89
    %s106 = sphi 0, %s90
  $region4: #{decoder_stage_forward.11} parent=0 // loop_header_branch
    %11 = sbr.rel (%p9) target = $region8
  $region5: #{decoder_stage_forward.11} parent=0 // loop_body
    %s13 = ssub.s32 %s8, 1
    %s14 = ssub.s32 %s8, 2
    %s21 = sadd.s32 1, %s16
    %p22 = scmp.ge.s32.totalorder %s21, 1
    %s23 = scalar_select %p22, 0, %s21
    %s24 = sadd.s32 1, %s15
    %s25 = scalar_select %p22, %s24, %s15
    %p26 = scmp.ge.s32.totalorder %s25, 2
    %s27 = scalar_select %p26, 0, %s25
    %s28 = ssub.s32 %s15, %s27
    %s29 = ssub.s32 %s16, %s23
    %s30 = sor.u32 %s28, %s29
    %p31 = scmp.eq.s32.totalorder %s30, 0
    %s33 = sadd.s32 %s32, 1
    %s34 = scalar_select %p31, %s32, %s33
    %p37 = pneg %p31
    %p38 = scmp.eq.s32.totalorder %s8, 1
    %p39 = por %p37, %p38
    %p40 = scmp.ne.s32.totalorder %s32, %s35
    %p41 = scmp.eq.s32.totalorder %s8, 0
    %p42 = por %p40, %p41
    %p43 = scmp.ne.s32.totalorder %s32, %s35
    %p44 = scmp.eq.s32.totalorder %s13, 1
    %p45 = por %p43, %p44
    %p46 = scmp.ne.s32.totalorder %s35, %s36
    %p47 = scmp.eq.s32.totalorder %s13, 0
    %p48 = por %p46, %p47
    %p49 = scmp.ne.s32.totalorder %s35, %s36
    %p50 = scmp.eq.s32.totalorder %s14, 1
    %p51 = por %p49, %p50
    %p53 = scmp.ne.s32.totalorder %s36, %s52
    %p54 = scmp.eq.s32.totalorder %s14, 0
    %p55 = por %p53, %p54
    %s56 = ssub.s32 %s15, %s27
    %p57 = scmp.eq.s32.totalorder %s56, 0
    %s59 = sadd.s32 %s58, 1
    %s60 = scalar_select %p57, %s58, %s59
    %p63 = pneg %p57
    %p64 = scmp.eq.s32.totalorder %s8, 1
    %p65 = por %p63, %p64
    %p66 = scmp.ne.s32.totalorder %s58, %s61
    %p67 = scmp.eq.s32.totalorder %s8, 0
    %p68 = por %p66, %p67
    %p69 = scmp.ne.s32.totalorder %s58, %s61
    %p70 = scmp.eq.s32.totalorder %s13, 1
    %p71 = por %p69, %p70
    %p72 = scmp.ne.s32.totalorder %s61, %s62
    %p73 = scmp.eq.s32.totalorder %s13, 0
    %p74 = por %p72, %p73
    %p75 = scmp.ne.s32.totalorder %s61, %s62
    %p76 = scmp.eq.s32.totalorder %s14, 1
    %p77 = por %p75, %p76
    %p79 = scmp.ne.s32.totalorder %s62, %s78
    %p80 = scmp.eq.s32.totalorder %s14, 0
    %p81 = por %p79, %p80
    %s82 = ssub.s32 %s15, %s27
    %s83 = ssub.s32 %s16, %s23
    %s84 = sor.u32 %s82, %s83
    %p85 = scmp.eq.s32.totalorder %s84, 0
    %s87 = sadd.s32 %s86, 1
    %s88 = scalar_select %p85, %s86, %s87
    %p91 = pneg %p85
    %p92 = scmp.eq.s32.totalorder %s8, 1
    %p93 = por %p91, %p92
    %p94 = scmp.ne.s32.totalorder %s86, %s89
    %p95 = scmp.eq.s32.totalorder %s8, 0
    %p96 = por %p94, %p95
    %p97 = scmp.ne.s32.totalorder %s86, %s89
    %p98 = scmp.eq.s32.totalorder %s13, 1
    %p99 = por %p97, %p98
    %p100 = scmp.ne.s32.totalorder %s89, %s90
    %p101 = scmp.eq.s32.totalorder %s13, 0
    %p102 = por %p100, %p101
    %p103 = scmp.ne.s32.totalorder %s89, %s90
    %p104 = scmp.eq.s32.totalorder %s14, 1
    %p105 = por %p103, %p104
    %p107 = scmp.ne.s32.totalorder %s90, %s106
    %p108 = scmp.eq.s32.totalorder %s14, 0
    %p109 = por %p107, %p108
    %p110 = scmp.le.s32.totalorder 1, %s8
    %p111 = scmp.lt.s32.totalorder %s8, 3
    %p112 = pnand %p110, %p111
    %p113 = pneg %p112
    // Predicated region
    $region9: #{decoder_stage_forward.11} parent=5 // pred_check
      _
    $region10: #{decoder_stage_forward.11} parent=5 // pred_check_branch
      %115 = sbr.rel (%p112) target = $region12
    $region11: #{decoder_stage_forward.11} parent=5 // pred_region
      %s116 = ssub.s32 %s8, 1
    $region12: #{decoder_stage_forward.11} parent=5 // pred_fallthru
      _
    %p117 = scmp.lt.s32.totalorder %s8, 2
    // Predicated region
    $region13: #{decoder_stage_forward.11} parent=5 // pred_check
      %p118 = pneg %p117
    $region14: #{decoder_stage_forward.11} parent=5 // pred_check_branch
      %120 = sbr.rel (%p118) target = $region16
    $region15: #{decoder_stage_forward.11} parent=5 // pred_region
      // Predicated region
      $region17: #{decoder_stage_forward.11} parent=15 // pred_check
        %p121 = pneg %p42
      $region18: #{decoder_stage_forward.11} parent=15 // pred_check_branch
        %123 = sbr.rel (%p121) target = $region20
      $region19: #{decoder_stage_forward.11} parent=15 // pred_region
        %s124 = smul.u32 2, %s16
        %p125 = scmp.lt.s32.totalorder %s15, 1
        %s126 = scalar_select %p125, %s15, 1
        %p127 = scmp.lt.s32.totalorder %s124, 1
        %s128 = scalar_select %p127, %s124, 1
        %s129 = smul.addr %s126, 8
        %s130 = sadd.s32 %s128, %s129
        %s131 = smul.addr %s130, 4
        %s132 = scalar_lea.vmem %s0, %s131
        %s133 = smul.u32 2, %s16
      $region20: #{decoder_stage_forward.11} parent=15 // pred_fallthru
        _
      // Predicated region
      $region21: #{decoder_stage_forward.11} parent=15 // pred_check
        %p134 = pneg %p68
      $region22: #{decoder_stage_forward.11} parent=15 // pred_check_branch
        %136 = sbr.rel (%p134) target = $region24
      $region23: #{decoder_stage_forward.11} parent=15 // pred_region
        %p137 = scmp.lt.s32.totalorder %s15, 1
        %s138 = scalar_select %p137, %s15, 1
        %s139 = smul.addr %s138, 4
        %s140 = smul.addr %s139, 8
        %s141 = scalar_lea.vmem %s1, %s140
      $region24: #{decoder_stage_forward.11} parent=15 // pred_fallthru
        _
    $region16: #{decoder_stage_forward.11} parent=5 // pred_fallthru
      _
    %p142 = scmp.le.s32.totalorder 1, %s8
    %p143 = scmp.lt.s32.totalorder %s8, 3
    %p144 = pnand %p142, %p143
    %p145 = pneg %p144
    // Predicated region
    $region25: #{decoder_stage_forward.11} parent=5 // pred_check
      _
    $region26: #{decoder_stage_forward.11} parent=5 // pred_check_branch
      %147 = sbr.rel (%p144) target = $region28
    $region27: #{decoder_stage_forward.11} parent=5 // pred_region
      %s148 = ssub.s32 %s8, 1
      %s149 = smul.u32 2, %s18
      %p150 = scmp.lt.s32.totalorder %s17, 1
      %s151 = scalar_select %p150, %s17, 1
      %p152 = scmp.lt.s32.totalorder %s149, 1
      %s153 = scalar_select %p152, %s149, 1
      %s154 = smul.addr %s151, 8
      %s155 = sadd.s32 %s153, %s154
      %s156 = smul.addr %s155, 4
      %s157 = scalar_lea.vmem %s0, %s156
      %p158 = pneg %p48
      %p159 = pneg %p45
      %p160 = scmp.lt.s32.totalorder %s17, 1
      %s161 = scalar_select %p160, %s17, 1
      %s162 = smul.addr %s161, 4
      %s163 = smul.addr %s162, 8
      %s164 = scalar_lea.vmem %s1, %s163
      %p165 = pneg %p74
      %p166 = pneg %p71
      %p167 = pneg %p102
      %p168 = pneg %p99
      %s169 = smul.u32 2, %s18
      %p170 = scmp.lt.s32.totalorder %s17, 1
      %s171 = scalar_select %p170, %s17, 1
      %p172 = scmp.lt.s32.totalorder %s169, 1
      %s173 = scalar_select %p172, %s169, 1
      %s174 = smul.addr %s171, 8
      %s175 = sadd.s32 %s173, %s174
      %s176 = smul.addr %s175, 8
      %s177 = scalar_lea.vmem %s2, %s176
      %s178 = smul.u32 2, %s18
      %p179 = scmp.lt.s32.totalorder %s17, 1
      %s180 = scalar_select %p179, %s17, 1
      %p181 = scmp.lt.s32.totalorder %s178, 1
      %s182 = scalar_select %p181, %s178, 1
      %s183 = smul.addr %s180, 8
      %s184 = sadd.s32 %s182, %s183
      %s185 = smul.addr %s184, 4
      %s186 = scalar_lea.vmem %s0, %s185
      %s187 = smul.u32 2, %s18
      %p188 = scmp.lt.s32.totalorder %s17, 1
      %s189 = scalar_select %p188, %s17, 1
      %s190 = smul.addr %s189, 4
      %s191 = smul.addr %s190, 8
      %s192 = scalar_lea.vmem %s1, %s191
      %s193 = smul.u32 2, %s18
      %p194 = scmp.lt.s32.totalorder %s17, 1
      %s195 = scalar_select %p194, %s17, 1
      %p196 = scmp.lt.s32.totalorder %s193, 1
      %s197 = scalar_select %p196, %s193, 1
      %s198 = smul.addr %s195, 8
      %s199 = sadd.s32 %s197, %s198
      %s200 = smul.addr %s199, 8
      %s201 = scalar_lea.vmem %s2, %s200
      %s202 = smul.u32 2, %s18
      %v203 = vld [vmem:[%s186] sm:$0xff]
      %v204 = vld [vmem:[%s186 + $0x8] sm:$0xff]
      %v205 = vld [vmem:[%s186 + $0x10] sm:$0xff]
      %v206 = vld [vmem:[%s186 + $0x18] sm:$0xff]
      %v207 = vunpack.c.l.bf16 %v203
      %v208 = vunpack.c.h.bf16 %v203
      %v209 = vunpack.c.l.bf16 %v204
      %v210 = vunpack.c.h.bf16 %v204
      %v211 = vunpack.c.l.bf16 %v205
      %v212 = vunpack.c.h.bf16 %v205
      %v213 = vunpack.c.l.bf16 %v206
      %v214 = vunpack.c.h.bf16 %v206
      %v215 = vld [vmem:[%s192] sm:$0xff]
      %v216 = vld [vmem:[%s192 + $0x8] sm:$0xff]
      %v217 = vld [vmem:[%s192 + $0x10] sm:$0xff]
      %v218 = vld [vmem:[%s192 + $0x18] sm:$0xff]
      %220 = vset.pattern.permute.xlu0 0
      %221 = vperm.xlu0 %220, %v215
      %v222 = vpop.permute.xlu0 %221
      %225 = vset.pattern.permute.xlu0 0
      %226 = vperm.xlu0 %225, %v216
      %v227 = vpop.permute.xlu0 %226
      %230 = vset.pattern.permute.xlu0 0
      %231 = vperm.xlu0 %230, %v217
      %v232 = vpop.permute.xlu0 %231
      %235 = vset.pattern.permute.xlu0 0
      %236 = vperm.xlu0 %235, %v218
      %v237 = vpop.permute.xlu0 %236
      %v239 = vmul.f32 %v207, %v222
      %v240 = vmul.f32 %v208, %v222
      %v241 = vmul.f32 %v209, %v227
      %v242 = vmul.f32 %v210, %v227
      %v243 = vmul.f32 %v211, %v232
      %v244 = vmul.f32 %v212, %v232
      %v245 = vmul.f32 %v213, %v237
      %v246 = vmul.f32 %v214, %v237
      %247 = vst [vmem:[%s201] sm:$0xff] %v239
      %248 = vst [vmem:[%s201 + $0x8] sm:$0xff] %v240
      %249 = vst [vmem:[%s201 + $0x10] sm:$0xff] %v241
      %250 = vst [vmem:[%s201 + $0x18] sm:$0xff] %v242
      %251 = vst [vmem:[%s201 + $0x20] sm:$0xff] %v243
      %252 = vst [vmem:[%s201 + $0x28] sm:$0xff] %v244
      %253 = vst [vmem:[%s201 + $0x30] sm:$0xff] %v245
      %254 = vst [vmem:[%s201 + $0x38] sm:$0xff] %v246
      %s255 = smul.u32 2, %s18
      %p256 = scmp.lt.s32.totalorder %s17, 1
      %s257 = scalar_select %p256, %s17, 1
      %p258 = scmp.lt.s32.totalorder %s255, 1
      %s259 = scalar_select %p258, %s255, 1
      %s260 = smul.addr %s257, 8
      %s261 = sadd.s32 %s259, %s260
      %s262 = smul.addr %s261, 8
      %s263 = scalar_lea.vmem %s2, %s262
      // Predicated region
      $region29: #{decoder_stage_forward.11} parent=27 // pred_check
        %p264 = pneg %p99
      $region30: #{decoder_stage_forward.11} parent=27 // pred_check_branch
        %266 = sbr.rel (%p264) target = $region32
      $region31: #{decoder_stage_forward.11} parent=27 // pred_region
        %s267 = smul.u32 2, %s18
      $region32: #{decoder_stage_forward.11} parent=27 // pred_fallthru
        _
    $region28: #{decoder_stage_forward.11} parent=5 // pred_fallthru
      _
    %p268 = scmp.le.s32.totalorder 2, %s8
    // Predicated region
    $region33: #{decoder_stage_forward.11} parent=5 // pred_check
      %p269 = pneg %p268
    $region34: #{decoder_stage_forward.11} parent=5 // pred_check_branch
      %271 = sbr.rel (%p269) target = $region36
    $region35: #{decoder_stage_forward.11} parent=5 // pred_region
      %s272 = ssub.s32 %s8, 2
      // Predicated region
      $region37: #{decoder_stage_forward.11} parent=35 // pred_check
        %p273 = pneg %p105
      $region38: #{decoder_stage_forward.11} parent=35 // pred_check_branch
        %275 = sbr.rel (%p273) target = $region40
      $region39: #{decoder_stage_forward.11} parent=35 // pred_region
        %s276 = smul.u32 2, %s20
        %p277 = scmp.lt.s32.totalorder %s19, 1
        %s278 = scalar_select %p277, %s19, 1
        %p279 = scmp.lt.s32.totalorder %s276, 1
        %s280 = scalar_select %p279, %s276, 1
        %s281 = smul.addr %s278, 8
        %s282 = sadd.s32 %s280, %s281
        %s283 = smul.addr %s282, 8
        %s284 = scalar_lea.vmem %s2, %s283
      $region40: #{decoder_stage_forward.11} parent=35 // pred_fallthru
        _
    $region36: #{decoder_stage_forward.11} parent=5 // pred_fallthru
      _
  $region6: #{decoder_stage_forward.11} parent=0 // loop_footer
    %s12 = sadd.s32 1, %s8
  $region7: #{decoder_stage_forward.11} parent=0 // loop_footer_branch
    %7 = sbr.rel target = $region3
  $region8: #{decoder_stage_forward.11} parent=0 // loop_exit
    _

// kernel: decoder_stage_forward.9
$region0: #{decoder_stage_forward.9}
  #allocation0 [shape = 'u32[]', space=smem, size = 0x4, offset = 0x4, fixed_abs, tag = 'smem constant byte address 0x4 - core index']
  #allocation1 [shape = 'u32[144,128]{1,0:T(1,128)}', space=vmem, size = 0x12000, scoped, tag = 'internal scratch']
  %s0 = inlined_call_operand.vmem [shape: f32[2,6,256], index: 0, kind: input, shape index: {}]
  %s1 = inlined_call_operand.vmem [shape: bf16[32,6], index: 1, kind: input, shape index: {}]
  %s2 = inlined_call_operand.vmem [shape: bf16[2,6,256], index: 2, kind: input, shape index: {}]
  %s3 = inlined_call_operand.vmem [shape: bf16[32,6], index: 3, kind: input, shape index: {}]
  %s4 = inlined_call_operand.vmem [shape: f32[32,1], index: 4, kind: input, shape index: {}]
  %s5 = inlined_call_operand.vmem [shape: bf16[2,32,256], index: 5, kind: output, shape index: {}]
  %s6 = sld [smem:[#allocation0]]
  $region53: #{decoder_stage_forward.9} parent=0
    _
  %s8 = ssub.s32 1, %s6
  %s9 = scalar_select 0, %s8, %s6
  loop: start=0, step=1, limit=4
  $region2: #{decoder_stage_forward.9} parent=0 // loop_pre_header
    _
  $region3: #{decoder_stage_forward.9} parent=0 // loop_header
    %s11 = sphi 0, %s15
    %p12 = scmp.ge.s32.totalorder %s11, 4
    %s18 = sphi 0, %s30
    %s19 = sphi 0, %s26
    %s20 = sphi 0, %s18
    %s21 = sphi 0, %s19
    %s22 = sphi 0, %s20
    %s23 = sphi 0, %s21
    %s35 = sphi 0, %s37
    %s38 = sphi 0, %s35
    %s39 = sphi 0, %s38
    %s55 = sphi 0, %s39
    %s59 = sphi 0, %s59
    %s61 = sphi 0, %s59
    %s62 = sphi 0, %s61
    %s76 = sphi 0, %s62
    %s84 = sphi 0, %s86
    %s87 = sphi 0, %s84
    %s88 = sphi 0, %s87
    %s104 = sphi 0, %s88
    %s108 = sphi 0, %s108
    %s110 = sphi 0, %s108
    %s111 = sphi 0, %s110
    %s125 = sphi 0, %s111
    %s129 = sphi 0, %s129
    %s131 = sphi 0, %s129
    %s132 = sphi 0, %s131
    %s146 = sphi 0, %s132
    %s154 = sphi 0, %s156
    %s157 = sphi 0, %s154
    %s158 = sphi 0, %s157
    %s174 = sphi 0, %s158
  $region4: #{decoder_stage_forward.9} parent=0 // loop_header_branch
    %14 = sbr.rel (%p12) target = $region8
  $region5: #{decoder_stage_forward.9} parent=0 // loop_body
    %s16 = ssub.s32 %s11, 1
    %s17 = ssub.s32 %s11, 2
    %s24 = sadd.s32 1, %s19
    %p25 = scmp.ge.s32.totalorder %s24, 1
    %s26 = scalar_select %p25, 0, %s24
    %s27 = sadd.s32 1, %s18
    %s28 = scalar_select %p25, %s27, %s18
    %p29 = scmp.ge.s32.totalorder %s28, 2
    %s30 = scalar_select %p29, 0, %s28
    %s31 = ssub.s32 %s18, %s30
    %s32 = ssub.s32 %s19, %s26
    %s33 = sor.u32 %s31, %s32
    %p34 = scmp.eq.s32.totalorder %s33, 0
    %s36 = sadd.s32 %s35, 1
    %s37 = scalar_select %p34, %s35, %s36
    %p40 = pneg %p34
    %p41 = scmp.eq.s32.totalorder %s11, 1
    %p42 = por %p40, %p41
    %p43 = scmp.ne.s32.totalorder %s35, %s38
    %p44 = scmp.eq.s32.totalorder %s11, 0
    %p45 = por %p43, %p44
    %p46 = scmp.ne.s32.totalorder %s35, %s38
    %p47 = scmp.eq.s32.totalorder %s16, 1
    %p48 = por %p46, %p47
    %p49 = scmp.ne.s32.totalorder %s38, %s39
    %p50 = scmp.eq.s32.totalorder %s16, 0
    %p51 = por %p49, %p50
    %p52 = scmp.ne.s32.totalorder %s38, %s39
    %p53 = scmp.eq.s32.totalorder %s17, 1
    %p54 = por %p52, %p53
    %p56 = scmp.ne.s32.totalorder %s39, %s55
    %p57 = scmp.eq.s32.totalorder %s17, 0
    %p58 = por %p56, %p57
    %s60 = sadd.s32 %s59, 1
    %p63 = scmp.eq.s32.totalorder %s11, 1
    %p64 = scmp.ne.s32.totalorder %s59, %s61
    %p65 = scmp.eq.s32.totalorder %s11, 0
    %p66 = por %p64, %p65
    %p67 = scmp.ne.s32.totalorder %s59, %s61
    %p68 = scmp.eq.s32.totalorder %s16, 1
    %p69 = por %p67, %p68
    %p70 = scmp.ne.s32.totalorder %s61, %s62
    %p71 = scmp.eq.s32.totalorder %s16, 0
    %p72 = por %p70, %p71
    %p73 = scmp.ne.s32.totalorder %s61, %s62
    %p74 = scmp.eq.s32.totalorder %s17, 1
    %p75 = por %p73, %p74
    %p77 = scmp.ne.s32.totalorder %s62, %s76
    %p78 = scmp.eq.s32.totalorder %s17, 0
    %p79 = por %p77, %p78
    %s80 = ssub.s32 %s18, %s30
    %s81 = ssub.s32 %s19, %s26
    %s82 = sor.u32 %s80, %s81
    %p83 = scmp.eq.s32.totalorder %s82, 0
    %s85 = sadd.s32 %s84, 1
    %s86 = scalar_select %p83, %s84, %s85
    %p89 = pneg %p83
    %p90 = scmp.eq.s32.totalorder %s11, 1
    %p91 = por %p89, %p90
    %p92 = scmp.ne.s32.totalorder %s84, %s87
    %p93 = scmp.eq.s32.totalorder %s11, 0
    %p94 = por %p92, %p93
    %p95 = scmp.ne.s32.totalorder %s84, %s87
    %p96 = scmp.eq.s32.totalorder %s16, 1
    %p97 = por %p95, %p96
    %p98 = scmp.ne.s32.totalorder %s87, %s88
    %p99 = scmp.eq.s32.totalorder %s16, 0
    %p100 = por %p98, %p99
    %p101 = scmp.ne.s32.totalorder %s87, %s88
    %p102 = scmp.eq.s32.totalorder %s17, 1
    %p103 = por %p101, %p102
    %p105 = scmp.ne.s32.totalorder %s88, %s104
    %p106 = scmp.eq.s32.totalorder %s17, 0
    %p107 = por %p105, %p106
    %s109 = sadd.s32 %s108, 1
    %p112 = scmp.eq.s32.totalorder %s11, 1
    %p113 = scmp.ne.s32.totalorder %s108, %s110
    %p114 = scmp.eq.s32.totalorder %s11, 0
    %p115 = por %p113, %p114
    %p116 = scmp.ne.s32.totalorder %s108, %s110
    %p117 = scmp.eq.s32.totalorder %s16, 1
    %p118 = por %p116, %p117
    %p119 = scmp.ne.s32.totalorder %s110, %s111
    %p120 = scmp.eq.s32.totalorder %s16, 0
    %p121 = por %p119, %p120
    %p122 = scmp.ne.s32.totalorder %s110, %s111
    %p123 = scmp.eq.s32.totalorder %s17, 1
    %p124 = por %p122, %p123
    %p126 = scmp.ne.s32.totalorder %s111, %s125
    %p127 = scmp.eq.s32.totalorder %s17, 0
    %p128 = por %p126, %p127
    %s130 = sadd.s32 %s129, 1
    %p133 = scmp.eq.s32.totalorder %s11, 1
    %p134 = scmp.ne.s32.totalorder %s129, %s131
    %p135 = scmp.eq.s32.totalorder %s11, 0
    %p136 = por %p134, %p135
    %p137 = scmp.ne.s32.totalorder %s129, %s131
    %p138 = scmp.eq.s32.totalorder %s16, 1
    %p139 = por %p137, %p138
    %p140 = scmp.ne.s32.totalorder %s131, %s132
    %p141 = scmp.eq.s32.totalorder %s16, 0
    %p142 = por %p140, %p141
    %p143 = scmp.ne.s32.totalorder %s131, %s132
    %p144 = scmp.eq.s32.totalorder %s17, 1
    %p145 = por %p143, %p144
    %p147 = scmp.ne.s32.totalorder %s132, %s146
    %p148 = scmp.eq.s32.totalorder %s17, 0
    %p149 = por %p147, %p148
    %s150 = ssub.s32 %s18, %s30
    %s151 = ssub.s32 %s19, %s26
    %s152 = sor.u32 %s150, %s151
    %p153 = scmp.eq.s32.totalorder %s152, 0
    %s155 = sadd.s32 %s154, 1
    %s156 = scalar_select %p153, %s154, %s155
    %p159 = pneg %p153
    %p160 = scmp.eq.s32.totalorder %s11, 1
    %p161 = por %p159, %p160
    %p162 = scmp.ne.s32.totalorder %s154, %s157
    %p163 = scmp.eq.s32.totalorder %s11, 0
    %p164 = por %p162, %p163
    %p165 = scmp.ne.s32.totalorder %s154, %s157
    %p166 = scmp.eq.s32.totalorder %s16, 1
    %p167 = por %p165, %p166
    %p168 = scmp.ne.s32.totalorder %s157, %s158
    %p169 = scmp.eq.s32.totalorder %s16, 0
    %p170 = por %p168, %p169
    %p171 = scmp.ne.s32.totalorder %s157, %s158
    %p172 = scmp.eq.s32.totalorder %s17, 1
    %p173 = por %p171, %p172
    %p175 = scmp.ne.s32.totalorder %s158, %s174
    %p176 = scmp.eq.s32.totalorder %s17, 0
    %p177 = por %p175, %p176
    %p178 = scmp.le.s32.totalorder 1, %s11
    %p179 = scmp.lt.s32.totalorder %s11, 3
    %p180 = pnand %p178, %p179
    %p181 = pneg %p180
    // Predicated region
    $region9: #{decoder_stage_forward.9} parent=5 // pred_check
      _
    $region10: #{decoder_stage_forward.9} parent=5 // pred_check_branch
      %183 = sbr.rel (%p180) target = $region12
    $region11: #{decoder_stage_forward.9} parent=5 // pred_region
      %s184 = ssub.s32 %s11, 1
      // Predicated region
      $region13: #{decoder_stage_forward.9} parent=11 // pred_check
        %p185 = pneg %p72
      $region14: #{decoder_stage_forward.9} parent=11 // pred_check_branch
        %187 = sbr.rel (%p185) target = $region16
      $region15: #{decoder_stage_forward.9} parent=11 // pred_region
        _
      $region16: #{decoder_stage_forward.9} parent=11 // pred_fallthru
        _
      // Predicated region
      $region17: #{decoder_stage_forward.9} parent=11 // pred_check
        %p188 = pneg %p121
      $region18: #{decoder_stage_forward.9} parent=11 // pred_check_branch
        %190 = sbr.rel (%p188) target = $region20
      $region19: #{decoder_stage_forward.9} parent=11 // pred_region
        _
      $region20: #{decoder_stage_forward.9} parent=11 // pred_fallthru
        _
      // Predicated region
      $region21: #{decoder_stage_forward.9} parent=11 // pred_check
        %p191 = pneg %p142
      $region22: #{decoder_stage_forward.9} parent=11 // pred_check_branch
        %193 = sbr.rel (%p191) target = $region24
      $region23: #{decoder_stage_forward.9} parent=11 // pred_region
        _
      $region24: #{decoder_stage_forward.9} parent=11 // pred_fallthru
        _
    $region12: #{decoder_stage_forward.9} parent=5 // pred_fallthru
      _
    %p194 = scmp.lt.s32.totalorder %s11, 2
    // Predicated region
    $region25: #{decoder_stage_forward.9} parent=5 // pred_check
      %p195 = pneg %p194
    $region26: #{decoder_stage_forward.9} parent=5 // pred_check_branch
      %197 = sbr.rel (%p195) target = $region28
    $region27: #{decoder_stage_forward.9} parent=5 // pred_region
      // Predicated region
      $region29: #{decoder_stage_forward.9} parent=27 // pred_check
        %p198 = pneg %p45
      $region30: #{decoder_stage_forward.9} parent=27 // pred_check_branch
        %200 = sbr.rel (%p198) target = $region32
      $region31: #{decoder_stage_forward.9} parent=27 // pred_region
        %s201 = smul.u32 2, %s19
        %p202 = scmp.lt.s32.totalorder %s18, 1
        %s203 = scalar_select %p202, %s18, 1
        %p204 = scmp.lt.s32.totalorder %s201, 1
        %s205 = scalar_select %p204, %s201, 1
        %s206 = smul.addr %s203, 2
        %s207 = sadd.s32 %s205, %s206
        %s208 = smul.addr %s207, 8
        %s209 = scalar_lea.vmem %s0, %s208
        %s210 = smul.u32 2, %s19
      $region32: #{decoder_stage_forward.9} parent=27 // pred_fallthru
        _
      // Predicated region
      $region33: #{decoder_stage_forward.9} parent=27 // pred_check
        %p211 = pneg %p94
      $region34: #{decoder_stage_forward.9} parent=27 // pred_check_branch
        %213 = sbr.rel (%p211) target = $region36
      $region35: #{decoder_stage_forward.9} parent=27 // pred_region
        %s214 = smul.u32 2, %s19
        %p215 = scmp.lt.s32.totalorder %s18, 1
        %s216 = scalar_select %p215, %s18, 1
        %p217 = scmp.lt.s32.totalorder %s214, 1
        %s218 = scalar_select %p217, %s214, 1
        %s219 = smul.addr %s216, 2
        %s220 = sadd.s32 %s218, %s219
        %s221 = smul.addr %s220, 4
        %s222 = scalar_lea.vmem %s2, %s221
        %s223 = smul.u32 2, %s19
      $region36: #{decoder_stage_forward.9} parent=27 // pred_fallthru
        _
    $region28: #{decoder_stage_forward.9} parent=5 // pred_fallthru
      _
    %p224 = scmp.le.s32.totalorder 1, %s11
    %p225 = scmp.lt.s32.totalorder %s11, 3
    %p226 = pnand %p224, %p225
    %p227 = pneg %p226
    // Predicated region
    $region37: #{decoder_stage_forward.9} parent=5 // pred_check
      _
    $region38: #{decoder_stage_forward.9} parent=5 // pred_check_branch
      %229 = sbr.rel (%p226) target = $region40
    $region39: #{decoder_stage_forward.9} parent=5 // pred_region
      %s230 = ssub.s32 %s11, 1
      %s231 = smul.u32 2, %s21
      %p232 = scmp.lt.s32.totalorder %s20, 1
      %s233 = scalar_select %p232, %s20, 1
      %p234 = scmp.lt.s32.totalorder %s231, 1
      %s235 = scalar_select %p234, %s231, 1
      %s236 = smul.addr %s233, 2
      %s237 = sadd.s32 %s235, %s236
      %s238 = smul.addr %s237, 8
      %s239 = scalar_lea.vmem %s0, %s238
      %p240 = pneg %p51
      %p241 = pneg %p48
      %p242 = pneg %p72
      %p243 = pneg %p69
      %s244 = smul.u32 2, %s21
      %p245 = scmp.lt.s32.totalorder %s20, 1
      %s246 = scalar_select %p245, %s20, 1
      %p247 = scmp.lt.s32.totalorder %s244, 1
      %s248 = scalar_select %p247, %s244, 1
      %s249 = smul.addr %s246, 2
      %s250 = sadd.s32 %s248, %s249
      %s251 = smul.addr %s250, 4
      %s252 = scalar_lea.vmem %s2, %s251
      %p253 = pneg %p100
      %p254 = pneg %p97
      %p255 = pneg %p121
      %p256 = pneg %p118
      %p257 = pneg %p142
      %p258 = pneg %p139
      %p259 = pneg %p170
      %p260 = pneg %p167
      %s261 = smul.u32 2, %s21
      %p262 = scmp.lt.s32.totalorder %s20, 1
      %s263 = scalar_select %p262, %s20, 1
      %p264 = scmp.lt.s32.totalorder %s261, 1
      %s265 = scalar_select %p264, %s261, 1
      %s266 = smul.addr %s263, 8
      %s267 = sadd.s32 %s265, %s266
      %s268 = smul.addr %s267, 4
      %s269 = scalar_lea.vmem %s5, %s268
      %s270 = smul.u32 2, %s21
      %p271 = scmp.lt.s32.totalorder %s20, 1
      %s272 = scalar_select %p271, %s20, 1
      %p273 = scmp.lt.s32.totalorder %s270, 1
      %s274 = scalar_select %p273, %s270, 1
      %s275 = smul.addr %s272, 2
      %s276 = sadd.s32 %s274, %s275
      %s277 = smul.addr %s276, 8
      %s278 = scalar_lea.vmem %s0, %s277
      %s279 = smul.u32 2, %s21
      %s280 = smul.u32 2, %s21
      %p281 = scmp.lt.s32.totalorder %s20, 1
      %s282 = scalar_select %p281, %s20, 1
      %p283 = scmp.lt.s32.totalorder %s280, 1
      %s284 = scalar_select %p283, %s280, 1
      %s285 = smul.addr %s282, 2
      %s286 = sadd.s32 %s284, %s285
      %s287 = smul.addr %s286, 4
      %s288 = scalar_lea.vmem %s2, %s287
      %s289 = smul.u32 2, %s21
      %s290 = smul.u32 2, %s21
      %p291 = scmp.lt.s32.totalorder %s20, 1
      %s292 = scalar_select %p291, %s20, 1
      %p293 = scmp.lt.s32.totalorder %s290, 1
      %s294 = scalar_select %p293, %s290, 1
      %s295 = smul.addr %s292, 8
      %s296 = sadd.s32 %s294, %s295
      %s297 = smul.addr %s296, 4
      %s298 = scalar_lea.vmem %s5, %s297
      %s299 = smul.u32 2, %s21
      %v301 = vld [vmem:[%s278] sm:$0x3f]
      %v302 = vld [vmem:[%s278 + $0x8] sm:$0x3f]
      %v303 = vpack.c.bf16 %v301, %v301
      %v304 = vpack.c.bf16 %v302, %v302
      %v305 = vld [vmem:[%s1] sm:$0xf]
      %v306 = vld [vmem:[%s1 + $0x4] sm:$0xf]
      %v307 = vld [vmem:[%s1 + $0x8] sm:$0xf]
      %v308 = vld [vmem:[%s1 + $0xc] sm:$0xf]
      %v309 = vld [vmem:[%s288] sm:$0x77]
      %v310 = vld [vmem:[%s3] sm:$0xf]
      %v311 = vld [vmem:[%s3 + $0x4] sm:$0xf]
      %v312 = vld [vmem:[%s3 + $0x8] sm:$0xf]
      %v313 = vld [vmem:[%s3 + $0xc] sm:$0xf]
      %v318 = vunpack.c.l.b16 %v310
      %v319 = vunpack.c.l.b16 %v311
      %v320 = vunpack.c.l.b16 %v312
      %v321 = vunpack.c.l.b16 %v313
      %v322 = vpack.c.b16 %v319, %v318
      %v323 = vpack.c.b16 %v321, %v320
      %v325 = vunpack.c.l.b16 %v309
      %v326 = vunpack.c.h.b16 %v309
      %v327 = vpack.c.b16 %v325, %v325
      %v328 = vpack.c.b16 %v326, %v326
      %vm329 = vcmask 48128
      %v331 = vsel %vm329, %v322, 0
      %v334 = vsel %vm329, %v323, 0
      %vm336 = vcmask 1042432
      %v338 = vsel %vm336, %v327, 0
      %v341 = vsel %vm336, %v328, 0
      %343 = vmatprep.subr.bf16.mxu0 0
      %344 = vmatpush1.bf16.msra.mxu0 0
      %345 = vmatprep.subr.bf16.mxu0 0
      %346 = vmatpush1.bf16.msra.mxu0 0
      %347 = vmatprep.subr.bf16.mxu0 0
      %348 = vmatpush1.bf16.msra.mxu0 0
      %349 = vmatprep.subr.bf16.mxu0 0
      %350 = vmatpush1.bf16.msra.mxu0 0
      %351 = vmatprep.subr.bf16.mxu0 0
      %352 = vmatpush1.bf16.msra.mxu0 0
      %353 = vmatprep.subr.bf16.mxu0 0
      %354 = vmatpush1.bf16.msra.mxu0 0
      %355 = vmatprep.subr.bf16.mxu0 0
      %356 = vmatpush1.bf16.msra.mxu0 0
      %357 = vmatprep.subr.bf16.mxu0 %v341
      %358 = vmatpush1.bf16.msra.mxu0 %v338
      %359 = vmatprep.subr.bf16.mxu0 0
      %360 = vmatpush2.bf16.msra.mxu0 0
      %361 = vmatprep.subr.bf16.mxu0 0
      %362 = vmatpush2.bf16.msra.mxu0 0
      %363 = vmatprep.subr.bf16.mxu0 0
      %364 = vmatpush2.bf16.msra.mxu0 0
      %365 = vmatprep.subr.bf16.mxu0 0
      %366 = vmatpush2.bf16.msra.mxu0 0
      %367 = vmatprep.subr.bf16.mxu0 0
      %368 = vmatpush2.bf16.msra.mxu0 0
      %369 = vmatprep.subr.bf16.mxu0 0
      %370 = vmatpush2.bf16.msra.mxu0 0
      %371 = vmatprep.subr.bf16.mxu0 0
      %372 = vmatpush2.bf16.msra.mxu0 0
      %373 = vmatprep.subr.bf16.mxu0 0
      %374 = vmatpush2.bf16.msra.mxu0 0
      %375 = vmatprep.mubr.bf16.mxu0 0
      %376 = vmatmul.mubr.bf16.gmra.mxu0 %v331
      %v377 = vpop.f32.mrf.mxu0
      %v378 = vadd.f32 0.0, %v377
      %v379 = vpop.f32.mrf.mxu0
      %v380 = vadd.f32 0.0, %v379
      %v381 = vpop.f32.mrf.mxu0
      %v382 = vadd.f32 0.0, %v381
      %v383 = vpop.f32.mrf.mxu0
      %v384 = vadd.f32 0.0, %v383
      %385 = vmatprep.mubr.bf16.mxu0 0
      %386 = vmatmul.mubr.bf16.gmra.mxu0 %v334
      %v387 = vpop.f32.mrf.mxu0
      %v388 = vadd.f32 0.0, %v387
      %v389 = vpop.f32.mrf.mxu0
      %v390 = vadd.f32 0.0, %v389
      %v391 = vpop.f32.mrf.mxu0
      %v392 = vadd.f32 0.0, %v391
      %v393 = vpop.f32.mrf.mxu0
      %v394 = vadd.f32 0.0, %v393
      %395 = vdwg.mxu0
      %v400 = vunpack.c.l.b16 %v305
      %v401 = vunpack.c.l.b16 %v306
      %v402 = vunpack.c.l.b16 %v307
      %v403 = vunpack.c.l.b16 %v308
      %v404 = vpack.c.b16 %v401, %v400
      %v405 = vpack.c.b16 %v403, %v402
      %v407 = vsel %vm329, %v404, 0
      %v410 = vsel %vm329, %v405, 0
      %v413 = vsel %vm336, %v303, 0
      %v416 = vsel %vm336, %v304, 0
      %418 = vmatprep.subr.bf16.mxu0 0
      %419 = vmatpush1.bf16.msra.mxu0 0
      %420 = vmatprep.subr.bf16.mxu0 0
      %421 = vmatpush1.bf16.msra.mxu0 0
      %422 = vmatprep.subr.bf16.mxu0 0
      %423 = vmatpush1.bf16.msra.mxu0 0
      %424 = vmatprep.subr.bf16.mxu0 0
      %425 = vmatpush1.bf16.msra.mxu0 0
      %426 = vmatprep.subr.bf16.mxu0 0
      %427 = vmatpush1.bf16.msra.mxu0 0
      %428 = vmatprep.subr.bf16.mxu0 0
      %429 = vmatpush1.bf16.msra.mxu0 0
      %430 = vmatprep.subr.bf16.mxu0 0
      %431 = vmatpush1.bf16.msra.mxu0 0
      %432 = vmatprep.subr.bf16.mxu0 %v416
      %433 = vmatpush1.bf16.msra.mxu0 %v413
      %434 = vmatprep.subr.bf16.mxu0 0
      %435 = vmatpush2.bf16.msra.mxu0 0
      %436 = vmatprep.subr.bf16.mxu0 0
      %437 = vmatpush2.bf16.msra.mxu0 0
      %438 = vmatprep.subr.bf16.mxu0 0
      %439 = vmatpush2.bf16.msra.mxu0 0
      %440 = vmatprep.subr.bf16.mxu0 0
      %441 = vmatpush2.bf16.msra.mxu0 0
      %442 = vmatprep.subr.bf16.mxu0 0
      %443 = vmatpush2.bf16.msra.mxu0 0
      %444 = vmatprep.subr.bf16.mxu0 0
      %445 = vmatpush2.bf16.msra.mxu0 0
      %446 = vmatprep.subr.bf16.mxu0 0
      %447 = vmatpush2.bf16.msra.mxu0 0
      %448 = vmatprep.subr.bf16.mxu0 0
      %449 = vmatpush2.bf16.msra.mxu0 0
      %450 = vmatprep.mubr.bf16.mxu0 0
      %451 = vmatmul.mubr.bf16.gmra.mxu0 %v407
      %v452 = vpop.f32.mrf.mxu0
      %v453 = vadd.f32 %v378, %v452
      %v454 = vpop.f32.mrf.mxu0
      %v455 = vadd.f32 %v380, %v454
      %v456 = vpop.f32.mrf.mxu0
      %v457 = vadd.f32 %v382, %v456
      %v458 = vpop.f32.mrf.mxu0
      %v459 = vadd.f32 %v384, %v458
      %460 = vmatprep.mubr.bf16.mxu0 0
      %461 = vmatmul.mubr.bf16.gmra.mxu0 %v410
      %v462 = vpop.f32.mrf.mxu0
      %v463 = vadd.f32 %v388, %v462
      %v464 = vpop.f32.mrf.mxu0
      %v465 = vadd.f32 %v390, %v464
      %v466 = vpop.f32.mrf.mxu0
      %v467 = vadd.f32 %v392, %v466
      %v468 = vpop.f32.mrf.mxu0
      %v469 = vadd.f32 %v394, %v468
      %470 = vdwg.mxu0
      %v471 = vld [vmem:[%s4] sm:$0xff]
      %v472 = vld [vmem:[%s4 + $0x8] sm:$0xff]
      %v473 = vld [vmem:[%s4 + $0x10] sm:$0xff]
      %v474 = vld [vmem:[%s4 + $0x18] sm:$0xff]
      %476 = vset.pattern.permute.xlu0 0
      %477 = vperm.xlu0 %476, %v471
      %v478 = vpop.permute.xlu0 %477
      %481 = vset.pattern.permute.xlu0 0
      %482 = vperm.xlu0 %481, %v472
      %v483 = vpop.permute.xlu0 %482
      %486 = vset.pattern.permute.xlu0 0
      %487 = vperm.xlu0 %486, %v473
      %v488 = vpop.permute.xlu0 %487
      %491 = vset.pattern.permute.xlu0 0
      %492 = vperm.xlu0 %491, %v474
      %v493 = vpop.permute.xlu0 %492
      %v495 = vadd.f32 %v453, %v478
      %v496 = vadd.f32 %v455, %v478
      %v497 = vadd.f32 %v457, %v483
      %v498 = vadd.f32 %v459, %v483
      %v499 = vadd.f32 %v463, %v488
      %v500 = vadd.f32 %v465, %v488
      %v501 = vadd.f32 %v467, %v493
      %v502 = vadd.f32 %v469, %v493
      %vm503 = vcmp.gt.f32.partialorder %v495, 0.0
      %vm504 = vcmp.gt.f32.partialorder %v496, 0.0
      %vm505 = vcmp.gt.f32.partialorder %v497, 0.0
      %vm506 = vcmp.gt.f32.partialorder %v498, 0.0
      %vm507 = vcmp.gt.f32.partialorder %v499, 0.0
      %vm508 = vcmp.gt.f32.partialorder %v500, 0.0
      %vm509 = vcmp.gt.f32.partialorder %v501, 0.0
      %vm510 = vcmp.gt.f32.partialorder %v502, 0.0
      %v511 = vmin.f32 %v495, 0.0
      %v512 = vmin.f32 %v496, 0.0
      %v513 = vmin.f32 %v497, 0.0
      %v514 = vmin.f32 %v498, 0.0
      %v515 = vmin.f32 %v499, 0.0
      %v516 = vmin.f32 %v500, 0.0
      %v517 = vmin.f32 %v501, 0.0
      %v518 = vmin.f32 %v502, 0.0
      %v519 = vmul.f32 %v511, 1.442695
      %v520 = vpow.pop %v519
      %v521 = vmul.f32 %v512, 1.442695
      %v522 = vpow.pop %v521
      %v523 = vmul.f32 %v513, 1.442695
      %v524 = vpow.pop %v523
      %v525 = vmul.f32 %v514, 1.442695
      %v526 = vpow.pop %v525
      %v527 = vmul.f32 %v515, 1.442695
      %v528 = vpow.pop %v527
      %v529 = vmul.f32 %v516, 1.442695
      %v530 = vpow.pop %v529
      %v531 = vmul.f32 %v517, 1.442695
      %v532 = vpow.pop %v531
      %v533 = vmul.f32 %v518, 1.442695
      %v534 = vpow.pop %v533
      %v535 = vsub.f32 %v520, 1.0
      %v536 = vsub.f32 %v522, 1.0
      %v537 = vsub.f32 %v524, 1.0
      %v538 = vsub.f32 %v526, 1.0
      %v539 = vsub.f32 %v528, 1.0
      %v540 = vsub.f32 %v530, 1.0
      %v541 = vsub.f32 %v532, 1.0
      %v542 = vsub.f32 %v534, 1.0
      %v543 = vsel %vm503, %v495, %v535
      %v544 = vsel %vm504, %v496, %v536
      %v545 = vsel %vm505, %v497, %v537
      %v546 = vsel %vm506, %v498, %v538
      %v547 = vsel %vm507, %v499, %v539
      %v548 = vsel %vm508, %v500, %v540
      %v549 = vsel %vm509, %v501, %v541
      %v550 = vsel %vm510, %v502, %v542
      %v551 = vpack.c.bf16 %v545, %v543
      %v552 = vpack.c.bf16 %v546, %v544
      %v553 = vpack.c.bf16 %v549, %v547
      %v554 = vpack.c.bf16 %v550, %v548
      %v559 = vunpack.c.l.b16 %v551
      %v560 = vunpack.c.l.b16 %v552
      %v561 = vunpack.c.h.b16 %v551
      %v562 = vunpack.c.h.b16 %v552
      %v563 = vunpack.c.l.b16 %v553
      %v564 = vunpack.c.l.b16 %v554
      %v565 = vunpack.c.h.b16 %v553
      %v566 = vunpack.c.h.b16 %v554
      %v567 = vpack.c.b16 %v560, %v559
      %v568 = vpack.c.b16 %v562, %v561
      %v569 = vpack.c.b16 %v564, %v563
      %v570 = vpack.c.b16 %v566, %v565
      %575 = vst [vmem:[%s298] sm:$0xff] %v567
      %576 = vst [vmem:[%s298 + $0x8] sm:$0xff] %v568
      %577 = vst [vmem:[%s298 + $0x10] sm:$0xff] %v569
      %578 = vst [vmem:[%s298 + $0x18] sm:$0xff] %v570
      %s579 = smul.u32 2, %s21
      %p580 = scmp.lt.s32.totalorder %s20, 1
      %s581 = scalar_select %p580, %s20, 1
      %p582 = scmp.lt.s32.totalorder %s579, 1
      %s583 = scalar_select %p582, %s579, 1
      %s584 = smul.addr %s581, 8
      %s585 = sadd.s32 %s583, %s584
      %s586 = smul.addr %s585, 4
      %s587 = scalar_lea.vmem %s5, %s586
      // Predicated region
      $region41: #{decoder_stage_forward.9} parent=39 // pred_check
        %p588 = pneg %p167
      $region42: #{decoder_stage_forward.9} parent=39 // pred_check_branch
        %590 = sbr.rel (%p588) target = $region44
      $region43: #{decoder_stage_forward.9} parent=39 // pred_region
        %s591 = smul.u32 2, %s21
      $region44: #{decoder_stage_forward.9} parent=39 // pred_fallthru
        _
    $region40: #{decoder_stage_forward.9} parent=5 // pred_fallthru
      _
    %p592 = scmp.le.s32.totalorder 2, %s11
    // Predicated region
    $region45: #{decoder_stage_forward.9} parent=5 // pred_check
      %p593 = pneg %p592
    $region46: #{decoder_stage_forward.9} parent=5 // pred_check_branch
      %595 = sbr.rel (%p593) target = $region48
    $region47: #{decoder_stage_forward.9} parent=5 // pred_region
      %s596 = ssub.s32 %s11, 2
      // Predicated region
      $region49: #{decoder_stage_forward.9} parent=47 // pred_check
        %p597 = pneg %p173
      $region50: #{decoder_stage_forward.9} parent=47 // pred_check_branch
        %599 = sbr.rel (%p597) target = $region52
      $region51: #{decoder_stage_forward.9} parent=47 // pred_region
        %s600 = smul.u32 2, %s23
        %p601 = scmp.lt.s32.totalorder %s22, 1
        %s602 = scalar_select %p601, %s22, 1
        %p603 = scmp.lt.s32.totalorder %s600, 1
        %s604 = scalar_select %p603, %s600, 1
        %s605 = smul.addr %s602, 8
        %s606 = sadd.s32 %s604, %s605
        %s607 = smul.addr %s606, 4
        %s608 = scalar_lea.vmem %s5, %s607
      $region52: #{decoder_stage_forward.9} parent=47 // pred_fallthru
        _
    $region48: #{decoder_stage_forward.9} parent=5 // pred_fallthru
      _
  $region6: #{decoder_stage_forward.9} parent=0 // loop_footer
    %s15 = sadd.s32 1, %s11
  $region7: #{decoder_stage_forward.9} parent=0 // loop_footer_branch
    %10 = sbr.rel target = $region3
  $region8: #{decoder_stage_forward.9} parent=0 // loop_exit
    _

// kernel: decoder_stage_forward.8
$region0: #{decoder_stage_forward.8}
  #allocation0 [shape = 'u32[]', space=smem, size = 0x4, offset = 0x4, fixed_abs, tag = 'smem constant byte address 0x4 - core index']
  #allocation1 [shape = 'u32[144,128]{1,0:T(1,128)}', space=vmem, size = 0x12000, scoped, tag = 'internal scratch']
  %s0 = inlined_call_operand.vmem [shape: f32[2,48,8], index: 0, kind: input, shape index: {}]
  %s1 = inlined_call_operand.vmem [shape: f32[16,8], index: 1, kind: input, shape index: {}]
  %s2 = inlined_call_operand.vmem [shape: f32[8,16], index: 2, kind: input, shape index: {}]
  %s3 = inlined_call_operand.vmem [shape: bf16[2,6,16,16], index: 3, kind: output, shape index: {}]
  %s4 = sld [smem:[#allocation0]]
  $region45: #{decoder_stage_forward.8} parent=0
    _
  %s6 = ssub.s32 1, %s4
  %s7 = scalar_select 0, %s6, %s4
  loop: start=0, step=1, limit=4
  $region2: #{decoder_stage_forward.8} parent=0 // loop_pre_header
    _
  $region3: #{decoder_stage_forward.8} parent=0 // loop_header
    %s9 = sphi 0, %s13
    %p10 = scmp.ge.s32.totalorder %s9, 4
    %s19 = sphi 0, %s21
    %s22 = sphi 0, %s19
    %s23 = sphi 0, %s22
    %s39 = sphi 0, %s23
    %s43 = sphi 0, %s43
    %s45 = sphi 0, %s43
    %s46 = sphi 0, %s45
    %s60 = sphi 0, %s46
    %s64 = sphi 0, %s64
    %s66 = sphi 0, %s64
    %s67 = sphi 0, %s66
    %s81 = sphi 0, %s67
    %s87 = sphi 0, %s89
    %s90 = sphi 0, %s87
    %s91 = sphi 0, %s90
    %s107 = sphi 0, %s91
  $region4: #{decoder_stage_forward.8} parent=0 // loop_header_branch
    %12 = sbr.rel (%p10) target = $region8
  $region5: #{decoder_stage_forward.8} parent=0 // loop_body
    %s14 = ssub.s32 %s9, 1
    %s15 = ssub.s32 %s9, 2
    %s16 = sadd.s32 %s9, 1
    %s17 = ssub.s32 %s9, %s16
    %p18 = scmp.eq.s32.totalorder %s17, 0
    %s20 = sadd.s32 %s19, 1
    %s21 = scalar_select %p18, %s19, %s20
    %p24 = pneg %p18
    %p25 = scmp.eq.s32.totalorder %s9, 1
    %p26 = por %p24, %p25
    %p27 = scmp.ne.s32.totalorder %s19, %s22
    %p28 = scmp.eq.s32.totalorder %s9, 0
    %p29 = por %p27, %p28
    %p30 = scmp.ne.s32.totalorder %s19, %s22
    %p31 = scmp.eq.s32.totalorder %s14, 1
    %p32 = por %p30, %p31
    %p33 = scmp.ne.s32.totalorder %s22, %s23
    %p34 = scmp.eq.s32.totalorder %s14, 0
    %p35 = por %p33, %p34
    %p36 = scmp.ne.s32.totalorder %s22, %s23
    %p37 = scmp.eq.s32.totalorder %s15, 1
    %p38 = por %p36, %p37
    %p40 = scmp.ne.s32.totalorder %s23, %s39
    %p41 = scmp.eq.s32.totalorder %s15, 0
    %p42 = por %p40, %p41
    %s44 = sadd.s32 %s43, 1
    %p47 = scmp.eq.s32.totalorder %s9, 1
    %p48 = scmp.ne.s32.totalorder %s43, %s45
    %p49 = scmp.eq.s32.totalorder %s9, 0
    %p50 = por %p48, %p49
    %p51 = scmp.ne.s32.totalorder %s43, %s45
    %p52 = scmp.eq.s32.totalorder %s14, 1
    %p53 = por %p51, %p52
    %p54 = scmp.ne.s32.totalorder %s45, %s46
    %p55 = scmp.eq.s32.totalorder %s14, 0
    %p56 = por %p54, %p55
    %p57 = scmp.ne.s32.totalorder %s45, %s46
    %p58 = scmp.eq.s32.totalorder %s15, 1
    %p59 = por %p57, %p58
    %p61 = scmp.ne.s32.totalorder %s46, %s60
    %p62 = scmp.eq.s32.totalorder %s15, 0
    %p63 = por %p61, %p62
    %s65 = sadd.s32 %s64, 1
    %p68 = scmp.eq.s32.totalorder %s9, 1
    %p69 = scmp.ne.s32.totalorder %s64, %s66
    %p70 = scmp.eq.s32.totalorder %s9, 0
    %p71 = por %p69, %p70
    %p72 = scmp.ne.s32.totalorder %s64, %s66
    %p73 = scmp.eq.s32.totalorder %s14, 1
    %p74 = por %p72, %p73
    %p75 = scmp.ne.s32.totalorder %s66, %s67
    %p76 = scmp.eq.s32.totalorder %s14, 0
    %p77 = por %p75, %p76
    %p78 = scmp.ne.s32.totalorder %s66, %s67
    %p79 = scmp.eq.s32.totalorder %s15, 1
    %p80 = por %p78, %p79
    %p82 = scmp.ne.s32.totalorder %s67, %s81
    %p83 = scmp.eq.s32.totalorder %s15, 0
    %p84 = por %p82, %p83
    %s85 = ssub.s32 %s9, %s16
    %p86 = scmp.eq.s32.totalorder %s85, 0
    %s88 = sadd.s32 %s87, 1
    %s89 = scalar_select %p86, %s87, %s88
    %p92 = pneg %p86
    %p93 = scmp.eq.s32.totalorder %s9, 1
    %p94 = por %p92, %p93
    %p95 = scmp.ne.s32.totalorder %s87, %s90
    %p96 = scmp.eq.s32.totalorder %s9, 0
    %p97 = por %p95, %p96
    %p98 = scmp.ne.s32.totalorder %s87, %s90
    %p99 = scmp.eq.s32.totalorder %s14, 1
    %p100 = por %p98, %p99
    %p101 = scmp.ne.s32.totalorder %s90, %s91
    %p102 = scmp.eq.s32.totalorder %s14, 0
    %p103 = por %p101, %p102
    %p104 = scmp.ne.s32.totalorder %s90, %s91
    %p105 = scmp.eq.s32.totalorder %s15, 1
    %p106 = por %p104, %p105
    %p108 = scmp.ne.s32.totalorder %s91, %s107
    %p109 = scmp.eq.s32.totalorder %s15, 0
    %p110 = por %p108, %p109
    %p111 = scmp.le.s32.totalorder 1, %s9
    %p112 = scmp.lt.s32.totalorder %s9, 3
    %p113 = pnand %p111, %p112
    %p114 = pneg %p113
    // Predicated region
    $region9: #{decoder_stage_forward.8} parent=5 // pred_check
      _
    $region10: #{decoder_stage_forward.8} parent=5 // pred_check_branch
      %116 = sbr.rel (%p113) target = $region12
    $region11: #{decoder_stage_forward.8} parent=5 // pred_region
      %s117 = ssub.s32 %s9, 1
      // Predicated region
      $region13: #{decoder_stage_forward.8} parent=11 // pred_check
        %p118 = pneg %p56
      $region14: #{decoder_stage_forward.8} parent=11 // pred_check_branch
        %120 = sbr.rel (%p118) target = $region16
      $region15: #{decoder_stage_forward.8} parent=11 // pred_region
        _
      $region16: #{decoder_stage_forward.8} parent=11 // pred_fallthru
        _
      // Predicated region
      $region17: #{decoder_stage_forward.8} parent=11 // pred_check
        %p121 = pneg %p77
      $region18: #{decoder_stage_forward.8} parent=11 // pred_check_branch
        %123 = sbr.rel (%p121) target = $region20
      $region19: #{decoder_stage_forward.8} parent=11 // pred_region
        _
      $region20: #{decoder_stage_forward.8} parent=11 // pred_fallthru
        _
    $region12: #{decoder_stage_forward.8} parent=5 // pred_fallthru
      _
    %p124 = scmp.lt.s32.totalorder %s9, 2
    // Predicated region
    $region21: #{decoder_stage_forward.8} parent=5 // pred_check
      %p125 = pneg %p124
    $region22: #{decoder_stage_forward.8} parent=5 // pred_check_branch
      %127 = sbr.rel (%p125) target = $region24
    $region23: #{decoder_stage_forward.8} parent=5 // pred_region
      // Predicated region
      $region25: #{decoder_stage_forward.8} parent=23 // pred_check
        %p128 = pneg %p29
      $region26: #{decoder_stage_forward.8} parent=23 // pred_check_branch
        %130 = sbr.rel (%p128) target = $region28
      $region27: #{decoder_stage_forward.8} parent=23 // pred_region
        %p131 = scmp.lt.s32.totalorder %s9, 1
        %s132 = scalar_select %p131, %s9, 1
        %s133 = smul.addr %s132, 6
        %s134 = smul.addr %s133, 8
        %s135 = scalar_lea.vmem %s0, %s134
      $region28: #{decoder_stage_forward.8} parent=23 // pred_fallthru
        _
    $region24: #{decoder_stage_forward.8} parent=5 // pred_fallthru
      _
    %p136 = scmp.le.s32.totalorder 1, %s9
    %p137 = scmp.lt.s32.totalorder %s9, 3
    %p138 = pnand %p136, %p137
    %p139 = pneg %p138
    // Predicated region
    $region29: #{decoder_stage_forward.8} parent=5 // pred_check
      _
    $region30: #{decoder_stage_forward.8} parent=5 // pred_check_branch
      %141 = sbr.rel (%p138) target = $region32
    $region31: #{decoder_stage_forward.8} parent=5 // pred_region
      %s142 = ssub.s32 %s9, 1
      %p143 = scmp.lt.s32.totalorder %s14, 1
      %s144 = scalar_select %p143, %s14, 1
      %s145 = smul.addr %s144, 6
      %s146 = smul.addr %s145, 8
      %s147 = scalar_lea.vmem %s0, %s146
      %p148 = pneg %p35
      %p149 = pneg %p32
      %p150 = pneg %p56
      %p151 = pneg %p53
      %p152 = pneg %p77
      %p153 = pneg %p74
      %p154 = pneg %p103
      %p155 = pneg %p100
      %p156 = scmp.lt.s32.totalorder %s14, 1
      %s157 = scalar_select %p156, %s14, 1
      %s158 = smul.addr %s157, 12
      %s159 = smul.addr %s158, 4
      %s160 = scalar_lea.vmem %s3, %s159
      %p161 = scmp.lt.s32.totalorder %s14, 1
      %s162 = scalar_select %p161, %s14, 1
      %s163 = smul.addr %s162, 6
      %s164 = smul.addr %s163, 8
      %s165 = scalar_lea.vmem %s0, %s164
      %p166 = scmp.lt.s32.totalorder %s14, 1
      %s167 = scalar_select %p166, %s14, 1
      %s168 = smul.addr %s167, 12
      %s169 = smul.addr %s168, 4
      %s170 = scalar_lea.vmem %s3, %s169
      %v171 = vld [vmem:[%s165] sm:$0xff]
      %v172 = vld [vmem:[%s165 + $0x8] sm:$0xff]
      %v173 = vld [vmem:[%s165 + $0x10] sm:$0xff]
      %v174 = vld [vmem:[%s165 + $0x18] sm:$0xff]
      %v175 = vld [vmem:[%s165 + $0x20] sm:$0xff]
      %v176 = vld [vmem:[%s165 + $0x28] sm:$0xff]
      %v177 = vld [vmem:[%s2] sm:$0xff]
      %vm178 = vcmask 64512
      %v180 = vsel %vm178, %v171, 0
      %v183 = vsel %vm178, %v172, 0
      %v186 = vsel %vm178, %v173, 0
      %v189 = vsel %vm178, %v174, 0
      %v192 = vsel %vm178, %v175, 0
      %v195 = vsel %vm178, %v176, 0
      %197 = vmatprep.subr.mxu0 0.0
      %198 = vmatpush1.msra.mxu0 0.0
      %199 = vmatprep.subr.mxu0 0.0
      %200 = vmatpush1.msra.mxu0 0.0
      %201 = vmatprep.subr.mxu0 0.0
      %202 = vmatpush1.msra.mxu0 0.0
      %203 = vmatprep.subr.mxu0 0.0
      %204 = vmatpush1.msra.mxu0 0.0
      %205 = vmatprep.subr.mxu0 0.0
      %206 = vmatpush1.msra.mxu0 0.0
      %207 = vmatprep.subr.mxu0 0.0
      %208 = vmatpush1.msra.mxu0 0.0
      %209 = vmatprep.subr.mxu0 0.0
      %210 = vmatpush1.msra.mxu0 0.0
      %211 = vmatprep.subr.mxu0 0.0
      %212 = vmatpush1.msra.mxu0 0.0
      %213 = vmatprep.subr.mxu0 0.0
      %214 = vmatpush1.msra.mxu0 0.0
      %215 = vmatprep.subr.mxu0 0.0
      %216 = vmatpush1.msra.mxu0 0.0
      %217 = vmatprep.subr.mxu0 0.0
      %218 = vmatpush1.msra.mxu0 0.0
      %219 = vmatprep.subr.mxu0 0.0
      %220 = vmatpush1.msra.mxu0 0.0
      %221 = vmatprep.subr.mxu0 0.0
      %222 = vmatpush1.msra.mxu0 0.0
      %223 = vmatprep.subr.mxu0 0.0
      %224 = vmatpush1.msra.mxu0 0.0
      %225 = vmatprep.subr.mxu0 0.0
      %226 = vmatpush1.msra.mxu0 0.0
      %227 = vmatprep.subr.mxu0 0.0
      %228 = vmatpush1.msra.mxu0 %v177
      %229 = vmatprep.subr.mxu0 0.0
      %230 = vmatpush2.msra.mxu0 0.0
      %231 = vmatprep.subr.mxu0 0.0
      %232 = vmatpush2.msra.mxu0 0.0
      %233 = vmatprep.subr.mxu0 0.0
      %234 = vmatpush2.msra.mxu0 0.0
      %235 = vmatprep.subr.mxu0 0.0
      %236 = vmatpush2.msra.mxu0 0.0
      %237 = vmatprep.subr.mxu0 0.0
      %238 = vmatpush2.msra.mxu0 0.0
      %239 = vmatprep.subr.mxu0 0.0
      %240 = vmatpush2.msra.mxu0 0.0
      %241 = vmatprep.subr.mxu0 0.0
      %242 = vmatpush2.msra.mxu0 0.0
      %243 = vmatprep.subr.mxu0 0.0
      %244 = vmatpush2.msra.mxu0 0.0
      %245 = vmatprep.subr.mxu0 0.0
      %246 = vmatpush2.msra.mxu0 0.0
      %247 = vmatprep.subr.mxu0 0.0
      %248 = vmatpush2.msra.mxu0 0.0
      %249 = vmatprep.subr.mxu0 0.0
      %250 = vmatpush2.msra.mxu0 0.0
      %251 = vmatprep.subr.mxu0 0.0
      %252 = vmatpush2.msra.mxu0 0.0
      %253 = vmatprep.subr.mxu0 0.0
      %254 = vmatpush2.msra.mxu0 0.0
      %255 = vmatprep.subr.mxu0 0.0
      %256 = vmatpush2.msra.mxu0 0.0
      %257 = vmatprep.subr.mxu0 0.0
      %258 = vmatpush2.msra.mxu0 0.0
      %259 = vmatprep.subr.mxu0 0.0
      %260 = vmatpush2.msra.mxu0 0.0
      %261 = vmatprep.mubr.f32.mxu0 0.0
      %262 = vmatmul.mubr.f32.gmra.mxu0 %v180
      %v263 = vpop.f32.mrf.mxu0
      %v264 = vadd.f32 0.0, %v263
      %v265 = vpop.f32.mrf.mxu0
      %266 = vmatprep.mubr.f32.mxu0 0.0
      %267 = vmatmul.mubr.f32.gmra.mxu0 %v183
      %v268 = vpop.f32.mrf.mxu0
      %v269 = vadd.f32 0.0, %v268
      %v270 = vpop.f32.mrf.mxu0
      %271 = vmatprep.mubr.f32.mxu0 0.0
      %272 = vmatmul.mubr.f32.gmra.mxu0 %v186
      %v273 = vpop.f32.mrf.mxu0
      %v274 = vadd.f32 0.0, %v273
      %v275 = vpop.f32.mrf.mxu0
      %276 = vmatprep.mubr.f32.mxu0 0.0
      %277 = vmatmul.mubr.f32.gmra.mxu0 %v189
      %v278 = vpop.f32.mrf.mxu0
      %v279 = vadd.f32 0.0, %v278
      %v280 = vpop.f32.mrf.mxu0
      %281 = vmatprep.mubr.f32.mxu0 0.0
      %282 = vmatmul.mubr.f32.gmra.mxu0 %v192
      %v283 = vpop.f32.mrf.mxu0
      %v284 = vadd.f32 0.0, %v283
      %v285 = vpop.f32.mrf.mxu0
      %286 = vmatprep.mubr.f32.mxu0 0.0
      %287 = vmatmul.mubr.f32.gmra.mxu0 %v195
      %v288 = vpop.f32.mrf.mxu0
      %v289 = vadd.f32 0.0, %v288
      %v290 = vpop.f32.mrf.mxu0
      %291 = vdwg.mxu0
      %v292 = vld [vmem:[%s1] sm:$0xff]
      %v293 = vld [vmem:[%s1 + $0x8] sm:$0xff]
      %v295 = vsel %vm178, %v292, 0
      %v298 = vsel %vm178, %v293, 0
      %300 = vmatprep.subr.mxu0 0.0
      %301 = vmatpush1.msra.mxu0 0.0
      %302 = vmatprep.subr.mxu0 0.0
      %303 = vmatpush1.msra.mxu0 0.0
      %304 = vmatprep.subr.mxu0 0.0
      %305 = vmatpush1.msra.mxu0 0.0
      %306 = vmatprep.subr.mxu0 0.0
      %307 = vmatpush1.msra.mxu0 0.0
      %308 = vmatprep.subr.mxu0 0.0
      %309 = vmatpush1.msra.mxu0 0.0
      %310 = vmatprep.subr.mxu0 0.0
      %311 = vmatpush1.msra.mxu0 0.0
      %312 = vmatprep.subr.mxu0 0.0
      %313 = vmatpush1.msra.mxu0 0.0
      %314 = vmatprep.subr.mxu0 0.0
      %315 = vmatpush1.msra.mxu0 0.0
      %316 = vmatprep.subr.mxu0 0.0
      %317 = vmatpush1.msra.mxu0 0.0
      %318 = vmatprep.subr.mxu0 0.0
      %319 = vmatpush1.msra.mxu0 0.0
      %320 = vmatprep.subr.mxu0 0.0
      %321 = vmatpush1.msra.mxu0 0.0
      %322 = vmatprep.subr.mxu0 0.0
      %323 = vmatpush1.msra.mxu0 0.0
      %324 = vmatprep.subr.mxu0 0.0
      %325 = vmatpush1.msra.mxu0 0.0
      %326 = vmatprep.subr.mxu0 0.0
      %327 = vmatpush1.msra.mxu0 0.0
      %328 = vmatprep.subr.mxu0 0.0
      %329 = vmatpush1.msra.mxu0 0.0
      %330 = vmatprep.subr.mxu0 0.0
      %331 = vmatpush1.msra.mxu0 %v264
      %332 = vmatprep.subr.mxu0 0.0
      %333 = vmatpush2.msra.mxu0 0.0
      %334 = vmatprep.subr.mxu0 0.0
      %335 = vmatpush2.msra.mxu0 0.0
      %336 = vmatprep.subr.mxu0 0.0
      %337 = vmatpush2.msra.mxu0 0.0
      %338 = vmatprep.subr.mxu0 0.0
      %339 = vmatpush2.msra.mxu0 0.0
      %340 = vmatprep.subr.mxu0 0.0
      %341 = vmatpush2.msra.mxu0 0.0
      %342 = vmatprep.subr.mxu0 0.0
      %343 = vmatpush2.msra.mxu0 0.0
      %344 = vmatprep.subr.mxu0 0.0
      %345 = vmatpush2.msra.mxu0 0.0
      %346 = vmatprep.subr.mxu0 0.0
      %347 = vmatpush2.msra.mxu0 0.0
      %348 = vmatprep.subr.mxu0 0.0
      %349 = vmatpush2.msra.mxu0 0.0
      %350 = vmatprep.subr.mxu0 0.0
      %351 = vmatpush2.msra.mxu0 0.0
      %352 = vmatprep.subr.mxu0 0.0
      %353 = vmatpush2.msra.mxu0 0.0
      %354 = vmatprep.subr.mxu0 0.0
      %355 = vmatpush2.msra.mxu0 0.0
      %356 = vmatprep.subr.mxu0 0.0
      %357 = vmatpush2.msra.mxu0 0.0
      %358 = vmatprep.subr.mxu0 0.0
      %359 = vmatpush2.msra.mxu0 0.0
      %360 = vmatprep.subr.mxu0 0.0
      %361 = vmatpush2.msra.mxu0 0.0
      %362 = vmatprep.subr.mxu0 0.0
      %363 = vmatpush2.msra.mxu0 0.0
      %364 = vmatprep.mubr.f32.mxu0 0.0
      %365 = vmatmul.mubr.f32.gmra.mxu0 %v295
      %v366 = vpop.f32.mrf.mxu0
      %v367 = vadd.f32 0.0, %v366
      %v368 = vpop.f32.mrf.mxu0
      %369 = vmatprep.mubr.f32.mxu0 0.0
      %370 = vmatmul.mubr.f32.gmra.mxu0 %v298
      %v371 = vpop.f32.mrf.mxu0
      %v372 = vadd.f32 0.0, %v371
      %v373 = vpop.f32.mrf.mxu0
      %374 = vdwg.mxu0
      %v375 = vpack.c.bf16 %v372, %v367
      %v377 = vunpack.c.l.b16 %v375
      %v378 = vunpack.c.h.b16 %v375
      %v379 = vpack.c.b16 %v377, %v377
      %v380 = vpack.c.b16 %v378, %v378
      %vm383 = vcmask 125952
      %384 = vst.msk [vmem:[%s170] sm:$0xf] %vm383, %v379
      %385 = vst.msk [vmem:[%s170 + $0x4] sm:$0xf] %vm383, %v380
      %v386 = vld [vmem:[%s1] sm:$0xff]
      %v387 = vld [vmem:[%s1 + $0x8] sm:$0xff]
      %v389 = vsel %vm178, %v386, 0
      %v392 = vsel %vm178, %v387, 0
      %394 = vmatprep.subr.mxu0 0.0
      %395 = vmatpush1.msra.mxu0 0.0
      %396 = vmatprep.subr.mxu0 0.0
      %397 = vmatpush1.msra.mxu0 0.0
      %398 = vmatprep.subr.mxu0 0.0
      %399 = vmatpush1.msra.mxu0 0.0
      %400 = vmatprep.subr.mxu0 0.0
      %401 = vmatpush1.msra.mxu0 0.0
      %402 = vmatprep.subr.mxu0 0.0
      %403 = vmatpush1.msra.mxu0 0.0
      %404 = vmatprep.subr.mxu0 0.0
      %405 = vmatpush1.msra.mxu0 0.0
      %406 = vmatprep.subr.mxu0 0.0
      %407 = vmatpush1.msra.mxu0 0.0
      %408 = vmatprep.subr.mxu0 0.0
      %409 = vmatpush1.msra.mxu0 0.0
      %410 = vmatprep.subr.mxu0 0.0
      %411 = vmatpush1.msra.mxu0 0.0
      %412 = vmatprep.subr.mxu0 0.0
      %413 = vmatpush1.msra.mxu0 0.0
      %414 = vmatprep.subr.mxu0 0.0
      %415 = vmatpush1.msra.mxu0 0.0
      %416 = vmatprep.subr.mxu0 0.0
      %417 = vmatpush1.msra.mxu0 0.0
      %418 = vmatprep.subr.mxu0 0.0
      %419 = vmatpush1.msra.mxu0 0.0
      %420 = vmatprep.subr.mxu0 0.0
      %421 = vmatpush1.msra.mxu0 0.0
      %422 = vmatprep.subr.mxu0 0.0
      %423 = vmatpush1.msra.mxu0 0.0
      %424 = vmatprep.subr.mxu0 0.0
      %425 = vmatpush1.msra.mxu0 %v269
      %426 = vmatprep.subr.mxu0 0.0
      %427 = vmatpush2.msra.mxu0 0.0
      %428 = vmatprep.subr.mxu0 0.0
      %429 = vmatpush2.msra.mxu0 0.0
      %430 = vmatprep.subr.mxu0 0.0
      %431 = vmatpush2.msra.mxu0 0.0
      %432 = vmatprep.subr.mxu0 0.0
      %433 = vmatpush2.msra.mxu0 0.0
      %434 = vmatprep.subr.mxu0 0.0
      %435 = vmatpush2.msra.mxu0 0.0
      %436 = vmatprep.subr.mxu0 0.0
      %437 = vmatpush2.msra.mxu0 0.0
      %438 = vmatprep.subr.mxu0 0.0
      %439 = vmatpush2.msra.mxu0 0.0
      %440 = vmatprep.subr.mxu0 0.0
      %441 = vmatpush2.msra.mxu0 0.0
      %442 = vmatprep.subr.mxu0 0.0
      %443 = vmatpush2.msra.mxu0 0.0
      %444 = vmatprep.subr.mxu0 0.0
      %445 = vmatpush2.msra.mxu0 0.0
      %446 = vmatprep.subr.mxu0 0.0
      %447 = vmatpush2.msra.mxu0 0.0
      %448 = vmatprep.subr.mxu0 0.0
      %449 = vmatpush2.msra.mxu0 0.0
      %450 = vmatprep.subr.mxu0 0.0
      %451 = vmatpush2.msra.mxu0 0.0
      %452 = vmatprep.subr.mxu0 0.0
      %453 = vmatpush2.msra.mxu0 0.0
      %454 = vmatprep.subr.mxu0 0.0
      %455 = vmatpush2.msra.mxu0 0.0
      %456 = vmatprep.subr.mxu0 0.0
      %457 = vmatpush2.msra.mxu0 0.0
      %458 = vmatprep.mubr.f32.mxu0 0.0
      %459 = vmatmul.mubr.f32.gmra.mxu0 %v389
      %v460 = vpop.f32.mrf.mxu0
      %v461 = vadd.f32 0.0, %v460
      %v462 = vpop.f32.mrf.mxu0
      %463 = vmatprep.mubr.f32.mxu0 0.0
      %464 = vmatmul.mubr.f32.gmra.mxu0 %v392
      %v465 = vpop.f32.mrf.mxu0
      %v466 = vadd.f32 0.0, %v465
      %v467 = vpop.f32.mrf.mxu0
      %468 = vdwg.mxu0
      %v469 = vpack.c.bf16 %v466, %v461
      %v471 = vunpack.c.l.b16 %v469
      %v472 = vunpack.c.h.b16 %v469
      %v473 = vpack.c.b16 %v471, %v471
      %v474 = vpack.c.b16 %v472, %v472
      %s477 = scalar_lea.vmem %s170, 8
      %478 = vst.msk [vmem:[%s477] sm:$0xf] %vm383, %v473
      %479 = vst.msk [vmem:[%s477 + $0x4] sm:$0xf] %vm383, %v474
      %v480 = vld [vmem:[%s1] sm:$0xff]
      %v481 = vld [vmem:[%s1 + $0x8] sm:$0xff]
      %v483 = vsel %vm178, %v480, 0
      %v486 = vsel %vm178, %v481, 0
      %488 = vmatprep.subr.mxu0 0.0
      %489 = vmatpush1.msra.mxu0 0.0
      %490 = vmatprep.subr.mxu0 0.0
      %491 = vmatpush1.msra.mxu0 0.0
      %492 = vmatprep.subr.mxu0 0.0
      %493 = vmatpush1.msra.mxu0 0.0
      %494 = vmatprep.subr.mxu0 0.0
      %495 = vmatpush1.msra.mxu0 0.0
      %496 = vmatprep.subr.mxu0 0.0
      %497 = vmatpush1.msra.mxu0 0.0
      %498 = vmatprep.subr.mxu0 0.0
      %499 = vmatpush1.msra.mxu0 0.0
      %500 = vmatprep.subr.mxu0 0.0
      %501 = vmatpush1.msra.mxu0 0.0
      %502 = vmatprep.subr.mxu0 0.0
      %503 = vmatpush1.msra.mxu0 0.0
      %504 = vmatprep.subr.mxu0 0.0
      %505 = vmatpush1.msra.mxu0 0.0
      %506 = vmatprep.subr.mxu0 0.0
      %507 = vmatpush1.msra.mxu0 0.0
      %508 = vmatprep.subr.mxu0 0.0
      %509 = vmatpush1.msra.mxu0 0.0
      %510 = vmatprep.subr.mxu0 0.0
      %511 = vmatpush1.msra.mxu0 0.0
      %512 = vmatprep.subr.mxu0 0.0
      %513 = vmatpush1.msra.mxu0 0.0
      %514 = vmatprep.subr.mxu0 0.0
      %515 = vmatpush1.msra.mxu0 0.0
      %516 = vmatprep.subr.mxu0 0.0
      %517 = vmatpush1.msra.mxu0 0.0
      %518 = vmatprep.subr.mxu0 0.0
      %519 = vmatpush1.msra.mxu0 %v274
      %520 = vmatprep.subr.mxu0 0.0
      %521 = vmatpush2.msra.mxu0 0.0
      %522 = vmatprep.subr.mxu0 0.0
      %523 = vmatpush2.msra.mxu0 0.0
      %524 = vmatprep.subr.mxu0 0.0
      %525 = vmatpush2.msra.mxu0 0.0
      %526 = vmatprep.subr.mxu0 0.0
      %527 = vmatpush2.msra.mxu0 0.0
      %528 = vmatprep.subr.mxu0 0.0
      %529 = vmatpush2.msra.mxu0 0.0
      %530 = vmatprep.subr.mxu0 0.0
      %531 = vmatpush2.msra.mxu0 0.0
      %532 = vmatprep.subr.mxu0 0.0
      %533 = vmatpush2.msra.mxu0 0.0
      %534 = vmatprep.subr.mxu0 0.0
      %535 = vmatpush2.msra.mxu0 0.0
      %536 = vmatprep.subr.mxu0 0.0
      %537 = vmatpush2.msra.mxu0 0.0
      %538 = vmatprep.subr.mxu0 0.0
      %539 = vmatpush2.msra.mxu0 0.0
      %540 = vmatprep.subr.mxu0 0.0
      %541 = vmatpush2.msra.mxu0 0.0
      %542 = vmatprep.subr.mxu0 0.0
      %543 = vmatpush2.msra.mxu0 0.0
      %544 = vmatprep.subr.mxu0 0.0
      %545 = vmatpush2.msra.mxu0 0.0
      %546 = vmatprep.subr.mxu0 0.0
      %547 = vmatpush2.msra.mxu0 0.0
      %548 = vmatprep.subr.mxu0 0.0
      %549 = vmatpush2.msra.mxu0 0.0
      %550 = vmatprep.subr.mxu0 0.0
      %551 = vmatpush2.msra.mxu0 0.0
      %552 = vmatprep.mubr.f32.mxu0 0.0
      %553 = vmatmul.mubr.f32.gmra.mxu0 %v483
      %v554 = vpop.f32.mrf.mxu0
      %v555 = vadd.f32 0.0, %v554
      %v556 = vpop.f32.mrf.mxu0
      %557 = vmatprep.mubr.f32.mxu0 0.0
      %558 = vmatmul.mubr.f32.gmra.mxu0 %v486
      %v559 = vpop.f32.mrf.mxu0
      %v560 = vadd.f32 0.0, %v559
      %v561 = vpop.f32.mrf.mxu0
      %562 = vdwg.mxu0
      %v563 = vpack.c.bf16 %v560, %v555
      %v565 = vunpack.c.l.b16 %v563
      %v566 = vunpack.c.h.b16 %v563
      %v567 = vpack.c.b16 %v565, %v565
      %v568 = vpack.c.b16 %v566, %v566
      %s571 = scalar_lea.vmem %s170, 16
      %572 = vst.msk [vmem:[%s571] sm:$0xf] %vm383, %v567
      %573 = vst.msk [vmem:[%s571 + $0x4] sm:$0xf] %vm383, %v568
      %v574 = vld [vmem:[%s1] sm:$0xff]
      %v575 = vld [vmem:[%s1 + $0x8] sm:$0xff]
      %v577 = vsel %vm178, %v574, 0
      %v580 = vsel %vm178, %v575, 0
      %582 = vmatprep.subr.mxu0 0.0
      %583 = vmatpush1.msra.mxu0 0.0
      %584 = vmatprep.subr.mxu0 0.0
      %585 = vmatpush1.msra.mxu0 0.0
      %586 = vmatprep.subr.mxu0 0.0
      %587 = vmatpush1.msra.mxu0 0.0
      %588 = vmatprep.subr.mxu0 0.0
      %589 = vmatpush1.msra.mxu0 0.0
      %590 = vmatprep.subr.mxu0 0.0
      %591 = vmatpush1.msra.mxu0 0.0
      %592 = vmatprep.subr.mxu0 0.0
      %593 = vmatpush1.msra.mxu0 0.0
      %594 = vmatprep.subr.mxu0 0.0
      %595 = vmatpush1.msra.mxu0 0.0
      %596 = vmatprep.subr.mxu0 0.0
      %597 = vmatpush1.msra.mxu0 0.0
      %598 = vmatprep.subr.mxu0 0.0
      %599 = vmatpush1.msra.mxu0 0.0
      %600 = vmatprep.subr.mxu0 0.0
      %601 = vmatpush1.msra.mxu0 0.0
      %602 = vmatprep.subr.mxu0 0.0
      %603 = vmatpush1.msra.mxu0 0.0
      %604 = vmatprep.subr.mxu0 0.0
      %605 = vmatpush1.msra.mxu0 0.0
      %606 = vmatprep.subr.mxu0 0.0
      %607 = vmatpush1.msra.mxu0 0.0
      %608 = vmatprep.subr.mxu0 0.0
      %609 = vmatpush1.msra.mxu0 0.0
      %610 = vmatprep.subr.mxu0 0.0
      %611 = vmatpush1.msra.mxu0 0.0
      %612 = vmatprep.subr.mxu0 0.0
      %613 = vmatpush1.msra.mxu0 %v279
      %614 = vmatprep.subr.mxu0 0.0
      %615 = vmatpush2.msra.mxu0 0.0
      %616 = vmatprep.subr.mxu0 0.0
      %617 = vmatpush2.msra.mxu0 0.0
      %618 = vmatprep.subr.mxu0 0.0
      %619 = vmatpush2.msra.mxu0 0.0
      %620 = vmatprep.subr.mxu0 0.0
      %621 = vmatpush2.msra.mxu0 0.0
      %622 = vmatprep.subr.mxu0 0.0
      %623 = vmatpush2.msra.mxu0 0.0
      %624 = vmatprep.subr.mxu0 0.0
      %625 = vmatpush2.msra.mxu0 0.0
      %626 = vmatprep.subr.mxu0 0.0
      %627 = vmatpush2.msra.mxu0 0.0
      %628 = vmatprep.subr.mxu0 0.0
      %629 = vmatpush2.msra.mxu0 0.0
      %630 = vmatprep.subr.mxu0 0.0
      %631 = vmatpush2.msra.mxu0 0.0
      %632 = vmatprep.subr.mxu0 0.0
      %633 = vmatpush2.msra.mxu0 0.0
      %634 = vmatprep.subr.mxu0 0.0
      %635 = vmatpush2.msra.mxu0 0.0
      %636 = vmatprep.subr.mxu0 0.0
      %637 = vmatpush2.msra.mxu0 0.0
      %638 = vmatprep.subr.mxu0 0.0
      %639 = vmatpush2.msra.mxu0 0.0
      %640 = vmatprep.subr.mxu0 0.0
      %641 = vmatpush2.msra.mxu0 0.0
      %642 = vmatprep.subr.mxu0 0.0
      %643 = vmatpush2.msra.mxu0 0.0
      %644 = vmatprep.subr.mxu0 0.0
      %645 = vmatpush2.msra.mxu0 0.0
      %646 = vmatprep.mubr.f32.mxu0 0.0
      %647 = vmatmul.mubr.f32.gmra.mxu0 %v577
      %v648 = vpop.f32.mrf.mxu0
      %v649 = vadd.f32 0.0, %v648
      %v650 = vpop.f32.mrf.mxu0
      %651 = vmatprep.mubr.f32.mxu0 0.0
      %652 = vmatmul.mubr.f32.gmra.mxu0 %v580
      %v653 = vpop.f32.mrf.mxu0
      %v654 = vadd.f32 0.0, %v653
      %v655 = vpop.f32.mrf.mxu0
      %656 = vdwg.mxu0
      %v657 = vpack.c.bf16 %v654, %v649
      %v659 = vunpack.c.l.b16 %v657
      %v660 = vunpack.c.h.b16 %v657
      %v661 = vpack.c.b16 %v659, %v659
      %v662 = vpack.c.b16 %v660, %v660
      %s665 = scalar_lea.vmem %s170, 24
      %666 = vst.msk [vmem:[%s665] sm:$0xf] %vm383, %v661
      %667 = vst.msk [vmem:[%s665 + $0x4] sm:$0xf] %vm383, %v662
      %v668 = vld [vmem:[%s1] sm:$0xff]
      %v669 = vld [vmem:[%s1 + $0x8] sm:$0xff]
      %v671 = vsel %vm178, %v668, 0
      %v674 = vsel %vm178, %v669, 0
      %676 = vmatprep.subr.mxu0 0.0
      %677 = vmatpush1.msra.mxu0 0.0
      %678 = vmatprep.subr.mxu0 0.0
      %679 = vmatpush1.msra.mxu0 0.0
      %680 = vmatprep.subr.mxu0 0.0
      %681 = vmatpush1.msra.mxu0 0.0
      %682 = vmatprep.subr.mxu0 0.0
      %683 = vmatpush1.msra.mxu0 0.0
      %684 = vmatprep.subr.mxu0 0.0
      %685 = vmatpush1.msra.mxu0 0.0
      %686 = vmatprep.subr.mxu0 0.0
      %687 = vmatpush1.msra.mxu0 0.0
      %688 = vmatprep.subr.mxu0 0.0
      %689 = vmatpush1.msra.mxu0 0.0
      %690 = vmatprep.subr.mxu0 0.0
      %691 = vmatpush1.msra.mxu0 0.0
      %692 = vmatprep.subr.mxu0 0.0
      %693 = vmatpush1.msra.mxu0 0.0
      %694 = vmatprep.subr.mxu0 0.0
      %695 = vmatpush1.msra.mxu0 0.0
      %696 = vmatprep.subr.mxu0 0.0
      %697 = vmatpush1.msra.mxu0 0.0
      %698 = vmatprep.subr.mxu0 0.0
      %699 = vmatpush1.msra.mxu0 0.0
      %700 = vmatprep.subr.mxu0 0.0
      %701 = vmatpush1.msra.mxu0 0.0
      %702 = vmatprep.subr.mxu0 0.0
      %703 = vmatpush1.msra.mxu0 0.0
      %704 = vmatprep.subr.mxu0 0.0
      %705 = vmatpush1.msra.mxu0 0.0
      %706 = vmatprep.subr.mxu0 0.0
      %707 = vmatpush1.msra.mxu0 %v284
      %708 = vmatprep.subr.mxu0 0.0
      %709 = vmatpush2.msra.mxu0 0.0
      %710 = vmatprep.subr.mxu0 0.0
      %711 = vmatpush2.msra.mxu0 0.0
      %712 = vmatprep.subr.mxu0 0.0
      %713 = vmatpush2.msra.mxu0 0.0
      %714 = vmatprep.subr.mxu0 0.0
      %715 = vmatpush2.msra.mxu0 0.0
      %716 = vmatprep.subr.mxu0 0.0
      %717 = vmatpush2.msra.mxu0 0.0
      %718 = vmatprep.subr.mxu0 0.0
      %719 = vmatpush2.msra.mxu0 0.0
      %720 = vmatprep.subr.mxu0 0.0
      %721 = vmatpush2.msra.mxu0 0.0
      %722 = vmatprep.subr.mxu0 0.0
      %723 = vmatpush2.msra.mxu0 0.0
      %724 = vmatprep.subr.mxu0 0.0
      %725 = vmatpush2.msra.mxu0 0.0
      %726 = vmatprep.subr.mxu0 0.0
      %727 = vmatpush2.msra.mxu0 0.0
      %728 = vmatprep.subr.mxu0 0.0
      %729 = vmatpush2.msra.mxu0 0.0
      %730 = vmatprep.subr.mxu0 0.0
      %731 = vmatpush2.msra.mxu0 0.0
      %732 = vmatprep.subr.mxu0 0.0
      %733 = vmatpush2.msra.mxu0 0.0
      %734 = vmatprep.subr.mxu0 0.0
      %735 = vmatpush2.msra.mxu0 0.0
      %736 = vmatprep.subr.mxu0 0.0
      %737 = vmatpush2.msra.mxu0 0.0
      %738 = vmatprep.subr.mxu0 0.0
      %739 = vmatpush2.msra.mxu0 0.0
      %740 = vmatprep.mubr.f32.mxu0 0.0
      %741 = vmatmul.mubr.f32.gmra.mxu0 %v671
      %v742 = vpop.f32.mrf.mxu0
      %v743 = vadd.f32 0.0, %v742
      %v744 = vpop.f32.mrf.mxu0
      %745 = vmatprep.mubr.f32.mxu0 0.0
      %746 = vmatmul.mubr.f32.gmra.mxu0 %v674
      %v747 = vpop.f32.mrf.mxu0
      %v748 = vadd.f32 0.0, %v747
      %v749 = vpop.f32.mrf.mxu0
      %750 = vdwg.mxu0
      %v751 = vpack.c.bf16 %v748, %v743
      %v753 = vunpack.c.l.b16 %v751
      %v754 = vunpack.c.h.b16 %v751
      %v755 = vpack.c.b16 %v753, %v753
      %v756 = vpack.c.b16 %v754, %v754
      %s759 = scalar_lea.vmem %s170, 32
      %760 = vst.msk [vmem:[%s759] sm:$0xf] %vm383, %v755
      %761 = vst.msk [vmem:[%s759 + $0x4] sm:$0xf] %vm383, %v756
      %v762 = vld [vmem:[%s1] sm:$0xff]
      %v763 = vld [vmem:[%s1 + $0x8] sm:$0xff]
      %v765 = vsel %vm178, %v762, 0
      %v768 = vsel %vm178, %v763, 0
      %770 = vmatprep.subr.mxu0 0.0
      %771 = vmatpush1.msra.mxu0 0.0
      %772 = vmatprep.subr.mxu0 0.0
      %773 = vmatpush1.msra.mxu0 0.0
      %774 = vmatprep.subr.mxu0 0.0
      %775 = vmatpush1.msra.mxu0 0.0
      %776 = vmatprep.subr.mxu0 0.0
      %777 = vmatpush1.msra.mxu0 0.0
      %778 = vmatprep.subr.mxu0 0.0
      %779 = vmatpush1.msra.mxu0 0.0
      %780 = vmatprep.subr.mxu0 0.0
      %781 = vmatpush1.msra.mxu0 0.0
      %782 = vmatprep.subr.mxu0 0.0
      %783 = vmatpush1.msra.mxu0 0.0
      %784 = vmatprep.subr.mxu0 0.0
      %785 = vmatpush1.msra.mxu0 0.0
      %786 = vmatprep.subr.mxu0 0.0
      %787 = vmatpush1.msra.mxu0 0.0
      %788 = vmatprep.subr.mxu0 0.0
      %789 = vmatpush1.msra.mxu0 0.0
      %790 = vmatprep.subr.mxu0 0.0
      %791 = vmatpush1.msra.mxu0 0.0
      %792 = vmatprep.subr.mxu0 0.0
      %793 = vmatpush1.msra.mxu0 0.0
      %794 = vmatprep.subr.mxu0 0.0
      %795 = vmatpush1.msra.mxu0 0.0
      %796 = vmatprep.subr.mxu0 0.0
      %797 = vmatpush1.msra.mxu0 0.0
      %798 = vmatprep.subr.mxu0 0.0
      %799 = vmatpush1.msra.mxu0 0.0
      %800 = vmatprep.subr.mxu0 0.0
      %801 = vmatpush1.msra.mxu0 %v289
      %802 = vmatprep.subr.mxu0 0.0
      %803 = vmatpush2.msra.mxu0 0.0
      %804 = vmatprep.subr.mxu0 0.0
      %805 = vmatpush2.msra.mxu0 0.0
      %806 = vmatprep.subr.mxu0 0.0
      %807 = vmatpush2.msra.mxu0 0.0
      %808 = vmatprep.subr.mxu0 0.0
      %809 = vmatpush2.msra.mxu0 0.0
      %810 = vmatprep.subr.mxu0 0.0
      %811 = vmatpush2.msra.mxu0 0.0
      %812 = vmatprep.subr.mxu0 0.0
      %813 = vmatpush2.msra.mxu0 0.0
      %814 = vmatprep.subr.mxu0 0.0
      %815 = vmatpush2.msra.mxu0 0.0
      %816 = vmatprep.subr.mxu0 0.0
      %817 = vmatpush2.msra.mxu0 0.0
      %818 = vmatprep.subr.mxu0 0.0
      %819 = vmatpush2.msra.mxu0 0.0
      %820 = vmatprep.subr.mxu0 0.0
      %821 = vmatpush2.msra.mxu0 0.0
      %822 = vmatprep.subr.mxu0 0.0
      %823 = vmatpush2.msra.mxu0 0.0
      %824 = vmatprep.subr.mxu0 0.0
      %825 = vmatpush2.msra.mxu0 0.0
      %826 = vmatprep.subr.mxu0 0.0
      %827 = vmatpush2.msra.mxu0 0.0
      %828 = vmatprep.subr.mxu0 0.0
      %829 = vmatpush2.msra.mxu0 0.0
      %830 = vmatprep.subr.mxu0 0.0
      %831 = vmatpush2.msra.mxu0 0.0
      %832 = vmatprep.subr.mxu0 0.0
      %833 = vmatpush2.msra.mxu0 0.0
      %834 = vmatprep.mubr.f32.mxu0 0.0
      %835 = vmatmul.mubr.f32.gmra.mxu0 %v765
      %v836 = vpop.f32.mrf.mxu0
      %v837 = vadd.f32 0.0, %v836
      %v838 = vpop.f32.mrf.mxu0
      %839 = vmatprep.mubr.f32.mxu0 0.0
      %840 = vmatmul.mubr.f32.gmra.mxu0 %v768
      %v841 = vpop.f32.mrf.mxu0
      %v842 = vadd.f32 0.0, %v841
      %v843 = vpop.f32.mrf.mxu0
      %844 = vdwg.mxu0
      %v845 = vpack.c.bf16 %v842, %v837
      %v847 = vunpack.c.l.b16 %v845
      %v848 = vunpack.c.h.b16 %v845
      %v849 = vpack.c.b16 %v847, %v847
      %v850 = vpack.c.b16 %v848, %v848
      %s853 = scalar_lea.vmem %s170, 40
      %854 = vst.msk [vmem:[%s853] sm:$0xf] %vm383, %v849
      %855 = vst.msk [vmem:[%s853 + $0x4] sm:$0xf] %vm383, %v850
      %p856 = scmp.lt.s32.totalorder %s14, 1
      %s857 = scalar_select %p856, %s14, 1
      %s858 = smul.addr %s857, 12
      %s859 = smul.addr %s858, 4
      %s860 = scalar_lea.vmem %s3, %s859
      // Predicated region
      $region33: #{decoder_stage_forward.8} parent=31 // pred_check
        %p861 = pneg %p100
      $region34: #{decoder_stage_forward.8} parent=31 // pred_check_branch
        %863 = sbr.rel (%p861) target = $region36
      $region35: #{decoder_stage_forward.8} parent=31 // pred_region
        _
      $region36: #{decoder_stage_forward.8} parent=31 // pred_fallthru
        _
    $region32: #{decoder_stage_forward.8} parent=5 // pred_fallthru
      _
    %p864 = scmp.le.s32.totalorder 2, %s9
    // Predicated region
    $region37: #{decoder_stage_forward.8} parent=5 // pred_check
      %p865 = pneg %p864
    $region38: #{decoder_stage_forward.8} parent=5 // pred_check_branch
      %867 = sbr.rel (%p865) target = $region40
    $region39: #{decoder_stage_forward.8} parent=5 // pred_region
      %s868 = ssub.s32 %s9, 2
      // Predicated region
      $region41: #{decoder_stage_forward.8} parent=39 // pred_check
        %p869 = pneg %p106
      $region42: #{decoder_stage_forward.8} parent=39 // pred_check_branch
        %871 = sbr.rel (%p869) target = $region44
      $region43: #{decoder_stage_forward.8} parent=39 // pred_region
        %p872 = scmp.lt.s32.totalorder %s15, 1
        %s873 = scalar_select %p872, %s15, 1
        %s874 = smul.addr %s873, 12
        %s875 = smul.addr %s874, 4
        %s876 = scalar_lea.vmem %s3, %s875
      $region44: #{decoder_stage_forward.8} parent=39 // pred_fallthru
        _
    $region40: #{decoder_stage_forward.8} parent=5 // pred_fallthru
      _
  $region6: #{decoder_stage_forward.8} parent=0 // loop_footer
    %s13 = sadd.s32 1, %s9
  $region7: #{decoder_stage_forward.8} parent=0 // loop_footer_branch
    %8 = sbr.rel target = $region3
  $region8: #{decoder_stage_forward.8} parent=0 // loop_exit
    _

// kernel: decoder_stage_forward.10
$region0: #{decoder_stage_forward.10}
  #allocation0 [shape = 'u32[]', space=smem, size = 0x4, offset = 0x4, fixed_abs, tag = 'smem constant byte address 0x4 - core index']
  #allocation1 [shape = 'u32[144,128]{1,0:T(1,128)}', space=vmem, size = 0x12000, scoped, tag = 'internal scratch']
  #allocation2 [shape = 'f32[32,1]{1,0:T(8,128)}', space=vmem, size = 0x4000, scoped, tag = 'scratch operand']
  %s0 = inlined_call_operand.vmem [shape: bf16[2,32,256], index: 0, kind: input, shape index: {}]
  %s1 = inlined_call_operand.vmem [shape: f32[2,32], index: 1, kind: input, shape index: {}]
  %s2 = inlined_call_operand.vmem [shape: f32[32,2], index: 2, kind: input, shape index: {}]
  %s3 = inlined_call_operand.vmem [shape: f32[2,32,1], index: 3, kind: output, shape index: {}]
  %s4 = sld [smem:[#allocation0]]
  $region53: #{decoder_stage_forward.10} parent=0
    _
  %s6 = ssub.s32 1, %s4
  %s7 = scalar_select 0, %s6, %s4
  loop: start=0, step=1, limit=4
  $region2: #{decoder_stage_forward.10} parent=0 // loop_pre_header
    _
  $region3: #{decoder_stage_forward.10} parent=0 // loop_header
    %s9 = sphi 0, %s13
    %p10 = scmp.ge.s32.totalorder %s9, 4
    %s16 = sphi 0, %s28
    %s17 = sphi 0, %s24
    %s18 = sphi 0, %s16
    %s19 = sphi 0, %s17
    %s20 = sphi 0, %s18
    %s21 = sphi 0, %s19
    %s33 = sphi 0, %s35
    %s36 = sphi 0, %s33
    %s37 = sphi 0, %s36
    %s53 = sphi 0, %s37
    %s57 = sphi 0, %s57
    %s59 = sphi 0, %s57
    %s60 = sphi 0, %s59
    %s74 = sphi 0, %s60
    %s78 = sphi 0, %s78
    %s80 = sphi 0, %s78
    %s81 = sphi 0, %s80
    %s95 = sphi 0, %s81
    %s101 = sphi 0, %s103
    %s104 = sphi 0, %s101
    %s105 = sphi 0, %s104
    %s121 = sphi 0, %s105
  $region4: #{decoder_stage_forward.10} parent=0 // loop_header_branch
    %12 = sbr.rel (%p10) target = $region8
  $region5: #{decoder_stage_forward.10} parent=0 // loop_body
    %s14 = ssub.s32 %s9, 1
    %s15 = ssub.s32 %s9, 2
    %s22 = sadd.s32 1, %s17
    %p23 = scmp.ge.s32.totalorder %s22, 1
    %s24 = scalar_select %p23, 0, %s22
    %s25 = sadd.s32 1, %s16
    %s26 = scalar_select %p23, %s25, %s16
    %p27 = scmp.ge.s32.totalorder %s26, 2
    %s28 = scalar_select %p27, 0, %s26
    %s29 = ssub.s32 %s16, %s28
    %s30 = ssub.s32 %s17, %s24
    %s31 = sor.u32 %s29, %s30
    %p32 = scmp.eq.s32.totalorder %s31, 0
    %s34 = sadd.s32 %s33, 1
    %s35 = scalar_select %p32, %s33, %s34
    %p38 = pneg %p32
    %p39 = scmp.eq.s32.totalorder %s9, 1
    %p40 = por %p38, %p39
    %p41 = scmp.ne.s32.totalorder %s33, %s36
    %p42 = scmp.eq.s32.totalorder %s9, 0
    %p43 = por %p41, %p42
    %p44 = scmp.ne.s32.totalorder %s33, %s36
    %p45 = scmp.eq.s32.totalorder %s14, 1
    %p46 = por %p44, %p45
    %p47 = scmp.ne.s32.totalorder %s36, %s37
    %p48 = scmp.eq.s32.totalorder %s14, 0
    %p49 = por %p47, %p48
    %p50 = scmp.ne.s32.totalorder %s36, %s37
    %p51 = scmp.eq.s32.totalorder %s15, 1
    %p52 = por %p50, %p51
    %p54 = scmp.ne.s32.totalorder %s37, %s53
    %p55 = scmp.eq.s32.totalorder %s15, 0
    %p56 = por %p54, %p55
    %s58 = sadd.s32 %s57, 1
    %p61 = scmp.eq.s32.totalorder %s9, 1
    %p62 = scmp.ne.s32.totalorder %s57, %s59
    %p63 = scmp.eq.s32.totalorder %s9, 0
    %p64 = por %p62, %p63
    %p65 = scmp.ne.s32.totalorder %s57, %s59
    %p66 = scmp.eq.s32.totalorder %s14, 1
    %p67 = por %p65, %p66
    %p68 = scmp.ne.s32.totalorder %s59, %s60
    %p69 = scmp.eq.s32.totalorder %s14, 0
    %p70 = por %p68, %p69
    %p71 = scmp.ne.s32.totalorder %s59, %s60
    %p72 = scmp.eq.s32.totalorder %s15, 1
    %p73 = por %p71, %p72
    %p75 = scmp.ne.s32.totalorder %s60, %s74
    %p76 = scmp.eq.s32.totalorder %s15, 0
    %p77 = por %p75, %p76
    %s79 = sadd.s32 %s78, 1
    %p82 = scmp.eq.s32.totalorder %s9, 1
    %p83 = scmp.ne.s32.totalorder %s78, %s80
    %p84 = scmp.eq.s32.totalorder %s9, 0
    %p85 = por %p83, %p84
    %p86 = scmp.ne.s32.totalorder %s78, %s80
    %p87 = scmp.eq.s32.totalorder %s14, 1
    %p88 = por %p86, %p87
    %p89 = scmp.ne.s32.totalorder %s80, %s81
    %p90 = scmp.eq.s32.totalorder %s14, 0
    %p91 = por %p89, %p90
    %p92 = scmp.ne.s32.totalorder %s80, %s81
    %p93 = scmp.eq.s32.totalorder %s15, 1
    %p94 = por %p92, %p93
    %p96 = scmp.ne.s32.totalorder %s81, %s95
    %p97 = scmp.eq.s32.totalorder %s15, 0
    %p98 = por %p96, %p97
    %s99 = ssub.s32 %s16, %s28
    %p100 = scmp.eq.s32.totalorder %s99, 0
    %s102 = sadd.s32 %s101, 1
    %s103 = scalar_select %p100, %s101, %s102
    %p106 = pneg %p100
    %p107 = scmp.eq.s32.totalorder %s9, 1
    %p108 = por %p106, %p107
    %p109 = scmp.ne.s32.totalorder %s101, %s104
    %p110 = scmp.eq.s32.totalorder %s9, 0
    %p111 = por %p109, %p110
    %p112 = scmp.ne.s32.totalorder %s101, %s104
    %p113 = scmp.eq.s32.totalorder %s14, 1
    %p114 = por %p112, %p113
    %p115 = scmp.ne.s32.totalorder %s104, %s105
    %p116 = scmp.eq.s32.totalorder %s14, 0
    %p117 = por %p115, %p116
    %p118 = scmp.ne.s32.totalorder %s104, %s105
    %p119 = scmp.eq.s32.totalorder %s15, 1
    %p120 = por %p118, %p119
    %p122 = scmp.ne.s32.totalorder %s105, %s121
    %p123 = scmp.eq.s32.totalorder %s15, 0
    %p124 = por %p122, %p123
    %p125 = scmp.le.s32.totalorder 1, %s9
    %p126 = scmp.lt.s32.totalorder %s9, 3
    %p127 = pnand %p125, %p126
    %p128 = pneg %p127
    // Predicated region
    $region9: #{decoder_stage_forward.10} parent=5 // pred_check
      _
    $region10: #{decoder_stage_forward.10} parent=5 // pred_check_branch
      %130 = sbr.rel (%p127) target = $region12
    $region11: #{decoder_stage_forward.10} parent=5 // pred_region
      %s131 = ssub.s32 %s9, 1
      // Predicated region
      $region13: #{decoder_stage_forward.10} parent=11 // pred_check
        %p132 = pneg %p70
      $region14: #{decoder_stage_forward.10} parent=11 // pred_check_branch
        %134 = sbr.rel (%p132) target = $region16
      $region15: #{decoder_stage_forward.10} parent=11 // pred_region
        _
      $region16: #{decoder_stage_forward.10} parent=11 // pred_fallthru
        _
      // Predicated region
      $region17: #{decoder_stage_forward.10} parent=11 // pred_check
        %p135 = pneg %p91
      $region18: #{decoder_stage_forward.10} parent=11 // pred_check_branch
        %137 = sbr.rel (%p135) target = $region20
      $region19: #{decoder_stage_forward.10} parent=11 // pred_region
        _
      $region20: #{decoder_stage_forward.10} parent=11 // pred_fallthru
        _
    $region12: #{decoder_stage_forward.10} parent=5 // pred_fallthru
      _
    %p138 = scmp.lt.s32.totalorder %s9, 2
    // Predicated region
    $region21: #{decoder_stage_forward.10} parent=5 // pred_check
      %p139 = pneg %p138
    $region22: #{decoder_stage_forward.10} parent=5 // pred_check_branch
      %141 = sbr.rel (%p139) target = $region24
    $region23: #{decoder_stage_forward.10} parent=5 // pred_region
      // Predicated region
      $region25: #{decoder_stage_forward.10} parent=23 // pred_check
        %p142 = pneg %p43
      $region26: #{decoder_stage_forward.10} parent=23 // pred_check_branch
        %144 = sbr.rel (%p142) target = $region28
      $region27: #{decoder_stage_forward.10} parent=23 // pred_region
        %s145 = smul.u32 2, %s17
        %p146 = scmp.lt.s32.totalorder %s16, 1
        %s147 = scalar_select %p146, %s16, 1
        %p148 = scmp.lt.s32.totalorder %s145, 1
        %s149 = scalar_select %p148, %s145, 1
        %s150 = smul.addr %s147, 8
        %s151 = sadd.s32 %s149, %s150
        %s152 = smul.addr %s151, 4
        %s153 = scalar_lea.vmem %s0, %s152
        %s154 = smul.u32 2, %s17
      $region28: #{decoder_stage_forward.10} parent=23 // pred_fallthru
        _
    $region24: #{decoder_stage_forward.10} parent=5 // pred_fallthru
      _
    %p155 = scmp.le.s32.totalorder 1, %s9
    %p156 = scmp.lt.s32.totalorder %s9, 3
    %p157 = pnand %p155, %p156
    %p158 = pneg %p157
    // Predicated region
    $region29: #{decoder_stage_forward.10} parent=5 // pred_check
      _
    $region30: #{decoder_stage_forward.10} parent=5 // pred_check_branch
      %160 = sbr.rel (%p157) target = $region32
    $region31: #{decoder_stage_forward.10} parent=5 // pred_region
      %s161 = ssub.s32 %s9, 1
      %s162 = smul.u32 2, %s19
      %p163 = scmp.lt.s32.totalorder %s18, 1
      %s164 = scalar_select %p163, %s18, 1
      %p165 = scmp.lt.s32.totalorder %s162, 1
      %s166 = scalar_select %p165, %s162, 1
      %s167 = smul.addr %s164, 8
      %s168 = sadd.s32 %s166, %s167
      %s169 = smul.addr %s168, 4
      %s170 = scalar_lea.vmem %s0, %s169
      %p171 = pneg %p49
      %p172 = pneg %p46
      %p173 = pneg %p70
      %p174 = pneg %p67
      %p175 = pneg %p91
      %p176 = pneg %p88
      %p177 = pneg %p117
      %p178 = pneg %p114
      %p179 = scmp.lt.s32.totalorder %s18, 1
      %s180 = scalar_select %p179, %s18, 1
      %s181 = smul.addr %s180, 4
      %s182 = smul.addr %s181, 8
      %s183 = scalar_lea.vmem %s3, %s182
      %s184 = smul.u32 2, %s19
      %p185 = scmp.lt.s32.totalorder %s18, 1
      %s186 = scalar_select %p185, %s18, 1
      %p187 = scmp.lt.s32.totalorder %s184, 1
      %s188 = scalar_select %p187, %s184, 1
      %s189 = smul.addr %s186, 8
      %s190 = sadd.s32 %s188, %s189
      %s191 = smul.addr %s190, 4
      %s192 = scalar_lea.vmem %s0, %s191
      %s193 = smul.u32 2, %s19
      %p194 = scmp.lt.s32.totalorder %s18, 1
      %s195 = scalar_select %p194, %s18, 1
      %s196 = smul.addr %s195, 4
      %s197 = smul.addr %s196, 8
      %s198 = scalar_lea.vmem %s3, %s197
      %p199 = scmp.eq.s32.totalorder %s19, 0
      // Predicated region
      $region33: #{decoder_stage_forward.10} parent=31 // pred_check
        %p200 = pneg %p199
      $region34: #{decoder_stage_forward.10} parent=31 // pred_check_branch
        %202 = sbr.rel (%p200) target = $region36
      $region35: #{decoder_stage_forward.10} parent=31 // pred_region
        %vm203 = vcmask 7168
        %204 = vst.msk [vmem:[#allocation2] sm:$0xff] %vm203, 0.0
        %205 = vst.msk [vmem:[#allocation2 + $0x8] sm:$0xff] %vm203, 0.0
        %206 = vst.msk [vmem:[#allocation2 + $0x10] sm:$0xff] %vm203, 0.0
        %207 = vst.msk [vmem:[#allocation2 + $0x18] sm:$0xff] %vm203, 0.0
      $region36: #{decoder_stage_forward.10} parent=31 // pred_fallthru
        _
      %v208 = vld [vmem:[#allocation2] sm:$0xff]
      %v209 = vld [vmem:[#allocation2 + $0x8] sm:$0xff]
      %v210 = vld [vmem:[#allocation2 + $0x10] sm:$0xff]
      %v211 = vld [vmem:[#allocation2 + $0x18] sm:$0xff]
      %v212 = vld [vmem:[%s192] sm:$0xff]
      %v213 = vld [vmem:[%s192 + $0x8] sm:$0xff]
      %v214 = vld [vmem:[%s192 + $0x10] sm:$0xff]
      %v215 = vld [vmem:[%s192 + $0x18] sm:$0xff]
      %v216 = vunpack.c.l.bf16 %v212
      %v217 = vunpack.c.h.bf16 %v212
      %v218 = vunpack.c.l.bf16 %v213
      %v219 = vunpack.c.h.bf16 %v213
      %v220 = vunpack.c.l.bf16 %v214
      %v221 = vunpack.c.h.bf16 %v214
      %v222 = vunpack.c.l.bf16 %v215
      %v223 = vunpack.c.h.bf16 %v215
      %v224 = vadd.f32 %v216, %v217
      %225 = vadd.xlane.f32.xlu0 %v224
      %v226 = vpop.xlane.xlu0 %225
      %v227 = vadd.f32 %v218, %v219
      %228 = vadd.xlane.f32.xlu0 %v227
      %v229 = vpop.xlane.xlu0 %228
      %v230 = vadd.f32 %v220, %v221
      %231 = vadd.xlane.f32.xlu0 %v230
      %v232 = vpop.xlane.xlu0 %231
      %v233 = vadd.f32 %v222, %v223
      %234 = vadd.xlane.f32.xlu0 %v233
      %v235 = vpop.xlane.xlu0 %234
      %v236 = vadd.f32 %v208, %v226
      %v237 = vadd.f32 %v209, %v229
      %v238 = vadd.f32 %v210, %v232
      %v239 = vadd.f32 %v211, %v235
      %vm240 = vcmask 7168
      %241 = vst.msk [vmem:[#allocation2] sm:$0xff] %vm240, %v236
      %242 = vst.msk [vmem:[#allocation2 + $0x8] sm:$0xff] %vm240, %v237
      %243 = vst.msk [vmem:[#allocation2 + $0x10] sm:$0xff] %vm240, %v238
      %244 = vst.msk [vmem:[#allocation2 + $0x18] sm:$0xff] %vm240, %v239
      // Predicated region
      $region37: #{decoder_stage_forward.10} parent=31 // pred_check
        %p245 = pneg %p199
      $region38: #{decoder_stage_forward.10} parent=31 // pred_check_branch
        %247 = sbr.rel (%p245) target = $region40
      $region39: #{decoder_stage_forward.10} parent=31 // pred_region
        %v248 = vld [vmem:[#allocation2] sm:$0xff]
        %v249 = vld [vmem:[#allocation2 + $0x8] sm:$0xff]
        %v250 = vld [vmem:[#allocation2 + $0x10] sm:$0xff]
        %v251 = vld [vmem:[#allocation2 + $0x18] sm:$0xff]
        %v252 = vmul.f32 %v248, 0.00390625
        %v253 = vmul.f32 %v249, 0.00390625
        %v254 = vmul.f32 %v250, 0.00390625
        %v255 = vmul.f32 %v251, 0.00390625
        %v256 = vld [vmem:[%s1] sm:$0x3]
        %vm257 = vcmask 261120
        %v259 = vsel %vm257, %v256, 0
        %261 = vmatprep.subr.mxu0 0.0
        %262 = vmatpush1.msra.mxu0 0.0
        %263 = vmatprep.subr.mxu0 0.0
        %264 = vmatpush1.msra.mxu0 0.0
        %265 = vmatprep.subr.mxu0 0.0
        %266 = vmatpush1.msra.mxu0 0.0
        %267 = vmatprep.subr.mxu0 0.0
        %268 = vmatpush1.msra.mxu0 0.0
        %269 = vmatprep.subr.mxu0 0.0
        %270 = vmatpush1.msra.mxu0 0.0
        %271 = vmatprep.subr.mxu0 0.0
        %272 = vmatpush1.msra.mxu0 0.0
        %273 = vmatprep.subr.mxu0 0.0
        %274 = vmatpush1.msra.mxu0 0.0
        %275 = vmatprep.subr.mxu0 0.0
        %276 = vmatpush1.msra.mxu0 0.0
        %277 = vmatprep.subr.mxu0 0.0
        %278 = vmatpush1.msra.mxu0 0.0
        %279 = vmatprep.subr.mxu0 0.0
        %280 = vmatpush1.msra.mxu0 0.0
        %281 = vmatprep.subr.mxu0 0.0
        %282 = vmatpush1.msra.mxu0 0.0
        %283 = vmatprep.subr.mxu0 0.0
        %284 = vmatpush1.msra.mxu0 0.0
        %285 = vmatprep.subr.mxu0 0.0
        %286 = vmatpush1.msra.mxu0 %v255
        %287 = vmatprep.subr.mxu0 0.0
        %288 = vmatpush1.msra.mxu0 %v254
        %289 = vmatprep.subr.mxu0 0.0
        %290 = vmatpush1.msra.mxu0 %v253
        %291 = vmatprep.subr.mxu0 0.0
        %292 = vmatpush1.msra.mxu0 %v252
        %293 = vmatprep.subr.mxu0 0.0
        %294 = vmatpush2.msra.mxu0 0.0
        %295 = vmatprep.subr.mxu0 0.0
        %296 = vmatpush2.msra.mxu0 0.0
        %297 = vmatprep.subr.mxu0 0.0
        %298 = vmatpush2.msra.mxu0 0.0
        %299 = vmatprep.subr.mxu0 0.0
        %300 = vmatpush2.msra.mxu0 0.0
        %301 = vmatprep.subr.mxu0 0.0
        %302 = vmatpush2.msra.mxu0 0.0
        %303 = vmatprep.subr.mxu0 0.0
        %304 = vmatpush2.msra.mxu0 0.0
        %305 = vmatprep.subr.mxu0 0.0
        %306 = vmatpush2.msra.mxu0 0.0
        %307 = vmatprep.subr.mxu0 0.0
        %308 = vmatpush2.msra.mxu0 0.0
        %309 = vmatprep.subr.mxu0 0.0
        %310 = vmatpush2.msra.mxu0 0.0
        %311 = vmatprep.subr.mxu0 0.0
        %312 = vmatpush2.msra.mxu0 0.0
        %313 = vmatprep.subr.mxu0 0.0
        %314 = vmatpush2.msra.mxu0 0.0
        %315 = vmatprep.subr.mxu0 0.0
        %316 = vmatpush2.msra.mxu0 0.0
        %317 = vmatprep.subr.mxu0 0.0
        %318 = vmatpush2.msra.mxu0 0.0
        %319 = vmatprep.subr.mxu0 0.0
        %320 = vmatpush2.msra.mxu0 0.0
        %321 = vmatprep.subr.mxu0 0.0
        %322 = vmatpush2.msra.mxu0 0.0
        %323 = vmatprep.subr.mxu0 0.0
        %324 = vmatpush2.msra.mxu0 0.0
        %325 = vmatprep.mubr.f32.mxu0 0.0
        %326 = vmatmul.mubr.f32.gmra.mxu0 %v259
        %v327 = vpop.f32.mrf.mxu0
        %v328 = vadd.f32 0.0, %v327
        %v329 = vpop.f32.mrf.mxu0
        %330 = vdwg.mxu0
        %v331 = vmax.f32 %v328, 0.0
        %v332 = vld [vmem:[%s2] sm:$0xff]
        %v333 = vld [vmem:[%s2 + $0x8] sm:$0xff]
        %v334 = vld [vmem:[%s2 + $0x10] sm:$0xff]
        %v335 = vld [vmem:[%s2 + $0x18] sm:$0xff]
        %vm336 = vcmask 15360
        %v338 = vsel %vm336, %v332, 0
        %v341 = vsel %vm336, %v333, 0
        %v344 = vsel %vm336, %v334, 0
        %v347 = vsel %vm336, %v335, 0
        %vm349 = vcmask 1041408
        %v351 = vsel %vm349, %v331, 0
        %353 = vmatprep.subr.mxu0 0.0
        %354 = vmatpush1.msra.mxu0 0.0
        %355 = vmatprep.subr.mxu0 0.0
        %356 = vmatpush1.msra.mxu0 0.0
        %357 = vmatprep.subr.mxu0 0.0
        %358 = vmatpush1.msra.mxu0 0.0
        %359 = vmatprep.subr.mxu0 0.0
        %360 = vmatpush1.msra.mxu0 0.0
        %361 = vmatprep.subr.mxu0 0.0
        %362 = vmatpush1.msra.mxu0 0.0
        %363 = vmatprep.subr.mxu0 0.0
        %364 = vmatpush1.msra.mxu0 0.0
        %365 = vmatprep.subr.mxu0 0.0
        %366 = vmatpush1.msra.mxu0 0.0
        %367 = vmatprep.subr.mxu0 0.0
        %368 = vmatpush1.msra.mxu0 0.0
        %369 = vmatprep.subr.mxu0 0.0
        %370 = vmatpush1.msra.mxu0 0.0
        %371 = vmatprep.subr.mxu0 0.0
        %372 = vmatpush1.msra.mxu0 0.0
        %373 = vmatprep.subr.mxu0 0.0
        %374 = vmatpush1.msra.mxu0 0.0
        %375 = vmatprep.subr.mxu0 0.0
        %376 = vmatpush1.msra.mxu0 0.0
        %377 = vmatprep.subr.mxu0 0.0
        %378 = vmatpush1.msra.mxu0 0.0
        %379 = vmatprep.subr.mxu0 0.0
        %380 = vmatpush1.msra.mxu0 0.0
        %381 = vmatprep.subr.mxu0 0.0
        %382 = vmatpush1.msra.mxu0 0.0
        %383 = vmatprep.subr.mxu0 0.0
        %384 = vmatpush1.msra.mxu0 %v351
        %385 = vmatprep.subr.mxu0 0.0
        %386 = vmatpush2.msra.mxu0 0.0
        %387 = vmatprep.subr.mxu0 0.0
        %388 = vmatpush2.msra.mxu0 0.0
        %389 = vmatprep.subr.mxu0 0.0
        %390 = vmatpush2.msra.mxu0 0.0
        %391 = vmatprep.subr.mxu0 0.0
        %392 = vmatpush2.msra.mxu0 0.0
        %393 = vmatprep.subr.mxu0 0.0
        %394 = vmatpush2.msra.mxu0 0.0
        %395 = vmatprep.subr.mxu0 0.0
        %396 = vmatpush2.msra.mxu0 0.0
        %397 = vmatprep.subr.mxu0 0.0
        %398 = vmatpush2.msra.mxu0 0.0
        %399 = vmatprep.subr.mxu0 0.0
        %400 = vmatpush2.msra.mxu0 0.0
        %401 = vmatprep.subr.mxu0 0.0
        %402 = vmatpush2.msra.mxu0 0.0
        %403 = vmatprep.subr.mxu0 0.0
        %404 = vmatpush2.msra.mxu0 0.0
        %405 = vmatprep.subr.mxu0 0.0
        %406 = vmatpush2.msra.mxu0 0.0
        %407 = vmatprep.subr.mxu0 0.0
        %408 = vmatpush2.msra.mxu0 0.0
        %409 = vmatprep.subr.mxu0 0.0
        %410 = vmatpush2.msra.mxu0 0.0
        %411 = vmatprep.subr.mxu0 0.0
        %412 = vmatpush2.msra.mxu0 0.0
        %413 = vmatprep.subr.mxu0 0.0
        %414 = vmatpush2.msra.mxu0 0.0
        %415 = vmatprep.subr.mxu0 0.0
        %416 = vmatpush2.msra.mxu0 0.0
        %417 = vmatprep.mubr.f32.mxu0 0.0
        %418 = vmatmul.mubr.f32.gmra.mxu0 %v338
        %v419 = vpop.f32.mrf.mxu0
        %v420 = vadd.f32 0.0, %v419
        %v421 = vpop.f32.mrf.mxu0
        %422 = vmatprep.mubr.f32.mxu0 0.0
        %423 = vmatmul.mubr.f32.gmra.mxu0 %v341
        %v424 = vpop.f32.mrf.mxu0
        %v425 = vadd.f32 0.0, %v424
        %v426 = vpop.f32.mrf.mxu0
        %427 = vmatprep.mubr.f32.mxu0 0.0
        %428 = vmatmul.mubr.f32.gmra.mxu0 %v344
        %v429 = vpop.f32.mrf.mxu0
        %v430 = vadd.f32 0.0, %v429
        %v431 = vpop.f32.mrf.mxu0
        %432 = vmatprep.mubr.f32.mxu0 0.0
        %433 = vmatmul.mubr.f32.gmra.mxu0 %v347
        %v434 = vpop.f32.mrf.mxu0
        %v435 = vadd.f32 0.0, %v434
        %v436 = vpop.f32.mrf.mxu0
        %437 = vdwg.mxu0
        %v438 = vsub.f32 0.0, %v420
        %v439 = vsub.f32 0.0, %v425
        %v440 = vsub.f32 0.0, %v430
        %v441 = vsub.f32 0.0, %v435
        %v442 = vmul.f32 %v438, 1.442695
        %v443 = vpow.pop %v442
        %v444 = vmul.f32 %v439, 1.442695
        %v445 = vpow.pop %v444
        %v446 = vmul.f32 %v440, 1.442695
        %v447 = vpow.pop %v446
        %v448 = vmul.f32 %v441, 1.442695
        %v449 = vpow.pop %v448
        %v450 = vadd.f32 %v443, 1.0
        %v451 = vadd.f32 %v445, 1.0
        %v452 = vadd.f32 %v447, 1.0
        %v453 = vadd.f32 %v449, 1.0
        %v454 = vrcp.pop %v450
        %v455 = vrcp.pop %v451
        %v456 = vrcp.pop %v452
        %v457 = vrcp.pop %v453
        %458 = vst.msk [vmem:[%s198] sm:$0xff] %vm240, %v454
        %459 = vst.msk [vmem:[%s198 + $0x8] sm:$0xff] %vm240, %v455
        %460 = vst.msk [vmem:[%s198 + $0x10] sm:$0xff] %vm240, %v456
        %461 = vst.msk [vmem:[%s198 + $0x18] sm:$0xff] %vm240, %v457
      $region40: #{decoder_stage_forward.10} parent=31 // pred_fallthru
        _
      %p462 = scmp.lt.s32.totalorder %s18, 1
      %s463 = scalar_select %p462, %s18, 1
      %s464 = smul.addr %s463, 4
      %s465 = smul.addr %s464, 8
      %s466 = scalar_lea.vmem %s3, %s465
      // Predicated region
      $region41: #{decoder_stage_forward.10} parent=31 // pred_check
        %p467 = pneg %p114
      $region42: #{decoder_stage_forward.10} parent=31 // pred_check_branch
        %469 = sbr.rel (%p467) target = $region44
      $region43: #{decoder_stage_forward.10} parent=31 // pred_region
        _
      $region44: #{decoder_stage_forward.10} parent=31 // pred_fallthru
        _
    $region32: #{decoder_stage_forward.10} parent=5 // pred_fallthru
      _
    %p470 = scmp.le.s32.totalorder 2, %s9
    // Predicated region
    $region45: #{decoder_stage_forward.10} parent=5 // pred_check
      %p471 = pneg %p470
    $region46: #{decoder_stage_forward.10} parent=5 // pred_check_branch
      %473 = sbr.rel (%p471) target = $region48
    $region47: #{decoder_stage_forward.10} parent=5 // pred_region
      %s474 = ssub.s32 %s9, 2
      // Predicated region
      $region49: #{decoder_stage_forward.10} parent=47 // pred_check
        %p475 = pneg %p120
      $region50: #{decoder_stage_forward.10} parent=47 // pred_check_branch
        %477 = sbr.rel (%p475) target = $region52
      $region51: #{decoder_stage_forward.10} parent=47 // pred_region
        %p478 = scmp.lt.s32.totalorder %s20, 1
        %s479 = scalar_select %p478, %s20, 1
        %s480 = smul.addr %s479, 4
        %s481 = smul.addr %s480, 8
        %s482 = scalar_lea.vmem %s3, %s481
      $region52: #{decoder_stage_forward.10} parent=47 // pred_fallthru
        _
    $region48: #{decoder_stage_forward.10} parent=5 // pred_fallthru
      _
  $region6: #{decoder_stage_forward.10} parent=0 // loop_footer
    %s13 = sadd.s32 1, %s9
  $region7: #{decoder_stage_forward.10} parent=0 // loop_footer_branch
    %8 = sbr.rel target = $region3
  $region8: #{decoder_stage_forward.10} parent=0 // loop_exit
    _

// kernel: decoder_stage_forward.12
$region0: #{decoder_stage_forward.12}
  #allocation0 [shape = 'u32[]', space=smem, size = 0x4, offset = 0x4, fixed_abs, tag = 'smem constant byte address 0x4 - core index']
  #allocation1 [shape = 'u32[144,128]{1,0:T(1,128)}', space=vmem, size = 0x12000, scoped, tag = 'internal scratch']
  #allocation2 [shape = 'bf16[72,80]{1,0:T(8,128)(2,1)}', space=vmem, size = 0x4800, scoped, tag = 'scratch operand']
  %s0 = inlined_call_operand.vmem [shape: bf16[2,1,8,102], index: 0, kind: input, shape index: {}]
  %s1 = inlined_call_operand.vmem [shape: bf16[32,72], index: 1, kind: input, shape index: {}]
  %s2 = inlined_call_operand.vmem [shape: f32[32,1], index: 2, kind: input, shape index: {}]
  %s3 = inlined_call_operand.vmem [shape: bf16[2,1,32,80], index: 3, kind: output, shape index: {}]
  %s4 = sld [smem:[#allocation0]]
  $region45: #{decoder_stage_forward.12} parent=0
    _
  %s6 = ssub.s32 1, %s4
  %s7 = scalar_select 0, %s6, %s4
  loop: start=0, step=1, limit=4
  $region2: #{decoder_stage_forward.12} parent=0 // loop_pre_header
    _
  $region3: #{decoder_stage_forward.12} parent=0 // loop_header
    %s9 = sphi 0, %s13
    %p10 = scmp.ge.s32.totalorder %s9, 4
    %s16 = sphi 0, %s28
    %s17 = sphi 0, %s24
    %s18 = sphi 0, %s16
    %s19 = sphi 0, %s17
    %s20 = sphi 0, %s18
    %s21 = sphi 0, %s19
    %s33 = sphi 0, %s35
    %s36 = sphi 0, %s33
    %s37 = sphi 0, %s36
    %s53 = sphi 0, %s37
    %s57 = sphi 0, %s57
    %s59 = sphi 0, %s57
    %s60 = sphi 0, %s59
    %s74 = sphi 0, %s60
    %s78 = sphi 0, %s78
    %s80 = sphi 0, %s78
    %s81 = sphi 0, %s80
    %s95 = sphi 0, %s81
    %s103 = sphi 0, %s105
    %s106 = sphi 0, %s103
    %s107 = sphi 0, %s106
    %s123 = sphi 0, %s107
  $region4: #{decoder_stage_forward.12} parent=0 // loop_header_branch
    %12 = sbr.rel (%p10) target = $region8
  $region5: #{decoder_stage_forward.12} parent=0 // loop_body
    %s14 = ssub.s32 %s9, 1
    %s15 = ssub.s32 %s9, 2
    %s22 = sadd.s32 1, %s17
    %p23 = scmp.ge.s32.totalorder %s22, 1
    %s24 = scalar_select %p23, 0, %s22
    %s25 = sadd.s32 1, %s16
    %s26 = scalar_select %p23, %s25, %s16
    %p27 = scmp.ge.s32.totalorder %s26, 2
    %s28 = scalar_select %p27, 0, %s26
    %s29 = ssub.s32 %s16, %s28
    %s30 = ssub.s32 %s17, %s24
    %s31 = sor.u32 %s29, %s30
    %p32 = scmp.eq.s32.totalorder %s31, 0
    %s34 = sadd.s32 %s33, 1
    %s35 = scalar_select %p32, %s33, %s34
    %p38 = pneg %p32
    %p39 = scmp.eq.s32.totalorder %s9, 1
    %p40 = por %p38, %p39
    %p41 = scmp.ne.s32.totalorder %s33, %s36
    %p42 = scmp.eq.s32.totalorder %s9, 0
    %p43 = por %p41, %p42
    %p44 = scmp.ne.s32.totalorder %s33, %s36
    %p45 = scmp.eq.s32.totalorder %s14, 1
    %p46 = por %p44, %p45
    %p47 = scmp.ne.s32.totalorder %s36, %s37
    %p48 = scmp.eq.s32.totalorder %s14, 0
    %p49 = por %p47, %p48
    %p50 = scmp.ne.s32.totalorder %s36, %s37
    %p51 = scmp.eq.s32.totalorder %s15, 1
    %p52 = por %p50, %p51
    %p54 = scmp.ne.s32.totalorder %s37, %s53
    %p55 = scmp.eq.s32.totalorder %s15, 0
    %p56 = por %p54, %p55
    %s58 = sadd.s32 %s57, 1
    %p61 = scmp.eq.s32.totalorder %s9, 1
    %p62 = scmp.ne.s32.totalorder %s57, %s59
    %p63 = scmp.eq.s32.totalorder %s9, 0
    %p64 = por %p62, %p63
    %p65 = scmp.ne.s32.totalorder %s57, %s59
    %p66 = scmp.eq.s32.totalorder %s14, 1
    %p67 = por %p65, %p66
    %p68 = scmp.ne.s32.totalorder %s59, %s60
    %p69 = scmp.eq.s32.totalorder %s14, 0
    %p70 = por %p68, %p69
    %p71 = scmp.ne.s32.totalorder %s59, %s60
    %p72 = scmp.eq.s32.totalorder %s15, 1
    %p73 = por %p71, %p72
    %p75 = scmp.ne.s32.totalorder %s60, %s74
    %p76 = scmp.eq.s32.totalorder %s15, 0
    %p77 = por %p75, %p76
    %s79 = sadd.s32 %s78, 1
    %p82 = scmp.eq.s32.totalorder %s9, 1
    %p83 = scmp.ne.s32.totalorder %s78, %s80
    %p84 = scmp.eq.s32.totalorder %s9, 0
    %p85 = por %p83, %p84
    %p86 = scmp.ne.s32.totalorder %s78, %s80
    %p87 = scmp.eq.s32.totalorder %s14, 1
    %p88 = por %p86, %p87
    %p89 = scmp.ne.s32.totalorder %s80, %s81
    %p90 = scmp.eq.s32.totalorder %s14, 0
    %p91 = por %p89, %p90
    %p92 = scmp.ne.s32.totalorder %s80, %s81
    %p93 = scmp.eq.s32.totalorder %s15, 1
    %p94 = por %p92, %p93
    %p96 = scmp.ne.s32.totalorder %s81, %s95
    %p97 = scmp.eq.s32.totalorder %s15, 0
    %p98 = por %p96, %p97
    %s99 = ssub.s32 %s16, %s28
    %s100 = ssub.s32 %s17, %s24
    %s101 = sor.u32 %s99, %s100
    %p102 = scmp.eq.s32.totalorder %s101, 0
    %s104 = sadd.s32 %s103, 1
    %s105 = scalar_select %p102, %s103, %s104
    %p108 = pneg %p102
    %p109 = scmp.eq.s32.totalorder %s9, 1
    %p110 = por %p108, %p109
    %p111 = scmp.ne.s32.totalorder %s103, %s106
    %p112 = scmp.eq.s32.totalorder %s9, 0
    %p113 = por %p111, %p112
    %p114 = scmp.ne.s32.totalorder %s103, %s106
    %p115 = scmp.eq.s32.totalorder %s14, 1
    %p116 = por %p114, %p115
    %p117 = scmp.ne.s32.totalorder %s106, %s107
    %p118 = scmp.eq.s32.totalorder %s14, 0
    %p119 = por %p117, %p118
    %p120 = scmp.ne.s32.totalorder %s106, %s107
    %p121 = scmp.eq.s32.totalorder %s15, 1
    %p122 = por %p120, %p121
    %p124 = scmp.ne.s32.totalorder %s107, %s123
    %p125 = scmp.eq.s32.totalorder %s15, 0
    %p126 = por %p124, %p125
    %p127 = scmp.le.s32.totalorder 1, %s9
    %p128 = scmp.lt.s32.totalorder %s9, 3
    %p129 = pnand %p127, %p128
    %p130 = pneg %p129
    // Predicated region
    $region9: #{decoder_stage_forward.12} parent=5 // pred_check
      _
    $region10: #{decoder_stage_forward.12} parent=5 // pred_check_branch
      %132 = sbr.rel (%p129) target = $region12
    $region11: #{decoder_stage_forward.12} parent=5 // pred_region
      %s133 = ssub.s32 %s9, 1
      // Predicated region
      $region13: #{decoder_stage_forward.12} parent=11 // pred_check
        %p134 = pneg %p70
      $region14: #{decoder_stage_forward.12} parent=11 // pred_check_branch
        %136 = sbr.rel (%p134) target = $region16
      $region15: #{decoder_stage_forward.12} parent=11 // pred_region
        _
      $region16: #{decoder_stage_forward.12} parent=11 // pred_fallthru
        _
      // Predicated region
      $region17: #{decoder_stage_forward.12} parent=11 // pred_check
        %p137 = pneg %p91
      $region18: #{decoder_stage_forward.12} parent=11 // pred_check_branch
        %139 = sbr.rel (%p137) target = $region20
      $region19: #{decoder_stage_forward.12} parent=11 // pred_region
        _
      $region20: #{decoder_stage_forward.12} parent=11 // pred_fallthru
        _
    $region12: #{decoder_stage_forward.12} parent=5 // pred_fallthru
      _
    %p140 = scmp.lt.s32.totalorder %s9, 2
    // Predicated region
    $region21: #{decoder_stage_forward.12} parent=5 // pred_check
      %p141 = pneg %p140
    $region22: #{decoder_stage_forward.12} parent=5 // pred_check_branch
      %143 = sbr.rel (%p141) target = $region24
    $region23: #{decoder_stage_forward.12} parent=5 // pred_region
      // Predicated region
      $region25: #{decoder_stage_forward.12} parent=23 // pred_check
        %p144 = pneg %p43
      $region26: #{decoder_stage_forward.12} parent=23 // pred_check_branch
        %146 = sbr.rel (%p144) target = $region28
      $region27: #{decoder_stage_forward.12} parent=23 // pred_region
        %p147 = scmp.lt.s32.totalorder %s16, 1
        %s148 = scalar_select %p147, %s16, 1
        %p149 = scmp.lt.s32.totalorder %s17, 0
        %s150 = scalar_select %p149, %s17, 0
        %s151 = sadd.s32 %s150, %s148
        %s152 = smul.addr %s151, 4
        %s153 = scalar_lea.vmem %s0, %s152
      $region28: #{decoder_stage_forward.12} parent=23 // pred_fallthru
        _
    $region24: #{decoder_stage_forward.12} parent=5 // pred_fallthru
      _
    %p154 = scmp.le.s32.totalorder 1, %s9
    %p155 = scmp.lt.s32.totalorder %s9, 3
    %p156 = pnand %p154, %p155
    %p157 = pneg %p156
    // Predicated region
    $region29: #{decoder_stage_forward.12} parent=5 // pred_check
      _
    $region30: #{decoder_stage_forward.12} parent=5 // pred_check_branch
      %159 = sbr.rel (%p156) target = $region32
    $region31: #{decoder_stage_forward.12} parent=5 // pred_region
      %s160 = ssub.s32 %s9, 1
      %p161 = scmp.lt.s32.totalorder %s18, 1
      %s162 = scalar_select %p161, %s18, 1
      %p163 = scmp.lt.s32.totalorder %s19, 0
      %s164 = scalar_select %p163, %s19, 0
      %s165 = sadd.s32 %s164, %s162
      %s166 = smul.addr %s165, 4
      %s167 = scalar_lea.vmem %s0, %s166
      %p168 = pneg %p49
      %p169 = pneg %p46
      %p170 = pneg %p70
      %p171 = pneg %p67
      %p172 = pneg %p91
      %p173 = pneg %p88
      %p174 = pneg %p119
      %p175 = pneg %p116
      %p176 = scmp.lt.s32.totalorder %s18, 1
      %s177 = scalar_select %p176, %s18, 1
      %p178 = scmp.lt.s32.totalorder %s19, 0
      %s179 = scalar_select %p178, %s19, 0
      %s180 = smul.addr %s179, 4
      %s181 = smul.addr %s177, 4
      %s182 = sadd.s32 %s180, %s181
      %s183 = smul.addr %s182, 4
      %s184 = scalar_lea.vmem %s3, %s183
      %p185 = scmp.lt.s32.totalorder %s18, 1
      %s186 = scalar_select %p185, %s18, 1
      %p187 = scmp.lt.s32.totalorder %s19, 0
      %s188 = scalar_select %p187, %s19, 0
      %s189 = sadd.s32 %s188, %s186
      %s190 = smul.addr %s189, 4
      %s191 = scalar_lea.vmem %s0, %s190
      %p192 = scmp.lt.s32.totalorder %s18, 1
      %s193 = scalar_select %p192, %s18, 1
      %p194 = scmp.lt.s32.totalorder %s19, 0
      %s195 = scalar_select %p194, %s19, 0
      %s196 = smul.addr %s195, 4
      %s197 = smul.addr %s193, 4
      %s198 = sadd.s32 %s196, %s197
      %s199 = smul.addr %s198, 4
      %s200 = scalar_lea.vmem %s3, %s199
      %v202 = vld [vmem:[%s191] sm:$0xf]
      %vm203 = vcmask 650240
      %204 = vst.msk [vmem:[#allocation2] sm:$0xf] %vm203, %v202
      %v205 = vld [vmem:[%s191] sm:$0xf]
      %207 = vrot.lane.b32.xlu0 %v205, 127
      %v208 = vpop.permute.xlu0 %207
      %210 = vst.msk [vmem:[#allocation2 + $0x4] sm:$0xf] %vm203, %v208
      %v211 = vld [vmem:[%s191] sm:$0xf]
      %213 = vrot.lane.b32.xlu0 %v211, 126
      %v214 = vpop.permute.xlu0 %213
      %216 = vst.msk [vmem:[#allocation2 + $0x8] sm:$0xf] %vm203, %v214
      %v217 = vld [vmem:[%s191] sm:$0xf]
      %219 = vrot.lane.b32.xlu0 %v217, 118
      %v220 = vpop.permute.xlu0 %219
      %222 = vst.msk [vmem:[#allocation2 + $0xc] sm:$0xf] %vm203, %v220
      %v223 = vld [vmem:[%s191] sm:$0xf]
      %225 = vrot.lane.b32.xlu0 %v223, 117
      %v226 = vpop.permute.xlu0 %225
      %228 = vst.msk [vmem:[#allocation2 + $0x10] sm:$0xf] %vm203, %v226
      %v229 = vld [vmem:[%s191] sm:$0xf]
      %231 = vrot.lane.b32.xlu0 %v229, 116
      %v232 = vpop.permute.xlu0 %231
      %234 = vst.msk [vmem:[#allocation2 + $0x14] sm:$0xf] %vm203, %v232
      %v235 = vld [vmem:[%s191] sm:$0xf]
      %237 = vrot.lane.b32.xlu0 %v235, 108
      %v238 = vpop.permute.xlu0 %237
      %240 = vst.msk [vmem:[#allocation2 + $0x18] sm:$0xf] %vm203, %v238
      %v241 = vld [vmem:[%s191] sm:$0xf]
      %243 = vrot.lane.b32.xlu0 %v241, 107
      %v244 = vpop.permute.xlu0 %243
      %246 = vst.msk [vmem:[#allocation2 + $0x1c] sm:$0xf] %vm203, %v244
      %v247 = vld [vmem:[%s191] sm:$0xf]
      %249 = vrot.lane.b32.xlu0 %v247, 106
      %v250 = vpop.permute.xlu0 %249
      %252 = vst.msk [vmem:[#allocation2 + $0x20] sm:$0xf] %vm203, %v250
      %v253 = vld [vmem:[%s1] sm:$0xf]
      %v254 = vld [vmem:[%s1 + $0x4] sm:$0xf]
      %v255 = vld [vmem:[%s1 + $0x8] sm:$0xf]
      %v256 = vld [vmem:[%s1 + $0xc] sm:$0xf]
      %v257 = vld [vmem:[#allocation2] sm:$0xf]
      %v258 = vld [vmem:[#allocation2 + $0x4] sm:$0xf]
      %v259 = vld [vmem:[#allocation2 + $0x8] sm:$0xf]
      %v260 = vld [vmem:[#allocation2 + $0xc] sm:$0xf]
      %v261 = vld [vmem:[#allocation2 + $0x10] sm:$0xf]
      %v262 = vld [vmem:[#allocation2 + $0x14] sm:$0xf]
      %v263 = vld [vmem:[#allocation2 + $0x18] sm:$0xf]
      %v264 = vld [vmem:[#allocation2 + $0x1c] sm:$0xf]
      %v265 = vld [vmem:[#allocation2 + $0x20] sm:$0xf]
      %v266 = vld [vmem:[%s2] sm:$0xff]
      %v267 = vld [vmem:[%s2 + $0x8] sm:$0xff]
      %v268 = vld [vmem:[%s2 + $0x10] sm:$0xff]
      %v269 = vld [vmem:[%s2 + $0x18] sm:$0xff]
      %271 = vset.pattern.permute.xlu0 0
      %272 = vperm.xlu0 %271, %v266
      %v273 = vpop.permute.xlu0 %272
      %276 = vset.pattern.permute.xlu0 0
      %277 = vperm.xlu0 %276, %v267
      %v278 = vpop.permute.xlu0 %277
      %281 = vset.pattern.permute.xlu0 0
      %282 = vperm.xlu0 %281, %v268
      %v283 = vpop.permute.xlu0 %282
      %286 = vset.pattern.permute.xlu0 0
      %287 = vperm.xlu0 %286, %v269
      %v288 = vpop.permute.xlu0 %287
      %v294 = vunpack.c.l.b16 %v253
      %v295 = vunpack.c.l.b16 %v254
      %v296 = vunpack.c.l.b16 %v255
      %v297 = vunpack.c.l.b16 %v256
      %v298 = vpack.c.b16 %v295, %v294
      %v299 = vpack.c.b16 %v297, %v296
      %v309 = vunpack.c.l.b16 %v257
      %v310 = vunpack.c.l.b16 %v258
      %v311 = vunpack.c.l.b16 %v259
      %v312 = vunpack.c.l.b16 %v260
      %v313 = vunpack.c.l.b16 %v261
      %v314 = vunpack.c.l.b16 %v262
      %v315 = vunpack.c.l.b16 %v263
      %v316 = vunpack.c.l.b16 %v264
      %v317 = vunpack.c.l.b16 %v265
      %v318 = vpack.c.b16 %v310, %v309
      %v319 = vpack.c.b16 %v312, %v311
      %v320 = vpack.c.b16 %v314, %v313
      %v321 = vpack.c.b16 %v316, %v315
      %v322 = vpack.c.b16 %v317, %v317
      %vm327 = vcmask 588800
      %v329 = vsel %vm327, %v298, 0
      %v332 = vsel %vm327, %v299, 0
      %vm334 = vcmask 1043456
      %v336 = vsel %vm334, %v322, 0
      %338 = vmatprep.subr.bf16.mxu0 0
      %339 = vmatpush1.bf16.msra.mxu0 0
      %340 = vmatprep.subr.bf16.mxu0 0
      %341 = vmatpush1.bf16.msra.mxu0 0
      %342 = vmatprep.subr.bf16.mxu0 0
      %343 = vmatpush1.bf16.msra.mxu0 0
      %344 = vmatprep.subr.bf16.mxu0 0
      %345 = vmatpush1.bf16.msra.mxu0 %v336
      %346 = vmatprep.subr.bf16.mxu0 0
      %347 = vmatpush1.bf16.msra.mxu0 %v321
      %348 = vmatprep.subr.bf16.mxu0 0
      %349 = vmatpush1.bf16.msra.mxu0 %v320
      %350 = vmatprep.subr.bf16.mxu0 0
      %351 = vmatpush1.bf16.msra.mxu0 %v319
      %352 = vmatprep.subr.bf16.mxu0 0
      %353 = vmatpush1.bf16.msra.mxu0 %v318
      %354 = vmatprep.subr.bf16.mxu0 0
      %355 = vmatpush2.bf16.msra.mxu0 0
      %356 = vmatprep.subr.bf16.mxu0 0
      %357 = vmatpush2.bf16.msra.mxu0 0
      %358 = vmatprep.subr.bf16.mxu0 0
      %359 = vmatpush2.bf16.msra.mxu0 0
      %360 = vmatprep.subr.bf16.mxu0 0
      %361 = vmatpush2.bf16.msra.mxu0 0
      %362 = vmatprep.subr.bf16.mxu0 0
      %363 = vmatpush2.bf16.msra.mxu0 0
      %364 = vmatprep.subr.bf16.mxu0 0
      %365 = vmatpush2.bf16.msra.mxu0 0
      %366 = vmatprep.subr.bf16.mxu0 0
      %367 = vmatpush2.bf16.msra.mxu0 0
      %368 = vmatprep.subr.bf16.mxu0 0
      %369 = vmatpush2.bf16.msra.mxu0 0
      %370 = vmatprep.mubr.bf16.mxu0 0
      %371 = vmatmul.mubr.bf16.gmra.mxu0 %v329
      %v372 = vpop.f32.mrf.mxu0
      %v373 = vadd.f32 %v273, %v372
      %v374 = vpop.f32.mrf.mxu0
      %v375 = vpop.f32.mrf.mxu0
      %v376 = vadd.f32 %v278, %v375
      %v377 = vpop.f32.mrf.mxu0
      %378 = vmatprep.mubr.bf16.mxu0 0
      %379 = vmatmul.mubr.bf16.gmra.mxu0 %v332
      %v380 = vpop.f32.mrf.mxu0
      %v381 = vadd.f32 %v283, %v380
      %v382 = vpop.f32.mrf.mxu0
      %v383 = vpop.f32.mrf.mxu0
      %v384 = vadd.f32 %v288, %v383
      %v385 = vpop.f32.mrf.mxu0
      %386 = vdwg.mxu0
      %vm387 = vcmp.gt.f32.partialorder %v373, 0.0
      %vm388 = vcmp.gt.f32.partialorder %v376, 0.0
      %vm389 = vcmp.gt.f32.partialorder %v381, 0.0
      %vm390 = vcmp.gt.f32.partialorder %v384, 0.0
      %v391 = vmin.f32 %v373, 0.0
      %v392 = vmin.f32 %v376, 0.0
      %v393 = vmin.f32 %v381, 0.0
      %v394 = vmin.f32 %v384, 0.0
      %v395 = vmul.f32 %v391, 1.442695
      %v396 = vpow.pop %v395
      %v397 = vmul.f32 %v392, 1.442695
      %v398 = vpow.pop %v397
      %v399 = vmul.f32 %v393, 1.442695
      %v400 = vpow.pop %v399
      %v401 = vmul.f32 %v394, 1.442695
      %v402 = vpow.pop %v401
      %v403 = vsub.f32 %v396, 1.0
      %v404 = vsub.f32 %v398, 1.0
      %v405 = vsub.f32 %v400, 1.0
      %v406 = vsub.f32 %v402, 1.0
      %v407 = vsel %vm387, %v373, %v403
      %v408 = vsel %vm388, %v376, %v404
      %v409 = vsel %vm389, %v381, %v405
      %v410 = vsel %vm390, %v384, %v406
      %v411 = vpack.c.bf16 %v408, %v407
      %v412 = vpack.c.bf16 %v410, %v409
      %v415 = vunpack.c.l.b16 %v411
      %v416 = vunpack.c.h.b16 %v411
      %v417 = vunpack.c.l.b16 %v412
      %v418 = vunpack.c.h.b16 %v412
      %v419 = vpack.c.b16 %v415, %v415
      %v420 = vpack.c.b16 %v416, %v416
      %v421 = vpack.c.b16 %v417, %v417
      %v422 = vpack.c.b16 %v418, %v418
      %427 = vst.msk [vmem:[%s200] sm:$0xf] %vm203, %v419
      %428 = vst.msk [vmem:[%s200 + $0x4] sm:$0xf] %vm203, %v420
      %429 = vst.msk [vmem:[%s200 + $0x8] sm:$0xf] %vm203, %v421
      %430 = vst.msk [vmem:[%s200 + $0xc] sm:$0xf] %vm203, %v422
      %p431 = scmp.lt.s32.totalorder %s18, 1
      %s432 = scalar_select %p431, %s18, 1
      %p433 = scmp.lt.s32.totalorder %s19, 0
      %s434 = scalar_select %p433, %s19, 0
      %s435 = smul.addr %s434, 4
      %s436 = smul.addr %s432, 4
      %s437 = sadd.s32 %s435, %s436
      %s438 = smul.addr %s437, 4
      %s439 = scalar_lea.vmem %s3, %s438
      // Predicated region
      $region33: #{decoder_stage_forward.12} parent=31 // pred_check
        %p440 = pneg %p116
      $region34: #{decoder_stage_forward.12} parent=31 // pred_check_branch
        %442 = sbr.rel (%p440) target = $region36
      $region35: #{decoder_stage_forward.12} parent=31 // pred_region
        _
      $region36: #{decoder_stage_forward.12} parent=31 // pred_fallthru
        _
    $region32: #{decoder_stage_forward.12} parent=5 // pred_fallthru
      _
    %p443 = scmp.le.s32.totalorder 2, %s9
    // Predicated region
    $region37: #{decoder_stage_forward.12} parent=5 // pred_check
      %p444 = pneg %p443
    $region38: #{decoder_stage_forward.12} parent=5 // pred_check_branch
      %446 = sbr.rel (%p444) target = $region40
    $region39: #{decoder_stage_forward.12} parent=5 // pred_region
      %s447 = ssub.s32 %s9, 2
      // Predicated region
      $region41: #{decoder_stage_forward.12} parent=39 // pred_check
        %p448 = pneg %p122
      $region42: #{decoder_stage_forward.12} parent=39 // pred_check_branch
        %450 = sbr.rel (%p448) target = $region44
      $region43: #{decoder_stage_forward.12} parent=39 // pred_region
        %p451 = scmp.lt.s32.totalorder %s20, 1
        %s452 = scalar_select %p451, %s20, 1
        %p453 = scmp.lt.s32.totalorder %s21, 0
        %s454 = scalar_select %p453, %s21, 0
        %s455 = smul.addr %s454, 4
        %s456 = smul.addr %s452, 4
        %s457 = sadd.s32 %s455, %s456
        %s458 = smul.addr %s457, 4
        %s459 = scalar_lea.vmem %s3, %s458
      $region44: #{decoder_stage_forward.12} parent=39 // pred_fallthru
        _
    $region40: #{decoder_stage_forward.12} parent=5 // pred_fallthru
      _
  $region6: #{decoder_stage_forward.12} parent=0 // loop_footer
    %s13 = sadd.s32 1, %s9
  $region7: #{decoder_stage_forward.12} parent=0 // loop_footer_branch
    %8 = sbr.rel target = $region3
  $region8: #{decoder_stage_forward.12} parent=0 // loop_exit
    _

// kernel: decoder_stage_forward.13
$region0: #{decoder_stage_forward.13}
  #allocation0 [shape = 'u32[]', space=smem, size = 0x4, offset = 0x4, fixed_abs, tag = 'smem constant byte address 0x4 - core index']
  #allocation1 [shape = 'u32[144,128]{1,0:T(1,128)}', space=vmem, size = 0x12000, scoped, tag = 'internal scratch']
  %s0 = inlined_call_operand.vmem [shape: f32[2,16,8], index: 0, kind: input, shape index: {}]
  %s1 = inlined_call_operand.vmem [shape: f32[16,8], index: 1, kind: input, shape index: {}]
  %s2 = inlined_call_operand.vmem [shape: f32[8,16], index: 2, kind: input, shape index: {}]
  %s3 = inlined_call_operand.vmem [shape: bf16[2,2,16,16], index: 3, kind: output, shape index: {}]
  %s4 = sld [smem:[#allocation0]]
  $region45: #{decoder_stage_forward.13} parent=0
    _
  %s6 = ssub.s32 1, %s4
  %s7 = scalar_select 0, %s6, %s4
  loop: start=0, step=1, limit=4
  $region2: #{decoder_stage_forward.13} parent=0 // loop_pre_header
    _
  $region3: #{decoder_stage_forward.13} parent=0 // loop_header
    %s9 = sphi 0, %s13
    %p10 = scmp.ge.s32.totalorder %s9, 4
    %s19 = sphi 0, %s21
    %s22 = sphi 0, %s19
    %s23 = sphi 0, %s22
    %s39 = sphi 0, %s23
    %s43 = sphi 0, %s43
    %s45 = sphi 0, %s43
    %s46 = sphi 0, %s45
    %s60 = sphi 0, %s46
    %s64 = sphi 0, %s64
    %s66 = sphi 0, %s64
    %s67 = sphi 0, %s66
    %s81 = sphi 0, %s67
    %s87 = sphi 0, %s89
    %s90 = sphi 0, %s87
    %s91 = sphi 0, %s90
    %s107 = sphi 0, %s91
  $region4: #{decoder_stage_forward.13} parent=0 // loop_header_branch
    %12 = sbr.rel (%p10) target = $region8
  $region5: #{decoder_stage_forward.13} parent=0 // loop_body
    %s14 = ssub.s32 %s9, 1
    %s15 = ssub.s32 %s9, 2
    %s16 = sadd.s32 %s9, 1
    %s17 = ssub.s32 %s9, %s16
    %p18 = scmp.eq.s32.totalorder %s17, 0
    %s20 = sadd.s32 %s19, 1
    %s21 = scalar_select %p18, %s19, %s20
    %p24 = pneg %p18
    %p25 = scmp.eq.s32.totalorder %s9, 1
    %p26 = por %p24, %p25
    %p27 = scmp.ne.s32.totalorder %s19, %s22
    %p28 = scmp.eq.s32.totalorder %s9, 0
    %p29 = por %p27, %p28
    %p30 = scmp.ne.s32.totalorder %s19, %s22
    %p31 = scmp.eq.s32.totalorder %s14, 1
    %p32 = por %p30, %p31
    %p33 = scmp.ne.s32.totalorder %s22, %s23
    %p34 = scmp.eq.s32.totalorder %s14, 0
    %p35 = por %p33, %p34
    %p36 = scmp.ne.s32.totalorder %s22, %s23
    %p37 = scmp.eq.s32.totalorder %s15, 1
    %p38 = por %p36, %p37
    %p40 = scmp.ne.s32.totalorder %s23, %s39
    %p41 = scmp.eq.s32.totalorder %s15, 0
    %p42 = por %p40, %p41
    %s44 = sadd.s32 %s43, 1
    %p47 = scmp.eq.s32.totalorder %s9, 1
    %p48 = scmp.ne.s32.totalorder %s43, %s45
    %p49 = scmp.eq.s32.totalorder %s9, 0
    %p50 = por %p48, %p49
    %p51 = scmp.ne.s32.totalorder %s43, %s45
    %p52 = scmp.eq.s32.totalorder %s14, 1
    %p53 = por %p51, %p52
    %p54 = scmp.ne.s32.totalorder %s45, %s46
    %p55 = scmp.eq.s32.totalorder %s14, 0
    %p56 = por %p54, %p55
    %p57 = scmp.ne.s32.totalorder %s45, %s46
    %p58 = scmp.eq.s32.totalorder %s15, 1
    %p59 = por %p57, %p58
    %p61 = scmp.ne.s32.totalorder %s46, %s60
    %p62 = scmp.eq.s32.totalorder %s15, 0
    %p63 = por %p61, %p62
    %s65 = sadd.s32 %s64, 1
    %p68 = scmp.eq.s32.totalorder %s9, 1
    %p69 = scmp.ne.s32.totalorder %s64, %s66
    %p70 = scmp.eq.s32.totalorder %s9, 0
    %p71 = por %p69, %p70
    %p72 = scmp.ne.s32.totalorder %s64, %s66
    %p73 = scmp.eq.s32.totalorder %s14, 1
    %p74 = por %p72, %p73
    %p75 = scmp.ne.s32.totalorder %s66, %s67
    %p76 = scmp.eq.s32.totalorder %s14, 0
    %p77 = por %p75, %p76
    %p78 = scmp.ne.s32.totalorder %s66, %s67
    %p79 = scmp.eq.s32.totalorder %s15, 1
    %p80 = por %p78, %p79
    %p82 = scmp.ne.s32.totalorder %s67, %s81
    %p83 = scmp.eq.s32.totalorder %s15, 0
    %p84 = por %p82, %p83
    %s85 = ssub.s32 %s9, %s16
    %p86 = scmp.eq.s32.totalorder %s85, 0
    %s88 = sadd.s32 %s87, 1
    %s89 = scalar_select %p86, %s87, %s88
    %p92 = pneg %p86
    %p93 = scmp.eq.s32.totalorder %s9, 1
    %p94 = por %p92, %p93
    %p95 = scmp.ne.s32.totalorder %s87, %s90
    %p96 = scmp.eq.s32.totalorder %s9, 0
    %p97 = por %p95, %p96
    %p98 = scmp.ne.s32.totalorder %s87, %s90
    %p99 = scmp.eq.s32.totalorder %s14, 1
    %p100 = por %p98, %p99
    %p101 = scmp.ne.s32.totalorder %s90, %s91
    %p102 = scmp.eq.s32.totalorder %s14, 0
    %p103 = por %p101, %p102
    %p104 = scmp.ne.s32.totalorder %s90, %s91
    %p105 = scmp.eq.s32.totalorder %s15, 1
    %p106 = por %p104, %p105
    %p108 = scmp.ne.s32.totalorder %s91, %s107
    %p109 = scmp.eq.s32.totalorder %s15, 0
    %p110 = por %p108, %p109
    %p111 = scmp.le.s32.totalorder 1, %s9
    %p112 = scmp.lt.s32.totalorder %s9, 3
    %p113 = pnand %p111, %p112
    %p114 = pneg %p113
    // Predicated region
    $region9: #{decoder_stage_forward.13} parent=5 // pred_check
      _
    $region10: #{decoder_stage_forward.13} parent=5 // pred_check_branch
      %116 = sbr.rel (%p113) target = $region12
    $region11: #{decoder_stage_forward.13} parent=5 // pred_region
      %s117 = ssub.s32 %s9, 1
      // Predicated region
      $region13: #{decoder_stage_forward.13} parent=11 // pred_check
        %p118 = pneg %p56
      $region14: #{decoder_stage_forward.13} parent=11 // pred_check_branch
        %120 = sbr.rel (%p118) target = $region16
      $region15: #{decoder_stage_forward.13} parent=11 // pred_region
        _
      $region16: #{decoder_stage_forward.13} parent=11 // pred_fallthru
        _
      // Predicated region
      $region17: #{decoder_stage_forward.13} parent=11 // pred_check
        %p121 = pneg %p77
      $region18: #{decoder_stage_forward.13} parent=11 // pred_check_branch
        %123 = sbr.rel (%p121) target = $region20
      $region19: #{decoder_stage_forward.13} parent=11 // pred_region
        _
      $region20: #{decoder_stage_forward.13} parent=11 // pred_fallthru
        _
    $region12: #{decoder_stage_forward.13} parent=5 // pred_fallthru
      _
    %p124 = scmp.lt.s32.totalorder %s9, 2
    // Predicated region
    $region21: #{decoder_stage_forward.13} parent=5 // pred_check
      %p125 = pneg %p124
    $region22: #{decoder_stage_forward.13} parent=5 // pred_check_branch
      %127 = sbr.rel (%p125) target = $region24
    $region23: #{decoder_stage_forward.13} parent=5 // pred_region
      // Predicated region
      $region25: #{decoder_stage_forward.13} parent=23 // pred_check
        %p128 = pneg %p29
      $region26: #{decoder_stage_forward.13} parent=23 // pred_check_branch
        %130 = sbr.rel (%p128) target = $region28
      $region27: #{decoder_stage_forward.13} parent=23 // pred_region
        %p131 = scmp.lt.s32.totalorder %s9, 1
        %s132 = scalar_select %p131, %s9, 1
        %s133 = smul.addr %s132, 2
        %s134 = smul.addr %s133, 8
        %s135 = scalar_lea.vmem %s0, %s134
      $region28: #{decoder_stage_forward.13} parent=23 // pred_fallthru
        _
    $region24: #{decoder_stage_forward.13} parent=5 // pred_fallthru
      _
    %p136 = scmp.le.s32.totalorder 1, %s9
    %p137 = scmp.lt.s32.totalorder %s9, 3
    %p138 = pnand %p136, %p137
    %p139 = pneg %p138
    // Predicated region
    $region29: #{decoder_stage_forward.13} parent=5 // pred_check
      _
    $region30: #{decoder_stage_forward.13} parent=5 // pred_check_branch
      %141 = sbr.rel (%p138) target = $region32
    $region31: #{decoder_stage_forward.13} parent=5 // pred_region
      %s142 = ssub.s32 %s9, 1
      %p143 = scmp.lt.s32.totalorder %s14, 1
      %s144 = scalar_select %p143, %s14, 1
      %s145 = smul.addr %s144, 2
      %s146 = smul.addr %s145, 8
      %s147 = scalar_lea.vmem %s0, %s146
      %p148 = pneg %p35
      %p149 = pneg %p32
      %p150 = pneg %p56
      %p151 = pneg %p53
      %p152 = pneg %p77
      %p153 = pneg %p74
      %p154 = pneg %p103
      %p155 = pneg %p100
      %p156 = scmp.lt.s32.totalorder %s14, 1
      %s157 = scalar_select %p156, %s14, 1
      %s158 = smul.addr %s157, 4
      %s159 = smul.addr %s158, 4
      %s160 = scalar_lea.vmem %s3, %s159
      %p161 = scmp.lt.s32.totalorder %s14, 1
      %s162 = scalar_select %p161, %s14, 1
      %s163 = smul.addr %s162, 2
      %s164 = smul.addr %s163, 8
      %s165 = scalar_lea.vmem %s0, %s164
      %p166 = scmp.lt.s32.totalorder %s14, 1
      %s167 = scalar_select %p166, %s14, 1
      %s168 = smul.addr %s167, 4
      %s169 = smul.addr %s168, 4
      %s170 = scalar_lea.vmem %s3, %s169
      %v171 = vld [vmem:[%s165] sm:$0xff]
      %v172 = vld [vmem:[%s165 + $0x8] sm:$0xff]
      %v173 = vld [vmem:[%s2] sm:$0xff]
      %vm174 = vcmask 64512
      %v176 = vsel %vm174, %v171, 0
      %v179 = vsel %vm174, %v172, 0
      %181 = vmatprep.subr.mxu0 0.0
      %182 = vmatpush1.msra.mxu0 0.0
      %183 = vmatprep.subr.mxu0 0.0
      %184 = vmatpush1.msra.mxu0 0.0
      %185 = vmatprep.subr.mxu0 0.0
      %186 = vmatpush1.msra.mxu0 0.0
      %187 = vmatprep.subr.mxu0 0.0
      %188 = vmatpush1.msra.mxu0 0.0
      %189 = vmatprep.subr.mxu0 0.0
      %190 = vmatpush1.msra.mxu0 0.0
      %191 = vmatprep.subr.mxu0 0.0
      %192 = vmatpush1.msra.mxu0 0.0
      %193 = vmatprep.subr.mxu0 0.0
      %194 = vmatpush1.msra.mxu0 0.0
      %195 = vmatprep.subr.mxu0 0.0
      %196 = vmatpush1.msra.mxu0 0.0
      %197 = vmatprep.subr.mxu0 0.0
      %198 = vmatpush1.msra.mxu0 0.0
      %199 = vmatprep.subr.mxu0 0.0
      %200 = vmatpush1.msra.mxu0 0.0
      %201 = vmatprep.subr.mxu0 0.0
      %202 = vmatpush1.msra.mxu0 0.0
      %203 = vmatprep.subr.mxu0 0.0
      %204 = vmatpush1.msra.mxu0 0.0
      %205 = vmatprep.subr.mxu0 0.0
      %206 = vmatpush1.msra.mxu0 0.0
      %207 = vmatprep.subr.mxu0 0.0
      %208 = vmatpush1.msra.mxu0 0.0
      %209 = vmatprep.subr.mxu0 0.0
      %210 = vmatpush1.msra.mxu0 0.0
      %211 = vmatprep.subr.mxu0 0.0
      %212 = vmatpush1.msra.mxu0 %v173
      %213 = vmatprep.subr.mxu0 0.0
      %214 = vmatpush2.msra.mxu0 0.0
      %215 = vmatprep.subr.mxu0 0.0
      %216 = vmatpush2.msra.mxu0 0.0
      %217 = vmatprep.subr.mxu0 0.0
      %218 = vmatpush2.msra.mxu0 0.0
      %219 = vmatprep.subr.mxu0 0.0
      %220 = vmatpush2.msra.mxu0 0.0
      %221 = vmatprep.subr.mxu0 0.0
      %222 = vmatpush2.msra.mxu0 0.0
      %223 = vmatprep.subr.mxu0 0.0
      %224 = vmatpush2.msra.mxu0 0.0
      %225 = vmatprep.subr.mxu0 0.0
      %226 = vmatpush2.msra.mxu0 0.0
      %227 = vmatprep.subr.mxu0 0.0
      %228 = vmatpush2.msra.mxu0 0.0
      %229 = vmatprep.subr.mxu0 0.0
      %230 = vmatpush2.msra.mxu0 0.0
      %231 = vmatprep.subr.mxu0 0.0
      %232 = vmatpush2.msra.mxu0 0.0
      %233 = vmatprep.subr.mxu0 0.0
      %234 = vmatpush2.msra.mxu0 0.0
      %235 = vmatprep.subr.mxu0 0.0
      %236 = vmatpush2.msra.mxu0 0.0
      %237 = vmatprep.subr.mxu0 0.0
      %238 = vmatpush2.msra.mxu0 0.0
      %239 = vmatprep.subr.mxu0 0.0
      %240 = vmatpush2.msra.mxu0 0.0
      %241 = vmatprep.subr.mxu0 0.0
      %242 = vmatpush2.msra.mxu0 0.0
      %243 = vmatprep.subr.mxu0 0.0
      %244 = vmatpush2.msra.mxu0 0.0
      %245 = vmatprep.mubr.f32.mxu0 0.0
      %246 = vmatmul.mubr.f32.gmra.mxu0 %v176
      %v247 = vpop.f32.mrf.mxu0
      %v248 = vadd.f32 0.0, %v247
      %v249 = vpop.f32.mrf.mxu0
      %250 = vmatprep.mubr.f32.mxu0 0.0
      %251 = vmatmul.mubr.f32.gmra.mxu0 %v179
      %v252 = vpop.f32.mrf.mxu0
      %v253 = vadd.f32 0.0, %v252
      %v254 = vpop.f32.mrf.mxu0
      %255 = vdwg.mxu0
      %v256 = vld [vmem:[%s1] sm:$0xff]
      %v257 = vld [vmem:[%s1 + $0x8] sm:$0xff]
      %v259 = vsel %vm174, %v256, 0
      %v262 = vsel %vm174, %v257, 0
      %264 = vmatprep.subr.mxu0 0.0
      %265 = vmatpush1.msra.mxu0 0.0
      %266 = vmatprep.subr.mxu0 0.0
      %267 = vmatpush1.msra.mxu0 0.0
      %268 = vmatprep.subr.mxu0 0.0
      %269 = vmatpush1.msra.mxu0 0.0
      %270 = vmatprep.subr.mxu0 0.0
      %271 = vmatpush1.msra.mxu0 0.0
      %272 = vmatprep.subr.mxu0 0.0
      %273 = vmatpush1.msra.mxu0 0.0
      %274 = vmatprep.subr.mxu0 0.0
      %275 = vmatpush1.msra.mxu0 0.0
      %276 = vmatprep.subr.mxu0 0.0
      %277 = vmatpush1.msra.mxu0 0.0
      %278 = vmatprep.subr.mxu0 0.0
      %279 = vmatpush1.msra.mxu0 0.0
      %280 = vmatprep.subr.mxu0 0.0
      %281 = vmatpush1.msra.mxu0 0.0
      %282 = vmatprep.subr.mxu0 0.0
      %283 = vmatpush1.msra.mxu0 0.0
      %284 = vmatprep.subr.mxu0 0.0
      %285 = vmatpush1.msra.mxu0 0.0
      %286 = vmatprep.subr.mxu0 0.0
      %287 = vmatpush1.msra.mxu0 0.0
      %288 = vmatprep.subr.mxu0 0.0
      %289 = vmatpush1.msra.mxu0 0.0
      %290 = vmatprep.subr.mxu0 0.0
      %291 = vmatpush1.msra.mxu0 0.0
      %292 = vmatprep.subr.mxu0 0.0
      %293 = vmatpush1.msra.mxu0 0.0
      %294 = vmatprep.subr.mxu0 0.0
      %295 = vmatpush1.msra.mxu0 %v248
      %296 = vmatprep.subr.mxu0 0.0
      %297 = vmatpush2.msra.mxu0 0.0
      %298 = vmatprep.subr.mxu0 0.0
      %299 = vmatpush2.msra.mxu0 0.0
      %300 = vmatprep.subr.mxu0 0.0
      %301 = vmatpush2.msra.mxu0 0.0
      %302 = vmatprep.subr.mxu0 0.0
      %303 = vmatpush2.msra.mxu0 0.0
      %304 = vmatprep.subr.mxu0 0.0
      %305 = vmatpush2.msra.mxu0 0.0
      %306 = vmatprep.subr.mxu0 0.0
      %307 = vmatpush2.msra.mxu0 0.0
      %308 = vmatprep.subr.mxu0 0.0
      %309 = vmatpush2.msra.mxu0 0.0
      %310 = vmatprep.subr.mxu0 0.0
      %311 = vmatpush2.msra.mxu0 0.0
      %312 = vmatprep.subr.mxu0 0.0
      %313 = vmatpush2.msra.mxu0 0.0
      %314 = vmatprep.subr.mxu0 0.0
      %315 = vmatpush2.msra.mxu0 0.0
      %316 = vmatprep.subr.mxu0 0.0
      %317 = vmatpush2.msra.mxu0 0.0
      %318 = vmatprep.subr.mxu0 0.0
      %319 = vmatpush2.msra.mxu0 0.0
      %320 = vmatprep.subr.mxu0 0.0
      %321 = vmatpush2.msra.mxu0 0.0
      %322 = vmatprep.subr.mxu0 0.0
      %323 = vmatpush2.msra.mxu0 0.0
      %324 = vmatprep.subr.mxu0 0.0
      %325 = vmatpush2.msra.mxu0 0.0
      %326 = vmatprep.subr.mxu0 0.0
      %327 = vmatpush2.msra.mxu0 0.0
      %328 = vmatprep.mubr.f32.mxu0 0.0
      %329 = vmatmul.mubr.f32.gmra.mxu0 %v259
      %v330 = vpop.f32.mrf.mxu0
      %v331 = vadd.f32 0.0, %v330
      %v332 = vpop.f32.mrf.mxu0
      %333 = vmatprep.mubr.f32.mxu0 0.0
      %334 = vmatmul.mubr.f32.gmra.mxu0 %v262
      %v335 = vpop.f32.mrf.mxu0
      %v336 = vadd.f32 0.0, %v335
      %v337 = vpop.f32.mrf.mxu0
      %338 = vdwg.mxu0
      %v339 = vpack.c.bf16 %v336, %v331
      %v341 = vunpack.c.l.b16 %v339
      %v342 = vunpack.c.h.b16 %v339
      %v343 = vpack.c.b16 %v341, %v341
      %v344 = vpack.c.b16 %v342, %v342
      %vm347 = vcmask 125952
      %348 = vst.msk [vmem:[%s170] sm:$0xf] %vm347, %v343
      %349 = vst.msk [vmem:[%s170 + $0x4] sm:$0xf] %vm347, %v344
      %v350 = vld [vmem:[%s1] sm:$0xff]
      %v351 = vld [vmem:[%s1 + $0x8] sm:$0xff]
      %v353 = vsel %vm174, %v350, 0
      %v356 = vsel %vm174, %v351, 0
      %358 = vmatprep.subr.mxu0 0.0
      %359 = vmatpush1.msra.mxu0 0.0
      %360 = vmatprep.subr.mxu0 0.0
      %361 = vmatpush1.msra.mxu0 0.0
      %362 = vmatprep.subr.mxu0 0.0
      %363 = vmatpush1.msra.mxu0 0.0
      %364 = vmatprep.subr.mxu0 0.0
      %365 = vmatpush1.msra.mxu0 0.0
      %366 = vmatprep.subr.mxu0 0.0
      %367 = vmatpush1.msra.mxu0 0.0
      %368 = vmatprep.subr.mxu0 0.0
      %369 = vmatpush1.msra.mxu0 0.0
      %370 = vmatprep.subr.mxu0 0.0
      %371 = vmatpush1.msra.mxu0 0.0
      %372 = vmatprep.subr.mxu0 0.0
      %373 = vmatpush1.msra.mxu0 0.0
      %374 = vmatprep.subr.mxu0 0.0
      %375 = vmatpush1.msra.mxu0 0.0
      %376 = vmatprep.subr.mxu0 0.0
      %377 = vmatpush1.msra.mxu0 0.0
      %378 = vmatprep.subr.mxu0 0.0
      %379 = vmatpush1.msra.mxu0 0.0
      %380 = vmatprep.subr.mxu0 0.0
      %381 = vmatpush1.msra.mxu0 0.0
      %382 = vmatprep.subr.mxu0 0.0
      %383 = vmatpush1.msra.mxu0 0.0
      %384 = vmatprep.subr.mxu0 0.0
      %385 = vmatpush1.msra.mxu0 0.0
      %386 = vmatprep.subr.mxu0 0.0
      %387 = vmatpush1.msra.mxu0 0.0
      %388 = vmatprep.subr.mxu0 0.0
      %389 = vmatpush1.msra.mxu0 %v253
      %390 = vmatprep.subr.mxu0 0.0
      %391 = vmatpush2.msra.mxu0 0.0
      %392 = vmatprep.subr.mxu0 0.0
      %393 = vmatpush2.msra.mxu0 0.0
      %394 = vmatprep.subr.mxu0 0.0
      %395 = vmatpush2.msra.mxu0 0.0
      %396 = vmatprep.subr.mxu0 0.0
      %397 = vmatpush2.msra.mxu0 0.0
      %398 = vmatprep.subr.mxu0 0.0
      %399 = vmatpush2.msra.mxu0 0.0
      %400 = vmatprep.subr.mxu0 0.0
      %401 = vmatpush2.msra.mxu0 0.0
      %402 = vmatprep.subr.mxu0 0.0
      %403 = vmatpush2.msra.mxu0 0.0
      %404 = vmatprep.subr.mxu0 0.0
      %405 = vmatpush2.msra.mxu0 0.0
      %406 = vmatprep.subr.mxu0 0.0
      %407 = vmatpush2.msra.mxu0 0.0
      %408 = vmatprep.subr.mxu0 0.0
      %409 = vmatpush2.msra.mxu0 0.0
      %410 = vmatprep.subr.mxu0 0.0
      %411 = vmatpush2.msra.mxu0 0.0
      %412 = vmatprep.subr.mxu0 0.0
      %413 = vmatpush2.msra.mxu0 0.0
      %414 = vmatprep.subr.mxu0 0.0
      %415 = vmatpush2.msra.mxu0 0.0
      %416 = vmatprep.subr.mxu0 0.0
      %417 = vmatpush2.msra.mxu0 0.0
      %418 = vmatprep.subr.mxu0 0.0
      %419 = vmatpush2.msra.mxu0 0.0
      %420 = vmatprep.subr.mxu0 0.0
      %421 = vmatpush2.msra.mxu0 0.0
      %422 = vmatprep.mubr.f32.mxu0 0.0
      %423 = vmatmul.mubr.f32.gmra.mxu0 %v353
      %v424 = vpop.f32.mrf.mxu0
      %v425 = vadd.f32 0.0, %v424
      %v426 = vpop.f32.mrf.mxu0
      %427 = vmatprep.mubr.f32.mxu0 0.0
      %428 = vmatmul.mubr.f32.gmra.mxu0 %v356
      %v429 = vpop.f32.mrf.mxu0
      %v430 = vadd.f32 0.0, %v429
      %v431 = vpop.f32.mrf.mxu0
      %432 = vdwg.mxu0
      %v433 = vpack.c.bf16 %v430, %v425
      %v435 = vunpack.c.l.b16 %v433
      %v436 = vunpack.c.h.b16 %v433
      %v437 = vpack.c.b16 %v435, %v435
      %v438 = vpack.c.b16 %v436, %v436
      %s441 = scalar_lea.vmem %s170, 8
      %442 = vst.msk [vmem:[%s441] sm:$0xf] %vm347, %v437
      %443 = vst.msk [vmem:[%s441 + $0x4] sm:$0xf] %vm347, %v438
      %p444 = scmp.lt.s32.totalorder %s14, 1
      %s445 = scalar_select %p444, %s14, 1
      %s446 = smul.addr %s445, 4
      %s447 = smul.addr %s446, 4
      %s448 = scalar_lea.vmem %s3, %s447
      // Predicated region
      $region33: #{decoder_stage_forward.13} parent=31 // pred_check
        %p449 = pneg %p100
      $region34: #{decoder_stage_forward.13} parent=31 // pred_check_branch
        %451 = sbr.rel (%p449) target = $region36
      $region35: #{decoder_stage_forward.13} parent=31 // pred_region
        _
      $region36: #{decoder_stage_forward.13} parent=31 // pred_fallthru
        _
    $region32: #{decoder_stage_forward.13} parent=5 // pred_fallthru
      _
    %p452 = scmp.le.s32.totalorder 2, %s9
    // Predicated region
    $region37: #{decoder_stage_forward.13} parent=5 // pred_check
      %p453 = pneg %p452
    $region38: #{decoder_stage_forward.13} parent=5 // pred_check_branch
      %455 = sbr.rel (%p453) target = $region40
    $region39: #{decoder_stage_forward.13} parent=5 // pred_region
      %s456 = ssub.s32 %s9, 2
      // Predicated region
      $region41: #{decoder_stage_forward.13} parent=39 // pred_check
        %p457 = pneg %p106
      $region42: #{decoder_stage_forward.13} parent=39 // pred_check_branch
        %459 = sbr.rel (%p457) target = $region44
      $region43: #{decoder_stage_forward.13} parent=39 // pred_region
        %p460 = scmp.lt.s32.totalorder %s15, 1
        %s461 = scalar_select %p460, %s15, 1
        %s462 = smul.addr %s461, 4
        %s463 = smul.addr %s462, 4
        %s464 = scalar_lea.vmem %s3, %s463
      $region44: #{decoder_stage_forward.13} parent=39 // pred_fallthru
        _
    $region40: #{decoder_stage_forward.13} parent=5 // pred_fallthru
      _
  $region6: #{decoder_stage_forward.13} parent=0 // loop_footer
    %s13 = sadd.s32 1, %s9
  $region7: #{decoder_stage_forward.13} parent=0 // loop_footer_branch
    %8 = sbr.rel target = $region3
  $region8: #{decoder_stage_forward.13} parent=0 // loop_exit
    _

// kernel: decoder_stage_forward.14
$region0: #{decoder_stage_forward.14}
  #allocation0 [shape = 'u32[]', space=smem, size = 0x4, offset = 0x4, fixed_abs, tag = 'smem constant byte address 0x4 - core index']
  #allocation1 [shape = 'u32[144,128]{1,0:T(1,128)}', space=vmem, size = 0x12000, scoped, tag = 'internal scratch']
  #allocation2 [shape = 'bf16[378,288]{1,0:T(8,128)(2,1)}', space=vmem, size = 0x48000, scoped, tag = 'scratch operand']
  %s0 = inlined_call_operand.vmem [shape: bf16[2,1,8,326], index: 0, kind: input, shape index: {}]
  %s1 = inlined_call_operand.vmem [shape: bf16[2,1,32,326], index: 1, kind: input, shape index: {}]
  %s2 = inlined_call_operand.vmem [shape: bf16[2,1,2,326], index: 2, kind: input, shape index: {}]
  %s3 = inlined_call_operand.vmem [shape: bf16[16,378], index: 3, kind: input, shape index: {}]
  %s4 = inlined_call_operand.vmem [shape: f32[16,1], index: 4, kind: input, shape index: {}]
  %s5 = inlined_call_operand.vmem [shape: f32[2,1,16,288], index: 5, kind: output, shape index: {}]
  %s6 = sld [smem:[#allocation0]]
  $region53: #{decoder_stage_forward.14} parent=0
    _
  %s8 = ssub.s32 1, %s6
  %s9 = scalar_select 0, %s8, %s6
  loop: start=0, step=1, limit=4
  $region2: #{decoder_stage_forward.14} parent=0 // loop_pre_header
    _
  $region3: #{decoder_stage_forward.14} parent=0 // loop_header
    %s11 = sphi 0, %s15
    %p12 = scmp.ge.s32.totalorder %s11, 4
    %s18 = sphi 0, %s30
    %s19 = sphi 0, %s26
    %s20 = sphi 0, %s18
    %s21 = sphi 0, %s19
    %s22 = sphi 0, %s20
    %s23 = sphi 0, %s21
    %s35 = sphi 0, %s37
    %s38 = sphi 0, %s35
    %s39 = sphi 0, %s38
    %s55 = sphi 0, %s39
    %s63 = sphi 0, %s65
    %s66 = sphi 0, %s63
    %s67 = sphi 0, %s66
    %s83 = sphi 0, %s67
    %s91 = sphi 0, %s93
    %s94 = sphi 0, %s91
    %s95 = sphi 0, %s94
    %s111 = sphi 0, %s95
    %s115 = sphi 0, %s115
    %s117 = sphi 0, %s115
    %s118 = sphi 0, %s117
    %s132 = sphi 0, %s118
    %s136 = sphi 0, %s136
    %s138 = sphi 0, %s136
    %s139 = sphi 0, %s138
    %s153 = sphi 0, %s139
    %s161 = sphi 0, %s163
    %s164 = sphi 0, %s161
    %s165 = sphi 0, %s164
    %s181 = sphi 0, %s165
  $region4: #{decoder_stage_forward.14} parent=0 // loop_header_branch
    %14 = sbr.rel (%p12) target = $region8
  $region5: #{decoder_stage_forward.14} parent=0 // loop_body
    %s16 = ssub.s32 %s11, 1
    %s17 = ssub.s32 %s11, 2
    %s24 = sadd.s32 1, %s19
    %p25 = scmp.ge.s32.totalorder %s24, 1
    %s26 = scalar_select %p25, 0, %s24
    %s27 = sadd.s32 1, %s18
    %s28 = scalar_select %p25, %s27, %s18
    %p29 = scmp.ge.s32.totalorder %s28, 2
    %s30 = scalar_select %p29, 0, %s28
    %s31 = ssub.s32 %s18, %s30
    %s32 = ssub.s32 %s19, %s26
    %s33 = sor.u32 %s31, %s32
    %p34 = scmp.eq.s32.totalorder %s33, 0
    %s36 = sadd.s32 %s35, 1
    %s37 = scalar_select %p34, %s35, %s36
    %p40 = pneg %p34
    %p41 = scmp.eq.s32.totalorder %s11, 1
    %p42 = por %p40, %p41
    %p43 = scmp.ne.s32.totalorder %s35, %s38
    %p44 = scmp.eq.s32.totalorder %s11, 0
    %p45 = por %p43, %p44
    %p46 = scmp.ne.s32.totalorder %s35, %s38
    %p47 = scmp.eq.s32.totalorder %s16, 1
    %p48 = por %p46, %p47
    %p49 = scmp.ne.s32.totalorder %s38, %s39
    %p50 = scmp.eq.s32.totalorder %s16, 0
    %p51 = por %p49, %p50
    %p52 = scmp.ne.s32.totalorder %s38, %s39
    %p53 = scmp.eq.s32.totalorder %s17, 1
    %p54 = por %p52, %p53
    %p56 = scmp.ne.s32.totalorder %s39, %s55
    %p57 = scmp.eq.s32.totalorder %s17, 0
    %p58 = por %p56, %p57
    %s59 = ssub.s32 %s18, %s30
    %s60 = ssub.s32 %s19, %s26
    %s61 = sor.u32 %s59, %s60
    %p62 = scmp.eq.s32.totalorder %s61, 0
    %s64 = sadd.s32 %s63, 1
    %s65 = scalar_select %p62, %s63, %s64
    %p68 = pneg %p62
    %p69 = scmp.eq.s32.totalorder %s11, 1
    %p70 = por %p68, %p69
    %p71 = scmp.ne.s32.totalorder %s63, %s66
    %p72 = scmp.eq.s32.totalorder %s11, 0
    %p73 = por %p71, %p72
    %p74 = scmp.ne.s32.totalorder %s63, %s66
    %p75 = scmp.eq.s32.totalorder %s16, 1
    %p76 = por %p74, %p75
    %p77 = scmp.ne.s32.totalorder %s66, %s67
    %p78 = scmp.eq.s32.totalorder %s16, 0
    %p79 = por %p77, %p78
    %p80 = scmp.ne.s32.totalorder %s66, %s67
    %p81 = scmp.eq.s32.totalorder %s17, 1
    %p82 = por %p80, %p81
    %p84 = scmp.ne.s32.totalorder %s67, %s83
    %p85 = scmp.eq.s32.totalorder %s17, 0
    %p86 = por %p84, %p85
    %s87 = ssub.s32 %s18, %s30
    %s88 = ssub.s32 %s19, %s26
    %s89 = sor.u32 %s87, %s88
    %p90 = scmp.eq.s32.totalorder %s89, 0
    %s92 = sadd.s32 %s91, 1
    %s93 = scalar_select %p90, %s91, %s92
    %p96 = pneg %p90
    %p97 = scmp.eq.s32.totalorder %s11, 1
    %p98 = por %p96, %p97
    %p99 = scmp.ne.s32.totalorder %s91, %s94
    %p100 = scmp.eq.s32.totalorder %s11, 0
    %p101 = por %p99, %p100
    %p102 = scmp.ne.s32.totalorder %s91, %s94
    %p103 = scmp.eq.s32.totalorder %s16, 1
    %p104 = por %p102, %p103
    %p105 = scmp.ne.s32.totalorder %s94, %s95
    %p106 = scmp.eq.s32.totalorder %s16, 0
    %p107 = por %p105, %p106
    %p108 = scmp.ne.s32.totalorder %s94, %s95
    %p109 = scmp.eq.s32.totalorder %s17, 1
    %p110 = por %p108, %p109
    %p112 = scmp.ne.s32.totalorder %s95, %s111
    %p113 = scmp.eq.s32.totalorder %s17, 0
    %p114 = por %p112, %p113
    %s116 = sadd.s32 %s115, 1
    %p119 = scmp.eq.s32.totalorder %s11, 1
    %p120 = scmp.ne.s32.totalorder %s115, %s117
    %p121 = scmp.eq.s32.totalorder %s11, 0
    %p122 = por %p120, %p121
    %p123 = scmp.ne.s32.totalorder %s115, %s117
    %p124 = scmp.eq.s32.totalorder %s16, 1
    %p125 = por %p123, %p124
    %p126 = scmp.ne.s32.totalorder %s117, %s118
    %p127 = scmp.eq.s32.totalorder %s16, 0
    %p128 = por %p126, %p127
    %p129 = scmp.ne.s32.totalorder %s117, %s118
    %p130 = scmp.eq.s32.totalorder %s17, 1
    %p131 = por %p129, %p130
    %p133 = scmp.ne.s32.totalorder %s118, %s132
    %p134 = scmp.eq.s32.totalorder %s17, 0
    %p135 = por %p133, %p134
    %s137 = sadd.s32 %s136, 1
    %p140 = scmp.eq.s32.totalorder %s11, 1
    %p141 = scmp.ne.s32.totalorder %s136, %s138
    %p142 = scmp.eq.s32.totalorder %s11, 0
    %p143 = por %p141, %p142
    %p144 = scmp.ne.s32.totalorder %s136, %s138
    %p145 = scmp.eq.s32.totalorder %s16, 1
    %p146 = por %p144, %p145
    %p147 = scmp.ne.s32.totalorder %s138, %s139
    %p148 = scmp.eq.s32.totalorder %s16, 0
    %p149 = por %p147, %p148
    %p150 = scmp.ne.s32.totalorder %s138, %s139
    %p151 = scmp.eq.s32.totalorder %s17, 1
    %p152 = por %p150, %p151
    %p154 = scmp.ne.s32.totalorder %s139, %s153
    %p155 = scmp.eq.s32.totalorder %s17, 0
    %p156 = por %p154, %p155
    %s157 = ssub.s32 %s18, %s30
    %s158 = ssub.s32 %s19, %s26
    %s159 = sor.u32 %s157, %s158
    %p160 = scmp.eq.s32.totalorder %s159, 0
    %s162 = sadd.s32 %s161, 1
    %s163 = scalar_select %p160, %s161, %s162
    %p166 = pneg %p160
    %p167 = scmp.eq.s32.totalorder %s11, 1
    %p168 = por %p166, %p167
    %p169 = scmp.ne.s32.totalorder %s161, %s164
    %p170 = scmp.eq.s32.totalorder %s11, 0
    %p171 = por %p169, %p170
    %p172 = scmp.ne.s32.totalorder %s161, %s164
    %p173 = scmp.eq.s32.totalorder %s16, 1
    %p174 = por %p172, %p173
    %p175 = scmp.ne.s32.totalorder %s164, %s165
    %p176 = scmp.eq.s32.totalorder %s16, 0
    %p177 = por %p175, %p176
    %p178 = scmp.ne.s32.totalorder %s164, %s165
    %p179 = scmp.eq.s32.totalorder %s17, 1
    %p180 = por %p178, %p179
    %p182 = scmp.ne.s32.totalorder %s165, %s181
    %p183 = scmp.eq.s32.totalorder %s17, 0
    %p184 = por %p182, %p183
    %p185 = scmp.le.s32.totalorder 1, %s11
    %p186 = scmp.lt.s32.totalorder %s11, 3
    %p187 = pnand %p185, %p186
    %p188 = pneg %p187
    // Predicated region
    $region9: #{decoder_stage_forward.14} parent=5 // pred_check
      _
    $region10: #{decoder_stage_forward.14} parent=5 // pred_check_branch
      %190 = sbr.rel (%p187) target = $region12
    $region11: #{decoder_stage_forward.14} parent=5 // pred_region
      %s191 = ssub.s32 %s11, 1
      // Predicated region
      $region13: #{decoder_stage_forward.14} parent=11 // pred_check
        %p192 = pneg %p128
      $region14: #{decoder_stage_forward.14} parent=11 // pred_check_branch
        %194 = sbr.rel (%p192) target = $region16
      $region15: #{decoder_stage_forward.14} parent=11 // pred_region
        _
      $region16: #{decoder_stage_forward.14} parent=11 // pred_fallthru
        _
      // Predicated region
      $region17: #{decoder_stage_forward.14} parent=11 // pred_check
        %p195 = pneg %p149
      $region18: #{decoder_stage_forward.14} parent=11 // pred_check_branch
        %197 = sbr.rel (%p195) target = $region20
      $region19: #{decoder_stage_forward.14} parent=11 // pred_region
        _
      $region20: #{decoder_stage_forward.14} parent=11 // pred_fallthru
        _
    $region12: #{decoder_stage_forward.14} parent=5 // pred_fallthru
      _
    %p198 = scmp.lt.s32.totalorder %s11, 2
    // Predicated region
    $region21: #{decoder_stage_forward.14} parent=5 // pred_check
      %p199 = pneg %p198
    $region22: #{decoder_stage_forward.14} parent=5 // pred_check_branch
      %201 = sbr.rel (%p199) target = $region24
    $region23: #{decoder_stage_forward.14} parent=5 // pred_region
      // Predicated region
      $region25: #{decoder_stage_forward.14} parent=23 // pred_check
        %p202 = pneg %p45
      $region26: #{decoder_stage_forward.14} parent=23 // pred_check_branch
        %204 = sbr.rel (%p202) target = $region28
      $region27: #{decoder_stage_forward.14} parent=23 // pred_region
        %p205 = scmp.lt.s32.totalorder %s18, 1
        %s206 = scalar_select %p205, %s18, 1
        %p207 = scmp.lt.s32.totalorder %s19, 0
        %s208 = scalar_select %p207, %s19, 0
        %s209 = smul.addr %s208, 3
        %s210 = smul.addr %s206, 3
        %s211 = sadd.s32 %s209, %s210
        %s212 = smul.addr %s211, 4
        %s213 = scalar_lea.vmem %s0, %s212
      $region28: #{decoder_stage_forward.14} parent=23 // pred_fallthru
        _
      // Predicated region
      $region29: #{decoder_stage_forward.14} parent=23 // pred_check
        %p214 = pneg %p73
      $region30: #{decoder_stage_forward.14} parent=23 // pred_check_branch
        %216 = sbr.rel (%p214) target = $region32
      $region31: #{decoder_stage_forward.14} parent=23 // pred_region
        %p217 = scmp.lt.s32.totalorder %s18, 1
        %s218 = scalar_select %p217, %s18, 1
        %p219 = scmp.lt.s32.totalorder %s19, 0
        %s220 = scalar_select %p219, %s19, 0
        %s221 = smul.addr %s220, 12
        %s222 = smul.addr %s218, 12
        %s223 = sadd.s32 %s221, %s222
        %s224 = smul.addr %s223, 4
        %s225 = scalar_lea.vmem %s1, %s224
      $region32: #{decoder_stage_forward.14} parent=23 // pred_fallthru
        _
      // Predicated region
      $region33: #{decoder_stage_forward.14} parent=23 // pred_check
        %p226 = pneg %p101
      $region34: #{decoder_stage_forward.14} parent=23 // pred_check_branch
        %228 = sbr.rel (%p226) target = $region36
      $region35: #{decoder_stage_forward.14} parent=23 // pred_region
        %p229 = scmp.lt.s32.totalorder %s18, 1
        %s230 = scalar_select %p229, %s18, 1
        %p231 = scmp.lt.s32.totalorder %s19, 0
        %s232 = scalar_select %p231, %s19, 0
        %s233 = smul.addr %s232, 3
        %s234 = smul.addr %s230, 3
        %s235 = sadd.s32 %s233, %s234
        %s236 = scalar_lea.vmem %s2, %s235
      $region36: #{decoder_stage_forward.14} parent=23 // pred_fallthru
        _
    $region24: #{decoder_stage_forward.14} parent=5 // pred_fallthru
      _
    %p237 = scmp.le.s32.totalorder 1, %s11
    %p238 = scmp.lt.s32.totalorder %s11, 3
    %p239 = pnand %p237, %p238
    %p240 = pneg %p239
    // Predicated region
    $region37: #{decoder_stage_forward.14} parent=5 // pred_check
      _
    $region38: #{decoder_stage_forward.14} parent=5 // pred_check_branch
      %242 = sbr.rel (%p239) target = $region40
    $region39: #{decoder_stage_forward.14} parent=5 // pred_region
      %s243 = ssub.s32 %s11, 1
      %p244 = scmp.lt.s32.totalorder %s20, 1
      %s245 = scalar_select %p244, %s20, 1
      %p246 = scmp.lt.s32.totalorder %s21, 0
      %s247 = scalar_select %p246, %s21, 0
      %s248 = smul.addr %s247, 3
      %s249 = smul.addr %s245, 3
      %s250 = sadd.s32 %s248, %s249
      %s251 = smul.addr %s250, 4
      %s252 = scalar_lea.vmem %s0, %s251
      %p253 = pneg %p51
      %p254 = pneg %p48
      %p255 = scmp.lt.s32.totalorder %s20, 1
      %s256 = scalar_select %p255, %s20, 1
      %p257 = scmp.lt.s32.totalorder %s21, 0
      %s258 = scalar_select %p257, %s21, 0
      %s259 = smul.addr %s258, 12
      %s260 = smul.addr %s256, 12
      %s261 = sadd.s32 %s259, %s260
      %s262 = smul.addr %s261, 4
      %s263 = scalar_lea.vmem %s1, %s262
      %p264 = pneg %p79
      %p265 = pneg %p76
      %p266 = scmp.lt.s32.totalorder %s20, 1
      %s267 = scalar_select %p266, %s20, 1
      %p268 = scmp.lt.s32.totalorder %s21, 0
      %s269 = scalar_select %p268, %s21, 0
      %s270 = smul.addr %s269, 3
      %s271 = smul.addr %s267, 3
      %s272 = sadd.s32 %s270, %s271
      %s273 = scalar_lea.vmem %s2, %s272
      %p274 = pneg %p107
      %p275 = pneg %p104
      %p276 = pneg %p128
      %p277 = pneg %p125
      %p278 = pneg %p149
      %p279 = pneg %p146
      %p280 = pneg %p177
      %p281 = pneg %p174
      %p282 = scmp.lt.s32.totalorder %s20, 1
      %s283 = scalar_select %p282, %s20, 1
      %p284 = scmp.lt.s32.totalorder %s21, 0
      %s285 = scalar_select %p284, %s21, 0
      %s286 = smul.addr %s285, 6
      %s287 = smul.addr %s283, 6
      %s288 = sadd.s32 %s286, %s287
      %s289 = smul.addr %s288, 8
      %s290 = scalar_lea.vmem %s5, %s289
      %p291 = scmp.lt.s32.totalorder %s20, 1
      %s292 = scalar_select %p291, %s20, 1
      %p293 = scmp.lt.s32.totalorder %s21, 0
      %s294 = scalar_select %p293, %s21, 0
      %s295 = smul.addr %s294, 3
      %s296 = smul.addr %s292, 3
      %s297 = sadd.s32 %s295, %s296
      %s298 = smul.addr %s297, 4
      %s299 = scalar_lea.vmem %s0, %s298
      %p300 = scmp.lt.s32.totalorder %s20, 1
      %s301 = scalar_select %p300, %s20, 1
      %p302 = scmp.lt.s32.totalorder %s21, 0
      %s303 = scalar_select %p302, %s21, 0
      %s304 = smul.addr %s303, 12
      %s305 = smul.addr %s301, 12
      %s306 = sadd.s32 %s304, %s305
      %s307 = smul.addr %s306, 4
      %s308 = scalar_lea.vmem %s1, %s307
      %p309 = scmp.lt.s32.totalorder %s20, 1
      %s310 = scalar_select %p309, %s20, 1
      %p311 = scmp.lt.s32.totalorder %s21, 0
      %s312 = scalar_select %p311, %s21, 0
      %s313 = smul.addr %s312, 3
      %s314 = smul.addr %s310, 3
      %s315 = sadd.s32 %s313, %s314
      %s316 = scalar_lea.vmem %s2, %s315
      %p317 = scmp.lt.s32.totalorder %s20, 1
      %s318 = scalar_select %p317, %s20, 1
      %p319 = scmp.lt.s32.totalorder %s21, 0
      %s320 = scalar_select %p319, %s21, 0
      %s321 = smul.addr %s320, 6
      %s322 = smul.addr %s318, 6
      %s323 = sadd.s32 %s321, %s322
      %s324 = smul.addr %s323, 8
      %s325 = scalar_lea.vmem %s5, %s324
      %v327 = vld [vmem:[%s299] sm:$0xff]
      %v328 = vld [vmem:[%s299 + $0x8] sm:$0xf]
      %329 = vst [vmem:[#allocation2] sm:$0xff] %v327
      %vm330 = vcmask 257024
      %331 = vst.msk [vmem:[#allocation2 + $0x8] sm:$0xf] %vm330, %v328
      %v332 = vld [vmem:[%s299] sm:$0xff]
      %v333 = vld [vmem:[%s299 + $0x8] sm:$0xf]
      %336 = vrot.lane.b32.xlu0 %v332, 127
      %v337 = vpop.permute.xlu0 %336
      %338 = vrot.lane.b32.xlu0 %v333, 127
      %v339 = vpop.permute.xlu0 %338
      %v340 = vrot.slane %v337, 4
      %v341 = vrot.slane %v339, 4
      %vm342 = vcmask 1043456
      %v343 = vsel %vm342, %v340, %v341
      %vm344 = vcmask 1039360
      %v345 = vsel %vm344, %v337, %v343
      %348 = vst [vmem:[#allocation2 + $0xc] sm:$0xff] %v345
      %349 = vst.msk [vmem:[#allocation2 + $0x14] sm:$0xf] %vm330, %v339
      %v350 = vld [vmem:[%s299] sm:$0xff]
      %v351 = vld [vmem:[%s299 + $0x8] sm:$0xf]
      %354 = vrot.lane.b32.xlu0 %v350, 126
      %v355 = vpop.permute.xlu0 %354
      %356 = vrot.lane.b32.xlu0 %v351, 126
      %v357 = vpop.permute.xlu0 %356
      %v358 = vrot.slane %v355, 4
      %v359 = vrot.slane %v357, 4
      %v360 = vsel %vm342, %v358, %v359
      %vm361 = vcmask 1031168
      %v362 = vsel %vm361, %v355, %v360
      %365 = vst [vmem:[#allocation2 + $0x18] sm:$0xff] %v362
      %366 = vst.msk [vmem:[#allocation2 + $0x20] sm:$0xf] %vm330, %v357
      %v367 = vld [vmem:[%s299] sm:$0xff]
      %v368 = vld [vmem:[%s299 + $0x8] sm:$0xf]
      %371 = vrot.lane.b32.xlu0 %v367, 110
      %v372 = vpop.permute.xlu0 %371
      %373 = vrot.lane.b32.xlu0 %v368, 110
      %v374 = vpop.permute.xlu0 %373
      %v375 = vrot.slane %v372, 4
      %v376 = vrot.slane %v374, 4
      %v377 = vsel %vm342, %v375, %v376
      %vm378 = vcmask 900096
      %v379 = vsel %vm378, %v372, %v377
      %382 = vst [vmem:[#allocation2 + $0x24] sm:$0xff] %v379
      %383 = vst.msk [vmem:[#allocation2 + $0x2c] sm:$0xf] %vm330, %v374
      %v384 = vld [vmem:[%s299] sm:$0xff]
      %v385 = vld [vmem:[%s299 + $0x8] sm:$0xf]
      %388 = vrot.lane.b32.xlu0 %v384, 109
      %v389 = vpop.permute.xlu0 %388
      %390 = vrot.lane.b32.xlu0 %v385, 109
      %v391 = vpop.permute.xlu0 %390
      %v392 = vrot.slane %v389, 4
      %v393 = vrot.slane %v391, 4
      %v394 = vsel %vm342, %v392, %v393
      %vm395 = vcmask 891904
      %v396 = vsel %vm395, %v389, %v394
      %399 = vst [vmem:[#allocation2 + $0x30] sm:$0xff] %v396
      %400 = vst.msk [vmem:[#allocation2 + $0x38] sm:$0xf] %vm330, %v391
      %v401 = vld [vmem:[%s299] sm:$0xff]
      %v402 = vld [vmem:[%s299 + $0x8] sm:$0xf]
      %405 = vrot.lane.b32.xlu0 %v401, 108
      %v406 = vpop.permute.xlu0 %405
      %407 = vrot.lane.b32.xlu0 %v402, 108
      %v408 = vpop.permute.xlu0 %407
      %v409 = vrot.slane %v406, 4
      %v410 = vrot.slane %v408, 4
      %v411 = vsel %vm342, %v409, %v410
      %vm412 = vcmask 883712
      %v413 = vsel %vm412, %v406, %v411
      %416 = vst [vmem:[#allocation2 + $0x3c] sm:$0xff] %v413
      %417 = vst.msk [vmem:[#allocation2 + $0x44] sm:$0xf] %vm330, %v408
      %v418 = vld [vmem:[%s299] sm:$0xff]
      %v419 = vld [vmem:[%s299 + $0x8] sm:$0xf]
      %422 = vrot.lane.b32.xlu0 %v418, 92
      %v423 = vpop.permute.xlu0 %422
      %424 = vrot.lane.b32.xlu0 %v419, 92
      %v425 = vpop.permute.xlu0 %424
      %v426 = vrot.slane %v423, 4
      %v427 = vrot.slane %v425, 4
      %v428 = vsel %vm342, %v426, %v427
      %vm429 = vcmask 752640
      %v430 = vsel %vm429, %v423, %v428
      %433 = vst [vmem:[#allocation2 + $0x48] sm:$0xff] %v430
      %434 = vst.msk [vmem:[#allocation2 + $0x50] sm:$0xf] %vm330, %v425
      %v435 = vld [vmem:[%s299] sm:$0xff]
      %v436 = vld [vmem:[%s299 + $0x8] sm:$0xf]
      %439 = vrot.lane.b32.xlu0 %v435, 91
      %v440 = vpop.permute.xlu0 %439
      %441 = vrot.lane.b32.xlu0 %v436, 91
      %v442 = vpop.permute.xlu0 %441
      %v443 = vrot.slane %v440, 4
      %v444 = vrot.slane %v442, 4
      %v445 = vsel %vm342, %v443, %v444
      %vm446 = vcmask 744448
      %v447 = vsel %vm446, %v440, %v445
      %450 = vst [vmem:[#allocation2 + $0x54] sm:$0xff] %v447
      %451 = vst.msk [vmem:[#allocation2 + $0x5c] sm:$0xf] %vm330, %v442
      %v452 = vld [vmem:[%s299] sm:$0xff]
      %v453 = vld [vmem:[%s299 + $0x8] sm:$0xf]
      %456 = vrot.lane.b32.xlu0 %v452, 90
      %v457 = vpop.permute.xlu0 %456
      %458 = vrot.lane.b32.xlu0 %v453, 90
      %v459 = vpop.permute.xlu0 %458
      %v460 = vrot.slane %v457, 4
      %v461 = vrot.slane %v459, 4
      %v462 = vsel %vm342, %v460, %v461
      %vm463 = vcmask 736256
      %v464 = vsel %vm463, %v457, %v462
      %467 = vst [vmem:[#allocation2 + $0x60] sm:$0xff] %v464
      %468 = vst.msk [vmem:[#allocation2 + $0x68] sm:$0xf] %vm330, %v459
      %v469 = vld [vmem:[%s308] sm:$0xff]
      %v470 = vld [vmem:[%s308 + $0x8] sm:$0xf]
      %v471 = vld [vmem:[%s308 + $0xc] sm:$0xff]
      %v472 = vld [vmem:[%s308 + $0x14] sm:$0xf]
      %v473 = vld [vmem:[%s308 + $0x18] sm:$0xff]
      %v474 = vld [vmem:[%s308 + $0x20] sm:$0xf]
      %v475 = vld [vmem:[%s308 + $0x24] sm:$0xff]
      %v476 = vld [vmem:[%s308 + $0x2c] sm:$0xf]
      %477 = vst [vmem:[#allocation2 + $0x6c] sm:$0xff] %v469
      %478 = vst.msk [vmem:[#allocation2 + $0x74] sm:$0xf] %vm330, %v470
      %479 = vst [vmem:[#allocation2 + $0x78] sm:$0xff] %v471
      %480 = vst.msk [vmem:[#allocation2 + $0x80] sm:$0xf] %vm330, %v472
      %481 = vst [vmem:[#allocation2 + $0x84] sm:$0xff] %v473
      %482 = vst.msk [vmem:[#allocation2 + $0x8c] sm:$0xf] %vm330, %v474
      %483 = vst [vmem:[#allocation2 + $0x90] sm:$0xff] %v475
      %484 = vst.msk [vmem:[#allocation2 + $0x98] sm:$0xf] %vm330, %v476
      %v485 = vld [vmem:[%s308] sm:$0xff]
      %v486 = vld [vmem:[%s308 + $0x8] sm:$0xf]
      %v487 = vld [vmem:[%s308 + $0xc] sm:$0xff]
      %v488 = vld [vmem:[%s308 + $0x14] sm:$0xf]
      %v489 = vld [vmem:[%s308 + $0x18] sm:$0xff]
      %v490 = vld [vmem:[%s308 + $0x20] sm:$0xf]
      %v491 = vld [vmem:[%s308 + $0x24] sm:$0xff]
      %v492 = vld [vmem:[%s308 + $0x2c] sm:$0xf]
      %501 = vrot.lane.b32.xlu0 %v485, 127
      %v502 = vpop.permute.xlu0 %501
      %503 = vrot.lane.b32.xlu0 %v486, 127
      %v504 = vpop.permute.xlu0 %503
      %505 = vrot.lane.b32.xlu0 %v487, 127
      %v506 = vpop.permute.xlu0 %505
      %507 = vrot.lane.b32.xlu0 %v488, 127
      %v508 = vpop.permute.xlu0 %507
      %509 = vrot.lane.b32.xlu0 %v489, 127
      %v510 = vpop.permute.xlu0 %509
      %511 = vrot.lane.b32.xlu0 %v490, 127
      %v512 = vpop.permute.xlu0 %511
      %513 = vrot.lane.b32.xlu0 %v491, 127
      %v514 = vpop.permute.xlu0 %513
      %515 = vrot.lane.b32.xlu0 %v492, 127
      %v516 = vpop.permute.xlu0 %515
      %v517 = vrot.slane %v502, 4
      %v518 = vrot.slane %v504, 4
      %v519 = vrot.slane %v506, 4
      %v520 = vrot.slane %v508, 4
      %v521 = vrot.slane %v510, 4
      %v522 = vrot.slane %v512, 4
      %v523 = vrot.slane %v514, 4
      %v524 = vrot.slane %v516, 4
      %v525 = vsel %vm342, %v517, %v518
      %v526 = vsel %vm344, %v502, %v525
      %v527 = vsel %vm342, %v519, %v520
      %v528 = vsel %vm344, %v506, %v527
      %v529 = vsel %vm342, %v521, %v522
      %v530 = vsel %vm344, %v510, %v529
      %v531 = vsel %vm342, %v523, %v524
      %v532 = vsel %vm344, %v514, %v531
      %541 = vst [vmem:[#allocation2 + $0x9c] sm:$0xff] %v526
      %542 = vst.msk [vmem:[#allocation2 + $0xa4] sm:$0xf] %vm330, %v504
      %543 = vst [vmem:[#allocation2 + $0xa8] sm:$0xff] %v528
      %544 = vst.msk [vmem:[#allocation2 + $0xb0] sm:$0xf] %vm330, %v508
      %545 = vst [vmem:[#allocation2 + $0xb4] sm:$0xff] %v530
      %546 = vst.msk [vmem:[#allocation2 + $0xbc] sm:$0xf] %vm330, %v512
      %547 = vst [vmem:[#allocation2 + $0xc0] sm:$0xff] %v532
      %548 = vst.msk [vmem:[#allocation2 + $0xc8] sm:$0xf] %vm330, %v516
      %v549 = vld [vmem:[%s308] sm:$0xff]
      %v550 = vld [vmem:[%s308 + $0x8] sm:$0xf]
      %v551 = vld [vmem:[%s308 + $0xc] sm:$0xff]
      %v552 = vld [vmem:[%s308 + $0x14] sm:$0xf]
      %v553 = vld [vmem:[%s308 + $0x18] sm:$0xff]
      %v554 = vld [vmem:[%s308 + $0x20] sm:$0xf]
      %v555 = vld [vmem:[%s308 + $0x24] sm:$0xff]
      %v556 = vld [vmem:[%s308 + $0x2c] sm:$0xf]
      %565 = vrot.lane.b32.xlu0 %v549, 126
      %v566 = vpop.permute.xlu0 %565
      %567 = vrot.lane.b32.xlu0 %v550, 126
      %v568 = vpop.permute.xlu0 %567
      %569 = vrot.lane.b32.xlu0 %v551, 126
      %v570 = vpop.permute.xlu0 %569
      %571 = vrot.lane.b32.xlu0 %v552, 126
      %v572 = vpop.permute.xlu0 %571
      %573 = vrot.lane.b32.xlu0 %v553, 126
      %v574 = vpop.permute.xlu0 %573
      %575 = vrot.lane.b32.xlu0 %v554, 126
      %v576 = vpop.permute.xlu0 %575
      %577 = vrot.lane.b32.xlu0 %v555, 126
      %v578 = vpop.permute.xlu0 %577
      %579 = vrot.lane.b32.xlu0 %v556, 126
      %v580 = vpop.permute.xlu0 %579
      %v581 = vrot.slane %v566, 4
      %v582 = vrot.slane %v568, 4
      %v583 = vrot.slane %v570, 4
      %v584 = vrot.slane %v572, 4
      %v585 = vrot.slane %v574, 4
      %v586 = vrot.slane %v576, 4
      %v587 = vrot.slane %v578, 4
      %v588 = vrot.slane %v580, 4
      %v589 = vsel %vm342, %v581, %v582
      %v590 = vsel %vm361, %v566, %v589
      %v591 = vsel %vm342, %v583, %v584
      %v592 = vsel %vm361, %v570, %v591
      %v593 = vsel %vm342, %v585, %v586
      %v594 = vsel %vm361, %v574, %v593
      %v595 = vsel %vm342, %v587, %v588
      %v596 = vsel %vm361, %v578, %v595
      %605 = vst [vmem:[#allocation2 + $0xcc] sm:$0xff] %v590
      %606 = vst.msk [vmem:[#allocation2 + $0xd4] sm:$0xf] %vm330, %v568
      %607 = vst [vmem:[#allocation2 + $0xd8] sm:$0xff] %v592
      %608 = vst.msk [vmem:[#allocation2 + $0xe0] sm:$0xf] %vm330, %v572
      %609 = vst [vmem:[#allocation2 + $0xe4] sm:$0xff] %v594
      %610 = vst.msk [vmem:[#allocation2 + $0xec] sm:$0xf] %vm330, %v576
      %611 = vst [vmem:[#allocation2 + $0xf0] sm:$0xff] %v596
      %612 = vst.msk [vmem:[#allocation2 + $0xf8] sm:$0xf] %vm330, %v580
      %v613 = vld [vmem:[%s308] sm:$0xff]
      %v614 = vld [vmem:[%s308 + $0x8] sm:$0xf]
      %v615 = vld [vmem:[%s308 + $0xc] sm:$0xff]
      %v616 = vld [vmem:[%s308 + $0x14] sm:$0xf]
      %v617 = vld [vmem:[%s308 + $0x18] sm:$0xff]
      %v618 = vld [vmem:[%s308 + $0x20] sm:$0xf]
      %v619 = vld [vmem:[%s308 + $0x24] sm:$0xff]
      %v620 = vld [vmem:[%s308 + $0x2c] sm:$0xf]
      %629 = vrot.lane.b32.xlu0 %v613, 110
      %v630 = vpop.permute.xlu0 %629
      %631 = vrot.lane.b32.xlu0 %v614, 110
      %v632 = vpop.permute.xlu0 %631
      %633 = vrot.lane.b32.xlu0 %v615, 110
      %v634 = vpop.permute.xlu0 %633
      %635 = vrot.lane.b32.xlu0 %v616, 110
      %v636 = vpop.permute.xlu0 %635
      %637 = vrot.lane.b32.xlu0 %v617, 110
      %v638 = vpop.permute.xlu0 %637
      %639 = vrot.lane.b32.xlu0 %v618, 110
      %v640 = vpop.permute.xlu0 %639
      %641 = vrot.lane.b32.xlu0 %v619, 110
      %v642 = vpop.permute.xlu0 %641
      %643 = vrot.lane.b32.xlu0 %v620, 110
      %v644 = vpop.permute.xlu0 %643
      %v645 = vrot.slane %v630, 4
      %v646 = vrot.slane %v632, 4
      %v647 = vrot.slane %v634, 4
      %v648 = vrot.slane %v636, 4
      %v649 = vrot.slane %v638, 4
      %v650 = vrot.slane %v640, 4
      %v651 = vrot.slane %v642, 4
      %v652 = vrot.slane %v644, 4
      %v653 = vsel %vm342, %v645, %v646
      %v654 = vsel %vm378, %v630, %v653
      %v655 = vsel %vm342, %v647, %v648
      %v656 = vsel %vm378, %v634, %v655
      %v657 = vsel %vm342, %v649, %v650
      %v658 = vsel %vm378, %v638, %v657
      %v659 = vsel %vm342, %v651, %v652
      %v660 = vsel %vm378, %v642, %v659
      %669 = vst [vmem:[#allocation2 + $0xfc] sm:$0xff] %v654
      %670 = vst.msk [vmem:[#allocation2 + $0x104] sm:$0xf] %vm330, %v632
      %671 = vst [vmem:[#allocation2 + $0x108] sm:$0xff] %v656
      %672 = vst.msk [vmem:[#allocation2 + $0x110] sm:$0xf] %vm330, %v636
      %673 = vst [vmem:[#allocation2 + $0x114] sm:$0xff] %v658
      %674 = vst.msk [vmem:[#allocation2 + $0x11c] sm:$0xf] %vm330, %v640
      %675 = vst [vmem:[#allocation2 + $0x120] sm:$0xff] %v660
      %676 = vst.msk [vmem:[#allocation2 + $0x128] sm:$0xf] %vm330, %v644
      %v677 = vld [vmem:[%s308] sm:$0xff]
      %v678 = vld [vmem:[%s308 + $0x8] sm:$0xf]
      %v679 = vld [vmem:[%s308 + $0xc] sm:$0xff]
      %v680 = vld [vmem:[%s308 + $0x14] sm:$0xf]
      %v681 = vld [vmem:[%s308 + $0x18] sm:$0xff]
      %v682 = vld [vmem:[%s308 + $0x20] sm:$0xf]
      %v683 = vld [vmem:[%s308 + $0x24] sm:$0xff]
      %v684 = vld [vmem:[%s308 + $0x2c] sm:$0xf]
      %693 = vrot.lane.b32.xlu0 %v677, 109
      %v694 = vpop.permute.xlu0 %693
      %695 = vrot.lane.b32.xlu0 %v678, 109
      %v696 = vpop.permute.xlu0 %695
      %697 = vrot.lane.b32.xlu0 %v679, 109
      %v698 = vpop.permute.xlu0 %697
      %699 = vrot.lane.b32.xlu0 %v680, 109
      %v700 = vpop.permute.xlu0 %699
      %701 = vrot.lane.b32.xlu0 %v681, 109
      %v702 = vpop.permute.xlu0 %701
      %703 = vrot.lane.b32.xlu0 %v682, 109
      %v704 = vpop.permute.xlu0 %703
      %705 = vrot.lane.b32.xlu0 %v683, 109
      %v706 = vpop.permute.xlu0 %705
      %707 = vrot.lane.b32.xlu0 %v684, 109
      %v708 = vpop.permute.xlu0 %707
      %v709 = vrot.slane %v694, 4
      %v710 = vrot.slane %v696, 4
      %v711 = vrot.slane %v698, 4
      %v712 = vrot.slane %v700, 4
      %v713 = vrot.slane %v702, 4
      %v714 = vrot.slane %v704, 4
      %v715 = vrot.slane %v706, 4
      %v716 = vrot.slane %v708, 4
      %v717 = vsel %vm342, %v709, %v710
      %v718 = vsel %vm395, %v694, %v717
      %v719 = vsel %vm342, %v711, %v712
      %v720 = vsel %vm395, %v698, %v719
      %v721 = vsel %vm342, %v713, %v714
      %v722 = vsel %vm395, %v702, %v721
      %v723 = vsel %vm342, %v715, %v716
      %v724 = vsel %vm395, %v706, %v723
      %733 = vst [vmem:[#allocation2 + $0x12c] sm:$0xff] %v718
      %734 = vst.msk [vmem:[#allocation2 + $0x134] sm:$0xf] %vm330, %v696
      %735 = vst [vmem:[#allocation2 + $0x138] sm:$0xff] %v720
      %736 = vst.msk [vmem:[#allocation2 + $0x140] sm:$0xf] %vm330, %v700
      %737 = vst [vmem:[#allocation2 + $0x144] sm:$0xff] %v722
      %738 = vst.msk [vmem:[#allocation2 + $0x14c] sm:$0xf] %vm330, %v704
      %739 = vst [vmem:[#allocation2 + $0x150] sm:$0xff] %v724
      %740 = vst.msk [vmem:[#allocation2 + $0x158] sm:$0xf] %vm330, %v708
      %v741 = vld [vmem:[%s308] sm:$0xff]
      %v742 = vld [vmem:[%s308 + $0x8] sm:$0xf]
      %v743 = vld [vmem:[%s308 + $0xc] sm:$0xff]
      %v744 = vld [vmem:[%s308 + $0x14] sm:$0xf]
      %v745 = vld [vmem:[%s308 + $0x18] sm:$0xff]
      %v746 = vld [vmem:[%s308 + $0x20] sm:$0xf]
      %v747 = vld [vmem:[%s308 + $0x24] sm:$0xff]
      %v748 = vld [vmem:[%s308 + $0x2c] sm:$0xf]
      %757 = vrot.lane.b32.xlu0 %v741, 108
      %v758 = vpop.permute.xlu0 %757
      %759 = vrot.lane.b32.xlu0 %v742, 108
      %v760 = vpop.permute.xlu0 %759
      %761 = vrot.lane.b32.xlu0 %v743, 108
      %v762 = vpop.permute.xlu0 %761
      %763 = vrot.lane.b32.xlu0 %v744, 108
      %v764 = vpop.permute.xlu0 %763
      %765 = vrot.lane.b32.xlu0 %v745, 108
      %v766 = vpop.permute.xlu0 %765
      %767 = vrot.lane.b32.xlu0 %v746, 108
      %v768 = vpop.permute.xlu0 %767
      %769 = vrot.lane.b32.xlu0 %v747, 108
      %v770 = vpop.permute.xlu0 %769
      %771 = vrot.lane.b32.xlu0 %v748, 108
      %v772 = vpop.permute.xlu0 %771
      %v773 = vrot.slane %v758, 4
      %v774 = vrot.slane %v760, 4
      %v775 = vrot.slane %v762, 4
      %v776 = vrot.slane %v764, 4
      %v777 = vrot.slane %v766, 4
      %v778 = vrot.slane %v768, 4
      %v779 = vrot.slane %v770, 4
      %v780 = vrot.slane %v772, 4
      %v781 = vsel %vm342, %v773, %v774
      %v782 = vsel %vm412, %v758, %v781
      %v783 = vsel %vm342, %v775, %v776
      %v784 = vsel %vm412, %v762, %v783
      %v785 = vsel %vm342, %v777, %v778
      %v786 = vsel %vm412, %v766, %v785
      %v787 = vsel %vm342, %v779, %v780
      %v788 = vsel %vm412, %v770, %v787
      %797 = vst [vmem:[#allocation2 + $0x15c] sm:$0xff] %v782
      %798 = vst.msk [vmem:[#allocation2 + $0x164] sm:$0xf] %vm330, %v760
      %799 = vst [vmem:[#allocation2 + $0x168] sm:$0xff] %v784
      %800 = vst.msk [vmem:[#allocation2 + $0x170] sm:$0xf] %vm330, %v764
      %801 = vst [vmem:[#allocation2 + $0x174] sm:$0xff] %v786
      %802 = vst.msk [vmem:[#allocation2 + $0x17c] sm:$0xf] %vm330, %v768
      %803 = vst [vmem:[#allocation2 + $0x180] sm:$0xff] %v788
      %804 = vst.msk [vmem:[#allocation2 + $0x188] sm:$0xf] %vm330, %v772
      %v805 = vld [vmem:[%s308] sm:$0xff]
      %v806 = vld [vmem:[%s308 + $0x8] sm:$0xf]
      %v807 = vld [vmem:[%s308 + $0xc] sm:$0xff]
      %v808 = vld [vmem:[%s308 + $0x14] sm:$0xf]
      %v809 = vld [vmem:[%s308 + $0x18] sm:$0xff]
      %v810 = vld [vmem:[%s308 + $0x20] sm:$0xf]
      %v811 = vld [vmem:[%s308 + $0x24] sm:$0xff]
      %v812 = vld [vmem:[%s308 + $0x2c] sm:$0xf]
      %821 = vrot.lane.b32.xlu0 %v805, 92
      %v822 = vpop.permute.xlu0 %821
      %823 = vrot.lane.b32.xlu0 %v806, 92
      %v824 = vpop.permute.xlu0 %823
      %825 = vrot.lane.b32.xlu0 %v807, 92
      %v826 = vpop.permute.xlu0 %825
      %827 = vrot.lane.b32.xlu0 %v808, 92
      %v828 = vpop.permute.xlu0 %827
      %829 = vrot.lane.b32.xlu0 %v809, 92
      %v830 = vpop.permute.xlu0 %829
      %831 = vrot.lane.b32.xlu0 %v810, 92
      %v832 = vpop.permute.xlu0 %831
      %833 = vrot.lane.b32.xlu0 %v811, 92
      %v834 = vpop.permute.xlu0 %833
      %835 = vrot.lane.b32.xlu0 %v812, 92
      %v836 = vpop.permute.xlu0 %835
      %v837 = vrot.slane %v822, 4
      %v838 = vrot.slane %v824, 4
      %v839 = vrot.slane %v826, 4
      %v840 = vrot.slane %v828, 4
      %v841 = vrot.slane %v830, 4
      %v842 = vrot.slane %v832, 4
      %v843 = vrot.slane %v834, 4
      %v844 = vrot.slane %v836, 4
      %v845 = vsel %vm342, %v837, %v838
      %v846 = vsel %vm429, %v822, %v845
      %v847 = vsel %vm342, %v839, %v840
      %v848 = vsel %vm429, %v826, %v847
      %v849 = vsel %vm342, %v841, %v842
      %v850 = vsel %vm429, %v830, %v849
      %v851 = vsel %vm342, %v843, %v844
      %v852 = vsel %vm429, %v834, %v851
      %861 = vst [vmem:[#allocation2 + $0x18c] sm:$0xff] %v846
      %862 = vst.msk [vmem:[#allocation2 + $0x194] sm:$0xf] %vm330, %v824
      %863 = vst [vmem:[#allocation2 + $0x198] sm:$0xff] %v848
      %864 = vst.msk [vmem:[#allocation2 + $0x1a0] sm:$0xf] %vm330, %v828
      %865 = vst [vmem:[#allocation2 + $0x1a4] sm:$0xff] %v850
      %866 = vst.msk [vmem:[#allocation2 + $0x1ac] sm:$0xf] %vm330, %v832
      %867 = vst [vmem:[#allocation2 + $0x1b0] sm:$0xff] %v852
      %868 = vst.msk [vmem:[#allocation2 + $0x1b8] sm:$0xf] %vm330, %v836
      %v869 = vld [vmem:[%s308] sm:$0xff]
      %v870 = vld [vmem:[%s308 + $0x8] sm:$0xf]
      %v871 = vld [vmem:[%s308 + $0xc] sm:$0xff]
      %v872 = vld [vmem:[%s308 + $0x14] sm:$0xf]
      %v873 = vld [vmem:[%s308 + $0x18] sm:$0xff]
      %v874 = vld [vmem:[%s308 + $0x20] sm:$0xf]
      %v875 = vld [vmem:[%s308 + $0x24] sm:$0xff]
      %v876 = vld [vmem:[%s308 + $0x2c] sm:$0xf]
      %885 = vrot.lane.b32.xlu0 %v869, 91
      %v886 = vpop.permute.xlu0 %885
      %887 = vrot.lane.b32.xlu0 %v870, 91
      %v888 = vpop.permute.xlu0 %887
      %889 = vrot.lane.b32.xlu0 %v871, 91
      %v890 = vpop.permute.xlu0 %889
      %891 = vrot.lane.b32.xlu0 %v872, 91
      %v892 = vpop.permute.xlu0 %891
      %893 = vrot.lane.b32.xlu0 %v873, 91
      %v894 = vpop.permute.xlu0 %893
      %895 = vrot.lane.b32.xlu0 %v874, 91
      %v896 = vpop.permute.xlu0 %895
      %897 = vrot.lane.b32.xlu0 %v875, 91
      %v898 = vpop.permute.xlu0 %897
      %899 = vrot.lane.b32.xlu0 %v876, 91
      %v900 = vpop.permute.xlu0 %899
      %v901 = vrot.slane %v886, 4
      %v902 = vrot.slane %v888, 4
      %v903 = vrot.slane %v890, 4
      %v904 = vrot.slane %v892, 4
      %v905 = vrot.slane %v894, 4
      %v906 = vrot.slane %v896, 4
      %v907 = vrot.slane %v898, 4
      %v908 = vrot.slane %v900, 4
      %v909 = vsel %vm342, %v901, %v902
      %v910 = vsel %vm446, %v886, %v909
      %v911 = vsel %vm342, %v903, %v904
      %v912 = vsel %vm446, %v890, %v911
      %v913 = vsel %vm342, %v905, %v906
      %v914 = vsel %vm446, %v894, %v913
      %v915 = vsel %vm342, %v907, %v908
      %v916 = vsel %vm446, %v898, %v915
      %925 = vst [vmem:[#allocation2 + $0x1bc] sm:$0xff] %v910
      %926 = vst.msk [vmem:[#allocation2 + $0x1c4] sm:$0xf] %vm330, %v888
      %927 = vst [vmem:[#allocation2 + $0x1c8] sm:$0xff] %v912
      %928 = vst.msk [vmem:[#allocation2 + $0x1d0] sm:$0xf] %vm330, %v892
      %929 = vst [vmem:[#allocation2 + $0x1d4] sm:$0xff] %v914
      %930 = vst.msk [vmem:[#allocation2 + $0x1dc] sm:$0xf] %vm330, %v896
      %931 = vst [vmem:[#allocation2 + $0x1e0] sm:$0xff] %v916
      %932 = vst.msk [vmem:[#allocation2 + $0x1e8] sm:$0xf] %vm330, %v900
      %v933 = vld [vmem:[%s308] sm:$0xff]
      %v934 = vld [vmem:[%s308 + $0x8] sm:$0xf]
      %v935 = vld [vmem:[%s308 + $0xc] sm:$0xff]
      %v936 = vld [vmem:[%s308 + $0x14] sm:$0xf]
      %v937 = vld [vmem:[%s308 + $0x18] sm:$0xff]
      %v938 = vld [vmem:[%s308 + $0x20] sm:$0xf]
      %v939 = vld [vmem:[%s308 + $0x24] sm:$0xff]
      %v940 = vld [vmem:[%s308 + $0x2c] sm:$0xf]
      %949 = vrot.lane.b32.xlu0 %v933, 90
      %v950 = vpop.permute.xlu0 %949
      %951 = vrot.lane.b32.xlu0 %v934, 90
      %v952 = vpop.permute.xlu0 %951
      %953 = vrot.lane.b32.xlu0 %v935, 90
      %v954 = vpop.permute.xlu0 %953
      %955 = vrot.lane.b32.xlu0 %v936, 90
      %v956 = vpop.permute.xlu0 %955
      %957 = vrot.lane.b32.xlu0 %v937, 90
      %v958 = vpop.permute.xlu0 %957
      %959 = vrot.lane.b32.xlu0 %v938, 90
      %v960 = vpop.permute.xlu0 %959
      %961 = vrot.lane.b32.xlu0 %v939, 90
      %v962 = vpop.permute.xlu0 %961
      %963 = vrot.lane.b32.xlu0 %v940, 90
      %v964 = vpop.permute.xlu0 %963
      %v965 = vrot.slane %v950, 4
      %v966 = vrot.slane %v952, 4
      %v967 = vrot.slane %v954, 4
      %v968 = vrot.slane %v956, 4
      %v969 = vrot.slane %v958, 4
      %v970 = vrot.slane %v960, 4
      %v971 = vrot.slane %v962, 4
      %v972 = vrot.slane %v964, 4
      %v973 = vsel %vm342, %v965, %v966
      %v974 = vsel %vm463, %v950, %v973
      %v975 = vsel %vm342, %v967, %v968
      %v976 = vsel %vm463, %v954, %v975
      %v977 = vsel %vm342, %v969, %v970
      %v978 = vsel %vm463, %v958, %v977
      %v979 = vsel %vm342, %v971, %v972
      %v980 = vsel %vm463, %v962, %v979
      %989 = vst [vmem:[#allocation2 + $0x1ec] sm:$0xff] %v974
      %990 = vst.msk [vmem:[#allocation2 + $0x1f4] sm:$0xf] %vm330, %v952
      %991 = vst [vmem:[#allocation2 + $0x1f8] sm:$0xff] %v976
      %992 = vst.msk [vmem:[#allocation2 + $0x200] sm:$0xf] %vm330, %v956
      %993 = vst [vmem:[#allocation2 + $0x204] sm:$0xff] %v978
      %994 = vst.msk [vmem:[#allocation2 + $0x20c] sm:$0xf] %vm330, %v960
      %995 = vst [vmem:[#allocation2 + $0x210] sm:$0xff] %v980
      %996 = vst.msk [vmem:[#allocation2 + $0x218] sm:$0xf] %vm330, %v964
      %v997 = vld [vmem:[%s316] sm:$0x7]
      %v1000 = vunpack.c.l.s4 1935823168
      %v1001 = vunpack.c.0.s8 %v1000
      %v1002 = vlaneseq
      %v1003 = vshrl.u32 %v1002, 7
      %v1004 = vsub.s32 %v1001, %v1003
      %v1005 = vrot.slane %v997, %v1004
      %v1006 = vcombine.high %v1005, %v1005
      %v1008 = vunpack.c.l.s4 1935823168
      %v1009 = vunpack.c.0.s8 %v1008
      %v1010 = vlaneseq
      %v1011 = vshrl.u32 %v1010, 7
      %v1012 = vsub.s32 %v1009, %v1011
      %v1013 = vrot.slane %v1005, %v1012
      %v1015 = vunpack.c.l.s4 1935823168
      %v1016 = vunpack.c.0.s8 %v1015
      %v1017 = vlaneseq
      %v1018 = vshrl.u32 %v1017, 7
      %v1019 = vsub.s32 %v1016, %v1018
      %v1020 = vrot.slane %v1006, %v1019
      %1023 = vst [vmem:[#allocation2 + $0x21c] sm:$0x11] %v1013
      %vm1024 = vcmask 253952
      %1025 = vst.msk [vmem:[#allocation2 + $0x224] sm:$0x1] %vm1024, %v1020
      %v1026 = vld [vmem:[%s316] sm:$0x7]
      %v1029 = vunpack.c.l.s4 1935823168
      %v1030 = vunpack.c.0.s8 %v1029
      %v1031 = vlaneseq
      %v1032 = vshrl.u32 %v1031, 7
      %v1033 = vsub.s32 %v1030, %v1032
      %v1034 = vrot.slane %v1026, %v1033
      %v1035 = vcombine.low %v1034, %v1034
      %v1037 = vunpack.c.l.s4 1935823168
      %v1038 = vunpack.c.0.s8 %v1037
      %v1039 = vlaneseq
      %v1040 = vshrl.u32 %v1039, 7
      %v1041 = vsub.s32 %v1038, %v1040
      %v1042 = vrot.slane %v1035, %v1041
      %v1044 = vunpack.c.l.s4 1935823168
      %v1045 = vunpack.c.0.s8 %v1044
      %v1046 = vlaneseq
      %v1047 = vshrl.u32 %v1046, 7
      %v1048 = vsub.s32 %v1045, %v1047
      %v1049 = vrot.slane %v1034, %v1048
      %1050 = vrot.lane.b32.xlu0 %v1042, 127
      %v1051 = vpop.permute.xlu0 %1050
      %1052 = vrot.lane.b32.xlu0 %v1049, 127
      %v1053 = vpop.permute.xlu0 %1052
      %v1054 = vrot.slane %v1051, 4
      %v1055 = vrot.slane %v1053, 4
      %v1056 = vsel %vm342, %v1054, %v1055
      %v1057 = vsel %vm344, %v1051, %v1056
      %1060 = vst [vmem:[#allocation2 + $0x21c] sm:$0x22] %v1057
      %vm1061 = vcmask 254977
      %1062 = vst.msk [vmem:[#allocation2 + $0x224] sm:$0x2] %vm1061, %v1053
      %v1063 = vld [vmem:[%s316] sm:$0x7]
      %v1065 = vcombine.low %v1063, %v1063
      %v1067 = vunpack.c.l.s4 1935823168
      %v1068 = vunpack.c.0.s8 %v1067
      %v1069 = vlaneseq
      %v1070 = vshrl.u32 %v1069, 7
      %v1071 = vsub.s32 %v1068, %v1070
      %v1072 = vrot.slane %v1065, %v1071
      %v1073 = vcombine.high %v1072, %v1072
      %v1075 = vunpack.c.l.s4 1935823168
      %v1076 = vunpack.c.0.s8 %v1075
      %v1077 = vlaneseq
      %v1078 = vshrl.u32 %v1077, 7
      %v1079 = vsub.s32 %v1076, %v1078
      %v1080 = vrot.slane %v1072, %v1079
      %v1082 = vunpack.c.l.s4 1935823168
      %v1083 = vunpack.c.0.s8 %v1082
      %v1084 = vlaneseq
      %v1085 = vshrl.u32 %v1084, 7
      %v1086 = vsub.s32 %v1083, %v1085
      %v1087 = vrot.slane %v1073, %v1086
      %1088 = vrot.lane.b32.xlu0 %v1080, 126
      %v1089 = vpop.permute.xlu0 %1088
      %1090 = vrot.lane.b32.xlu0 %v1087, 126
      %v1091 = vpop.permute.xlu0 %1090
      %v1092 = vrot.slane %v1089, 4
      %v1093 = vrot.slane %v1091, 4
      %v1094 = vsel %vm342, %v1092, %v1093
      %v1095 = vsel %vm361, %v1089, %v1094
      %1098 = vst [vmem:[#allocation2 + $0x21c] sm:$0x44] %v1095
      %vm1099 = vcmask 256002
      %1100 = vst.msk [vmem:[#allocation2 + $0x224] sm:$0x4] %vm1099, %v1091
      %v1101 = vld [vmem:[%s316] sm:$0x7]
      %v1103 = vcombine.low %v1101, %v1101
      %v1105 = vunpack.c.l.s4 1935823168
      %v1106 = vunpack.c.0.s8 %v1105
      %v1107 = vlaneseq
      %v1108 = vshrl.u32 %v1107, 7
      %v1109 = vsub.s32 %v1106, %v1108
      %v1110 = vrot.slane %v1103, %v1109
      %v1111 = vcombine.low %v1110, %v1110
      %v1113 = vunpack.c.l.s4 1935823168
      %v1114 = vunpack.c.0.s8 %v1113
      %v1115 = vlaneseq
      %v1116 = vshrl.u32 %v1115, 7
      %v1117 = vsub.s32 %v1114, %v1116
      %v1118 = vrot.slane %v1111, %v1117
      %v1120 = vunpack.c.l.s4 1935823168
      %v1121 = vunpack.c.0.s8 %v1120
      %v1122 = vlaneseq
      %v1123 = vshrl.u32 %v1122, 7
      %v1124 = vsub.s32 %v1121, %v1123
      %v1125 = vrot.slane %v1110, %v1124
      %1126 = vrot.lane.b32.xlu0 %v1118, 110
      %v1127 = vpop.permute.xlu0 %1126
      %1128 = vrot.lane.b32.xlu0 %v1125, 110
      %v1129 = vpop.permute.xlu0 %1128
      %v1130 = vrot.slane %v1127, 4
      %v1131 = vrot.slane %v1129, 4
      %v1132 = vsel %vm342, %v1130, %v1131
      %v1133 = vsel %vm378, %v1127, %v1132
      %1136 = vst [vmem:[#allocation2 + $0x21c] sm:$0x88] %v1133
      %vm1137 = vcmask 257027
      %1138 = vst.msk [vmem:[#allocation2 + $0x224] sm:$0x8] %vm1137, %v1129
      %v1139 = vld [vmem:[%s316] sm:$0x7]
      %v1142 = vunpack.c.l.s4 1935823168
      %v1143 = vunpack.c.0.s8 %v1142
      %v1144 = vlaneseq
      %v1145 = vshrl.u32 %v1144, 7
      %v1146 = vsub.s32 %v1143, %v1145
      %v1147 = vrot.slane %v1139, %v1146
      %v1148 = vcombine.high %v1147, %v1147
      %v1150 = vunpack.c.l.s4 1935823168
      %v1151 = vunpack.c.0.s8 %v1150
      %v1152 = vlaneseq
      %v1153 = vshrl.u32 %v1152, 7
      %v1154 = vsub.s32 %v1151, %v1153
      %v1155 = vrot.slane %v1147, %v1154
      %v1157 = vunpack.c.l.s4 1935823168
      %v1158 = vunpack.c.0.s8 %v1157
      %v1159 = vlaneseq
      %v1160 = vshrl.u32 %v1159, 7
      %v1161 = vsub.s32 %v1158, %v1160
      %v1162 = vrot.slane %v1148, %v1161
      %1163 = vrot.lane.b32.xlu0 %v1155, 109
      %v1164 = vpop.permute.xlu0 %1163
      %1165 = vrot.lane.b32.xlu0 %v1162, 109
      %v1166 = vpop.permute.xlu0 %1165
      %v1167 = vrot.slane %v1164, 4
      %v1168 = vrot.slane %v1166, 4
      %v1169 = vsel %vm342, %v1167, %v1168
      %v1170 = vsel %vm395, %v1164, %v1169
      %1173 = vst [vmem:[#allocation2 + $0x228] sm:$0x11] %v1170
      %1174 = vst.msk [vmem:[#allocation2 + $0x230] sm:$0x1] %vm1024, %v1166
      %v1175 = vld [vmem:[%s316] sm:$0x7]
      %v1178 = vunpack.c.l.s4 1935823168
      %v1179 = vunpack.c.0.s8 %v1178
      %v1180 = vlaneseq
      %v1181 = vshrl.u32 %v1180, 7
      %v1182 = vsub.s32 %v1179, %v1181
      %v1183 = vrot.slane %v1175, %v1182
      %v1184 = vcombine.low %v1183, %v1183
      %v1186 = vunpack.c.l.s4 1935823168
      %v1187 = vunpack.c.0.s8 %v1186
      %v1188 = vlaneseq
      %v1189 = vshrl.u32 %v1188, 7
      %v1190 = vsub.s32 %v1187, %v1189
      %v1191 = vrot.slane %v1184, %v1190
      %v1193 = vunpack.c.l.s4 1935823168
      %v1194 = vunpack.c.0.s8 %v1193
      %v1195 = vlaneseq
      %v1196 = vshrl.u32 %v1195, 7
      %v1197 = vsub.s32 %v1194, %v1196
      %v1198 = vrot.slane %v1183, %v1197
      %1199 = vrot.lane.b32.xlu0 %v1191, 108
      %v1200 = vpop.permute.xlu0 %1199
      %1201 = vrot.lane.b32.xlu0 %v1198, 108
      %v1202 = vpop.permute.xlu0 %1201
      %v1203 = vrot.slane %v1200, 4
      %v1204 = vrot.slane %v1202, 4
      %v1205 = vsel %vm342, %v1203, %v1204
      %v1206 = vsel %vm412, %v1200, %v1205
      %1209 = vst [vmem:[#allocation2 + $0x228] sm:$0x22] %v1206
      %1210 = vst.msk [vmem:[#allocation2 + $0x230] sm:$0x2] %vm1061, %v1202
      %v1211 = vld [vmem:[%s316] sm:$0x7]
      %v1213 = vcombine.low %v1211, %v1211
      %v1215 = vunpack.c.l.s4 1935823168
      %v1216 = vunpack.c.0.s8 %v1215
      %v1217 = vlaneseq
      %v1218 = vshrl.u32 %v1217, 7
      %v1219 = vsub.s32 %v1216, %v1218
      %v1220 = vrot.slane %v1213, %v1219
      %v1221 = vcombine.high %v1220, %v1220
      %v1223 = vunpack.c.l.s4 1935823168
      %v1224 = vunpack.c.0.s8 %v1223
      %v1225 = vlaneseq
      %v1226 = vshrl.u32 %v1225, 7
      %v1227 = vsub.s32 %v1224, %v1226
      %v1228 = vrot.slane %v1220, %v1227
      %v1230 = vunpack.c.l.s4 1935823168
      %v1231 = vunpack.c.0.s8 %v1230
      %v1232 = vlaneseq
      %v1233 = vshrl.u32 %v1232, 7
      %v1234 = vsub.s32 %v1231, %v1233
      %v1235 = vrot.slane %v1221, %v1234
      %1236 = vrot.lane.b32.xlu0 %v1228, 92
      %v1237 = vpop.permute.xlu0 %1236
      %1238 = vrot.lane.b32.xlu0 %v1235, 92
      %v1239 = vpop.permute.xlu0 %1238
      %v1240 = vrot.slane %v1237, 4
      %v1241 = vrot.slane %v1239, 4
      %v1242 = vsel %vm342, %v1240, %v1241
      %v1243 = vsel %vm429, %v1237, %v1242
      %1246 = vst [vmem:[#allocation2 + $0x228] sm:$0x44] %v1243
      %1247 = vst.msk [vmem:[#allocation2 + $0x230] sm:$0x4] %vm1099, %v1239
      %v1248 = vld [vmem:[%s316] sm:$0x7]
      %v1250 = vcombine.low %v1248, %v1248
      %v1252 = vunpack.c.l.s4 1935823168
      %v1253 = vunpack.c.0.s8 %v1252
      %v1254 = vlaneseq
      %v1255 = vshrl.u32 %v1254, 7
      %v1256 = vsub.s32 %v1253, %v1255
      %v1257 = vrot.slane %v1250, %v1256
      %v1258 = vcombine.low %v1257, %v1257
      %v1260 = vunpack.c.l.s4 1935823168
      %v1261 = vunpack.c.0.s8 %v1260
      %v1262 = vlaneseq
      %v1263 = vshrl.u32 %v1262, 7
      %v1264 = vsub.s32 %v1261, %v1263
      %v1265 = vrot.slane %v1258, %v1264
      %v1267 = vunpack.c.l.s4 1935823168
      %v1268 = vunpack.c.0.s8 %v1267
      %v1269 = vlaneseq
      %v1270 = vshrl.u32 %v1269, 7
      %v1271 = vsub.s32 %v1268, %v1270
      %v1272 = vrot.slane %v1257, %v1271
      %1273 = vrot.lane.b32.xlu0 %v1265, 91
      %v1274 = vpop.permute.xlu0 %1273
      %1275 = vrot.lane.b32.xlu0 %v1272, 91
      %v1276 = vpop.permute.xlu0 %1275
      %v1277 = vrot.slane %v1274, 4
      %v1278 = vrot.slane %v1276, 4
      %v1279 = vsel %vm342, %v1277, %v1278
      %v1280 = vsel %vm446, %v1274, %v1279
      %1283 = vst [vmem:[#allocation2 + $0x228] sm:$0x88] %v1280
      %1284 = vst.msk [vmem:[#allocation2 + $0x230] sm:$0x8] %vm1137, %v1276
      %v1285 = vld [vmem:[%s316] sm:$0x7]
      %v1288 = vunpack.c.l.s4 1935823168
      %v1289 = vunpack.c.0.s8 %v1288
      %v1290 = vlaneseq
      %v1291 = vshrl.u32 %v1290, 7
      %v1292 = vsub.s32 %v1289, %v1291
      %v1293 = vrot.slane %v1285, %v1292
      %v1294 = vcombine.high %v1293, %v1293
      %v1296 = vunpack.c.l.s4 1935823168
      %v1297 = vunpack.c.0.s8 %v1296
      %v1298 = vlaneseq
      %v1299 = vshrl.u32 %v1298, 7
      %v1300 = vsub.s32 %v1297, %v1299
      %v1301 = vrot.slane %v1293, %v1300
      %v1303 = vunpack.c.l.s4 1935823168
      %v1304 = vunpack.c.0.s8 %v1303
      %v1305 = vlaneseq
      %v1306 = vshrl.u32 %v1305, 7
      %v1307 = vsub.s32 %v1304, %v1306
      %v1308 = vrot.slane %v1294, %v1307
      %1309 = vrot.lane.b32.xlu0 %v1301, 90
      %v1310 = vpop.permute.xlu0 %1309
      %1311 = vrot.lane.b32.xlu0 %v1308, 90
      %v1312 = vpop.permute.xlu0 %1311
      %v1313 = vrot.slane %v1310, 4
      %v1314 = vrot.slane %v1312, 4
      %v1315 = vsel %vm342, %v1313, %v1314
      %v1316 = vsel %vm463, %v1310, %v1315
      %1319 = vst [vmem:[#allocation2 + $0x234] sm:$0x11] %v1316
      %1320 = vst.msk [vmem:[#allocation2 + $0x23c] sm:$0x1] %vm1024, %v1312
      %v1321 = vld [vmem:[%s3] sm:$0xff]
      %v1322 = vld [vmem:[%s3 + $0x8] sm:$0xf]
      %v1323 = vld [vmem:[%s3 + $0xc] sm:$0xff]
      %v1324 = vld [vmem:[%s3 + $0x14] sm:$0xf]
      %v1325 = vld [vmem:[#allocation2] sm:$0xff]
      %v1326 = vld [vmem:[#allocation2 + $0x8] sm:$0xf]
      %v1327 = vld [vmem:[#allocation2 + $0xc] sm:$0xff]
      %v1328 = vld [vmem:[#allocation2 + $0x14] sm:$0xf]
      %v1329 = vld [vmem:[#allocation2 + $0x18] sm:$0xff]
      %v1330 = vld [vmem:[#allocation2 + $0x20] sm:$0xf]
      %v1331 = vld [vmem:[#allocation2 + $0x24] sm:$0xff]
      %v1332 = vld [vmem:[#allocation2 + $0x2c] sm:$0xf]
      %v1333 = vld [vmem:[#allocation2 + $0x30] sm:$0xff]
      %v1334 = vld [vmem:[#allocation2 + $0x38] sm:$0xf]
      %v1335 = vld [vmem:[#allocation2 + $0x3c] sm:$0xff]
      %v1336 = vld [vmem:[#allocation2 + $0x44] sm:$0xf]
      %v1337 = vld [vmem:[#allocation2 + $0x48] sm:$0xff]
      %v1338 = vld [vmem:[#allocation2 + $0x50] sm:$0xf]
      %v1339 = vld [vmem:[#allocation2 + $0x54] sm:$0xff]
      %v1340 = vld [vmem:[#allocation2 + $0x5c] sm:$0xf]
      %v1341 = vld [vmem:[#allocation2 + $0x60] sm:$0xff]
      %v1342 = vld [vmem:[#allocation2 + $0x68] sm:$0xf]
      %v1343 = vld [vmem:[#allocation2 + $0x6c] sm:$0xff]
      %v1344 = vld [vmem:[#allocation2 + $0x74] sm:$0xf]
      %v1345 = vld [vmem:[#allocation2 + $0x78] sm:$0xff]
      %v1346 = vld [vmem:[#allocation2 + $0x80] sm:$0xf]
      %v1347 = vld [vmem:[#allocation2 + $0x84] sm:$0xff]
      %v1348 = vld [vmem:[#allocation2 + $0x8c] sm:$0xf]
      %v1349 = vld [vmem:[#allocation2 + $0x90] sm:$0xff]
      %v1350 = vld [vmem:[#allocation2 + $0x98] sm:$0xf]
      %v1351 = vld [vmem:[#allocation2 + $0x9c] sm:$0xff]
      %v1352 = vld [vmem:[#allocation2 + $0xa4] sm:$0xf]
      %v1353 = vld [vmem:[#allocation2 + $0xa8] sm:$0xff]
      %v1354 = vld [vmem:[#allocation2 + $0xb0] sm:$0xf]
      %v1355 = vld [vmem:[#allocation2 + $0xb4] sm:$0xff]
      %v1356 = vld [vmem:[#allocation2 + $0xbc] sm:$0xf]
      %v1357 = vld [vmem:[#allocation2 + $0xc0] sm:$0xff]
      %v1358 = vld [vmem:[#allocation2 + $0xc8] sm:$0xf]
      %v1359 = vld [vmem:[#allocation2 + $0xcc] sm:$0xff]
      %v1360 = vld [vmem:[#allocation2 + $0xd4] sm:$0xf]
      %v1361 = vld [vmem:[#allocation2 + $0xd8] sm:$0xff]
      %v1362 = vld [vmem:[#allocation2 + $0xe0] sm:$0xf]
      %v1363 = vld [vmem:[#allocation2 + $0xe4] sm:$0xff]
      %v1364 = vld [vmem:[#allocation2 + $0xec] sm:$0xf]
      %v1365 = vld [vmem:[#allocation2 + $0xf0] sm:$0xff]
      %v1366 = vld [vmem:[#allocation2 + $0xf8] sm:$0xf]
      %v1367 = vld [vmem:[#allocation2 + $0xfc] sm:$0xff]
      %v1368 = vld [vmem:[#allocation2 + $0x104] sm:$0xf]
      %v1369 = vld [vmem:[#allocation2 + $0x108] sm:$0xff]
      %v1370 = vld [vmem:[#allocation2 + $0x110] sm:$0xf]
      %v1371 = vld [vmem:[#allocation2 + $0x114] sm:$0xff]
      %v1372 = vld [vmem:[#allocation2 + $0x11c] sm:$0xf]
      %v1373 = vld [vmem:[#allocation2 + $0x120] sm:$0xff]
      %v1374 = vld [vmem:[#allocation2 + $0x128] sm:$0xf]
      %v1375 = vld [vmem:[#allocation2 + $0x12c] sm:$0xff]
      %v1376 = vld [vmem:[#allocation2 + $0x134] sm:$0xf]
      %v1377 = vld [vmem:[#allocation2 + $0x138] sm:$0xff]
      %v1378 = vld [vmem:[#allocation2 + $0x140] sm:$0xf]
      %v1379 = vld [vmem:[#allocation2 + $0x144] sm:$0xff]
      %v1380 = vld [vmem:[#allocation2 + $0x14c] sm:$0xf]
      %v1381 = vld [vmem:[#allocation2 + $0x150] sm:$0xff]
      %v1382 = vld [vmem:[#allocation2 + $0x158] sm:$0xf]
      %v1383 = vld [vmem:[#allocation2 + $0x15c] sm:$0xff]
      %v1384 = vld [vmem:[#allocation2 + $0x164] sm:$0xf]
      %v1385 = vld [vmem:[#allocation2 + $0x168] sm:$0xff]
      %v1386 = vld [vmem:[#allocation2 + $0x170] sm:$0xf]
      %v1387 = vld [vmem:[#allocation2 + $0x174] sm:$0xff]
      %v1388 = vld [vmem:[#allocation2 + $0x17c] sm:$0xf]
      %v1389 = vld [vmem:[#allocation2 + $0x180] sm:$0xff]
      %v1390 = vld [vmem:[#allocation2 + $0x188] sm:$0xf]
      %v1391 = vld [vmem:[#allocation2 + $0x18c] sm:$0xff]
      %v1392 = vld [vmem:[#allocation2 + $0x194] sm:$0xf]
      %v1393 = vld [vmem:[#allocation2 + $0x198] sm:$0xff]
      %v1394 = vld [vmem:[#allocation2 + $0x1a0] sm:$0xf]
      %v1395 = vld [vmem:[#allocation2 + $0x1a4] sm:$0xff]
      %v1396 = vld [vmem:[#allocation2 + $0x1ac] sm:$0xf]
      %v1397 = vld [vmem:[#allocation2 + $0x1b0] sm:$0xff]
      %v1398 = vld [vmem:[#allocation2 + $0x1b8] sm:$0xf]
      %v1399 = vld [vmem:[#allocation2 + $0x1bc] sm:$0xff]
      %v1400 = vld [vmem:[#allocation2 + $0x1c4] sm:$0xf]
      %v1401 = vld [vmem:[#allocation2 + $0x1c8] sm:$0xff]
      %v1402 = vld [vmem:[#allocation2 + $0x1d0] sm:$0xf]
      %v1403 = vld [vmem:[#allocation2 + $0x1d4] sm:$0xff]
      %v1404 = vld [vmem:[#allocation2 + $0x1dc] sm:$0xf]
      %v1405 = vld [vmem:[#allocation2 + $0x1e0] sm:$0xff]
      %v1406 = vld [vmem:[#allocation2 + $0x1e8] sm:$0xf]
      %v1407 = vld [vmem:[#allocation2 + $0x1ec] sm:$0xff]
      %v1408 = vld [vmem:[#allocation2 + $0x1f4] sm:$0xf]
      %v1409 = vld [vmem:[#allocation2 + $0x1f8] sm:$0xff]
      %v1410 = vld [vmem:[#allocation2 + $0x200] sm:$0xf]
      %v1411 = vld [vmem:[#allocation2 + $0x204] sm:$0xff]
      %v1412 = vld [vmem:[#allocation2 + $0x20c] sm:$0xf]
      %v1413 = vld [vmem:[#allocation2 + $0x210] sm:$0xff]
      %v1414 = vld [vmem:[#allocation2 + $0x218] sm:$0xf]
      %v1415 = vld [vmem:[#allocation2 + $0x21c] sm:$0xff]
      %v1416 = vld [vmem:[#allocation2 + $0x224] sm:$0xf]
      %v1417 = vld [vmem:[#allocation2 + $0x228] sm:$0xff]
      %v1418 = vld [vmem:[#allocation2 + $0x230] sm:$0xf]
      %v1419 = vld [vmem:[#allocation2 + $0x234] sm:$0x11]
      %v1420 = vld [vmem:[#allocation2 + $0x23c] sm:$0x1]
      %v1421 = vld [vmem:[%s4] sm:$0xff]
      %v1422 = vld [vmem:[%s4 + $0x8] sm:$0xff]
      %1424 = vset.pattern.permute.xlu0 0
      %1425 = vperm.xlu0 %1424, %v1421
      %v1426 = vpop.permute.xlu0 %1425
      %1429 = vset.pattern.permute.xlu0 0
      %1430 = vperm.xlu0 %1429, %v1422
      %v1431 = vpop.permute.xlu0 %1430
      %v1437 = vunpack.c.l.b16 %v1321
      %v1438 = vunpack.c.h.b16 %v1321
      %v1439 = vunpack.c.l.b16 %v1322
      %v1440 = vunpack.c.l.b16 %v1323
      %v1441 = vunpack.c.h.b16 %v1323
      %v1442 = vunpack.c.l.b16 %v1324
      %v1443 = vpack.c.b16 %v1440, %v1437
      %v1444 = vpack.c.b16 %v1441, %v1438
      %v1445 = vpack.c.b16 %v1442, %v1439
      %v1544 = vunpack.c.l.b16 %v1325
      %v1545 = vunpack.c.h.b16 %v1325
      %v1546 = vunpack.c.l.b16 %v1326
      %v1547 = vunpack.c.l.b16 %v1327
      %v1548 = vunpack.c.h.b16 %v1327
      %v1549 = vunpack.c.l.b16 %v1328
      %v1550 = vunpack.c.l.b16 %v1329
      %v1551 = vunpack.c.h.b16 %v1329
      %v1552 = vunpack.c.l.b16 %v1330
      %v1553 = vunpack.c.l.b16 %v1331
      %v1554 = vunpack.c.h.b16 %v1331
      %v1555 = vunpack.c.l.b16 %v1332
      %v1556 = vunpack.c.l.b16 %v1333
      %v1557 = vunpack.c.h.b16 %v1333
      %v1558 = vunpack.c.l.b16 %v1334
      %v1559 = vunpack.c.l.b16 %v1335
      %v1560 = vunpack.c.h.b16 %v1335
      %v1561 = vunpack.c.l.b16 %v1336
      %v1562 = vunpack.c.l.b16 %v1337
      %v1563 = vunpack.c.h.b16 %v1337
      %v1564 = vunpack.c.l.b16 %v1338
      %v1565 = vunpack.c.l.b16 %v1339
      %v1566 = vunpack.c.h.b16 %v1339
      %v1567 = vunpack.c.l.b16 %v1340
      %v1568 = vunpack.c.l.b16 %v1341
      %v1569 = vunpack.c.h.b16 %v1341
      %v1570 = vunpack.c.l.b16 %v1342
      %v1571 = vunpack.c.l.b16 %v1343
      %v1572 = vunpack.c.h.b16 %v1343
      %v1573 = vunpack.c.l.b16 %v1344
      %v1574 = vunpack.c.l.b16 %v1345
      %v1575 = vunpack.c.h.b16 %v1345
      %v1576 = vunpack.c.l.b16 %v1346
      %v1577 = vunpack.c.l.b16 %v1347
      %v1578 = vunpack.c.h.b16 %v1347
      %v1579 = vunpack.c.l.b16 %v1348
      %v1580 = vunpack.c.l.b16 %v1349
      %v1581 = vunpack.c.h.b16 %v1349
      %v1582 = vunpack.c.l.b16 %v1350
      %v1583 = vunpack.c.l.b16 %v1351
      %v1584 = vunpack.c.h.b16 %v1351
      %v1585 = vunpack.c.l.b16 %v1352
      %v1586 = vunpack.c.l.b16 %v1353
      %v1587 = vunpack.c.h.b16 %v1353
      %v1588 = vunpack.c.l.b16 %v1354
      %v1589 = vunpack.c.l.b16 %v1355
      %v1590 = vunpack.c.h.b16 %v1355
      %v1591 = vunpack.c.l.b16 %v1356
      %v1592 = vunpack.c.l.b16 %v1357
      %v1593 = vunpack.c.h.b16 %v1357
      %v1594 = vunpack.c.l.b16 %v1358
      %v1595 = vunpack.c.l.b16 %v1359
      %v1596 = vunpack.c.h.b16 %v1359
      %v1597 = vunpack.c.l.b16 %v1360
      %v1598 = vunpack.c.l.b16 %v1361
      %v1599 = vunpack.c.h.b16 %v1361
      %v1600 = vunpack.c.l.b16 %v1362
      %v1601 = vunpack.c.l.b16 %v1363
      %v1602 = vunpack.c.h.b16 %v1363
      %v1603 = vunpack.c.l.b16 %v1364
      %v1604 = vunpack.c.l.b16 %v1365
      %v1605 = vunpack.c.h.b16 %v1365
      %v1606 = vunpack.c.l.b16 %v1366
      %v1607 = vunpack.c.l.b16 %v1367
      %v1608 = vunpack.c.h.b16 %v1367
      %v1609 = vunpack.c.l.b16 %v1368
      %v1610 = vunpack.c.l.b16 %v1369
      %v1611 = vunpack.c.h.b16 %v1369
      %v1612 = vunpack.c.l.b16 %v1370
      %v1613 = vunpack.c.l.b16 %v1371
      %v1614 = vunpack.c.h.b16 %v1371
      %v1615 = vunpack.c.l.b16 %v1372
      %v1616 = vunpack.c.l.b16 %v1373
      %v1617 = vunpack.c.h.b16 %v1373
      %v1618 = vunpack.c.l.b16 %v1374
      %v1619 = vunpack.c.l.b16 %v1375
      %v1620 = vunpack.c.h.b16 %v1375
      %v1621 = vunpack.c.l.b16 %v1376
      %v1622 = vunpack.c.l.b16 %v1377
      %v1623 = vunpack.c.h.b16 %v1377
      %v1624 = vunpack.c.l.b16 %v1378
      %v1625 = vunpack.c.l.b16 %v1379
      %v1626 = vunpack.c.h.b16 %v1379
      %v1627 = vunpack.c.l.b16 %v1380
      %v1628 = vunpack.c.l.b16 %v1381
      %v1629 = vunpack.c.h.b16 %v1381
      %v1630 = vunpack.c.l.b16 %v1382
      %v1631 = vunpack.c.l.b16 %v1383
      %v1632 = vunpack.c.h.b16 %v1383
      %v1633 = vunpack.c.l.b16 %v1384
      %v1634 = vunpack.c.l.b16 %v1385
      %v1635 = vunpack.c.h.b16 %v1385
      %v1636 = vunpack.c.l.b16 %v1386
      %v1637 = vunpack.c.l.b16 %v1387
      %v1638 = vunpack.c.h.b16 %v1387
      %v1639 = vunpack.c.l.b16 %v1388
      %v1640 = vunpack.c.l.b16 %v1389
      %v1641 = vunpack.c.h.b16 %v1389
      %v1642 = vunpack.c.l.b16 %v1390
      %v1643 = vunpack.c.l.b16 %v1391
      %v1644 = vunpack.c.h.b16 %v1391
      %v1645 = vunpack.c.l.b16 %v1392
      %v1646 = vunpack.c.l.b16 %v1393
      %v1647 = vunpack.c.h.b16 %v1393
      %v1648 = vunpack.c.l.b16 %v1394
      %v1649 = vunpack.c.l.b16 %v1395
      %v1650 = vunpack.c.h.b16 %v1395
      %v1651 = vunpack.c.l.b16 %v1396
      %v1652 = vunpack.c.l.b16 %v1397
      %v1653 = vunpack.c.h.b16 %v1397
      %v1654 = vunpack.c.l.b16 %v1398
      %v1655 = vunpack.c.l.b16 %v1399
      %v1656 = vunpack.c.h.b16 %v1399
      %v1657 = vunpack.c.l.b16 %v1400
      %v1658 = vunpack.c.l.b16 %v1401
      %v1659 = vunpack.c.h.b16 %v1401
      %v1660 = vunpack.c.l.b16 %v1402
      %v1661 = vunpack.c.l.b16 %v1403
      %v1662 = vunpack.c.h.b16 %v1403
      %v1663 = vunpack.c.l.b16 %v1404
      %v1664 = vunpack.c.l.b16 %v1405
      %v1665 = vunpack.c.h.b16 %v1405
      %v1666 = vunpack.c.l.b16 %v1406
      %v1667 = vunpack.c.l.b16 %v1407
      %v1668 = vunpack.c.h.b16 %v1407
      %v1669 = vunpack.c.l.b16 %v1408
      %v1670 = vunpack.c.l.b16 %v1409
      %v1671 = vunpack.c.h.b16 %v1409
      %v1672 = vunpack.c.l.b16 %v1410
      %v1673 = vunpack.c.l.b16 %v1411
      %v1674 = vunpack.c.h.b16 %v1411
      %v1675 = vunpack.c.l.b16 %v1412
      %v1676 = vunpack.c.l.b16 %v1413
      %v1677 = vunpack.c.h.b16 %v1413
      %v1678 = vunpack.c.l.b16 %v1414
      %v1679 = vunpack.c.l.b16 %v1415
      %v1680 = vunpack.c.h.b16 %v1415
      %v1681 = vunpack.c.l.b16 %v1416
      %v1682 = vunpack.c.l.b16 %v1417
      %v1683 = vunpack.c.h.b16 %v1417
      %v1684 = vunpack.c.l.b16 %v1418
      %v1685 = vunpack.c.l.b16 %v1419
      %v1686 = vunpack.c.h.b16 %v1419
      %v1687 = vunpack.c.l.b16 %v1420
      %v1688 = vpack.c.b16 %v1547, %v1544
      %v1689 = vpack.c.b16 %v1548, %v1545
      %v1690 = vpack.c.b16 %v1549, %v1546
      %v1691 = vpack.c.b16 %v1553, %v1550
      %v1692 = vpack.c.b16 %v1554, %v1551
      %v1693 = vpack.c.b16 %v1555, %v1552
      %v1694 = vpack.c.b16 %v1559, %v1556
      %v1695 = vpack.c.b16 %v1560, %v1557
      %v1696 = vpack.c.b16 %v1561, %v1558
      %v1697 = vpack.c.b16 %v1565, %v1562
      %v1698 = vpack.c.b16 %v1566, %v1563
      %v1699 = vpack.c.b16 %v1567, %v1564
      %v1700 = vpack.c.b16 %v1571, %v1568
      %v1701 = vpack.c.b16 %v1572, %v1569
      %v1702 = vpack.c.b16 %v1573, %v1570
      %v1703 = vpack.c.b16 %v1577, %v1574
      %v1704 = vpack.c.b16 %v1578, %v1575
      %v1705 = vpack.c.b16 %v1579, %v1576
      %v1706 = vpack.c.b16 %v1583, %v1580
      %v1707 = vpack.c.b16 %v1584, %v1581
      %v1708 = vpack.c.b16 %v1585, %v1582
      %v1709 = vpack.c.b16 %v1589, %v1586
      %v1710 = vpack.c.b16 %v1590, %v1587
      %v1711 = vpack.c.b16 %v1591, %v1588
      %v1712 = vpack.c.b16 %v1595, %v1592
      %v1713 = vpack.c.b16 %v1596, %v1593
      %v1714 = vpack.c.b16 %v1597, %v1594
      %v1715 = vpack.c.b16 %v1601, %v1598
      %v1716 = vpack.c.b16 %v1602, %v1599
      %v1717 = vpack.c.b16 %v1603, %v1600
      %v1718 = vpack.c.b16 %v1607, %v1604
      %v1719 = vpack.c.b16 %v1608, %v1605
      %v1720 = vpack.c.b16 %v1609, %v1606
      %v1721 = vpack.c.b16 %v1613, %v1610
      %v1722 = vpack.c.b16 %v1614, %v1611
      %v1723 = vpack.c.b16 %v1615, %v1612
      %v1724 = vpack.c.b16 %v1619, %v1616
      %v1725 = vpack.c.b16 %v1620, %v1617
      %v1726 = vpack.c.b16 %v1621, %v1618
      %v1727 = vpack.c.b16 %v1625, %v1622
      %v1728 = vpack.c.b16 %v1626, %v1623
      %v1729 = vpack.c.b16 %v1627, %v1624
      %v1730 = vpack.c.b16 %v1631, %v1628
      %v1731 = vpack.c.b16 %v1632, %v1629
      %v1732 = vpack.c.b16 %v1633, %v1630
      %v1733 = vpack.c.b16 %v1637, %v1634
      %v1734 = vpack.c.b16 %v1638, %v1635
      %v1735 = vpack.c.b16 %v1639, %v1636
      %v1736 = vpack.c.b16 %v1643, %v1640
      %v1737 = vpack.c.b16 %v1644, %v1641
      %v1738 = vpack.c.b16 %v1645, %v1642
      %v1739 = vpack.c.b16 %v1649, %v1646
      %v1740 = vpack.c.b16 %v1650, %v1647
      %v1741 = vpack.c.b16 %v1651, %v1648
      %v1742 = vpack.c.b16 %v1655, %v1652
      %v1743 = vpack.c.b16 %v1656, %v1653
      %v1744 = vpack.c.b16 %v1657, %v1654
      %v1745 = vpack.c.b16 %v1661, %v1658
      %v1746 = vpack.c.b16 %v1662, %v1659
      %v1747 = vpack.c.b16 %v1663, %v1660
      %v1748 = vpack.c.b16 %v1667, %v1664
      %v1749 = vpack.c.b16 %v1668, %v1665
      %v1750 = vpack.c.b16 %v1669, %v1666
      %v1751 = vpack.c.b16 %v1673, %v1670
      %v1752 = vpack.c.b16 %v1674, %v1671
      %v1753 = vpack.c.b16 %v1675, %v1672
      %v1754 = vpack.c.b16 %v1679, %v1676
      %v1755 = vpack.c.b16 %v1680, %v1677
      %v1756 = vpack.c.b16 %v1681, %v1678
      %v1757 = vpack.c.b16 %v1685, %v1682
      %v1758 = vpack.c.b16 %v1686, %v1683
      %v1759 = vpack.c.b16 %v1687, %v1684
      %vm1829 = vcmask 998400
      %v1831 = vsel %vm1829, %v1445, 0
      %vm1833 = vcmask 1044480
      %v1835 = vsel %vm1833, %v1757, 0
      %v1838 = vsel %vm1833, %v1758, 0
      %v1841 = vsel %vm1833, %v1759, 0
      %1843 = vmatprep.subr.bf16.mxu0 %v1710
      %1844 = vmatpush1.bf16.msra.mxu0 %v1709
      %1845 = vmatprep.subr.bf16.mxu0 %v1707
      %1846 = vmatpush1.bf16.msra.mxu0 %v1706
      %1847 = vmatprep.subr.bf16.mxu0 %v1704
      %1848 = vmatpush1.bf16.msra.mxu0 %v1703
      %1849 = vmatprep.subr.bf16.mxu0 %v1701
      %1850 = vmatpush1.bf16.msra.mxu0 %v1700
      %1851 = vmatprep.subr.bf16.mxu0 %v1698
      %1852 = vmatpush1.bf16.msra.mxu0 %v1697
      %1853 = vmatprep.subr.bf16.mxu0 %v1695
      %1854 = vmatpush1.bf16.msra.mxu0 %v1694
      %1855 = vmatprep.subr.bf16.mxu0 %v1692
      %1856 = vmatpush1.bf16.msra.mxu0 %v1691
      %1857 = vmatprep.subr.bf16.mxu0 %v1689
      %1858 = vmatpush1.bf16.msra.mxu0 %v1688
      %1859 = vmatprep.subr.bf16.mxu0 %v1734
      %1860 = vmatpush2.bf16.msra.mxu0 %v1733
      %1861 = vmatprep.subr.bf16.mxu0 %v1731
      %1862 = vmatpush2.bf16.msra.mxu0 %v1730
      %1863 = vmatprep.subr.bf16.mxu0 %v1728
      %1864 = vmatpush2.bf16.msra.mxu0 %v1727
      %1865 = vmatprep.subr.bf16.mxu0 %v1725
      %1866 = vmatpush2.bf16.msra.mxu0 %v1724
      %1867 = vmatprep.subr.bf16.mxu0 %v1722
      %1868 = vmatpush2.bf16.msra.mxu0 %v1721
      %1869 = vmatprep.subr.bf16.mxu0 %v1719
      %1870 = vmatpush2.bf16.msra.mxu0 %v1718
      %1871 = vmatprep.subr.bf16.mxu0 %v1716
      %1872 = vmatpush2.bf16.msra.mxu0 %v1715
      %1873 = vmatprep.subr.bf16.mxu0 %v1713
      %1874 = vmatpush2.bf16.msra.mxu0 %v1712
      %1875 = vmatprep.mubr.bf16.mxu0 %v1444
      %1876 = vmatmul.mubr.bf16.gmra.mxu0 %v1443
      %v1877 = vpop.f32.mrf.mxu0
      %v1878 = vadd.f32 %v1426, %v1877
      %v1879 = vpop.f32.mrf.mxu0
      %v1880 = vadd.f32 %v1426, %v1879
      %v1881 = vpop.f32.mrf.mxu0
      %v1882 = vadd.f32 %v1431, %v1881
      %v1883 = vpop.f32.mrf.mxu0
      %v1884 = vadd.f32 %v1431, %v1883
      %1885 = vdwg.mxu0
      %1886 = vmatprep.subr.bf16.mxu0 %v1838
      %1887 = vmatpush1.bf16.msra.mxu0 %v1835
      %1888 = vmatprep.subr.bf16.mxu0 %v1755
      %1889 = vmatpush1.bf16.msra.mxu0 %v1754
      %1890 = vmatprep.subr.bf16.mxu0 %v1752
      %1891 = vmatpush1.bf16.msra.mxu0 %v1751
      %1892 = vmatprep.subr.bf16.mxu0 %v1749
      %1893 = vmatpush1.bf16.msra.mxu0 %v1748
      %1894 = vmatprep.subr.bf16.mxu0 %v1746
      %1895 = vmatpush1.bf16.msra.mxu0 %v1745
      %1896 = vmatprep.subr.bf16.mxu0 %v1743
      %1897 = vmatpush1.bf16.msra.mxu0 %v1742
      %1898 = vmatprep.subr.bf16.mxu0 %v1740
      %1899 = vmatpush1.bf16.msra.mxu0 %v1739
      %1900 = vmatprep.subr.bf16.mxu0 %v1737
      %1901 = vmatpush1.bf16.msra.mxu0 %v1736
      %1902 = vmatprep.subr.bf16.mxu0 0
      %1903 = vmatpush2.bf16.msra.mxu0 0
      %1904 = vmatprep.subr.bf16.mxu0 0
      %1905 = vmatpush2.bf16.msra.mxu0 0
      %1906 = vmatprep.subr.bf16.mxu0 0
      %1907 = vmatpush2.bf16.msra.mxu0 0
      %1908 = vmatprep.subr.bf16.mxu0 0
      %1909 = vmatpush2.bf16.msra.mxu0 0
      %1910 = vmatprep.subr.bf16.mxu0 0
      %1911 = vmatpush2.bf16.msra.mxu0 0
      %1912 = vmatprep.subr.bf16.mxu0 0
      %1913 = vmatpush2.bf16.msra.mxu0 0
      %1914 = vmatprep.subr.bf16.mxu0 0
      %1915 = vmatpush2.bf16.msra.mxu0 0
      %1916 = vmatprep.subr.bf16.mxu0 0
      %1917 = vmatpush2.bf16.msra.mxu0 0
      %1918 = vmatprep.mubr.bf16.mxu0 0
      %1919 = vmatmul.mubr.bf16.gmra.mxu0 %v1831
      %v1920 = vpop.f32.mrf.mxu0
      %v1921 = vadd.f32 %v1878, %v1920
      %v1922 = vpop.f32.mrf.mxu0
      %v1923 = vadd.f32 %v1880, %v1922
      %v1924 = vpop.f32.mrf.mxu0
      %v1925 = vadd.f32 %v1882, %v1924
      %v1926 = vpop.f32.mrf.mxu0
      %v1927 = vadd.f32 %v1884, %v1926
      %1928 = vdwg.mxu0
      %1929 = vmatprep.subr.bf16.mxu0 0
      %1930 = vmatpush1.bf16.msra.mxu0 %v1711
      %1931 = vmatprep.subr.bf16.mxu0 0
      %1932 = vmatpush1.bf16.msra.mxu0 %v1708
      %1933 = vmatprep.subr.bf16.mxu0 0
      %1934 = vmatpush1.bf16.msra.mxu0 %v1705
      %1935 = vmatprep.subr.bf16.mxu0 0
      %1936 = vmatpush1.bf16.msra.mxu0 %v1702
      %1937 = vmatprep.subr.bf16.mxu0 0
      %1938 = vmatpush1.bf16.msra.mxu0 %v1699
      %1939 = vmatprep.subr.bf16.mxu0 0
      %1940 = vmatpush1.bf16.msra.mxu0 %v1696
      %1941 = vmatprep.subr.bf16.mxu0 0
      %1942 = vmatpush1.bf16.msra.mxu0 %v1693
      %1943 = vmatprep.subr.bf16.mxu0 0
      %1944 = vmatpush1.bf16.msra.mxu0 %v1690
      %1945 = vmatprep.subr.bf16.mxu0 0
      %1946 = vmatpush2.bf16.msra.mxu0 %v1735
      %1947 = vmatprep.subr.bf16.mxu0 0
      %1948 = vmatpush2.bf16.msra.mxu0 %v1732
      %1949 = vmatprep.subr.bf16.mxu0 0
      %1950 = vmatpush2.bf16.msra.mxu0 %v1729
      %1951 = vmatprep.subr.bf16.mxu0 0
      %1952 = vmatpush2.bf16.msra.mxu0 %v1726
      %1953 = vmatprep.subr.bf16.mxu0 0
      %1954 = vmatpush2.bf16.msra.mxu0 %v1723
      %1955 = vmatprep.subr.bf16.mxu0 0
      %1956 = vmatpush2.bf16.msra.mxu0 %v1720
      %1957 = vmatprep.subr.bf16.mxu0 0
      %1958 = vmatpush2.bf16.msra.mxu0 %v1717
      %1959 = vmatprep.subr.bf16.mxu0 0
      %1960 = vmatpush2.bf16.msra.mxu0 %v1714
      %1961 = vmatprep.mubr.bf16.mxu0 %v1444
      %1962 = vmatmul.mubr.bf16.gmra.mxu0 %v1443
      %v1963 = vpop.f32.mrf.mxu0
      %v1964 = vadd.f32 %v1426, %v1963
      %v1965 = vpop.f32.mrf.mxu0
      %v1966 = vpop.f32.mrf.mxu0
      %v1967 = vadd.f32 %v1431, %v1966
      %v1968 = vpop.f32.mrf.mxu0
      %1969 = vdwg.mxu0
      %1970 = vmatprep.subr.bf16.mxu0 0
      %1971 = vmatpush1.bf16.msra.mxu0 %v1841
      %1972 = vmatprep.subr.bf16.mxu0 0
      %1973 = vmatpush1.bf16.msra.mxu0 %v1756
      %1974 = vmatprep.subr.bf16.mxu0 0
      %1975 = vmatpush1.bf16.msra.mxu0 %v1753
      %1976 = vmatprep.subr.bf16.mxu0 0
      %1977 = vmatpush1.bf16.msra.mxu0 %v1750
      %1978 = vmatprep.subr.bf16.mxu0 0
      %1979 = vmatpush1.bf16.msra.mxu0 %v1747
      %1980 = vmatprep.subr.bf16.mxu0 0
      %1981 = vmatpush1.bf16.msra.mxu0 %v1744
      %1982 = vmatprep.subr.bf16.mxu0 0
      %1983 = vmatpush1.bf16.msra.mxu0 %v1741
      %1984 = vmatprep.subr.bf16.mxu0 0
      %1985 = vmatpush1.bf16.msra.mxu0 %v1738
      %1986 = vmatprep.subr.bf16.mxu0 0
      %1987 = vmatpush2.bf16.msra.mxu0 0
      %1988 = vmatprep.subr.bf16.mxu0 0
      %1989 = vmatpush2.bf16.msra.mxu0 0
      %1990 = vmatprep.subr.bf16.mxu0 0
      %1991 = vmatpush2.bf16.msra.mxu0 0
      %1992 = vmatprep.subr.bf16.mxu0 0
      %1993 = vmatpush2.bf16.msra.mxu0 0
      %1994 = vmatprep.subr.bf16.mxu0 0
      %1995 = vmatpush2.bf16.msra.mxu0 0
      %1996 = vmatprep.subr.bf16.mxu0 0
      %1997 = vmatpush2.bf16.msra.mxu0 0
      %1998 = vmatprep.subr.bf16.mxu0 0
      %1999 = vmatpush2.bf16.msra.mxu0 0
      %2000 = vmatprep.subr.bf16.mxu0 0
      %2001 = vmatpush2.bf16.msra.mxu0 0
      %2002 = vmatprep.mubr.bf16.mxu0 0
      %2003 = vmatmul.mubr.bf16.gmra.mxu0 %v1831
      %v2004 = vpop.f32.mrf.mxu0
      %v2005 = vadd.f32 %v1964, %v2004
      %v2006 = vpop.f32.mrf.mxu0
      %v2007 = vpop.f32.mrf.mxu0
      %v2008 = vadd.f32 %v1967, %v2007
      %v2009 = vpop.f32.mrf.mxu0
      %2010 = vdwg.mxu0
      %vm2011 = vcmp.gt.f32.partialorder %v1921, 0.0
      %vm2012 = vcmp.gt.f32.partialorder %v1923, 0.0
      %vm2013 = vcmp.gt.f32.partialorder %v2005, 0.0
      %vm2014 = vcmp.gt.f32.partialorder %v1925, 0.0
      %vm2015 = vcmp.gt.f32.partialorder %v1927, 0.0
      %vm2016 = vcmp.gt.f32.partialorder %v2008, 0.0
      %v2017 = vmin.f32 %v1921, 0.0
      %v2018 = vmin.f32 %v1923, 0.0
      %v2019 = vmin.f32 %v2005, 0.0
      %v2020 = vmin.f32 %v1925, 0.0
      %v2021 = vmin.f32 %v1927, 0.0
      %v2022 = vmin.f32 %v2008, 0.0
      %v2023 = vmul.f32 %v2017, 1.442695
      %v2024 = vpow.pop %v2023
      %v2025 = vmul.f32 %v2018, 1.442695
      %v2026 = vpow.pop %v2025
      %v2027 = vmul.f32 %v2019, 1.442695
      %v2028 = vpow.pop %v2027
      %v2029 = vmul.f32 %v2020, 1.442695
      %v2030 = vpow.pop %v2029
      %v2031 = vmul.f32 %v2021, 1.442695
      %v2032 = vpow.pop %v2031
      %v2033 = vmul.f32 %v2022, 1.442695
      %v2034 = vpow.pop %v2033
      %v2035 = vsub.f32 %v2024, 1.0
      %v2036 = vsub.f32 %v2026, 1.0
      %v2037 = vsub.f32 %v2028, 1.0
      %v2038 = vsub.f32 %v2030, 1.0
      %v2039 = vsub.f32 %v2032, 1.0
      %v2040 = vsub.f32 %v2034, 1.0
      %v2041 = vsel %vm2011, %v1921, %v2035
      %v2042 = vsel %vm2012, %v1923, %v2036
      %v2043 = vsel %vm2013, %v2005, %v2037
      %v2044 = vsel %vm2014, %v1925, %v2038
      %v2045 = vsel %vm2015, %v1927, %v2039
      %v2046 = vsel %vm2016, %v2008, %v2040
      %2047 = vst [vmem:[%s325] sm:$0xff] %v2041
      %2048 = vst [vmem:[%s325 + $0x8] sm:$0xff] %v2042
      %vm2049 = vcmask 261120
      %2050 = vst.msk [vmem:[%s325 + $0x10] sm:$0xff] %vm2049, %v2043
      %2051 = vst [vmem:[%s325 + $0x18] sm:$0xff] %v2044
      %2052 = vst [vmem:[%s325 + $0x20] sm:$0xff] %v2045
      %2053 = vst.msk [vmem:[%s325 + $0x28] sm:$0xff] %vm2049, %v2046
      %p2054 = scmp.lt.s32.totalorder %s20, 1
      %s2055 = scalar_select %p2054, %s20, 1
      %p2056 = scmp.lt.s32.totalorder %s21, 0
      %s2057 = scalar_select %p2056, %s21, 0
      %s2058 = smul.addr %s2057, 6
      %s2059 = smul.addr %s2055, 6
      %s2060 = sadd.s32 %s2058, %s2059
      %s2061 = smul.addr %s2060, 8
      %s2062 = scalar_lea.vmem %s5, %s2061
      // Predicated region
      $region41: #{decoder_stage_forward.14} parent=39 // pred_check
        %p2063 = pneg %p174
      $region42: #{decoder_stage_forward.14} parent=39 // pred_check_branch
        %2065 = sbr.rel (%p2063) target = $region44
      $region43: #{decoder_stage_forward.14} parent=39 // pred_region
        _
      $region44: #{decoder_stage_forward.14} parent=39 // pred_fallthru
        _
    $region40: #{decoder_stage_forward.14} parent=5 // pred_fallthru
      _
    %p2066 = scmp.le.s32.totalorder 2, %s11
    // Predicated region
    $region45: #{decoder_stage_forward.14} parent=5 // pred_check
      %p2067 = pneg %p2066
    $region46: #{decoder_stage_forward.14} parent=5 // pred_check_branch
      %2069 = sbr.rel (%p2067) target = $region48
    $region47: #{decoder_stage_forward.14} parent=5 // pred_region
      %s2070 = ssub.s32 %s11, 2
      // Predicated region
      $region49: #{decoder_stage_forward.14} parent=47 // pred_check
        %p2071 = pneg %p180
      $region50: #{decoder_stage_forward.14} parent=47 // pred_check_branch
        %2073 = sbr.rel (%p2071) target = $region52
      $region51: #{decoder_stage_forward.14} parent=47 // pred_region
        %p2074 = scmp.lt.s32.totalorder %s22, 1
        %s2075 = scalar_select %p2074, %s22, 1
        %p2076 = scmp.lt.s32.totalorder %s23, 0
        %s2077 = scalar_select %p2076, %s23, 0
        %s2078 = smul.addr %s2077, 6
        %s2079 = smul.addr %s2075, 6
        %s2080 = sadd.s32 %s2078, %s2079
        %s2081 = smul.addr %s2080, 8
        %s2082 = scalar_lea.vmem %s5, %s2081
      $region52: #{decoder_stage_forward.14} parent=47 // pred_fallthru
        _
    $region48: #{decoder_stage_forward.14} parent=5 // pred_fallthru
      _
  $region6: #{decoder_stage_forward.14} parent=0 // loop_footer
    %s15 = sadd.s32 1, %s11
  $region7: #{decoder_stage_forward.14} parent=0 // loop_footer_branch
    %10 = sbr.rel target = $region3
  $region8: #{decoder_stage_forward.14} parent=0 // loop_exit
    _

// kernel: decoder_stage_forward.15
$region0: #{decoder_stage_forward.15}
  #allocation0 [shape = 'u32[]', space=smem, size = 0x4, offset = 0x4, fixed_abs, tag = 'smem constant byte address 0x4 - core index']
  #allocation1 [shape = 'u32[144,128]{1,0:T(1,128)}', space=vmem, size = 0x12000, scoped, tag = 'internal scratch']
  #allocation2 [shape = 'bf16[144,288]{1,0:T(8,128)(2,1)}', space=vmem, size = 0x1b000, scoped, tag = 'scratch operand']
  %s0 = inlined_call_operand.vmem [shape: bf16[2,1,16,326], index: 0, kind: input, shape index: {}]
  %s1 = inlined_call_operand.vmem [shape: bf16[2,144], index: 1, kind: input, shape index: {}]
  %s2 = inlined_call_operand.vmem [shape: f32[2,1], index: 2, kind: input, shape index: {}]
  %s3 = inlined_call_operand.vmem [shape: f32[2,1,2,288], index: 3, kind: output, shape index: {}]
  %s4 = sld [smem:[#allocation0]]
  $region45: #{decoder_stage_forward.15} parent=0
    _
  %s6 = ssub.s32 1, %s4
  %s7 = scalar_select 0, %s6, %s4
  loop: start=0, step=1, limit=4
  $region2: #{decoder_stage_forward.15} parent=0 // loop_pre_header
    _
  $region3: #{decoder_stage_forward.15} parent=0 // loop_header
    %s9 = sphi 0, %s13
    %p10 = scmp.ge.s32.totalorder %s9, 4
    %s16 = sphi 0, %s28
    %s17 = sphi 0, %s24
    %s18 = sphi 0, %s16
    %s19 = sphi 0, %s17
    %s20 = sphi 0, %s18
    %s21 = sphi 0, %s19
    %s33 = sphi 0, %s35
    %s36 = sphi 0, %s33
    %s37 = sphi 0, %s36
    %s53 = sphi 0, %s37
    %s57 = sphi 0, %s57
    %s59 = sphi 0, %s57
    %s60 = sphi 0, %s59
    %s74 = sphi 0, %s60
    %s78 = sphi 0, %s78
    %s80 = sphi 0, %s78
    %s81 = sphi 0, %s80
    %s95 = sphi 0, %s81
    %s103 = sphi 0, %s105
    %s106 = sphi 0, %s103
    %s107 = sphi 0, %s106
    %s123 = sphi 0, %s107
  $region4: #{decoder_stage_forward.15} parent=0 // loop_header_branch
    %12 = sbr.rel (%p10) target = $region8
  $region5: #{decoder_stage_forward.15} parent=0 // loop_body
    %s14 = ssub.s32 %s9, 1
    %s15 = ssub.s32 %s9, 2
    %s22 = sadd.s32 1, %s17
    %p23 = scmp.ge.s32.totalorder %s22, 1
    %s24 = scalar_select %p23, 0, %s22
    %s25 = sadd.s32 1, %s16
    %s26 = scalar_select %p23, %s25, %s16
    %p27 = scmp.ge.s32.totalorder %s26, 2
    %s28 = scalar_select %p27, 0, %s26
    %s29 = ssub.s32 %s16, %s28
    %s30 = ssub.s32 %s17, %s24
    %s31 = sor.u32 %s29, %s30
    %p32 = scmp.eq.s32.totalorder %s31, 0
    %s34 = sadd.s32 %s33, 1
    %s35 = scalar_select %p32, %s33, %s34
    %p38 = pneg %p32
    %p39 = scmp.eq.s32.totalorder %s9, 1
    %p40 = por %p38, %p39
    %p41 = scmp.ne.s32.totalorder %s33, %s36
    %p42 = scmp.eq.s32.totalorder %s9, 0
    %p43 = por %p41, %p42
    %p44 = scmp.ne.s32.totalorder %s33, %s36
    %p45 = scmp.eq.s32.totalorder %s14, 1
    %p46 = por %p44, %p45
    %p47 = scmp.ne.s32.totalorder %s36, %s37
    %p48 = scmp.eq.s32.totalorder %s14, 0
    %p49 = por %p47, %p48
    %p50 = scmp.ne.s32.totalorder %s36, %s37
    %p51 = scmp.eq.s32.totalorder %s15, 1
    %p52 = por %p50, %p51
    %p54 = scmp.ne.s32.totalorder %s37, %s53
    %p55 = scmp.eq.s32.totalorder %s15, 0
    %p56 = por %p54, %p55
    %s58 = sadd.s32 %s57, 1
    %p61 = scmp.eq.s32.totalorder %s9, 1
    %p62 = scmp.ne.s32.totalorder %s57, %s59
    %p63 = scmp.eq.s32.totalorder %s9, 0
    %p64 = por %p62, %p63
    %p65 = scmp.ne.s32.totalorder %s57, %s59
    %p66 = scmp.eq.s32.totalorder %s14, 1
    %p67 = por %p65, %p66
    %p68 = scmp.ne.s32.totalorder %s59, %s60
    %p69 = scmp.eq.s32.totalorder %s14, 0
    %p70 = por %p68, %p69
    %p71 = scmp.ne.s32.totalorder %s59, %s60
    %p72 = scmp.eq.s32.totalorder %s15, 1
    %p73 = por %p71, %p72
    %p75 = scmp.ne.s32.totalorder %s60, %s74
    %p76 = scmp.eq.s32.totalorder %s15, 0
    %p77 = por %p75, %p76
    %s79 = sadd.s32 %s78, 1
    %p82 = scmp.eq.s32.totalorder %s9, 1
    %p83 = scmp.ne.s32.totalorder %s78, %s80
    %p84 = scmp.eq.s32.totalorder %s9, 0
    %p85 = por %p83, %p84
    %p86 = scmp.ne.s32.totalorder %s78, %s80
    %p87 = scmp.eq.s32.totalorder %s14, 1
    %p88 = por %p86, %p87
    %p89 = scmp.ne.s32.totalorder %s80, %s81
    %p90 = scmp.eq.s32.totalorder %s14, 0
    %p91 = por %p89, %p90
    %p92 = scmp.ne.s32.totalorder %s80, %s81
    %p93 = scmp.eq.s32.totalorder %s15, 1
    %p94 = por %p92, %p93
    %p96 = scmp.ne.s32.totalorder %s81, %s95
    %p97 = scmp.eq.s32.totalorder %s15, 0
    %p98 = por %p96, %p97
    %s99 = ssub.s32 %s16, %s28
    %s100 = ssub.s32 %s17, %s24
    %s101 = sor.u32 %s99, %s100
    %p102 = scmp.eq.s32.totalorder %s101, 0
    %s104 = sadd.s32 %s103, 1
    %s105 = scalar_select %p102, %s103, %s104
    %p108 = pneg %p102
    %p109 = scmp.eq.s32.totalorder %s9, 1
    %p110 = por %p108, %p109
    %p111 = scmp.ne.s32.totalorder %s103, %s106
    %p112 = scmp.eq.s32.totalorder %s9, 0
    %p113 = por %p111, %p112
    %p114 = scmp.ne.s32.totalorder %s103, %s106
    %p115 = scmp.eq.s32.totalorder %s14, 1
    %p116 = por %p114, %p115
    %p117 = scmp.ne.s32.totalorder %s106, %s107
    %p118 = scmp.eq.s32.totalorder %s14, 0
    %p119 = por %p117, %p118
    %p120 = scmp.ne.s32.totalorder %s106, %s107
    %p121 = scmp.eq.s32.totalorder %s15, 1
    %p122 = por %p120, %p121
    %p124 = scmp.ne.s32.totalorder %s107, %s123
    %p125 = scmp.eq.s32.totalorder %s15, 0
    %p126 = por %p124, %p125
    %p127 = scmp.le.s32.totalorder 1, %s9
    %p128 = scmp.lt.s32.totalorder %s9, 3
    %p129 = pnand %p127, %p128
    %p130 = pneg %p129
    // Predicated region
    $region9: #{decoder_stage_forward.15} parent=5 // pred_check
      _
    $region10: #{decoder_stage_forward.15} parent=5 // pred_check_branch
      %132 = sbr.rel (%p129) target = $region12
    $region11: #{decoder_stage_forward.15} parent=5 // pred_region
      %s133 = ssub.s32 %s9, 1
      // Predicated region
      $region13: #{decoder_stage_forward.15} parent=11 // pred_check
        %p134 = pneg %p70
      $region14: #{decoder_stage_forward.15} parent=11 // pred_check_branch
        %136 = sbr.rel (%p134) target = $region16
      $region15: #{decoder_stage_forward.15} parent=11 // pred_region
        _
      $region16: #{decoder_stage_forward.15} parent=11 // pred_fallthru
        _
      // Predicated region
      $region17: #{decoder_stage_forward.15} parent=11 // pred_check
        %p137 = pneg %p91
      $region18: #{decoder_stage_forward.15} parent=11 // pred_check_branch
        %139 = sbr.rel (%p137) target = $region20
      $region19: #{decoder_stage_forward.15} parent=11 // pred_region
        _
      $region20: #{decoder_stage_forward.15} parent=11 // pred_fallthru
        _
    $region12: #{decoder_stage_forward.15} parent=5 // pred_fallthru
      _
    %p140 = scmp.lt.s32.totalorder %s9, 2
    // Predicated region
    $region21: #{decoder_stage_forward.15} parent=5 // pred_check
      %p141 = pneg %p140
    $region22: #{decoder_stage_forward.15} parent=5 // pred_check_branch
      %143 = sbr.rel (%p141) target = $region24
    $region23: #{decoder_stage_forward.15} parent=5 // pred_region
      // Predicated region
      $region25: #{decoder_stage_forward.15} parent=23 // pred_check
        %p144 = pneg %p43
      $region26: #{decoder_stage_forward.15} parent=23 // pred_check_branch
        %146 = sbr.rel (%p144) target = $region28
      $region27: #{decoder_stage_forward.15} parent=23 // pred_region
        %p147 = scmp.lt.s32.totalorder %s16, 1
        %s148 = scalar_select %p147, %s16, 1
        %p149 = scmp.lt.s32.totalorder %s17, 0
        %s150 = scalar_select %p149, %s17, 0
        %s151 = smul.addr %s150, 6
        %s152 = smul.addr %s148, 6
        %s153 = sadd.s32 %s151, %s152
        %s154 = smul.addr %s153, 4
        %s155 = scalar_lea.vmem %s0, %s154
      $region28: #{decoder_stage_forward.15} parent=23 // pred_fallthru
        _
    $region24: #{decoder_stage_forward.15} parent=5 // pred_fallthru
      _
    %p156 = scmp.le.s32.totalorder 1, %s9
    %p157 = scmp.lt.s32.totalorder %s9, 3
    %p158 = pnand %p156, %p157
    %p159 = pneg %p158
    // Predicated region
    $region29: #{decoder_stage_forward.15} parent=5 // pred_check
      _
    $region30: #{decoder_stage_forward.15} parent=5 // pred_check_branch
      %161 = sbr.rel (%p158) target = $region32
    $region31: #{decoder_stage_forward.15} parent=5 // pred_region
      %s162 = ssub.s32 %s9, 1
      %p163 = scmp.lt.s32.totalorder %s18, 1
      %s164 = scalar_select %p163, %s18, 1
      %p165 = scmp.lt.s32.totalorder %s19, 0
      %s166 = scalar_select %p165, %s19, 0
      %s167 = smul.addr %s166, 6
      %s168 = smul.addr %s164, 6
      %s169 = sadd.s32 %s167, %s168
      %s170 = smul.addr %s169, 4
      %s171 = scalar_lea.vmem %s0, %s170
      %p172 = pneg %p49
      %p173 = pneg %p46
      %p174 = pneg %p70
      %p175 = pneg %p67
      %p176 = pneg %p91
      %p177 = pneg %p88
      %p178 = pneg %p119
      %p179 = pneg %p116
      %p180 = scmp.lt.s32.totalorder %s18, 1
      %s181 = scalar_select %p180, %s18, 1
      %p182 = scmp.lt.s32.totalorder %s19, 0
      %s183 = scalar_select %p182, %s19, 0
      %s184 = smul.addr %s183, 3
      %s185 = smul.addr %s181, 3
      %s186 = sadd.s32 %s184, %s185
      %s187 = smul.addr %s186, 2
      %s188 = scalar_lea.vmem %s3, %s187
      %p189 = scmp.lt.s32.totalorder %s18, 1
      %s190 = scalar_select %p189, %s18, 1
      %p191 = scmp.lt.s32.totalorder %s19, 0
      %s192 = scalar_select %p191, %s19, 0
      %s193 = smul.addr %s192, 6
      %s194 = smul.addr %s190, 6
      %s195 = sadd.s32 %s193, %s194
      %s196 = smul.addr %s195, 4
      %s197 = scalar_lea.vmem %s0, %s196
      %p198 = scmp.lt.s32.totalorder %s18, 1
      %s199 = scalar_select %p198, %s18, 1
      %p200 = scmp.lt.s32.totalorder %s19, 0
      %s201 = scalar_select %p200, %s19, 0
      %s202 = smul.addr %s201, 3
      %s203 = smul.addr %s199, 3
      %s204 = sadd.s32 %s202, %s203
      %s205 = smul.addr %s204, 2
      %s206 = scalar_lea.vmem %s3, %s205
      %v208 = vld [vmem:[%s197] sm:$0xff]
      %v209 = vld [vmem:[%s197 + $0x8] sm:$0xf]
      %v210 = vld [vmem:[%s197 + $0xc] sm:$0xff]
      %v211 = vld [vmem:[%s197 + $0x14] sm:$0xf]
      %212 = vst [vmem:[#allocation2] sm:$0xff] %v208
      %vm213 = vcmask 257024
      %214 = vst.msk [vmem:[#allocation2 + $0x8] sm:$0xf] %vm213, %v209
      %215 = vst [vmem:[#allocation2 + $0xc] sm:$0xff] %v210
      %216 = vst.msk [vmem:[#allocation2 + $0x14] sm:$0xf] %vm213, %v211
      %v217 = vld [vmem:[%s197] sm:$0xff]
      %v218 = vld [vmem:[%s197 + $0x8] sm:$0xf]
      %v219 = vld [vmem:[%s197 + $0xc] sm:$0xff]
      %v220 = vld [vmem:[%s197 + $0x14] sm:$0xf]
      %225 = vrot.lane.b32.xlu0 %v217, 127
      %v226 = vpop.permute.xlu0 %225
      %227 = vrot.lane.b32.xlu0 %v218, 127
      %v228 = vpop.permute.xlu0 %227
      %229 = vrot.lane.b32.xlu0 %v219, 127
      %v230 = vpop.permute.xlu0 %229
      %231 = vrot.lane.b32.xlu0 %v220, 127
      %v232 = vpop.permute.xlu0 %231
      %v233 = vrot.slane %v226, 4
      %v234 = vrot.slane %v228, 4
      %v235 = vrot.slane %v230, 4
      %v236 = vrot.slane %v232, 4
      %vm237 = vcmask 1043456
      %v238 = vsel %vm237, %v233, %v234
      %vm239 = vcmask 1039360
      %v240 = vsel %vm239, %v226, %v238
      %v241 = vsel %vm237, %v235, %v236
      %v242 = vsel %vm239, %v230, %v241
      %247 = vst [vmem:[#allocation2 + $0x18] sm:$0xff] %v240
      %248 = vst.msk [vmem:[#allocation2 + $0x20] sm:$0xf] %vm213, %v228
      %249 = vst [vmem:[#allocation2 + $0x24] sm:$0xff] %v242
      %250 = vst.msk [vmem:[#allocation2 + $0x2c] sm:$0xf] %vm213, %v232
      %v251 = vld [vmem:[%s197] sm:$0xff]
      %v252 = vld [vmem:[%s197 + $0x8] sm:$0xf]
      %v253 = vld [vmem:[%s197 + $0xc] sm:$0xff]
      %v254 = vld [vmem:[%s197 + $0x14] sm:$0xf]
      %259 = vrot.lane.b32.xlu0 %v251, 126
      %v260 = vpop.permute.xlu0 %259
      %261 = vrot.lane.b32.xlu0 %v252, 126
      %v262 = vpop.permute.xlu0 %261
      %263 = vrot.lane.b32.xlu0 %v253, 126
      %v264 = vpop.permute.xlu0 %263
      %265 = vrot.lane.b32.xlu0 %v254, 126
      %v266 = vpop.permute.xlu0 %265
      %v267 = vrot.slane %v260, 4
      %v268 = vrot.slane %v262, 4
      %v269 = vrot.slane %v264, 4
      %v270 = vrot.slane %v266, 4
      %v271 = vsel %vm237, %v267, %v268
      %vm272 = vcmask 1031168
      %v273 = vsel %vm272, %v260, %v271
      %v274 = vsel %vm237, %v269, %v270
      %v275 = vsel %vm272, %v264, %v274
      %280 = vst [vmem:[#allocation2 + $0x30] sm:$0xff] %v273
      %281 = vst.msk [vmem:[#allocation2 + $0x38] sm:$0xf] %vm213, %v262
      %282 = vst [vmem:[#allocation2 + $0x3c] sm:$0xff] %v275
      %283 = vst.msk [vmem:[#allocation2 + $0x44] sm:$0xf] %vm213, %v266
      %v284 = vld [vmem:[%s197] sm:$0xff]
      %v285 = vld [vmem:[%s197 + $0x8] sm:$0xf]
      %v286 = vld [vmem:[%s197 + $0xc] sm:$0xff]
      %v287 = vld [vmem:[%s197 + $0x14] sm:$0xf]
      %292 = vrot.lane.b32.xlu0 %v284, 110
      %v293 = vpop.permute.xlu0 %292
      %294 = vrot.lane.b32.xlu0 %v285, 110
      %v295 = vpop.permute.xlu0 %294
      %296 = vrot.lane.b32.xlu0 %v286, 110
      %v297 = vpop.permute.xlu0 %296
      %298 = vrot.lane.b32.xlu0 %v287, 110
      %v299 = vpop.permute.xlu0 %298
      %v300 = vrot.slane %v293, 4
      %v301 = vrot.slane %v295, 4
      %v302 = vrot.slane %v297, 4
      %v303 = vrot.slane %v299, 4
      %v304 = vsel %vm237, %v300, %v301
      %vm305 = vcmask 900096
      %v306 = vsel %vm305, %v293, %v304
      %v307 = vsel %vm237, %v302, %v303
      %v308 = vsel %vm305, %v297, %v307
      %313 = vst [vmem:[#allocation2 + $0x48] sm:$0xff] %v306
      %314 = vst.msk [vmem:[#allocation2 + $0x50] sm:$0xf] %vm213, %v295
      %315 = vst [vmem:[#allocation2 + $0x54] sm:$0xff] %v308
      %316 = vst.msk [vmem:[#allocation2 + $0x5c] sm:$0xf] %vm213, %v299
      %v317 = vld [vmem:[%s197] sm:$0xff]
      %v318 = vld [vmem:[%s197 + $0x8] sm:$0xf]
      %v319 = vld [vmem:[%s197 + $0xc] sm:$0xff]
      %v320 = vld [vmem:[%s197 + $0x14] sm:$0xf]
      %325 = vrot.lane.b32.xlu0 %v317, 109
      %v326 = vpop.permute.xlu0 %325
      %327 = vrot.lane.b32.xlu0 %v318, 109
      %v328 = vpop.permute.xlu0 %327
      %329 = vrot.lane.b32.xlu0 %v319, 109
      %v330 = vpop.permute.xlu0 %329
      %331 = vrot.lane.b32.xlu0 %v320, 109
      %v332 = vpop.permute.xlu0 %331
      %v333 = vrot.slane %v326, 4
      %v334 = vrot.slane %v328, 4
      %v335 = vrot.slane %v330, 4
      %v336 = vrot.slane %v332, 4
      %v337 = vsel %vm237, %v333, %v334
      %vm338 = vcmask 891904
      %v339 = vsel %vm338, %v326, %v337
      %v340 = vsel %vm237, %v335, %v336
      %v341 = vsel %vm338, %v330, %v340
      %346 = vst [vmem:[#allocation2 + $0x60] sm:$0xff] %v339
      %347 = vst.msk [vmem:[#allocation2 + $0x68] sm:$0xf] %vm213, %v328
      %348 = vst [vmem:[#allocation2 + $0x6c] sm:$0xff] %v341
      %349 = vst.msk [vmem:[#allocation2 + $0x74] sm:$0xf] %vm213, %v332
      %v350 = vld [vmem:[%s197] sm:$0xff]
      %v351 = vld [vmem:[%s197 + $0x8] sm:$0xf]
      %v352 = vld [vmem:[%s197 + $0xc] sm:$0xff]
      %v353 = vld [vmem:[%s197 + $0x14] sm:$0xf]
      %358 = vrot.lane.b32.xlu0 %v350, 108
      %v359 = vpop.permute.xlu0 %358
      %360 = vrot.lane.b32.xlu0 %v351, 108
      %v361 = vpop.permute.xlu0 %360
      %362 = vrot.lane.b32.xlu0 %v352, 108
      %v363 = vpop.permute.xlu0 %362
      %364 = vrot.lane.b32.xlu0 %v353, 108
      %v365 = vpop.permute.xlu0 %364
      %v366 = vrot.slane %v359, 4
      %v367 = vrot.slane %v361, 4
      %v368 = vrot.slane %v363, 4
      %v369 = vrot.slane %v365, 4
      %v370 = vsel %vm237, %v366, %v367
      %vm371 = vcmask 883712
      %v372 = vsel %vm371, %v359, %v370
      %v373 = vsel %vm237, %v368, %v369
      %v374 = vsel %vm371, %v363, %v373
      %379 = vst [vmem:[#allocation2 + $0x78] sm:$0xff] %v372
      %380 = vst.msk [vmem:[#allocation2 + $0x80] sm:$0xf] %vm213, %v361
      %381 = vst [vmem:[#allocation2 + $0x84] sm:$0xff] %v374
      %382 = vst.msk [vmem:[#allocation2 + $0x8c] sm:$0xf] %vm213, %v365
      %v383 = vld [vmem:[%s197] sm:$0xff]
      %v384 = vld [vmem:[%s197 + $0x8] sm:$0xf]
      %v385 = vld [vmem:[%s197 + $0xc] sm:$0xff]
      %v386 = vld [vmem:[%s197 + $0x14] sm:$0xf]
      %391 = vrot.lane.b32.xlu0 %v383, 92
      %v392 = vpop.permute.xlu0 %391
      %393 = vrot.lane.b32.xlu0 %v384, 92
      %v394 = vpop.permute.xlu0 %393
      %395 = vrot.lane.b32.xlu0 %v385, 92
      %v396 = vpop.permute.xlu0 %395
      %397 = vrot.lane.b32.xlu0 %v386, 92
      %v398 = vpop.permute.xlu0 %397
      %v399 = vrot.slane %v392, 4
      %v400 = vrot.slane %v394, 4
      %v401 = vrot.slane %v396, 4
      %v402 = vrot.slane %v398, 4
      %v403 = vsel %vm237, %v399, %v400
      %vm404 = vcmask 752640
      %v405 = vsel %vm404, %v392, %v403
      %v406 = vsel %vm237, %v401, %v402
      %v407 = vsel %vm404, %v396, %v406
      %412 = vst [vmem:[#allocation2 + $0x90] sm:$0xff] %v405
      %413 = vst.msk [vmem:[#allocation2 + $0x98] sm:$0xf] %vm213, %v394
      %414 = vst [vmem:[#allocation2 + $0x9c] sm:$0xff] %v407
      %415 = vst.msk [vmem:[#allocation2 + $0xa4] sm:$0xf] %vm213, %v398
      %v416 = vld [vmem:[%s197] sm:$0xff]
      %v417 = vld [vmem:[%s197 + $0x8] sm:$0xf]
      %v418 = vld [vmem:[%s197 + $0xc] sm:$0xff]
      %v419 = vld [vmem:[%s197 + $0x14] sm:$0xf]
      %424 = vrot.lane.b32.xlu0 %v416, 91
      %v425 = vpop.permute.xlu0 %424
      %426 = vrot.lane.b32.xlu0 %v417, 91
      %v427 = vpop.permute.xlu0 %426
      %428 = vrot.lane.b32.xlu0 %v418, 91
      %v429 = vpop.permute.xlu0 %428
      %430 = vrot.lane.b32.xlu0 %v419, 91
      %v431 = vpop.permute.xlu0 %430
      %v432 = vrot.slane %v425, 4
      %v433 = vrot.slane %v427, 4
      %v434 = vrot.slane %v429, 4
      %v435 = vrot.slane %v431, 4
      %v436 = vsel %vm237, %v432, %v433
      %vm437 = vcmask 744448
      %v438 = vsel %vm437, %v425, %v436
      %v439 = vsel %vm237, %v434, %v435
      %v440 = vsel %vm437, %v429, %v439
      %445 = vst [vmem:[#allocation2 + $0xa8] sm:$0xff] %v438
      %446 = vst.msk [vmem:[#allocation2 + $0xb0] sm:$0xf] %vm213, %v427
      %447 = vst [vmem:[#allocation2 + $0xb4] sm:$0xff] %v440
      %448 = vst.msk [vmem:[#allocation2 + $0xbc] sm:$0xf] %vm213, %v431
      %v449 = vld [vmem:[%s197] sm:$0xff]
      %v450 = vld [vmem:[%s197 + $0x8] sm:$0xf]
      %v451 = vld [vmem:[%s197 + $0xc] sm:$0xff]
      %v452 = vld [vmem:[%s197 + $0x14] sm:$0xf]
      %457 = vrot.lane.b32.xlu0 %v449, 90
      %v458 = vpop.permute.xlu0 %457
      %459 = vrot.lane.b32.xlu0 %v450, 90
      %v460 = vpop.permute.xlu0 %459
      %461 = vrot.lane.b32.xlu0 %v451, 90
      %v462 = vpop.permute.xlu0 %461
      %463 = vrot.lane.b32.xlu0 %v452, 90
      %v464 = vpop.permute.xlu0 %463
      %v465 = vrot.slane %v458, 4
      %v466 = vrot.slane %v460, 4
      %v467 = vrot.slane %v462, 4
      %v468 = vrot.slane %v464, 4
      %v469 = vsel %vm237, %v465, %v466
      %vm470 = vcmask 736256
      %v471 = vsel %vm470, %v458, %v469
      %v472 = vsel %vm237, %v467, %v468
      %v473 = vsel %vm470, %v462, %v472
      %478 = vst [vmem:[#allocation2 + $0xc0] sm:$0xff] %v471
      %479 = vst.msk [vmem:[#allocation2 + $0xc8] sm:$0xf] %vm213, %v460
      %480 = vst [vmem:[#allocation2 + $0xcc] sm:$0xff] %v473
      %481 = vst.msk [vmem:[#allocation2 + $0xd4] sm:$0xf] %vm213, %v464
      %v482 = vld [vmem:[%s1] sm:$0x3]
      %v483 = vld [vmem:[#allocation2] sm:$0xff]
      %v484 = vld [vmem:[#allocation2 + $0x8] sm:$0xf]
      %v485 = vld [vmem:[#allocation2 + $0xc] sm:$0xff]
      %v486 = vld [vmem:[#allocation2 + $0x14] sm:$0xf]
      %v487 = vld [vmem:[#allocation2 + $0x18] sm:$0xff]
      %v488 = vld [vmem:[#allocation2 + $0x20] sm:$0xf]
      %v489 = vld [vmem:[#allocation2 + $0x24] sm:$0xff]
      %v490 = vld [vmem:[#allocation2 + $0x2c] sm:$0xf]
      %v491 = vld [vmem:[#allocation2 + $0x30] sm:$0xff]
      %v492 = vld [vmem:[#allocation2 + $0x38] sm:$0xf]
      %v493 = vld [vmem:[#allocation2 + $0x3c] sm:$0xff]
      %v494 = vld [vmem:[#allocation2 + $0x44] sm:$0xf]
      %v495 = vld [vmem:[#allocation2 + $0x48] sm:$0xff]
      %v496 = vld [vmem:[#allocation2 + $0x50] sm:$0xf]
      %v497 = vld [vmem:[#allocation2 + $0x54] sm:$0xff]
      %v498 = vld [vmem:[#allocation2 + $0x5c] sm:$0xf]
      %v499 = vld [vmem:[#allocation2 + $0x60] sm:$0xff]
      %v500 = vld [vmem:[#allocation2 + $0x68] sm:$0xf]
      %v501 = vld [vmem:[#allocation2 + $0x6c] sm:$0xff]
      %v502 = vld [vmem:[#allocation2 + $0x74] sm:$0xf]
      %v503 = vld [vmem:[#allocation2 + $0x78] sm:$0xff]
      %v504 = vld [vmem:[#allocation2 + $0x80] sm:$0xf]
      %v505 = vld [vmem:[#allocation2 + $0x84] sm:$0xff]
      %v506 = vld [vmem:[#allocation2 + $0x8c] sm:$0xf]
      %v507 = vld [vmem:[#allocation2 + $0x90] sm:$0xff]
      %v508 = vld [vmem:[#allocation2 + $0x98] sm:$0xf]
      %v509 = vld [vmem:[#allocation2 + $0x9c] sm:$0xff]
      %v510 = vld [vmem:[#allocation2 + $0xa4] sm:$0xf]
      %v511 = vld [vmem:[#allocation2 + $0xa8] sm:$0xff]
      %v512 = vld [vmem:[#allocation2 + $0xb0] sm:$0xf]
      %v513 = vld [vmem:[#allocation2 + $0xb4] sm:$0xff]
      %v514 = vld [vmem:[#allocation2 + $0xbc] sm:$0xf]
      %v515 = vld [vmem:[#allocation2 + $0xc0] sm:$0xff]
      %v516 = vld [vmem:[#allocation2 + $0xc8] sm:$0xf]
      %v517 = vld [vmem:[#allocation2 + $0xcc] sm:$0xff]
      %v518 = vld [vmem:[#allocation2 + $0xd4] sm:$0xf]
      %v519 = vld [vmem:[%s2] sm:$0x3]
      %521 = vset.pattern.permute.xlu0 0
      %522 = vperm.xlu0 %521, %v519
      %v523 = vpop.permute.xlu0 %522
      %v527 = vunpack.c.l.s4 1966171168
      %v528 = vunpack.c.0.s8 %v527
      %v529 = vlaneseq
      %v530 = vshrl.u32 %v529, 7
      %v531 = vsub.s32 %v528, %v530
      %v532 = vrot.slane %v482, %v531
      %v533 = vcombine.high %v532, %v532
      %v535 = vunpack.c.l.s4 1966171168
      %v536 = vunpack.c.0.s8 %v535
      %v537 = vlaneseq
      %v538 = vshrl.u32 %v537, 7
      %v539 = vsub.s32 %v536, %v538
      %v540 = vrot.slane %v532, %v539
      %v542 = vunpack.c.l.s4 1966171168
      %v543 = vunpack.c.0.s8 %v542
      %v544 = vlaneseq
      %v545 = vshrl.u32 %v544, 7
      %v546 = vsub.s32 %v543, %v545
      %v547 = vrot.slane %v533, %v546
      %v585 = vunpack.c.l.b16 %v483
      %v586 = vunpack.c.h.b16 %v483
      %v587 = vunpack.c.l.b16 %v484
      %v588 = vunpack.c.l.b16 %v485
      %v589 = vunpack.c.h.b16 %v485
      %v590 = vunpack.c.l.b16 %v486
      %v591 = vunpack.c.l.b16 %v487
      %v592 = vunpack.c.h.b16 %v487
      %v593 = vunpack.c.l.b16 %v488
      %v594 = vunpack.c.l.b16 %v489
      %v595 = vunpack.c.h.b16 %v489
      %v596 = vunpack.c.l.b16 %v490
      %v597 = vunpack.c.l.b16 %v491
      %v598 = vunpack.c.h.b16 %v491
      %v599 = vunpack.c.l.b16 %v492
      %v600 = vunpack.c.l.b16 %v493
      %v601 = vunpack.c.h.b16 %v493
      %v602 = vunpack.c.l.b16 %v494
      %v603 = vunpack.c.l.b16 %v495
      %v604 = vunpack.c.h.b16 %v495
      %v605 = vunpack.c.l.b16 %v496
      %v606 = vunpack.c.l.b16 %v497
      %v607 = vunpack.c.h.b16 %v497
      %v608 = vunpack.c.l.b16 %v498
      %v609 = vunpack.c.l.b16 %v499
      %v610 = vunpack.c.h.b16 %v499
      %v611 = vunpack.c.l.b16 %v500
      %v612 = vunpack.c.l.b16 %v501
      %v613 = vunpack.c.h.b16 %v501
      %v614 = vunpack.c.l.b16 %v502
      %v615 = vunpack.c.l.b16 %v503
      %v616 = vunpack.c.h.b16 %v503
      %v617 = vunpack.c.l.b16 %v504
      %v618 = vunpack.c.l.b16 %v505
      %v619 = vunpack.c.h.b16 %v505
      %v620 = vunpack.c.l.b16 %v506
      %v621 = vunpack.c.l.b16 %v507
      %v622 = vunpack.c.h.b16 %v507
      %v623 = vunpack.c.l.b16 %v508
      %v624 = vunpack.c.l.b16 %v509
      %v625 = vunpack.c.h.b16 %v509
      %v626 = vunpack.c.l.b16 %v510
      %v627 = vunpack.c.l.b16 %v511
      %v628 = vunpack.c.h.b16 %v511
      %v629 = vunpack.c.l.b16 %v512
      %v630 = vunpack.c.l.b16 %v513
      %v631 = vunpack.c.h.b16 %v513
      %v632 = vunpack.c.l.b16 %v514
      %v633 = vunpack.c.l.b16 %v515
      %v634 = vunpack.c.h.b16 %v515
      %v635 = vunpack.c.l.b16 %v516
      %v636 = vunpack.c.l.b16 %v517
      %v637 = vunpack.c.h.b16 %v517
      %v638 = vunpack.c.l.b16 %v518
      %v639 = vpack.c.b16 %v588, %v585
      %v640 = vpack.c.b16 %v589, %v586
      %v641 = vpack.c.b16 %v590, %v587
      %v642 = vpack.c.b16 %v594, %v591
      %v643 = vpack.c.b16 %v595, %v592
      %v644 = vpack.c.b16 %v596, %v593
      %v645 = vpack.c.b16 %v600, %v597
      %v646 = vpack.c.b16 %v601, %v598
      %v647 = vpack.c.b16 %v602, %v599
      %v648 = vpack.c.b16 %v606, %v603
      %v649 = vpack.c.b16 %v607, %v604
      %v650 = vpack.c.b16 %v608, %v605
      %v651 = vpack.c.b16 %v612, %v609
      %v652 = vpack.c.b16 %v613, %v610
      %v653 = vpack.c.b16 %v614, %v611
      %v654 = vpack.c.b16 %v618, %v615
      %v655 = vpack.c.b16 %v619, %v616
      %v656 = vpack.c.b16 %v620, %v617
      %v657 = vpack.c.b16 %v624, %v621
      %v658 = vpack.c.b16 %v625, %v622
      %v659 = vpack.c.b16 %v626, %v623
      %v660 = vpack.c.b16 %v630, %v627
      %v661 = vpack.c.b16 %v631, %v628
      %v662 = vpack.c.b16 %v632, %v629
      %v663 = vpack.c.b16 %v636, %v633
      %v664 = vpack.c.b16 %v637, %v634
      %v665 = vpack.c.b16 %v638, %v635
      %vm693 = vcmask 130048
      %v695 = vsel %vm693, %v547, 0
      %697 = vmatprep.subr.bf16.mxu0 %v661
      %698 = vmatpush1.bf16.msra.mxu0 %v660
      %699 = vmatprep.subr.bf16.mxu0 %v658
      %700 = vmatpush1.bf16.msra.mxu0 %v657
      %701 = vmatprep.subr.bf16.mxu0 %v655
      %702 = vmatpush1.bf16.msra.mxu0 %v654
      %703 = vmatprep.subr.bf16.mxu0 %v652
      %704 = vmatpush1.bf16.msra.mxu0 %v651
      %705 = vmatprep.subr.bf16.mxu0 %v649
      %706 = vmatpush1.bf16.msra.mxu0 %v648
      %707 = vmatprep.subr.bf16.mxu0 %v646
      %708 = vmatpush1.bf16.msra.mxu0 %v645
      %709 = vmatprep.subr.bf16.mxu0 %v643
      %710 = vmatpush1.bf16.msra.mxu0 %v642
      %711 = vmatprep.subr.bf16.mxu0 %v640
      %712 = vmatpush1.bf16.msra.mxu0 %v639
      %713 = vmatprep.subr.bf16.mxu0 0
      %714 = vmatpush2.bf16.msra.mxu0 0
      %715 = vmatprep.subr.bf16.mxu0 0
      %716 = vmatpush2.bf16.msra.mxu0 0
      %717 = vmatprep.subr.bf16.mxu0 0
      %718 = vmatpush2.bf16.msra.mxu0 0
      %719 = vmatprep.subr.bf16.mxu0 0
      %720 = vmatpush2.bf16.msra.mxu0 0
      %721 = vmatprep.subr.bf16.mxu0 0
      %722 = vmatpush2.bf16.msra.mxu0 0
      %723 = vmatprep.subr.bf16.mxu0 0
      %724 = vmatpush2.bf16.msra.mxu0 0
      %725 = vmatprep.subr.bf16.mxu0 0
      %726 = vmatpush2.bf16.msra.mxu0 0
      %727 = vmatprep.subr.bf16.mxu0 %v664
      %728 = vmatpush2.bf16.msra.mxu0 %v663
      %729 = vmatprep.mubr.bf16.mxu0 %v695
      %730 = vmatmul.mubr.bf16.gmra.mxu0 %v540
      %v731 = vpop.f32.mrf.mxu0
      %v732 = vadd.f32 %v523, %v731
      %v733 = vpop.f32.mrf.mxu0
      %v734 = vadd.f32 %v523, %v733
      %v735 = vpop.f32.mrf.mxu0
      %v736 = vpop.f32.mrf.mxu0
      %737 = vdwg.mxu0
      %738 = vmatprep.subr.bf16.mxu0 0
      %739 = vmatpush1.bf16.msra.mxu0 %v662
      %740 = vmatprep.subr.bf16.mxu0 0
      %741 = vmatpush1.bf16.msra.mxu0 %v659
      %742 = vmatprep.subr.bf16.mxu0 0
      %743 = vmatpush1.bf16.msra.mxu0 %v656
      %744 = vmatprep.subr.bf16.mxu0 0
      %745 = vmatpush1.bf16.msra.mxu0 %v653
      %746 = vmatprep.subr.bf16.mxu0 0
      %747 = vmatpush1.bf16.msra.mxu0 %v650
      %748 = vmatprep.subr.bf16.mxu0 0
      %749 = vmatpush1.bf16.msra.mxu0 %v647
      %750 = vmatprep.subr.bf16.mxu0 0
      %751 = vmatpush1.bf16.msra.mxu0 %v644
      %752 = vmatprep.subr.bf16.mxu0 0
      %753 = vmatpush1.bf16.msra.mxu0 %v641
      %754 = vmatprep.subr.bf16.mxu0 0
      %755 = vmatpush2.bf16.msra.mxu0 0
      %756 = vmatprep.subr.bf16.mxu0 0
      %757 = vmatpush2.bf16.msra.mxu0 0
      %758 = vmatprep.subr.bf16.mxu0 0
      %759 = vmatpush2.bf16.msra.mxu0 0
      %760 = vmatprep.subr.bf16.mxu0 0
      %761 = vmatpush2.bf16.msra.mxu0 0
      %762 = vmatprep.subr.bf16.mxu0 0
      %763 = vmatpush2.bf16.msra.mxu0 0
      %764 = vmatprep.subr.bf16.mxu0 0
      %765 = vmatpush2.bf16.msra.mxu0 0
      %766 = vmatprep.subr.bf16.mxu0 0
      %767 = vmatpush2.bf16.msra.mxu0 0
      %768 = vmatprep.subr.bf16.mxu0 0
      %769 = vmatpush2.bf16.msra.mxu0 %v665
      %770 = vmatprep.mubr.bf16.mxu0 %v695
      %771 = vmatmul.mubr.bf16.gmra.mxu0 %v540
      %v772 = vpop.f32.mrf.mxu0
      %v773 = vadd.f32 %v523, %v772
      %v774 = vpop.f32.mrf.mxu0
      %v775 = vpop.f32.mrf.mxu0
      %v776 = vpop.f32.mrf.mxu0
      %777 = vdwg.mxu0
      %v778 = vsub.f32 0.0, %v732
      %v779 = vsub.f32 0.0, %v734
      %v780 = vsub.f32 0.0, %v773
      %v781 = vmul.f32 %v778, 1.442695
      %v782 = vpow.pop %v781
      %v783 = vmul.f32 %v779, 1.442695
      %v784 = vpow.pop %v783
      %v785 = vmul.f32 %v780, 1.442695
      %v786 = vpow.pop %v785
      %v787 = vadd.f32 %v782, 1.0
      %v788 = vadd.f32 %v784, 1.0
      %v789 = vadd.f32 %v786, 1.0
      %v790 = vrcp.pop %v787
      %v791 = vrcp.pop %v788
      %v792 = vrcp.pop %v789
      %v796 = vcombine.low %v790, %v791
      %v798 = vunpack.c.l.s4 1983009808
      %v799 = vunpack.c.0.s8 %v798
      %v800 = vlaneseq
      %v801 = vshrl.u32 %v800, 7
      %v802 = vsub.s32 %v799, %v801
      %v803 = vrot.slane %v796, %v802
      %v805 = vunpack.c.l.s4 1983009808
      %v806 = vunpack.c.0.s8 %v805
      %v807 = vlaneseq
      %v808 = vshrl.u32 %v807, 7
      %v809 = vsub.s32 %v806, %v808
      %v810 = vrot.slane %v792, %v809
      %v811 = vcombine.low %v803, %v810
      %vm813 = vcmask 1041408
      %vm814 = vcmask 1043458
      %vm815 = vmor %vm814, %vm813
      %vm816 = vcmask 259076
      %vm817 = vmor %vm816, %vm815
      %818 = vst.msk [vmem:[%s206] sm:$0x3f] %vm817, %v811
      %p819 = scmp.lt.s32.totalorder %s18, 1
      %s820 = scalar_select %p819, %s18, 1
      %p821 = scmp.lt.s32.totalorder %s19, 0
      %s822 = scalar_select %p821, %s19, 0
      %s823 = smul.addr %s822, 3
      %s824 = smul.addr %s820, 3
      %s825 = sadd.s32 %s823, %s824
      %s826 = smul.addr %s825, 2
      %s827 = scalar_lea.vmem %s3, %s826
      // Predicated region
      $region33: #{decoder_stage_forward.15} parent=31 // pred_check
        %p828 = pneg %p116
      $region34: #{decoder_stage_forward.15} parent=31 // pred_check_branch
        %830 = sbr.rel (%p828) target = $region36
      $region35: #{decoder_stage_forward.15} parent=31 // pred_region
        _
      $region36: #{decoder_stage_forward.15} parent=31 // pred_fallthru
        _
    $region32: #{decoder_stage_forward.15} parent=5 // pred_fallthru
      _
    %p831 = scmp.le.s32.totalorder 2, %s9
    // Predicated region
    $region37: #{decoder_stage_forward.15} parent=5 // pred_check
      %p832 = pneg %p831
    $region38: #{decoder_stage_forward.15} parent=5 // pred_check_branch
      %834 = sbr.rel (%p832) target = $region40
    $region39: #{decoder_stage_forward.15} parent=5 // pred_region
      %s835 = ssub.s32 %s9, 2
      // Predicated region
      $region41: #{decoder_stage_forward.15} parent=39 // pred_check
        %p836 = pneg %p122
      $region42: #{decoder_stage_forward.15} parent=39 // pred_check_branch
        %838 = sbr.rel (%p836) target = $region44
      $region43: #{decoder_stage_forward.15} parent=39 // pred_region
        %p839 = scmp.lt.s32.totalorder %s20, 1
        %s840 = scalar_select %p839, %s20, 1
        %p841 = scmp.lt.s32.totalorder %s21, 0
        %s842 = scalar_select %p841, %s21, 0
        %s843 = smul.addr %s842, 3
        %s844 = smul.addr %s840, 3
        %s845 = sadd.s32 %s843, %s844
        %s846 = smul.addr %s845, 2
        %s847 = scalar_lea.vmem %s3, %s846
      $region44: #{decoder_stage_forward.15} parent=39 // pred_fallthru
        _
    $region40: #{decoder_stage_forward.15} parent=5 // pred_fallthru
      _
  $region6: #{decoder_stage_forward.15} parent=0 // loop_footer
    %s13 = sadd.s32 1, %s9
  $region7: #{decoder_stage_forward.15} parent=0 // loop_footer_branch
    %8 = sbr.rel target = $region3
  $region8: #{decoder_stage_forward.15} parent=0 // loop_exit
    _

</llo_original>
